<compile_context>
chip_gen: v5e
topology: v5e:2x2
jax: 0.10.0
libtpu: 0.0.40
codegen_flags: <defaults>
</compile_context>

<pallas_src>
import functools

import jax
import jax.numpy as jnp
import numpy as np
from jax.experimental import pallas as pl
from jax.experimental.pallas import tpu as pltpu

EPS = 1e-6
NUM_GROUPS = 32

# MXU matmul operand dtype.  f32 keeps the demo comfortably inside the 5e-2
# reference tolerance; flip to jnp.bfloat16 on v6e/v7x for ~2x MXU throughput
# at larger shapes (accumulation stays f32; GroupNorm stats and softmax stay f32).
MM_DTYPE = jnp.float32


# ----------------------------- in-kernel helpers -----------------------------
def _mm(a, b):
    return jnp.dot(a.astype(MM_DTYPE), b.astype(MM_DTYPE),
                   preferred_element_type=jnp.float32)


def _bmm(spec, a, b):
    return jnp.einsum(spec, a.astype(MM_DTYPE), b.astype(MM_DTYPE),
                      preferred_element_type=jnp.float32)


def _group_norm(x3, gamma, beta):
    """Per-sample GroupNorm.  x3: (T, N, C) f32; gamma/beta: (1, C)."""
    T, N, C = x3.shape
    cs = C // NUM_GROUPS
    inv_cnt = 1.0 / float(N * cs)
    s1 = jnp.sum(x3, axis=1)          # (T, C) per-(sample, channel) sums
    s2 = jnp.sum(x3 * x3, axis=1)     # (T, C)
    if cs == 1:                        # channels_per_group == 1: stats are per-channel
        mean = s1 * inv_cnt
        mean_sq = s2 * inv_cnt
    else:                              # generic group reduction on the VPU/XLU (no amat matmul)
        def gavg(s):
            g = jnp.sum(s.reshape(T, NUM_GROUPS, cs), axis=-1, keepdims=True) * inv_cnt
            return jnp.broadcast_to(g, (T, NUM_GROUPS, cs)).reshape(T, C)
        mean, mean_sq = gavg(s1), gavg(s2)
    var = jnp.maximum(mean_sq - mean * mean, 0.0)   # clamp: E[x^2]-E[x]^2 can dip < 0
    inv = jax.lax.rsqrt(var + EPS)
    return ((x3 - mean[:, None, :]) * inv[:, None, :]
            * gamma.reshape(1, 1, C) + beta.reshape(1, 1, C))


def _softmax_rows(s):
    """Softmax over the last axis; reciprocal goes to the EUP slot."""
    m = jnp.max(s, axis=-1, keepdims=True)
    p = jnp.exp(s - m)
    return p * pl.reciprocal(jnp.sum(p, axis=-1, keepdims=True), approx=True)


# --------------------------------- fused kernel -------------------------------
def _fused_kernel(x_ref,
                  sp_g_ref, sp_b_ref, sp_wqkv_ref, sp_bqkv_ref, sp_wp_ref, sp_bp_ref,
                  tm_g_ref, tm_b_ref, tm_wqkv_ref, tm_bqkv_ref, tm_wp_ref, tm_bp_ref,
                  o_ref, *, T, N, C):
    TN = T * N
    xs = x_ref[0]                       # (T*N, C) original input (kept for both residuals)
    x3 = xs.reshape(T, N, C)

    # ---- spatial branch: GroupNorm + fused QKV + per-frame attention + proj + residual ----
    hn = _group_norm(x3, sp_g_ref[...], sp_b_ref[...])
    qkv = _mm(hn.reshape(TN, C), sp_wqkv_ref[...]) + sp_bqkv_ref[...]     # (T*N, 3C)
    q = qkv[:, 0 * C:1 * C].reshape(T, N, C)        # 1/sqrt(C) already folded into Wq/bq
    k = qkv[:, 1 * C:2 * C].reshape(T, N, C)
    v = qkv[:, 2 * C:3 * C].reshape(T, N, C)
    s = _bmm('tnc,tmc->tnm', q, k)                  # (T, N, N)
    p = _softmax_rows(s)
    attn = _bmm('tnm,tmc->tnc', p, v)               # (T, N, C)
    spatio = xs + _mm(attn.reshape(TN, C), sp_wp_ref[...]) + sp_bp_ref[...]

    # ---- temporal branch: GroupNorm + fused QKV + attention across T + proj + residual ----
    hnt = _group_norm(spatio.reshape(T, N, C), tm_g_ref[...], tm_b_ref[...])
    qkvt = _mm(hnt.reshape(TN, C), tm_wqkv_ref[...]) + tm_bqkv_ref[...]   # (T*N, 3C)
    qt = qkvt[:, 0 * C:1 * C].reshape(T, N, C)
    kt = qkvt[:, 1 * C:2 * C].reshape(T, N, C)
    vt = qkvt[:, 2 * C:3 * C].reshape(T, N, C)

    # Attention over the T axis, batched over the N spatial positions.  T is tiny
    # (temporal_len), so a static unroll of VPU multiplies + lane reductions in the
    # native (T, N, C) layout avoids any in-kernel transpose and any degenerate
    # TxT MXU matmuls (which are drain/latency bound).
    outs = []
    for t1 in range(T):
        logits = jnp.concatenate(
            [jnp.sum(qt[t1] * kt[t2], axis=-1, keepdims=True) for t2 in range(T)],
            axis=-1)                                    # (N, T)
        pr = _softmax_rows(logits)                      # (N, T)
        acc = pr[:, 0:1] * vt[0]
        for t2 in range(1, T):
            acc = acc + pr[:, t2:t2 + 1] * vt[t2]
        outs.append(acc)                                # (N, C)
    attn_t = jnp.concatenate(outs, axis=0)              # (T*N, C), same (t, n) row order as xs

    # proj_out_temp + residual with the ORIGINAL input x (matches `return x + h_`)
    o_ref[0] = xs + _mm(attn_t, tm_wp_ref[...]) + tm_bp_ref[...]


# ------------------------------ pallas wrapper --------------------------------
def run_fused_block(x_btnc, sp, tm, *, T):
    B, TN, C = x_btnc.shape
    N = TN // T
    io_spec = pl.BlockSpec((1, TN, C), lambda b: (b, 0, 0))

    def const(shape):
        return pl.BlockSpec(shape, lambda b, _s=len(shape): (0,) * _s)

    kernel = functools.partial(_fused_kernel, T=T, N=N, C=C)
    return pl.pallas_call(
        kernel,
        out_shape=jax.ShapeDtypeStruct((B, TN, C), jnp.float32),
        grid=(B,),
        in_specs=[io_spec,
                  const((1, C)), const((1, C)), const((C, 3 * C)), const((1, 3 * C)),
                  const((C, C)), const((1, C)),
                  const((1, C)), const((1, C)), const((C, 3 * C)), const((1, 3 * C)),
                  const((C, C)), const((1, C))],
        out_specs=io_spec,
        compiler_params=pltpu.CompilerParams(dimension_semantics=("parallel",)),
    )(x_btnc,
      sp["gn_g"], sp["gn_b"], sp["wqkv"], sp["bqkv"], sp["wp"], sp["bp"],
      tm["gn_g"], tm["gn_b"], tm["wqkv"], tm["bqkv"], tm["wp"], tm["bp"])


def _pack_branch(p, C):
    """Concatenate Wq|Wk|Wv / bq|bk|bv and fold the 1/sqrt(C) scale into the q part."""
    scale = 1.0 / np.sqrt(C)
    wqkv = jnp.concatenate([p["wq"] * scale, p["wk"], p["wv"]], axis=1)   # (C, 3C)
    bqkv = jnp.concatenate([p["bq"] * scale, p["bk"], p["bv"]], axis=1)   # (1, 3C)
    return dict(gn_g=p["gn_g"], gn_b=p["gn_b"], wqkv=wqkv, bqkv=bqkv,
                wp=p["wp"], bp=p["bp"])


# --------------------------------- full model ---------------------------------
def memory_efficient_attn_block_with_temporal(x_nchw, params, temporal_len):
    BT, C, H, W = x_nchw.shape
    T = temporal_len
    B = BT // T
    N = H * W
    sp = _pack_branch(params["spatial"], C)
    tm = _pack_branch(params["temporal"], C)
    # single NCHW -> channels-last layout conversion (inherent to the torch interface)
    x_btnc = jnp.transpose(x_nchw, (0, 2, 3, 1)).reshape(B, T * N, C)
    out = run_fused_block(x_btnc, sp, tm, T=T)
    return jnp.transpose(out.reshape(BT, H, W, C), (0, 3, 1, 2))


# ------------------------------ params / reference ----------------------------
def init_params(key, C):
    keys = iter(jax.random.split(key, 20))

    def conv():
        # weight stored as (C_in, C_out) so the kernel does `x @ w + b`
        w = jax.random.normal(next(keys), (C, C), jnp.float32) / np.sqrt(C)
        b = 0.02 * jax.random.normal(next(keys), (1, C), jnp.float32)
        return w, b

    def branch():
        gn_g = 1.0 + 0.1 * jax.random.normal(next(keys), (1, C), jnp.float32)
        gn_b = 0.05 * jax.random.normal(next(keys), (1, C), jnp.float32)
        wq, bq = conv(); wk, bk = conv(); wv, bv = conv(); wp, bp = conv()
        return dict(gn_g=gn_g, gn_b=gn_b, wq=wq, bq=bq, wk=wk, bk=bk,
                    wv=wv, bv=bv, wp=wp, bp=bp)

    return dict(spatial=branch(), temporal=branch())


def ref_forward(x, params, T):
    """Pure-JAX reference mirroring the PyTorch forward (NCHW)."""
    BT, C, H, W = x.shape
    G = NUM_GROUPS
    N = H * W
    scale = 1.0 / np.sqrt(C)

    def gn(h, g, b):
        hg = h.reshape(BT, G, C // G, H, W)
        m = hg.mean(axis=(2, 3, 4), keepdims=True)
        v = hg.var(axis=(2, 3, 4), keepdims=True)
        hn = ((hg - m) / jnp.sqrt(v + EPS)).reshape(BT, C, H, W)
        return hn * g.reshape(1, C, 1, 1) + b.reshape(1, C, 1, 1)

    def conv(h, w, b):
        return jnp.einsum('bchw,co->bohw', h, w) + b.reshape(1, C, 1, 1)

    sp = params["spatial"]
    h = gn(x, sp["gn_g"], sp["gn_b"])
    q, k, v = conv(h, sp["wq"], sp["bq"]), conv(h, sp["wk"], sp["bk"]), conv(h, sp["wv"], sp["bv"])

    def bnc(t):
        return jnp.transpose(t, (0, 2, 3, 1)).reshape(BT, N, C)

    qs, ks, vs = bnc(q), bnc(k), bnc(v)
    attn = jax.nn.softmax(jnp.einsum('bnc,bmc->bnm', qs, ks) * scale, axis=-1)
    o = jnp.einsum('bnm,bmc->bnc', attn, vs)
    o = jnp.transpose(o.reshape(BT, H, W, C), (0, 3, 1, 2))
    spatio = x + conv(o, sp["wp"], sp["bp"])

    tp = params["temporal"]
    h = gn(spatio, tp["gn_g"], tp["gn_b"])
    q, k, v = conv(h, tp["wq"], tp["bq"]), conv(h, tp["wk"], tp["bk"]), conv(h, tp["wv"], tp["bv"])
    B = BT // T

    def bhwtc(t_):
        return jnp.transpose(t_.reshape(B, T, C, H, W), (0, 3, 4, 1, 2)).reshape(B * H * W, T, C)

    qt, kt, vt = bhwtc(q), bhwtc(k), bhwtc(v)
    attn = jax.nn.softmax(jnp.einsum('xtc,xsc->xts', qt, kt) * scale, axis=-1)
    o = jnp.einsum('xts,xsc->xtc', attn, vt)
    o = jnp.transpose(o.reshape(B, H, W, T, C), (0, 3, 4, 1, 2)).reshape(BT, C, H, W)
    return x + conv(o, tp["wp"], tp["bp"])


# ------------------------------------ main ------------------------------------
if __name__ == "__main__":
    B, T, C, H, W = 2, 5, 32, 8, 8        # in_channels=32 (divisible by 32 groups), temporal_len=5
    BT = B * T

    key = jax.random.PRNGKey(0)
    kx, kp = jax.random.split(key)
    x = jax.random.normal(kx, (BT, C, H, W), jnp.float32)     # NCHW, like PyTorch

    params = init_params(kp, C)

    fwd = jax.jit(lambda a: memory_efficient_attn_block_with_temporal(a, params, T))
    out = jax.block_until_ready(fwd(x))

    ref = jax.block_until_ready(ref_forward(x, params, T))
    assert out.shape == x.shape and out.dtype == x.dtype
    err = float(jnp.max(jnp.abs(out - ref)))
    assert err < 5e-2, f"max abs error too large: {err}"
    print("KERNEL_OK")
</pallas_src>

<mosaic_0001>
module attributes {stable_mosaic.version = 11 : i64} {
  func.func @_fused_kernel(%arg0: i32, %arg1: memref<1x320x32xf32, #tpu.memory_space<vmem>>, %arg2: memref<1x32xf32, #tpu.memory_space<vmem>>, %arg3: memref<1x32xf32, #tpu.memory_space<vmem>>, %arg4: memref<32x96xf32, #tpu.memory_space<vmem>>, %arg5: memref<1x96xf32, #tpu.memory_space<vmem>>, %arg6: memref<32x32xf32, #tpu.memory_space<vmem>>, %arg7: memref<1x32xf32, #tpu.memory_space<vmem>>, %arg8: memref<1x32xf32, #tpu.memory_space<vmem>>, %arg9: memref<1x32xf32, #tpu.memory_space<vmem>>, %arg10: memref<32x96xf32, #tpu.memory_space<vmem>>, %arg11: memref<1x96xf32, #tpu.memory_space<vmem>>, %arg12: memref<32x32xf32, #tpu.memory_space<vmem>>, %arg13: memref<1x32xf32, #tpu.memory_space<vmem>>, %arg14: memref<1x320x32xf32, #tpu.memory_space<vmem>>) attributes {dimension_semantics = [#tpu.dimension_semantics<parallel>], iteration_bounds = array<i64: 2>, scalar_prefetch = 0 : i64, scratch_operands = 0 : i64, tpu.core_type = #tpu.core_type<tc>, window_params = [{transform_indices = @transform_0, window_bounds = array<i64: 1, 320, 32>}, {pipeline_mode = #tpu.pipeline_mode<synchronous>, transform_indices = @transform_1, window_bounds = array<i64: 1, 32>}, {pipeline_mode = #tpu.pipeline_mode<synchronous>, transform_indices = @transform_2, window_bounds = array<i64: 1, 32>}, {pipeline_mode = #tpu.pipeline_mode<synchronous>, transform_indices = @transform_3, window_bounds = array<i64: 32, 96>}, {pipeline_mode = #tpu.pipeline_mode<synchronous>, transform_indices = @transform_4, window_bounds = array<i64: 1, 96>}, {pipeline_mode = #tpu.pipeline_mode<synchronous>, transform_indices = @transform_5, window_bounds = array<i64: 32, 32>}, {pipeline_mode = #tpu.pipeline_mode<synchronous>, transform_indices = @transform_6, window_bounds = array<i64: 1, 32>}, {pipeline_mode = #tpu.pipeline_mode<synchronous>, transform_indices = @transform_7, window_bounds = array<i64: 1, 32>}, {pipeline_mode = #tpu.pipeline_mode<synchronous>, transform_indices = @transform_8, window_bounds = array<i64: 1, 32>}, {pipeline_mode = #tpu.pipeline_mode<synchronous>, transform_indices = @transform_9, window_bounds = array<i64: 32, 96>}, {pipeline_mode = #tpu.pipeline_mode<synchronous>, transform_indices = @transform_10, window_bounds = array<i64: 1, 96>}, {pipeline_mode = #tpu.pipeline_mode<synchronous>, transform_indices = @transform_11, window_bounds = array<i64: 32, 32>}, {pipeline_mode = #tpu.pipeline_mode<synchronous>, transform_indices = @transform_12, window_bounds = array<i64: 1, 32>}, {transform_indices = @transform_13, window_bounds = array<i64: 1, 320, 32>}]} {
    %c0 = arith.constant 0 : index
    %c0_0 = arith.constant 0 : index
    %c0_1 = arith.constant 0 : index
    %0 = vector.load %arg1[%c0, %c0_0, %c0_1] : memref<1x320x32xf32, #tpu.memory_space<vmem>>, vector<1x320x32xf32>
    %1 = vector.shape_cast %0 : vector<1x320x32xf32> to vector<320x32xf32>
    %2 = vector.shape_cast %1 : vector<320x32xf32> to vector<5x64x32xf32>
    %c0_2 = arith.constant 0 : index
    %c0_3 = arith.constant 0 : index
    %3 = vector.load %arg2[%c0_2, %c0_3] : memref<1x32xf32, #tpu.memory_space<vmem>>, vector<1x32xf32>
    %c0_4 = arith.constant 0 : index
    %c0_5 = arith.constant 0 : index
    %4 = vector.load %arg3[%c0_4, %c0_5] : memref<1x32xf32, #tpu.memory_space<vmem>>, vector<1x32xf32>
    %cst = arith.constant dense<0.000000e+00> : vector<5x32xf32>
    %5 = vector.multi_reduction <add>, %2, %cst [1] : vector<5x64x32xf32> to vector<5x32xf32>
    %6 = arith.mulf %2, %2 : vector<5x64x32xf32>
    %cst_6 = arith.constant dense<0.000000e+00> : vector<5x32xf32>
    %7 = vector.multi_reduction <add>, %6, %cst_6 [1] : vector<5x64x32xf32> to vector<5x32xf32>
    %cst_7 = arith.constant 1.562500e-02 : f32
    %8 = vector.broadcast %cst_7 : f32 to vector<5x32xf32>
    %9 = arith.mulf %5, %8 : vector<5x32xf32>
    %cst_8 = arith.constant 1.562500e-02 : f32
    %10 = vector.broadcast %cst_8 : f32 to vector<5x32xf32>
    %11 = arith.mulf %7, %10 : vector<5x32xf32>
    %12 = arith.mulf %9, %9 : vector<5x32xf32>
    %13 = arith.subf %11, %12 : vector<5x32xf32>
    %cst_9 = arith.constant 0.000000e+00 : f32
    %14 = vector.broadcast %cst_9 : f32 to vector<5x32xf32>
    %15 = arith.maximumf %13, %14 : vector<5x32xf32>
    %cst_10 = arith.constant 9.99999997E-7 : f32
    %16 = vector.broadcast %cst_10 : f32 to vector<5x32xf32>
    %17 = arith.addf %15, %16 : vector<5x32xf32>
    %18 = math.rsqrt %17 : vector<5x32xf32>
    %19 = vector.shape_cast %9 : vector<5x32xf32> to vector<5x1x32xf32>
    %20 = vector.broadcast %19 : vector<5x1x32xf32> to vector<5x64x32xf32>
    %21 = arith.subf %2, %20 : vector<5x64x32xf32>
    %22 = vector.shape_cast %18 : vector<5x32xf32> to vector<5x1x32xf32>
    %23 = vector.broadcast %22 : vector<5x1x32xf32> to vector<5x64x32xf32>
    %24 = arith.mulf %21, %23 : vector<5x64x32xf32>
    %25 = vector.shape_cast %3 : vector<1x32xf32> to vector<1x1x32xf32>
    %26 = vector.broadcast %25 : vector<1x1x32xf32> to vector<5x64x32xf32>
    %27 = arith.mulf %24, %26 : vector<5x64x32xf32>
    %28 = vector.shape_cast %4 : vector<1x32xf32> to vector<1x1x32xf32>
    %29 = vector.broadcast %28 : vector<1x1x32xf32> to vector<5x64x32xf32>
    %30 = arith.addf %27, %29 : vector<5x64x32xf32>
    %31 = vector.shape_cast %30 : vector<5x64x32xf32> to vector<320x32xf32>
    %c0_11 = arith.constant 0 : index
    %c0_12 = arith.constant 0 : index
    %32 = vector.load %arg4[%c0_11, %c0_12] : memref<32x96xf32, #tpu.memory_space<vmem>>, vector<32x96xf32>
    %cst_13 = arith.constant dense<0.000000e+00> : vector<320x96xf32>
    %33 = tpu.matmul %31, %32, %cst_13 {dimension_numbers = #tpu.dot_dimension_numbers<[1], [0], [0], [1], [0, 0, 1, 1], [], []>} : vector<320x32xf32>, vector<32x96xf32>, vector<320x96xf32> -> vector<320x96xf32>
    %c0_14 = arith.constant 0 : index
    %c0_15 = arith.constant 0 : index
    %34 = vector.load %arg5[%c0_14, %c0_15] : memref<1x96xf32, #tpu.memory_space<vmem>>, vector<1x96xf32>
    %35 = vector.broadcast %34 : vector<1x96xf32> to vector<320x96xf32>
    %36 = arith.addf %33, %35 : vector<320x96xf32>
    %37 = vector.extract_strided_slice %36 {offsets = [0, 0], sizes = [320, 32], strides = [1, 1]} : vector<320x96xf32> to vector<320x32xf32>
    %38 = vector.shape_cast %37 : vector<320x32xf32> to vector<5x64x32xf32>
    %39 = vector.extract_strided_slice %36 {offsets = [0, 32], sizes = [320, 32], strides = [1, 1]} : vector<320x96xf32> to vector<320x32xf32>
    %40 = vector.shape_cast %39 : vector<320x32xf32> to vector<5x64x32xf32>
    %41 = vector.extract_strided_slice %36 {offsets = [0, 64], sizes = [320, 32], strides = [1, 1]} : vector<320x96xf32> to vector<320x32xf32>
    %42 = vector.shape_cast %41 : vector<320x32xf32> to vector<5x64x32xf32>
    "tpu.trace_start"() <{level = 10 : i32, message = "tnc,tmc->tnm"}> : () -> ()
    %cst_16 = arith.constant dense<0.000000e+00> : vector<5x64x64xf32>
    %43 = tpu.matmul %38, %40, %cst_16 {dimension_numbers = #tpu.dot_dimension_numbers<[2], [2], [1], [1], [0, 0, 0, 1, 1, 1], [0], [0]>} : vector<5x64x32xf32>, vector<5x64x32xf32>, vector<5x64x64xf32> -> vector<5x64x64xf32>
    "tpu.trace_stop"() : () -> ()
    %cst_17 = arith.constant dense<0xFF800000> : vector<5x64xf32>
    %44 = vector.multi_reduction <maximumf>, %43, %cst_17 [2] : vector<5x64x64xf32> to vector<5x64xf32>
    %45 = vector.shape_cast %44 : vector<5x64xf32> to vector<5x64x1xf32>
    %46 = vector.broadcast %45 : vector<5x64x1xf32> to vector<5x64x64xf32>
    %47 = arith.subf %43, %46 : vector<5x64x64xf32>
    %48 = math.exp %47 : vector<5x64x64xf32>
    %cst_18 = arith.constant dense<0.000000e+00> : vector<5x64xf32>
    %49 = vector.multi_reduction <add>, %48, %cst_18 [2] : vector<5x64x64xf32> to vector<5x64xf32>
    %50 = vector.shape_cast %49 : vector<5x64xf32> to vector<5x64x1xf32>
    %51 = tpu.reciprocal %50 {approx = true} : vector<5x64x1xf32> -> vector<5x64x1xf32>
    %52 = vector.broadcast %51 : vector<5x64x1xf32> to vector<5x64x64xf32>
    %53 = arith.mulf %48, %52 : vector<5x64x64xf32>
    "tpu.trace_start"() <{level = 10 : i32, message = "tnm,tmc->tnc"}> : () -> ()
    %cst_19 = arith.constant dense<0.000000e+00> : vector<5x64x32xf32>
    %54 = tpu.matmul %53, %42, %cst_19 {dimension_numbers = #tpu.dot_dimension_numbers<[2], [1], [1], [2], [0, 0, 0, 1, 1, 2], [0], [0]>} : vector<5x64x64xf32>, vector<5x64x32xf32>, vector<5x64x32xf32> -> vector<5x64x32xf32>
    "tpu.trace_stop"() : () -> ()
    %55 = vector.shape_cast %54 : vector<5x64x32xf32> to vector<320x32xf32>
    %c0_20 = arith.constant 0 : index
    %c0_21 = arith.constant 0 : index
    %56 = vector.load %arg6[%c0_20, %c0_21] : memref<32x32xf32, #tpu.memory_space<vmem>>, vector<32x32xf32>
    %cst_22 = arith.constant dense<0.000000e+00> : vector<320x32xf32>
    %57 = tpu.matmul %55, %56, %cst_22 {dimension_numbers = #tpu.dot_dimension_numbers<[1], [0], [0], [1], [0, 0, 1, 1], [], []>} : vector<320x32xf32>, vector<32x32xf32>, vector<320x32xf32> -> vector<320x32xf32>
    %58 = arith.addf %1, %57 : vector<320x32xf32>
    %c0_23 = arith.constant 0 : index
    %c0_24 = arith.constant 0 : index
    %59 = vector.load %arg7[%c0_23, %c0_24] : memref<1x32xf32, #tpu.memory_space<vmem>>, vector<1x32xf32>
    %60 = vector.broadcast %59 : vector<1x32xf32> to vector<320x32xf32>
    %61 = arith.addf %58, %60 : vector<320x32xf32>
    %62 = vector.shape_cast %61 : vector<320x32xf32> to vector<5x64x32xf32>
    %c0_25 = arith.constant 0 : index
    %c0_26 = arith.constant 0 : index
    %63 = vector.load %arg8[%c0_25, %c0_26] : memref<1x32xf32, #tpu.memory_space<vmem>>, vector<1x32xf32>
    %c0_27 = arith.constant 0 : index
    %c0_28 = arith.constant 0 : index
    %64 = vector.load %arg9[%c0_27, %c0_28] : memref<1x32xf32, #tpu.memory_space<vmem>>, vector<1x32xf32>
    %cst_29 = arith.constant dense<0.000000e+00> : vector<5x32xf32>
    %65 = vector.multi_reduction <add>, %62, %cst_29 [1] : vector<5x64x32xf32> to vector<5x32xf32>
    %66 = arith.mulf %62, %62 : vector<5x64x32xf32>
    %cst_30 = arith.constant dense<0.000000e+00> : vector<5x32xf32>
    %67 = vector.multi_reduction <add>, %66, %cst_30 [1] : vector<5x64x32xf32> to vector<5x32xf32>
    %cst_31 = arith.constant 1.562500e-02 : f32
    %68 = vector.broadcast %cst_31 : f32 to vector<5x32xf32>
    %69 = arith.mulf %65, %68 : vector<5x32xf32>
    %cst_32 = arith.constant 1.562500e-02 : f32
    %70 = vector.broadcast %cst_32 : f32 to vector<5x32xf32>
    %71 = arith.mulf %67, %70 : vector<5x32xf32>
    %72 = arith.mulf %69, %69 : vector<5x32xf32>
    %73 = arith.subf %71, %72 : vector<5x32xf32>
    %cst_33 = arith.constant 0.000000e+00 : f32
    %74 = vector.broadcast %cst_33 : f32 to vector<5x32xf32>
    %75 = arith.maximumf %73, %74 : vector<5x32xf32>
    %cst_34 = arith.constant 9.99999997E-7 : f32
    %76 = vector.broadcast %cst_34 : f32 to vector<5x32xf32>
    %77 = arith.addf %75, %76 : vector<5x32xf32>
    %78 = math.rsqrt %77 : vector<5x32xf32>
    %79 = vector.shape_cast %69 : vector<5x32xf32> to vector<5x1x32xf32>
    %80 = vector.broadcast %79 : vector<5x1x32xf32> to vector<5x64x32xf32>
    %81 = arith.subf %62, %80 : vector<5x64x32xf32>
    %82 = vector.shape_cast %78 : vector<5x32xf32> to vector<5x1x32xf32>
    %83 = vector.broadcast %82 : vector<5x1x32xf32> to vector<5x64x32xf32>
    %84 = arith.mulf %81, %83 : vector<5x64x32xf32>
    %85 = vector.shape_cast %63 : vector<1x32xf32> to vector<1x1x32xf32>
    %86 = vector.broadcast %85 : vector<1x1x32xf32> to vector<5x64x32xf32>
    %87 = arith.mulf %84, %86 : vector<5x64x32xf32>
    %88 = vector.shape_cast %64 : vector<1x32xf32> to vector<1x1x32xf32>
    %89 = vector.broadcast %88 : vector<1x1x32xf32> to vector<5x64x32xf32>
    %90 = arith.addf %87, %89 : vector<5x64x32xf32>
    %91 = vector.shape_cast %90 : vector<5x64x32xf32> to vector<320x32xf32>
    %c0_35 = arith.constant 0 : index
    %c0_36 = arith.constant 0 : index
    %92 = vector.load %arg10[%c0_35, %c0_36] : memref<32x96xf32, #tpu.memory_space<vmem>>, vector<32x96xf32>
    %cst_37 = arith.constant dense<0.000000e+00> : vector<320x96xf32>
    %93 = tpu.matmul %91, %92, %cst_37 {dimension_numbers = #tpu.dot_dimension_numbers<[1], [0], [0], [1], [0, 0, 1, 1], [], []>} : vector<320x32xf32>, vector<32x96xf32>, vector<320x96xf32> -> vector<320x96xf32>
    %c0_38 = arith.constant 0 : index
    %c0_39 = arith.constant 0 : index
    %94 = vector.load %arg11[%c0_38, %c0_39] : memref<1x96xf32, #tpu.memory_space<vmem>>, vector<1x96xf32>
    %95 = vector.broadcast %94 : vector<1x96xf32> to vector<320x96xf32>
    %96 = arith.addf %93, %95 : vector<320x96xf32>
    %97 = vector.extract_strided_slice %96 {offsets = [0, 0], sizes = [320, 32], strides = [1, 1]} : vector<320x96xf32> to vector<320x32xf32>
    %98 = vector.shape_cast %97 : vector<320x32xf32> to vector<5x64x32xf32>
    %99 = vector.extract_strided_slice %96 {offsets = [0, 32], sizes = [320, 32], strides = [1, 1]} : vector<320x96xf32> to vector<320x32xf32>
    %100 = vector.shape_cast %99 : vector<320x32xf32> to vector<5x64x32xf32>
    %101 = vector.extract_strided_slice %96 {offsets = [0, 64], sizes = [320, 32], strides = [1, 1]} : vector<320x96xf32> to vector<320x32xf32>
    %102 = vector.shape_cast %101 : vector<320x32xf32> to vector<5x64x32xf32>
    %103 = vector.extract_strided_slice %98 {offsets = [0, 0, 0], sizes = [1, 64, 32], strides = [1, 1, 1]} : vector<5x64x32xf32> to vector<1x64x32xf32>
    %104 = vector.shape_cast %103 : vector<1x64x32xf32> to vector<64x32xf32>
    %105 = vector.extract_strided_slice %100 {offsets = [0, 0, 0], sizes = [1, 64, 32], strides = [1, 1, 1]} : vector<5x64x32xf32> to vector<1x64x32xf32>
    %106 = vector.shape_cast %105 : vector<1x64x32xf32> to vector<64x32xf32>
    %107 = arith.mulf %104, %106 : vector<64x32xf32>
    %cst_40 = arith.constant dense<0.000000e+00> : vector<64xf32>
    %108 = vector.multi_reduction <add>, %107, %cst_40 [1] : vector<64x32xf32> to vector<64xf32>
    %109 = vector.shape_cast %108 : vector<64xf32> to vector<64x1xf32>
    %110 = vector.extract_strided_slice %98 {offsets = [0, 0, 0], sizes = [1, 64, 32], strides = [1, 1, 1]} : vector<5x64x32xf32> to vector<1x64x32xf32>
    %111 = vector.shape_cast %110 : vector<1x64x32xf32> to vector<64x32xf32>
    %112 = vector.extract_strided_slice %100 {offsets = [1, 0, 0], sizes = [1, 64, 32], strides = [1, 1, 1]} : vector<5x64x32xf32> to vector<1x64x32xf32>
    %113 = vector.shape_cast %112 : vector<1x64x32xf32> to vector<64x32xf32>
    %114 = arith.mulf %111, %113 : vector<64x32xf32>
    %cst_41 = arith.constant dense<0.000000e+00> : vector<64xf32>
    %115 = vector.multi_reduction <add>, %114, %cst_41 [1] : vector<64x32xf32> to vector<64xf32>
    %116 = vector.shape_cast %115 : vector<64xf32> to vector<64x1xf32>
    %117 = vector.extract_strided_slice %98 {offsets = [0, 0, 0], sizes = [1, 64, 32], strides = [1, 1, 1]} : vector<5x64x32xf32> to vector<1x64x32xf32>
    %118 = vector.shape_cast %117 : vector<1x64x32xf32> to vector<64x32xf32>
    %119 = vector.extract_strided_slice %100 {offsets = [2, 0, 0], sizes = [1, 64, 32], strides = [1, 1, 1]} : vector<5x64x32xf32> to vector<1x64x32xf32>
    %120 = vector.shape_cast %119 : vector<1x64x32xf32> to vector<64x32xf32>
    %121 = arith.mulf %118, %120 : vector<64x32xf32>
    %cst_42 = arith.constant dense<0.000000e+00> : vector<64xf32>
    %122 = vector.multi_reduction <add>, %121, %cst_42 [1] : vector<64x32xf32> to vector<64xf32>
    %123 = vector.shape_cast %122 : vector<64xf32> to vector<64x1xf32>
    %124 = vector.extract_strided_slice %98 {offsets = [0, 0, 0], sizes = [1, 64, 32], strides = [1, 1, 1]} : vector<5x64x32xf32> to vector<1x64x32xf32>
    %125 = vector.shape_cast %124 : vector<1x64x32xf32> to vector<64x32xf32>
    %126 = vector.extract_strided_slice %100 {offsets = [3, 0, 0], sizes = [1, 64, 32], strides = [1, 1, 1]} : vector<5x64x32xf32> to vector<1x64x32xf32>
    %127 = vector.shape_cast %126 : vector<1x64x32xf32> to vector<64x32xf32>
    %128 = arith.mulf %125, %127 : vector<64x32xf32>
    %cst_43 = arith.constant dense<0.000000e+00> : vector<64xf32>
    %129 = vector.multi_reduction <add>, %128, %cst_43 [1] : vector<64x32xf32> to vector<64xf32>
    %130 = vector.shape_cast %129 : vector<64xf32> to vector<64x1xf32>
    %131 = vector.extract_strided_slice %98 {offsets = [0, 0, 0], sizes = [1, 64, 32], strides = [1, 1, 1]} : vector<5x64x32xf32> to vector<1x64x32xf32>
    %132 = vector.shape_cast %131 : vector<1x64x32xf32> to vector<64x32xf32>
    %133 = vector.extract_strided_slice %100 {offsets = [4, 0, 0], sizes = [1, 64, 32], strides = [1, 1, 1]} : vector<5x64x32xf32> to vector<1x64x32xf32>
    %134 = vector.shape_cast %133 : vector<1x64x32xf32> to vector<64x32xf32>
    %135 = arith.mulf %132, %134 : vector<64x32xf32>
    %cst_44 = arith.constant dense<0.000000e+00> : vector<64xf32>
    %136 = vector.multi_reduction <add>, %135, %cst_44 [1] : vector<64x32xf32> to vector<64xf32>
    %137 = vector.shape_cast %136 : vector<64xf32> to vector<64x1xf32>
    %138 = tpu.concatenate %109, %116, %123, %130, %137 in 1 : vector<64x1xf32>, vector<64x1xf32>, vector<64x1xf32>, vector<64x1xf32>, vector<64x1xf32> -> vector<64x5xf32>
    %cst_45 = arith.constant dense<0xFF800000> : vector<64xf32>
    %139 = vector.multi_reduction <maximumf>, %138, %cst_45 [1] : vector<64x5xf32> to vector<64xf32>
    %140 = vector.shape_cast %139 : vector<64xf32> to vector<64x1xf32>
    %141 = vector.broadcast %140 : vector<64x1xf32> to vector<64x5xf32>
    %142 = arith.subf %138, %141 : vector<64x5xf32>
    %143 = math.exp %142 : vector<64x5xf32>
    %cst_46 = arith.constant dense<0.000000e+00> : vector<64xf32>
    %144 = vector.multi_reduction <add>, %143, %cst_46 [1] : vector<64x5xf32> to vector<64xf32>
    %145 = vector.shape_cast %144 : vector<64xf32> to vector<64x1xf32>
    %146 = tpu.reciprocal %145 {approx = true} : vector<64x1xf32> -> vector<64x1xf32>
    %147 = vector.broadcast %146 : vector<64x1xf32> to vector<64x5xf32>
    %148 = arith.mulf %143, %147 : vector<64x5xf32>
    %149 = vector.extract_strided_slice %148 {offsets = [0, 0], sizes = [64, 1], strides = [1, 1]} : vector<64x5xf32> to vector<64x1xf32>
    %150 = vector.extract_strided_slice %102 {offsets = [0, 0, 0], sizes = [1, 64, 32], strides = [1, 1, 1]} : vector<5x64x32xf32> to vector<1x64x32xf32>
    %151 = vector.shape_cast %150 : vector<1x64x32xf32> to vector<64x32xf32>
    %152 = vector.broadcast %149 : vector<64x1xf32> to vector<64x32xf32>
    %153 = arith.mulf %152, %151 : vector<64x32xf32>
    %154 = vector.extract_strided_slice %148 {offsets = [0, 1], sizes = [64, 1], strides = [1, 1]} : vector<64x5xf32> to vector<64x1xf32>
    %155 = vector.extract_strided_slice %102 {offsets = [1, 0, 0], sizes = [1, 64, 32], strides = [1, 1, 1]} : vector<5x64x32xf32> to vector<1x64x32xf32>
    %156 = vector.shape_cast %155 : vector<1x64x32xf32> to vector<64x32xf32>
    %157 = vector.broadcast %154 : vector<64x1xf32> to vector<64x32xf32>
    %158 = arith.mulf %157, %156 : vector<64x32xf32>
    %159 = arith.addf %153, %158 : vector<64x32xf32>
    %160 = vector.extract_strided_slice %148 {offsets = [0, 2], sizes = [64, 1], strides = [1, 1]} : vector<64x5xf32> to vector<64x1xf32>
    %161 = vector.extract_strided_slice %102 {offsets = [2, 0, 0], sizes = [1, 64, 32], strides = [1, 1, 1]} : vector<5x64x32xf32> to vector<1x64x32xf32>
    %162 = vector.shape_cast %161 : vector<1x64x32xf32> to vector<64x32xf32>
    %163 = vector.broadcast %160 : vector<64x1xf32> to vector<64x32xf32>
    %164 = arith.mulf %163, %162 : vector<64x32xf32>
    %165 = arith.addf %159, %164 : vector<64x32xf32>
    %166 = vector.extract_strided_slice %148 {offsets = [0, 3], sizes = [64, 1], strides = [1, 1]} : vector<64x5xf32> to vector<64x1xf32>
    %167 = vector.extract_strided_slice %102 {offsets = [3, 0, 0], sizes = [1, 64, 32], strides = [1, 1, 1]} : vector<5x64x32xf32> to vector<1x64x32xf32>
    %168 = vector.shape_cast %167 : vector<1x64x32xf32> to vector<64x32xf32>
    %169 = vector.broadcast %166 : vector<64x1xf32> to vector<64x32xf32>
    %170 = arith.mulf %169, %168 : vector<64x32xf32>
    %171 = arith.addf %165, %170 : vector<64x32xf32>
    %172 = vector.extract_strided_slice %148 {offsets = [0, 4], sizes = [64, 1], strides = [1, 1]} : vector<64x5xf32> to vector<64x1xf32>
    %173 = vector.extract_strided_slice %102 {offsets = [4, 0, 0], sizes = [1, 64, 32], strides = [1, 1, 1]} : vector<5x64x32xf32> to vector<1x64x32xf32>
    %174 = vector.shape_cast %173 : vector<1x64x32xf32> to vector<64x32xf32>
    %175 = vector.broadcast %172 : vector<64x1xf32> to vector<64x32xf32>
    %176 = arith.mulf %175, %174 : vector<64x32xf32>
    %177 = arith.addf %171, %176 : vector<64x32xf32>
    %178 = vector.extract_strided_slice %98 {offsets = [1, 0, 0], sizes = [1, 64, 32], strides = [1, 1, 1]} : vector<5x64x32xf32> to vector<1x64x32xf32>
    %179 = vector.shape_cast %178 : vector<1x64x32xf32> to vector<64x32xf32>
    %180 = vector.extract_strided_slice %100 {offsets = [0, 0, 0], sizes = [1, 64, 32], strides = [1, 1, 1]} : vector<5x64x32xf32> to vector<1x64x32xf32>
    %181 = vector.shape_cast %180 : vector<1x64x32xf32> to vector<64x32xf32>
    %182 = arith.mulf %179, %181 : vector<64x32xf32>
    %cst_47 = arith.constant dense<0.000000e+00> : vector<64xf32>
    %183 = vector.multi_reduction <add>, %182, %cst_47 [1] : vector<64x32xf32> to vector<64xf32>
    %184 = vector.shape_cast %183 : vector<64xf32> to vector<64x1xf32>
    %185 = vector.extract_strided_slice %98 {offsets = [1, 0, 0], sizes = [1, 64, 32], strides = [1, 1, 1]} : vector<5x64x32xf32> to vector<1x64x32xf32>
    %186 = vector.shape_cast %185 : vector<1x64x32xf32> to vector<64x32xf32>
    %187 = vector.extract_strided_slice %100 {offsets = [1, 0, 0], sizes = [1, 64, 32], strides = [1, 1, 1]} : vector<5x64x32xf32> to vector<1x64x32xf32>
    %188 = vector.shape_cast %187 : vector<1x64x32xf32> to vector<64x32xf32>
    %189 = arith.mulf %186, %188 : vector<64x32xf32>
    %cst_48 = arith.constant dense<0.000000e+00> : vector<64xf32>
    %190 = vector.multi_reduction <add>, %189, %cst_48 [1] : vector<64x32xf32> to vector<64xf32>
    %191 = vector.shape_cast %190 : vector<64xf32> to vector<64x1xf32>
    %192 = vector.extract_strided_slice %98 {offsets = [1, 0, 0], sizes = [1, 64, 32], strides = [1, 1, 1]} : vector<5x64x32xf32> to vector<1x64x32xf32>
    %193 = vector.shape_cast %192 : vector<1x64x32xf32> to vector<64x32xf32>
    %194 = vector.extract_strided_slice %100 {offsets = [2, 0, 0], sizes = [1, 64, 32], strides = [1, 1, 1]} : vector<5x64x32xf32> to vector<1x64x32xf32>
    %195 = vector.shape_cast %194 : vector<1x64x32xf32> to vector<64x32xf32>
    %196 = arith.mulf %193, %195 : vector<64x32xf32>
    %cst_49 = arith.constant dense<0.000000e+00> : vector<64xf32>
    %197 = vector.multi_reduction <add>, %196, %cst_49 [1] : vector<64x32xf32> to vector<64xf32>
    %198 = vector.shape_cast %197 : vector<64xf32> to vector<64x1xf32>
    %199 = vector.extract_strided_slice %98 {offsets = [1, 0, 0], sizes = [1, 64, 32], strides = [1, 1, 1]} : vector<5x64x32xf32> to vector<1x64x32xf32>
    %200 = vector.shape_cast %199 : vector<1x64x32xf32> to vector<64x32xf32>
    %201 = vector.extract_strided_slice %100 {offsets = [3, 0, 0], sizes = [1, 64, 32], strides = [1, 1, 1]} : vector<5x64x32xf32> to vector<1x64x32xf32>
    %202 = vector.shape_cast %201 : vector<1x64x32xf32> to vector<64x32xf32>
    %203 = arith.mulf %200, %202 : vector<64x32xf32>
    %cst_50 = arith.constant dense<0.000000e+00> : vector<64xf32>
    %204 = vector.multi_reduction <add>, %203, %cst_50 [1] : vector<64x32xf32> to vector<64xf32>
    %205 = vector.shape_cast %204 : vector<64xf32> to vector<64x1xf32>
    %206 = vector.extract_strided_slice %98 {offsets = [1, 0, 0], sizes = [1, 64, 32], strides = [1, 1, 1]} : vector<5x64x32xf32> to vector<1x64x32xf32>
    %207 = vector.shape_cast %206 : vector<1x64x32xf32> to vector<64x32xf32>
    %208 = vector.extract_strided_slice %100 {offsets = [4, 0, 0], sizes = [1, 64, 32], strides = [1, 1, 1]} : vector<5x64x32xf32> to vector<1x64x32xf32>
    %209 = vector.shape_cast %208 : vector<1x64x32xf32> to vector<64x32xf32>
    %210 = arith.mulf %207, %209 : vector<64x32xf32>
    %cst_51 = arith.constant dense<0.000000e+00> : vector<64xf32>
    %211 = vector.multi_reduction <add>, %210, %cst_51 [1] : vector<64x32xf32> to vector<64xf32>
    %212 = vector.shape_cast %211 : vector<64xf32> to vector<64x1xf32>
    %213 = tpu.concatenate %184, %191, %198, %205, %212 in 1 : vector<64x1xf32>, vector<64x1xf32>, vector<64x1xf32>, vector<64x1xf32>, vector<64x1xf32> -> vector<64x5xf32>
    %cst_52 = arith.constant dense<0xFF800000> : vector<64xf32>
    %214 = vector.multi_reduction <maximumf>, %213, %cst_52 [1] : vector<64x5xf32> to vector<64xf32>
    %215 = vector.shape_cast %214 : vector<64xf32> to vector<64x1xf32>
    %216 = vector.broadcast %215 : vector<64x1xf32> to vector<64x5xf32>
    %217 = arith.subf %213, %216 : vector<64x5xf32>
    %218 = math.exp %217 : vector<64x5xf32>
    %cst_53 = arith.constant dense<0.000000e+00> : vector<64xf32>
    %219 = vector.multi_reduction <add>, %218, %cst_53 [1] : vector<64x5xf32> to vector<64xf32>
    %220 = vector.shape_cast %219 : vector<64xf32> to vector<64x1xf32>
    %221 = tpu.reciprocal %220 {approx = true} : vector<64x1xf32> -> vector<64x1xf32>
    %222 = vector.broadcast %221 : vector<64x1xf32> to vector<64x5xf32>
    %223 = arith.mulf %218, %222 : vector<64x5xf32>
    %224 = vector.extract_strided_slice %223 {offsets = [0, 0], sizes = [64, 1], strides = [1, 1]} : vector<64x5xf32> to vector<64x1xf32>
    %225 = vector.extract_strided_slice %102 {offsets = [0, 0, 0], sizes = [1, 64, 32], strides = [1, 1, 1]} : vector<5x64x32xf32> to vector<1x64x32xf32>
    %226 = vector.shape_cast %225 : vector<1x64x32xf32> to vector<64x32xf32>
    %227 = vector.broadcast %224 : vector<64x1xf32> to vector<64x32xf32>
    %228 = arith.mulf %227, %226 : vector<64x32xf32>
    %229 = vector.extract_strided_slice %223 {offsets = [0, 1], sizes = [64, 1], strides = [1, 1]} : vector<64x5xf32> to vector<64x1xf32>
    %230 = vector.extract_strided_slice %102 {offsets = [1, 0, 0], sizes = [1, 64, 32], strides = [1, 1, 1]} : vector<5x64x32xf32> to vector<1x64x32xf32>
    %231 = vector.shape_cast %230 : vector<1x64x32xf32> to vector<64x32xf32>
    %232 = vector.broadcast %229 : vector<64x1xf32> to vector<64x32xf32>
    %233 = arith.mulf %232, %231 : vector<64x32xf32>
    %234 = arith.addf %228, %233 : vector<64x32xf32>
    %235 = vector.extract_strided_slice %223 {offsets = [0, 2], sizes = [64, 1], strides = [1, 1]} : vector<64x5xf32> to vector<64x1xf32>
    %236 = vector.extract_strided_slice %102 {offsets = [2, 0, 0], sizes = [1, 64, 32], strides = [1, 1, 1]} : vector<5x64x32xf32> to vector<1x64x32xf32>
    %237 = vector.shape_cast %236 : vector<1x64x32xf32> to vector<64x32xf32>
    %238 = vector.broadcast %235 : vector<64x1xf32> to vector<64x32xf32>
    %239 = arith.mulf %238, %237 : vector<64x32xf32>
    %240 = arith.addf %234, %239 : vector<64x32xf32>
    %241 = vector.extract_strided_slice %223 {offsets = [0, 3], sizes = [64, 1], strides = [1, 1]} : vector<64x5xf32> to vector<64x1xf32>
    %242 = vector.extract_strided_slice %102 {offsets = [3, 0, 0], sizes = [1, 64, 32], strides = [1, 1, 1]} : vector<5x64x32xf32> to vector<1x64x32xf32>
    %243 = vector.shape_cast %242 : vector<1x64x32xf32> to vector<64x32xf32>
    %244 = vector.broadcast %241 : vector<64x1xf32> to vector<64x32xf32>
    %245 = arith.mulf %244, %243 : vector<64x32xf32>
    %246 = arith.addf %240, %245 : vector<64x32xf32>
    %247 = vector.extract_strided_slice %223 {offsets = [0, 4], sizes = [64, 1], strides = [1, 1]} : vector<64x5xf32> to vector<64x1xf32>
    %248 = vector.extract_strided_slice %102 {offsets = [4, 0, 0], sizes = [1, 64, 32], strides = [1, 1, 1]} : vector<5x64x32xf32> to vector<1x64x32xf32>
    %249 = vector.shape_cast %248 : vector<1x64x32xf32> to vector<64x32xf32>
    %250 = vector.broadcast %247 : vector<64x1xf32> to vector<64x32xf32>
    %251 = arith.mulf %250, %249 : vector<64x32xf32>
    %252 = arith.addf %246, %251 : vector<64x32xf32>
    %253 = vector.extract_strided_slice %98 {offsets = [2, 0, 0], sizes = [1, 64, 32], strides = [1, 1, 1]} : vector<5x64x32xf32> to vector<1x64x32xf32>
    %254 = vector.shape_cast %253 : vector<1x64x32xf32> to vector<64x32xf32>
    %255 = vector.extract_strided_slice %100 {offsets = [0, 0, 0], sizes = [1, 64, 32], strides = [1, 1, 1]} : vector<5x64x32xf32> to vector<1x64x32xf32>
    %256 = vector.shape_cast %255 : vector<1x64x32xf32> to vector<64x32xf32>
    %257 = arith.mulf %254, %256 : vector<64x32xf32>
    %cst_54 = arith.constant dense<0.000000e+00> : vector<64xf32>
    %258 = vector.multi_reduction <add>, %257, %cst_54 [1] : vector<64x32xf32> to vector<64xf32>
    %259 = vector.shape_cast %258 : vector<64xf32> to vector<64x1xf32>
    %260 = vector.extract_strided_slice %98 {offsets = [2, 0, 0], sizes = [1, 64, 32], strides = [1, 1, 1]} : vector<5x64x32xf32> to vector<1x64x32xf32>
    %261 = vector.shape_cast %260 : vector<1x64x32xf32> to vector<64x32xf32>
    %262 = vector.extract_strided_slice %100 {offsets = [1, 0, 0], sizes = [1, 64, 32], strides = [1, 1, 1]} : vector<5x64x32xf32> to vector<1x64x32xf32>
    %263 = vector.shape_cast %262 : vector<1x64x32xf32> to vector<64x32xf32>
    %264 = arith.mulf %261, %263 : vector<64x32xf32>
    %cst_55 = arith.constant dense<0.000000e+00> : vector<64xf32>
    %265 = vector.multi_reduction <add>, %264, %cst_55 [1] : vector<64x32xf32> to vector<64xf32>
    %266 = vector.shape_cast %265 : vector<64xf32> to vector<64x1xf32>
    %267 = vector.extract_strided_slice %98 {offsets = [2, 0, 0], sizes = [1, 64, 32], strides = [1, 1, 1]} : vector<5x64x32xf32> to vector<1x64x32xf32>
    %268 = vector.shape_cast %267 : vector<1x64x32xf32> to vector<64x32xf32>
    %269 = vector.extract_strided_slice %100 {offsets = [2, 0, 0], sizes = [1, 64, 32], strides = [1, 1, 1]} : vector<5x64x32xf32> to vector<1x64x32xf32>
    %270 = vector.shape_cast %269 : vector<1x64x32xf32> to vector<64x32xf32>
    %271 = arith.mulf %268, %270 : vector<64x32xf32>
    %cst_56 = arith.constant dense<0.000000e+00> : vector<64xf32>
    %272 = vector.multi_reduction <add>, %271, %cst_56 [1] : vector<64x32xf32> to vector<64xf32>
    %273 = vector.shape_cast %272 : vector<64xf32> to vector<64x1xf32>
    %274 = vector.extract_strided_slice %98 {offsets = [2, 0, 0], sizes = [1, 64, 32], strides = [1, 1, 1]} : vector<5x64x32xf32> to vector<1x64x32xf32>
    %275 = vector.shape_cast %274 : vector<1x64x32xf32> to vector<64x32xf32>
    %276 = vector.extract_strided_slice %100 {offsets = [3, 0, 0], sizes = [1, 64, 32], strides = [1, 1, 1]} : vector<5x64x32xf32> to vector<1x64x32xf32>
    %277 = vector.shape_cast %276 : vector<1x64x32xf32> to vector<64x32xf32>
    %278 = arith.mulf %275, %277 : vector<64x32xf32>
    %cst_57 = arith.constant dense<0.000000e+00> : vector<64xf32>
    %279 = vector.multi_reduction <add>, %278, %cst_57 [1] : vector<64x32xf32> to vector<64xf32>
    %280 = vector.shape_cast %279 : vector<64xf32> to vector<64x1xf32>
    %281 = vector.extract_strided_slice %98 {offsets = [2, 0, 0], sizes = [1, 64, 32], strides = [1, 1, 1]} : vector<5x64x32xf32> to vector<1x64x32xf32>
    %282 = vector.shape_cast %281 : vector<1x64x32xf32> to vector<64x32xf32>
    %283 = vector.extract_strided_slice %100 {offsets = [4, 0, 0], sizes = [1, 64, 32], strides = [1, 1, 1]} : vector<5x64x32xf32> to vector<1x64x32xf32>
    %284 = vector.shape_cast %283 : vector<1x64x32xf32> to vector<64x32xf32>
    %285 = arith.mulf %282, %284 : vector<64x32xf32>
    %cst_58 = arith.constant dense<0.000000e+00> : vector<64xf32>
    %286 = vector.multi_reduction <add>, %285, %cst_58 [1] : vector<64x32xf32> to vector<64xf32>
    %287 = vector.shape_cast %286 : vector<64xf32> to vector<64x1xf32>
    %288 = tpu.concatenate %259, %266, %273, %280, %287 in 1 : vector<64x1xf32>, vector<64x1xf32>, vector<64x1xf32>, vector<64x1xf32>, vector<64x1xf32> -> vector<64x5xf32>
    %cst_59 = arith.constant dense<0xFF800000> : vector<64xf32>
    %289 = vector.multi_reduction <maximumf>, %288, %cst_59 [1] : vector<64x5xf32> to vector<64xf32>
    %290 = vector.shape_cast %289 : vector<64xf32> to vector<64x1xf32>
    %291 = vector.broadcast %290 : vector<64x1xf32> to vector<64x5xf32>
    %292 = arith.subf %288, %291 : vector<64x5xf32>
    %293 = math.exp %292 : vector<64x5xf32>
    %cst_60 = arith.constant dense<0.000000e+00> : vector<64xf32>
    %294 = vector.multi_reduction <add>, %293, %cst_60 [1] : vector<64x5xf32> to vector<64xf32>
    %295 = vector.shape_cast %294 : vector<64xf32> to vector<64x1xf32>
    %296 = tpu.reciprocal %295 {approx = true} : vector<64x1xf32> -> vector<64x1xf32>
    %297 = vector.broadcast %296 : vector<64x1xf32> to vector<64x5xf32>
    %298 = arith.mulf %293, %297 : vector<64x5xf32>
    %299 = vector.extract_strided_slice %298 {offsets = [0, 0], sizes = [64, 1], strides = [1, 1]} : vector<64x5xf32> to vector<64x1xf32>
    %300 = vector.extract_strided_slice %102 {offsets = [0, 0, 0], sizes = [1, 64, 32], strides = [1, 1, 1]} : vector<5x64x32xf32> to vector<1x64x32xf32>
    %301 = vector.shape_cast %300 : vector<1x64x32xf32> to vector<64x32xf32>
    %302 = vector.broadcast %299 : vector<64x1xf32> to vector<64x32xf32>
    %303 = arith.mulf %302, %301 : vector<64x32xf32>
    %304 = vector.extract_strided_slice %298 {offsets = [0, 1], sizes = [64, 1], strides = [1, 1]} : vector<64x5xf32> to vector<64x1xf32>
    %305 = vector.extract_strided_slice %102 {offsets = [1, 0, 0], sizes = [1, 64, 32], strides = [1, 1, 1]} : vector<5x64x32xf32> to vector<1x64x32xf32>
    %306 = vector.shape_cast %305 : vector<1x64x32xf32> to vector<64x32xf32>
    %307 = vector.broadcast %304 : vector<64x1xf32> to vector<64x32xf32>
    %308 = arith.mulf %307, %306 : vector<64x32xf32>
    %309 = arith.addf %303, %308 : vector<64x32xf32>
    %310 = vector.extract_strided_slice %298 {offsets = [0, 2], sizes = [64, 1], strides = [1, 1]} : vector<64x5xf32> to vector<64x1xf32>
    %311 = vector.extract_strided_slice %102 {offsets = [2, 0, 0], sizes = [1, 64, 32], strides = [1, 1, 1]} : vector<5x64x32xf32> to vector<1x64x32xf32>
    %312 = vector.shape_cast %311 : vector<1x64x32xf32> to vector<64x32xf32>
    %313 = vector.broadcast %310 : vector<64x1xf32> to vector<64x32xf32>
    %314 = arith.mulf %313, %312 : vector<64x32xf32>
    %315 = arith.addf %309, %314 : vector<64x32xf32>
    %316 = vector.extract_strided_slice %298 {offsets = [0, 3], sizes = [64, 1], strides = [1, 1]} : vector<64x5xf32> to vector<64x1xf32>
    %317 = vector.extract_strided_slice %102 {offsets = [3, 0, 0], sizes = [1, 64, 32], strides = [1, 1, 1]} : vector<5x64x32xf32> to vector<1x64x32xf32>
    %318 = vector.shape_cast %317 : vector<1x64x32xf32> to vector<64x32xf32>
    %319 = vector.broadcast %316 : vector<64x1xf32> to vector<64x32xf32>
    %320 = arith.mulf %319, %318 : vector<64x32xf32>
    %321 = arith.addf %315, %320 : vector<64x32xf32>
    %322 = vector.extract_strided_slice %298 {offsets = [0, 4], sizes = [64, 1], strides = [1, 1]} : vector<64x5xf32> to vector<64x1xf32>
    %323 = vector.extract_strided_slice %102 {offsets = [4, 0, 0], sizes = [1, 64, 32], strides = [1, 1, 1]} : vector<5x64x32xf32> to vector<1x64x32xf32>
    %324 = vector.shape_cast %323 : vector<1x64x32xf32> to vector<64x32xf32>
    %325 = vector.broadcast %322 : vector<64x1xf32> to vector<64x32xf32>
    %326 = arith.mulf %325, %324 : vector<64x32xf32>
    %327 = arith.addf %321, %326 : vector<64x32xf32>
    %328 = vector.extract_strided_slice %98 {offsets = [3, 0, 0], sizes = [1, 64, 32], strides = [1, 1, 1]} : vector<5x64x32xf32> to vector<1x64x32xf32>
    %329 = vector.shape_cast %328 : vector<1x64x32xf32> to vector<64x32xf32>
    %330 = vector.extract_strided_slice %100 {offsets = [0, 0, 0], sizes = [1, 64, 32], strides = [1, 1, 1]} : vector<5x64x32xf32> to vector<1x64x32xf32>
    %331 = vector.shape_cast %330 : vector<1x64x32xf32> to vector<64x32xf32>
    %332 = arith.mulf %329, %331 : vector<64x32xf32>
    %cst_61 = arith.constant dense<0.000000e+00> : vector<64xf32>
    %333 = vector.multi_reduction <add>, %332, %cst_61 [1] : vector<64x32xf32> to vector<64xf32>
    %334 = vector.shape_cast %333 : vector<64xf32> to vector<64x1xf32>
    %335 = vector.extract_strided_slice %98 {offsets = [3, 0, 0], sizes = [1, 64, 32], strides = [1, 1, 1]} : vector<5x64x32xf32> to vector<1x64x32xf32>
    %336 = vector.shape_cast %335 : vector<1x64x32xf32> to vector<64x32xf32>
    %337 = vector.extract_strided_slice %100 {offsets = [1, 0, 0], sizes = [1, 64, 32], strides = [1, 1, 1]} : vector<5x64x32xf32> to vector<1x64x32xf32>
    %338 = vector.shape_cast %337 : vector<1x64x32xf32> to vector<64x32xf32>
    %339 = arith.mulf %336, %338 : vector<64x32xf32>
    %cst_62 = arith.constant dense<0.000000e+00> : vector<64xf32>
    %340 = vector.multi_reduction <add>, %339, %cst_62 [1] : vector<64x32xf32> to vector<64xf32>
    %341 = vector.shape_cast %340 : vector<64xf32> to vector<64x1xf32>
    %342 = vector.extract_strided_slice %98 {offsets = [3, 0, 0], sizes = [1, 64, 32], strides = [1, 1, 1]} : vector<5x64x32xf32> to vector<1x64x32xf32>
    %343 = vector.shape_cast %342 : vector<1x64x32xf32> to vector<64x32xf32>
    %344 = vector.extract_strided_slice %100 {offsets = [2, 0, 0], sizes = [1, 64, 32], strides = [1, 1, 1]} : vector<5x64x32xf32> to vector<1x64x32xf32>
    %345 = vector.shape_cast %344 : vector<1x64x32xf32> to vector<64x32xf32>
    %346 = arith.mulf %343, %345 : vector<64x32xf32>
    %cst_63 = arith.constant dense<0.000000e+00> : vector<64xf32>
    %347 = vector.multi_reduction <add>, %346, %cst_63 [1] : vector<64x32xf32> to vector<64xf32>
    %348 = vector.shape_cast %347 : vector<64xf32> to vector<64x1xf32>
    %349 = vector.extract_strided_slice %98 {offsets = [3, 0, 0], sizes = [1, 64, 32], strides = [1, 1, 1]} : vector<5x64x32xf32> to vector<1x64x32xf32>
    %350 = vector.shape_cast %349 : vector<1x64x32xf32> to vector<64x32xf32>
    %351 = vector.extract_strided_slice %100 {offsets = [3, 0, 0], sizes = [1, 64, 32], strides = [1, 1, 1]} : vector<5x64x32xf32> to vector<1x64x32xf32>
    %352 = vector.shape_cast %351 : vector<1x64x32xf32> to vector<64x32xf32>
    %353 = arith.mulf %350, %352 : vector<64x32xf32>
    %cst_64 = arith.constant dense<0.000000e+00> : vector<64xf32>
    %354 = vector.multi_reduction <add>, %353, %cst_64 [1] : vector<64x32xf32> to vector<64xf32>
    %355 = vector.shape_cast %354 : vector<64xf32> to vector<64x1xf32>
    %356 = vector.extract_strided_slice %98 {offsets = [3, 0, 0], sizes = [1, 64, 32], strides = [1, 1, 1]} : vector<5x64x32xf32> to vector<1x64x32xf32>
    %357 = vector.shape_cast %356 : vector<1x64x32xf32> to vector<64x32xf32>
    %358 = vector.extract_strided_slice %100 {offsets = [4, 0, 0], sizes = [1, 64, 32], strides = [1, 1, 1]} : vector<5x64x32xf32> to vector<1x64x32xf32>
    %359 = vector.shape_cast %358 : vector<1x64x32xf32> to vector<64x32xf32>
    %360 = arith.mulf %357, %359 : vector<64x32xf32>
    %cst_65 = arith.constant dense<0.000000e+00> : vector<64xf32>
    %361 = vector.multi_reduction <add>, %360, %cst_65 [1] : vector<64x32xf32> to vector<64xf32>
    %362 = vector.shape_cast %361 : vector<64xf32> to vector<64x1xf32>
    %363 = tpu.concatenate %334, %341, %348, %355, %362 in 1 : vector<64x1xf32>, vector<64x1xf32>, vector<64x1xf32>, vector<64x1xf32>, vector<64x1xf32> -> vector<64x5xf32>
    %cst_66 = arith.constant dense<0xFF800000> : vector<64xf32>
    %364 = vector.multi_reduction <maximumf>, %363, %cst_66 [1] : vector<64x5xf32> to vector<64xf32>
    %365 = vector.shape_cast %364 : vector<64xf32> to vector<64x1xf32>
    %366 = vector.broadcast %365 : vector<64x1xf32> to vector<64x5xf32>
    %367 = arith.subf %363, %366 : vector<64x5xf32>
    %368 = math.exp %367 : vector<64x5xf32>
    %cst_67 = arith.constant dense<0.000000e+00> : vector<64xf32>
    %369 = vector.multi_reduction <add>, %368, %cst_67 [1] : vector<64x5xf32> to vector<64xf32>
    %370 = vector.shape_cast %369 : vector<64xf32> to vector<64x1xf32>
    %371 = tpu.reciprocal %370 {approx = true} : vector<64x1xf32> -> vector<64x1xf32>
    %372 = vector.broadcast %371 : vector<64x1xf32> to vector<64x5xf32>
    %373 = arith.mulf %368, %372 : vector<64x5xf32>
    %374 = vector.extract_strided_slice %373 {offsets = [0, 0], sizes = [64, 1], strides = [1, 1]} : vector<64x5xf32> to vector<64x1xf32>
    %375 = vector.extract_strided_slice %102 {offsets = [0, 0, 0], sizes = [1, 64, 32], strides = [1, 1, 1]} : vector<5x64x32xf32> to vector<1x64x32xf32>
    %376 = vector.shape_cast %375 : vector<1x64x32xf32> to vector<64x32xf32>
    %377 = vector.broadcast %374 : vector<64x1xf32> to vector<64x32xf32>
    %378 = arith.mulf %377, %376 : vector<64x32xf32>
    %379 = vector.extract_strided_slice %373 {offsets = [0, 1], sizes = [64, 1], strides = [1, 1]} : vector<64x5xf32> to vector<64x1xf32>
    %380 = vector.extract_strided_slice %102 {offsets = [1, 0, 0], sizes = [1, 64, 32], strides = [1, 1, 1]} : vector<5x64x32xf32> to vector<1x64x32xf32>
    %381 = vector.shape_cast %380 : vector<1x64x32xf32> to vector<64x32xf32>
    %382 = vector.broadcast %379 : vector<64x1xf32> to vector<64x32xf32>
    %383 = arith.mulf %382, %381 : vector<64x32xf32>
    %384 = arith.addf %378, %383 : vector<64x32xf32>
    %385 = vector.extract_strided_slice %373 {offsets = [0, 2], sizes = [64, 1], strides = [1, 1]} : vector<64x5xf32> to vector<64x1xf32>
    %386 = vector.extract_strided_slice %102 {offsets = [2, 0, 0], sizes = [1, 64, 32], strides = [1, 1, 1]} : vector<5x64x32xf32> to vector<1x64x32xf32>
    %387 = vector.shape_cast %386 : vector<1x64x32xf32> to vector<64x32xf32>
    %388 = vector.broadcast %385 : vector<64x1xf32> to vector<64x32xf32>
    %389 = arith.mulf %388, %387 : vector<64x32xf32>
    %390 = arith.addf %384, %389 : vector<64x32xf32>
    %391 = vector.extract_strided_slice %373 {offsets = [0, 3], sizes = [64, 1], strides = [1, 1]} : vector<64x5xf32> to vector<64x1xf32>
    %392 = vector.extract_strided_slice %102 {offsets = [3, 0, 0], sizes = [1, 64, 32], strides = [1, 1, 1]} : vector<5x64x32xf32> to vector<1x64x32xf32>
    %393 = vector.shape_cast %392 : vector<1x64x32xf32> to vector<64x32xf32>
    %394 = vector.broadcast %391 : vector<64x1xf32> to vector<64x32xf32>
    %395 = arith.mulf %394, %393 : vector<64x32xf32>
    %396 = arith.addf %390, %395 : vector<64x32xf32>
    %397 = vector.extract_strided_slice %373 {offsets = [0, 4], sizes = [64, 1], strides = [1, 1]} : vector<64x5xf32> to vector<64x1xf32>
    %398 = vector.extract_strided_slice %102 {offsets = [4, 0, 0], sizes = [1, 64, 32], strides = [1, 1, 1]} : vector<5x64x32xf32> to vector<1x64x32xf32>
    %399 = vector.shape_cast %398 : vector<1x64x32xf32> to vector<64x32xf32>
    %400 = vector.broadcast %397 : vector<64x1xf32> to vector<64x32xf32>
    %401 = arith.mulf %400, %399 : vector<64x32xf32>
    %402 = arith.addf %396, %401 : vector<64x32xf32>
    %403 = vector.extract_strided_slice %98 {offsets = [4, 0, 0], sizes = [1, 64, 32], strides = [1, 1, 1]} : vector<5x64x32xf32> to vector<1x64x32xf32>
    %404 = vector.shape_cast %403 : vector<1x64x32xf32> to vector<64x32xf32>
    %405 = vector.extract_strided_slice %100 {offsets = [0, 0, 0], sizes = [1, 64, 32], strides = [1, 1, 1]} : vector<5x64x32xf32> to vector<1x64x32xf32>
    %406 = vector.shape_cast %405 : vector<1x64x32xf32> to vector<64x32xf32>
    %407 = arith.mulf %404, %406 : vector<64x32xf32>
    %cst_68 = arith.constant dense<0.000000e+00> : vector<64xf32>
    %408 = vector.multi_reduction <add>, %407, %cst_68 [1] : vector<64x32xf32> to vector<64xf32>
    %409 = vector.shape_cast %408 : vector<64xf32> to vector<64x1xf32>
    %410 = vector.extract_strided_slice %98 {offsets = [4, 0, 0], sizes = [1, 64, 32], strides = [1, 1, 1]} : vector<5x64x32xf32> to vector<1x64x32xf32>
    %411 = vector.shape_cast %410 : vector<1x64x32xf32> to vector<64x32xf32>
    %412 = vector.extract_strided_slice %100 {offsets = [1, 0, 0], sizes = [1, 64, 32], strides = [1, 1, 1]} : vector<5x64x32xf32> to vector<1x64x32xf32>
    %413 = vector.shape_cast %412 : vector<1x64x32xf32> to vector<64x32xf32>
    %414 = arith.mulf %411, %413 : vector<64x32xf32>
    %cst_69 = arith.constant dense<0.000000e+00> : vector<64xf32>
    %415 = vector.multi_reduction <add>, %414, %cst_69 [1] : vector<64x32xf32> to vector<64xf32>
    %416 = vector.shape_cast %415 : vector<64xf32> to vector<64x1xf32>
    %417 = vector.extract_strided_slice %98 {offsets = [4, 0, 0], sizes = [1, 64, 32], strides = [1, 1, 1]} : vector<5x64x32xf32> to vector<1x64x32xf32>
    %418 = vector.shape_cast %417 : vector<1x64x32xf32> to vector<64x32xf32>
    %419 = vector.extract_strided_slice %100 {offsets = [2, 0, 0], sizes = [1, 64, 32], strides = [1, 1, 1]} : vector<5x64x32xf32> to vector<1x64x32xf32>
    %420 = vector.shape_cast %419 : vector<1x64x32xf32> to vector<64x32xf32>
    %421 = arith.mulf %418, %420 : vector<64x32xf32>
    %cst_70 = arith.constant dense<0.000000e+00> : vector<64xf32>
    %422 = vector.multi_reduction <add>, %421, %cst_70 [1] : vector<64x32xf32> to vector<64xf32>
    %423 = vector.shape_cast %422 : vector<64xf32> to vector<64x1xf32>
    %424 = vector.extract_strided_slice %98 {offsets = [4, 0, 0], sizes = [1, 64, 32], strides = [1, 1, 1]} : vector<5x64x32xf32> to vector<1x64x32xf32>
    %425 = vector.shape_cast %424 : vector<1x64x32xf32> to vector<64x32xf32>
    %426 = vector.extract_strided_slice %100 {offsets = [3, 0, 0], sizes = [1, 64, 32], strides = [1, 1, 1]} : vector<5x64x32xf32> to vector<1x64x32xf32>
    %427 = vector.shape_cast %426 : vector<1x64x32xf32> to vector<64x32xf32>
    %428 = arith.mulf %425, %427 : vector<64x32xf32>
    %cst_71 = arith.constant dense<0.000000e+00> : vector<64xf32>
    %429 = vector.multi_reduction <add>, %428, %cst_71 [1] : vector<64x32xf32> to vector<64xf32>
    %430 = vector.shape_cast %429 : vector<64xf32> to vector<64x1xf32>
    %431 = vector.extract_strided_slice %98 {offsets = [4, 0, 0], sizes = [1, 64, 32], strides = [1, 1, 1]} : vector<5x64x32xf32> to vector<1x64x32xf32>
    %432 = vector.shape_cast %431 : vector<1x64x32xf32> to vector<64x32xf32>
    %433 = vector.extract_strided_slice %100 {offsets = [4, 0, 0], sizes = [1, 64, 32], strides = [1, 1, 1]} : vector<5x64x32xf32> to vector<1x64x32xf32>
    %434 = vector.shape_cast %433 : vector<1x64x32xf32> to vector<64x32xf32>
    %435 = arith.mulf %432, %434 : vector<64x32xf32>
    %cst_72 = arith.constant dense<0.000000e+00> : vector<64xf32>
    %436 = vector.multi_reduction <add>, %435, %cst_72 [1] : vector<64x32xf32> to vector<64xf32>
    %437 = vector.shape_cast %436 : vector<64xf32> to vector<64x1xf32>
    %438 = tpu.concatenate %409, %416, %423, %430, %437 in 1 : vector<64x1xf32>, vector<64x1xf32>, vector<64x1xf32>, vector<64x1xf32>, vector<64x1xf32> -> vector<64x5xf32>
    %cst_73 = arith.constant dense<0xFF800000> : vector<64xf32>
    %439 = vector.multi_reduction <maximumf>, %438, %cst_73 [1] : vector<64x5xf32> to vector<64xf32>
    %440 = vector.shape_cast %439 : vector<64xf32> to vector<64x1xf32>
    %441 = vector.broadcast %440 : vector<64x1xf32> to vector<64x5xf32>
    %442 = arith.subf %438, %441 : vector<64x5xf32>
    %443 = math.exp %442 : vector<64x5xf32>
    %cst_74 = arith.constant dense<0.000000e+00> : vector<64xf32>
    %444 = vector.multi_reduction <add>, %443, %cst_74 [1] : vector<64x5xf32> to vector<64xf32>
    %445 = vector.shape_cast %444 : vector<64xf32> to vector<64x1xf32>
    %446 = tpu.reciprocal %445 {approx = true} : vector<64x1xf32> -> vector<64x1xf32>
    %447 = vector.broadcast %446 : vector<64x1xf32> to vector<64x5xf32>
    %448 = arith.mulf %443, %447 : vector<64x5xf32>
    %449 = vector.extract_strided_slice %448 {offsets = [0, 0], sizes = [64, 1], strides = [1, 1]} : vector<64x5xf32> to vector<64x1xf32>
    %450 = vector.extract_strided_slice %102 {offsets = [0, 0, 0], sizes = [1, 64, 32], strides = [1, 1, 1]} : vector<5x64x32xf32> to vector<1x64x32xf32>
    %451 = vector.shape_cast %450 : vector<1x64x32xf32> to vector<64x32xf32>
    %452 = vector.broadcast %449 : vector<64x1xf32> to vector<64x32xf32>
    %453 = arith.mulf %452, %451 : vector<64x32xf32>
    %454 = vector.extract_strided_slice %448 {offsets = [0, 1], sizes = [64, 1], strides = [1, 1]} : vector<64x5xf32> to vector<64x1xf32>
    %455 = vector.extract_strided_slice %102 {offsets = [1, 0, 0], sizes = [1, 64, 32], strides = [1, 1, 1]} : vector<5x64x32xf32> to vector<1x64x32xf32>
    %456 = vector.shape_cast %455 : vector<1x64x32xf32> to vector<64x32xf32>
    %457 = vector.broadcast %454 : vector<64x1xf32> to vector<64x32xf32>
    %458 = arith.mulf %457, %456 : vector<64x32xf32>
    %459 = arith.addf %453, %458 : vector<64x32xf32>
    %460 = vector.extract_strided_slice %448 {offsets = [0, 2], sizes = [64, 1], strides = [1, 1]} : vector<64x5xf32> to vector<64x1xf32>
    %461 = vector.extract_strided_slice %102 {offsets = [2, 0, 0], sizes = [1, 64, 32], strides = [1, 1, 1]} : vector<5x64x32xf32> to vector<1x64x32xf32>
    %462 = vector.shape_cast %461 : vector<1x64x32xf32> to vector<64x32xf32>
    %463 = vector.broadcast %460 : vector<64x1xf32> to vector<64x32xf32>
    %464 = arith.mulf %463, %462 : vector<64x32xf32>
    %465 = arith.addf %459, %464 : vector<64x32xf32>
    %466 = vector.extract_strided_slice %448 {offsets = [0, 3], sizes = [64, 1], strides = [1, 1]} : vector<64x5xf32> to vector<64x1xf32>
    %467 = vector.extract_strided_slice %102 {offsets = [3, 0, 0], sizes = [1, 64, 32], strides = [1, 1, 1]} : vector<5x64x32xf32> to vector<1x64x32xf32>
    %468 = vector.shape_cast %467 : vector<1x64x32xf32> to vector<64x32xf32>
    %469 = vector.broadcast %466 : vector<64x1xf32> to vector<64x32xf32>
    %470 = arith.mulf %469, %468 : vector<64x32xf32>
    %471 = arith.addf %465, %470 : vector<64x32xf32>
    %472 = vector.extract_strided_slice %448 {offsets = [0, 4], sizes = [64, 1], strides = [1, 1]} : vector<64x5xf32> to vector<64x1xf32>
    %473 = vector.extract_strided_slice %102 {offsets = [4, 0, 0], sizes = [1, 64, 32], strides = [1, 1, 1]} : vector<5x64x32xf32> to vector<1x64x32xf32>
    %474 = vector.shape_cast %473 : vector<1x64x32xf32> to vector<64x32xf32>
    %475 = vector.broadcast %472 : vector<64x1xf32> to vector<64x32xf32>
    %476 = arith.mulf %475, %474 : vector<64x32xf32>
    %477 = arith.addf %471, %476 : vector<64x32xf32>
    %478 = tpu.concatenate %177, %252, %327, %402, %477 in 0 : vector<64x32xf32>, vector<64x32xf32>, vector<64x32xf32>, vector<64x32xf32>, vector<64x32xf32> -> vector<320x32xf32>
    %c0_75 = arith.constant 0 : index
    %c0_76 = arith.constant 0 : index
    %479 = vector.load %arg12[%c0_75, %c0_76] : memref<32x32xf32, #tpu.memory_space<vmem>>, vector<32x32xf32>
    %cst_77 = arith.constant dense<0.000000e+00> : vector<320x32xf32>
    %480 = tpu.matmul %478, %479, %cst_77 {dimension_numbers = #tpu.dot_dimension_numbers<[1], [0], [0], [1], [0, 0, 1, 1], [], []>} : vector<320x32xf32>, vector<32x32xf32>, vector<320x32xf32> -> vector<320x32xf32>
    %481 = arith.addf %1, %480 : vector<320x32xf32>
    %c0_78 = arith.constant 0 : index
    %c0_79 = arith.constant 0 : index
    %482 = vector.load %arg13[%c0_78, %c0_79] : memref<1x32xf32, #tpu.memory_space<vmem>>, vector<1x32xf32>
    %483 = vector.broadcast %482 : vector<1x32xf32> to vector<320x32xf32>
    %484 = arith.addf %481, %483 : vector<320x32xf32>
    %c0_80 = arith.constant 0 : index
    %c0_81 = arith.constant 0 : index
    %c0_82 = arith.constant 0 : index
    %485 = vector.load %arg14[%c0_80, %c0_81, %c0_82] : memref<1x320x32xf32, #tpu.memory_space<vmem>>, vector<1x320x32xf32>
    %486 = vector.shape_cast %485 : vector<1x320x32xf32> to vector<320x32xf32>
    %487 = vector.shape_cast %484 : vector<320x32xf32> to vector<1x320x32xf32>
    tpu.vector_store %arg14[%c0_80, %c0_81, %c0_82], %487 {strides = array<i32>} : memref<1x320x32xf32, #tpu.memory_space<vmem>>, vector<1x320x32xf32>,
    return
  }
  func.func @transform_0(%arg0: i32) -> (i32, i32, i32) {
    %c0_i32 = arith.constant 0 : i32
    %c0_i32_0 = arith.constant 0 : i32
    %c0_i32_1 = arith.constant 0 : i32
    return %arg0, %c0_i32, %c0_i32_0 : i32, i32, i32
  }
  func.func @transform_1(%arg0: i32) -> (i32, i32) {
    %c0_i32 = arith.constant 0 : i32
    %c0_i32_0 = arith.constant 0 : i32
    %c0_i32_1 = arith.constant 0 : i32
    return %c0_i32, %c0_i32_0 : i32, i32
  }
  func.func @transform_2(%arg0: i32) -> (i32, i32) {
    %c0_i32 = arith.constant 0 : i32
    %c0_i32_0 = arith.constant 0 : i32
    %c0_i32_1 = arith.constant 0 : i32
    return %c0_i32, %c0_i32_0 : i32, i32
  }
  func.func @transform_3(%arg0: i32) -> (i32, i32) {
    %c0_i32 = arith.constant 0 : i32
    %c0_i32_0 = arith.constant 0 : i32
    %c0_i32_1 = arith.constant 0 : i32
    return %c0_i32, %c0_i32_0 : i32, i32
  }
  func.func @transform_4(%arg0: i32) -> (i32, i32) {
    %c0_i32 = arith.constant 0 : i32
    %c0_i32_0 = arith.constant 0 : i32
    %c0_i32_1 = arith.constant 0 : i32
    return %c0_i32, %c0_i32_0 : i32, i32
  }
  func.func @transform_5(%arg0: i32) -> (i32, i32) {
    %c0_i32 = arith.constant 0 : i32
    %c0_i32_0 = arith.constant 0 : i32
    %c0_i32_1 = arith.constant 0 : i32
    return %c0_i32, %c0_i32_0 : i32, i32
  }
  func.func @transform_6(%arg0: i32) -> (i32, i32) {
    %c0_i32 = arith.constant 0 : i32
    %c0_i32_0 = arith.constant 0 : i32
    %c0_i32_1 = arith.constant 0 : i32
    return %c0_i32, %c0_i32_0 : i32, i32
  }
  func.func @transform_7(%arg0: i32) -> (i32, i32) {
    %c0_i32 = arith.constant 0 : i32
    %c0_i32_0 = arith.constant 0 : i32
    %c0_i32_1 = arith.constant 0 : i32
    return %c0_i32, %c0_i32_0 : i32, i32
  }
  func.func @transform_8(%arg0: i32) -> (i32, i32) {
    %c0_i32 = arith.constant 0 : i32
    %c0_i32_0 = arith.constant 0 : i32
    %c0_i32_1 = arith.constant 0 : i32
    return %c0_i32, %c0_i32_0 : i32, i32
  }
  func.func @transform_9(%arg0: i32) -> (i32, i32) {
    %c0_i32 = arith.constant 0 : i32
    %c0_i32_0 = arith.constant 0 : i32
    %c0_i32_1 = arith.constant 0 : i32
    return %c0_i32, %c0_i32_0 : i32, i32
  }
  func.func @transform_10(%arg0: i32) -> (i32, i32) {
    %c0_i32 = arith.constant 0 : i32
    %c0_i32_0 = arith.constant 0 : i32
    %c0_i32_1 = arith.constant 0 : i32
    return %c0_i32, %c0_i32_0 : i32, i32
  }
  func.func @transform_11(%arg0: i32) -> (i32, i32) {
    %c0_i32 = arith.constant 0 : i32
    %c0_i32_0 = arith.constant 0 : i32
    %c0_i32_1 = arith.constant 0 : i32
    return %c0_i32, %c0_i32_0 : i32, i32
  }
  func.func @transform_12(%arg0: i32) -> (i32, i32) {
    %c0_i32 = arith.constant 0 : i32
    %c0_i32_0 = arith.constant 0 : i32
    %c0_i32_1 = arith.constant 0 : i32
    return %c0_i32, %c0_i32_0 : i32, i32
  }
  func.func @transform_13(%arg0: i32) -> (i32, i32, i32) {
    %c0_i32 = arith.constant 0 : i32
    %c0_i32_0 = arith.constant 0 : i32
    %c0_i32_1 = arith.constant 0 : i32
    return %arg0, %c0_i32, %c0_i32_0 : i32, i32, i32
  }
}

</mosaic_0001>

<llo_original>
// kernel: _lambda_.1
$region0: #{_lambda_.1}
  #allocation0 [shape = 'u32[]', space=smem, size = 0x4, offset = 0x4, fixed_abs, tag = 'smem constant byte address 0x4 - core index']
  #allocation1 [shape = 'u32[72,128]{1,0:T(1,128)}', space=vmem, size = 0x9000, scoped, tag = 'internal scratch']
  %s0 = inlined_call_operand.hbm [shape: f32[2,320,32], index: 0, kind: input, shape index: {}]
  %s1 = inlined_call_operand.hbm [shape: f32[1,32], index: 1, kind: input, shape index: {}]
  %s2 = inlined_call_operand.hbm [shape: f32[1,32], index: 2, kind: input, shape index: {}]
  %s3 = inlined_call_operand.hbm [shape: f32[32,96], index: 3, kind: input, shape index: {}]
  %s4 = inlined_call_operand.vmem [shape: f32[1,96], index: 4, kind: input, shape index: {}]
  %s5 = inlined_call_operand.hbm [shape: f32[32,32], index: 5, kind: input, shape index: {}]
  %s6 = inlined_call_operand.hbm [shape: f32[1,32], index: 6, kind: input, shape index: {}]
  %s7 = inlined_call_operand.vmem [shape: f32[1,32], index: 7, kind: input, shape index: {}]
  %s8 = inlined_call_operand.vmem [shape: f32[1,32], index: 8, kind: input, shape index: {}]
  %s9 = inlined_call_operand.hbm [shape: f32[32,96], index: 9, kind: input, shape index: {}]
  %s10 = inlined_call_operand.vmem [shape: f32[1,96], index: 10, kind: input, shape index: {}]
  %s11 = inlined_call_operand.hbm [shape: f32[32,32], index: 11, kind: input, shape index: {}]
  %s12 = inlined_call_operand.vmem [shape: f32[1,32], index: 12, kind: input, shape index: {}]
  %s13 = inlined_call_operand.hbm [shape: f32[2,320,32], index: 13, kind: output, shape index: {}]
  %s14 = sld [smem:[#allocation0]]
  $region117: #{_lambda_.1} parent=0
    _
  %s16 = ssub.s32 1, %s14
  %s17 = scalar_select 0, %s16, %s14
  $region1: #{_lambda_.1} parent=0
    #allocation2 [shape = 'u8[327680]{0}', space=vmem, size = 0x50000, scoped, tag = 'input window, operand 0']
    #allocation3 [shape = 's32[2]{0}', space=sflag, size = 0x8, scoped, tag = 'scoped memory for _lambda_.1']
    #allocation4 [shape = 's32[2]{0}', space=sflag, size = 0x8, scoped, tag = 'scoped memory for _lambda_.1']
    #allocation5 [shape = 'u8[512]{0}', space=vmem, size = 0x400, scoped, tag = 'input window, operand 1, single buffered']
    #allocation6 [shape = 's32[1]{0}', space=sflag, size = 0x4, scoped, tag = 'scoped memory for _lambda_.1']
    #allocation7 [shape = 'u8[512]{0}', space=vmem, size = 0x400, scoped, tag = 'input window, operand 2, single buffered']
    #allocation8 [shape = 'u8[16384]{0}', space=vmem, size = 0x4000, scoped, tag = 'input window, operand 3, single buffered']
    #allocation9 [shape = 's32[1]{0}', space=sflag, size = 0x4, scoped, tag = 'scoped memory for _lambda_.1']
    #allocation10 [shape = 'u8[16384]{0}', space=vmem, size = 0x4000, scoped, tag = 'input window, operand 5, single buffered']
    #allocation11 [shape = 'u8[512]{0}', space=vmem, size = 0x400, scoped, tag = 'input window, operand 6, single buffered']
    #allocation12 [shape = 's32[1]{0}', space=sflag, size = 0x4, scoped, tag = 'scoped memory for _lambda_.1']
    #allocation13 [shape = 'u8[16384]{0}', space=vmem, size = 0x4000, scoped, tag = 'input window, operand 9, single buffered']
    #allocation14 [shape = 'u8[16384]{0}', space=vmem, size = 0x4000, scoped, tag = 'input window, operand 11, single buffered']
    #allocation15 [shape = 's32[1]{0}', space=sflag, size = 0x4, scoped, tag = 'scoped memory for _lambda_.1']
    #allocation16 [shape = 'u8[327680]{0}', space=vmem, size = 0x50000, scoped, tag = 'output window, operand 0']
    %18 = vsyncpa [#allocation3], 0
    %s19 = scalar_lea.sflag [#allocation3], 1
    %20 = vsyncpa %s19, 0
    %21 = vsyncpa [#allocation6], 0
    %22 = vsyncpa [#allocation9], 0
    %23 = vsyncpa [#allocation12], 0
    %24 = vsyncpa [#allocation15], 0
    %25 = vsyncpa [#allocation4], 0
    %s26 = scalar_lea.sflag [#allocation4], 1
    %27 = vsyncpa %s26, 0
    loop: start=0, step=1, limit=4
    $region2: #{_lambda_.1} parent=1 // loop_pre_header
      _
    $region3: #{_lambda_.1} parent=1 // loop_header
      %s29 = sphi 0, %s33
      %p30 = scmp.ge.s32.totalorder %s29, 4
      %s39 = sphi 0, %s41
      %s42 = sphi 0, %s39
      %s43 = sphi 0, %s42
      %s59 = sphi 0, %s43
      %s63 = sphi 0, %s63
      %s65 = sphi 0, %s63
      %s66 = sphi 0, %s65
      %s80 = sphi 0, %s66
      %s84 = sphi 0, %s84
      %s86 = sphi 0, %s84
      %s87 = sphi 0, %s86
      %s101 = sphi 0, %s87
      %s105 = sphi 0, %s105
      %s107 = sphi 0, %s105
      %s108 = sphi 0, %s107
      %s122 = sphi 0, %s108
      %s126 = sphi 0, %s126
      %s128 = sphi 0, %s126
      %s129 = sphi 0, %s128
      %s143 = sphi 0, %s129
      %s147 = sphi 0, %s147
      %s149 = sphi 0, %s147
      %s150 = sphi 0, %s149
      %s164 = sphi 0, %s150
      %s168 = sphi 0, %s168
      %s170 = sphi 0, %s168
      %s171 = sphi 0, %s170
      %s185 = sphi 0, %s171
      %s189 = sphi 0, %s189
      %s191 = sphi 0, %s189
      %s192 = sphi 0, %s191
      %s206 = sphi 0, %s192
      %s210 = sphi 0, %s210
      %s212 = sphi 0, %s210
      %s213 = sphi 0, %s212
      %s227 = sphi 0, %s213
      %s231 = sphi 0, %s231
      %s233 = sphi 0, %s231
      %s234 = sphi 0, %s233
      %s248 = sphi 0, %s234
      %s252 = sphi 0, %s252
      %s254 = sphi 0, %s252
      %s255 = sphi 0, %s254
      %s269 = sphi 0, %s255
      %s273 = sphi 0, %s273
      %s275 = sphi 0, %s273
      %s276 = sphi 0, %s275
      %s290 = sphi 0, %s276
      %s294 = sphi 0, %s294
      %s296 = sphi 0, %s294
      %s297 = sphi 0, %s296
      %s311 = sphi 0, %s297
      %s317 = sphi 0, %s319
      %s320 = sphi 0, %s317
      %s321 = sphi 0, %s320
      %s337 = sphi 0, %s321
    $region4: #{_lambda_.1} parent=1 // loop_header_branch
      %32 = sbr.rel (%p30) target = $region8
    $region5: #{_lambda_.1} parent=1 // loop_body
      %s34 = ssub.s32 %s29, 1
      %s35 = ssub.s32 %s29, 2
      %s36 = sadd.s32 %s29, 1
      %s37 = ssub.s32 %s29, %s36
      %p38 = scmp.eq.s32.totalorder %s37, 0
      %s40 = sadd.s32 %s39, 1
      %s41 = scalar_select %p38, %s39, %s40
      %p44 = pneg %p38
      %p45 = scmp.eq.s32.totalorder %s29, 1
      %p46 = por %p44, %p45
      %p47 = scmp.ne.s32.totalorder %s39, %s42
      %p48 = scmp.eq.s32.totalorder %s29, 0
      %p49 = por %p47, %p48
      %p50 = scmp.ne.s32.totalorder %s39, %s42
      %p51 = scmp.eq.s32.totalorder %s34, 1
      %p52 = por %p50, %p51
      %p53 = scmp.ne.s32.totalorder %s42, %s43
      %p54 = scmp.eq.s32.totalorder %s34, 0
      %p55 = por %p53, %p54
      %p56 = scmp.ne.s32.totalorder %s42, %s43
      %p57 = scmp.eq.s32.totalorder %s35, 1
      %p58 = por %p56, %p57
      %p60 = scmp.ne.s32.totalorder %s43, %s59
      %p61 = scmp.eq.s32.totalorder %s35, 0
      %p62 = por %p60, %p61
      %s64 = sadd.s32 %s63, 1
      %p67 = scmp.eq.s32.totalorder %s29, 1
      %p68 = scmp.ne.s32.totalorder %s63, %s65
      %p69 = scmp.eq.s32.totalorder %s29, 0
      %p70 = por %p68, %p69
      %p71 = scmp.ne.s32.totalorder %s63, %s65
      %p72 = scmp.eq.s32.totalorder %s34, 1
      %p73 = por %p71, %p72
      %p74 = scmp.ne.s32.totalorder %s65, %s66
      %p75 = scmp.eq.s32.totalorder %s34, 0
      %p76 = por %p74, %p75
      %p77 = scmp.ne.s32.totalorder %s65, %s66
      %p78 = scmp.eq.s32.totalorder %s35, 1
      %p79 = por %p77, %p78
      %p81 = scmp.ne.s32.totalorder %s66, %s80
      %p82 = scmp.eq.s32.totalorder %s35, 0
      %p83 = por %p81, %p82
      %s85 = sadd.s32 %s84, 1
      %p88 = scmp.eq.s32.totalorder %s29, 1
      %p89 = scmp.ne.s32.totalorder %s84, %s86
      %p90 = scmp.eq.s32.totalorder %s29, 0
      %p91 = por %p89, %p90
      %p92 = scmp.ne.s32.totalorder %s84, %s86
      %p93 = scmp.eq.s32.totalorder %s34, 1
      %p94 = por %p92, %p93
      %p95 = scmp.ne.s32.totalorder %s86, %s87
      %p96 = scmp.eq.s32.totalorder %s34, 0
      %p97 = por %p95, %p96
      %p98 = scmp.ne.s32.totalorder %s86, %s87
      %p99 = scmp.eq.s32.totalorder %s35, 1
      %p100 = por %p98, %p99
      %p102 = scmp.ne.s32.totalorder %s87, %s101
      %p103 = scmp.eq.s32.totalorder %s35, 0
      %p104 = por %p102, %p103
      %s106 = sadd.s32 %s105, 1
      %p109 = scmp.eq.s32.totalorder %s29, 1
      %p110 = scmp.ne.s32.totalorder %s105, %s107
      %p111 = scmp.eq.s32.totalorder %s29, 0
      %p112 = por %p110, %p111
      %p113 = scmp.ne.s32.totalorder %s105, %s107
      %p114 = scmp.eq.s32.totalorder %s34, 1
      %p115 = por %p113, %p114
      %p116 = scmp.ne.s32.totalorder %s107, %s108
      %p117 = scmp.eq.s32.totalorder %s34, 0
      %p118 = por %p116, %p117
      %p119 = scmp.ne.s32.totalorder %s107, %s108
      %p120 = scmp.eq.s32.totalorder %s35, 1
      %p121 = por %p119, %p120
      %p123 = scmp.ne.s32.totalorder %s108, %s122
      %p124 = scmp.eq.s32.totalorder %s35, 0
      %p125 = por %p123, %p124
      %s127 = sadd.s32 %s126, 1
      %p130 = scmp.eq.s32.totalorder %s29, 1
      %p131 = scmp.ne.s32.totalorder %s126, %s128
      %p132 = scmp.eq.s32.totalorder %s29, 0
      %p133 = por %p131, %p132
      %p134 = scmp.ne.s32.totalorder %s126, %s128
      %p135 = scmp.eq.s32.totalorder %s34, 1
      %p136 = por %p134, %p135
      %p137 = scmp.ne.s32.totalorder %s128, %s129
      %p138 = scmp.eq.s32.totalorder %s34, 0
      %p139 = por %p137, %p138
      %p140 = scmp.ne.s32.totalorder %s128, %s129
      %p141 = scmp.eq.s32.totalorder %s35, 1
      %p142 = por %p140, %p141
      %p144 = scmp.ne.s32.totalorder %s129, %s143
      %p145 = scmp.eq.s32.totalorder %s35, 0
      %p146 = por %p144, %p145
      %s148 = sadd.s32 %s147, 1
      %p151 = scmp.eq.s32.totalorder %s29, 1
      %p152 = scmp.ne.s32.totalorder %s147, %s149
      %p153 = scmp.eq.s32.totalorder %s29, 0
      %p154 = por %p152, %p153
      %p155 = scmp.ne.s32.totalorder %s147, %s149
      %p156 = scmp.eq.s32.totalorder %s34, 1
      %p157 = por %p155, %p156
      %p158 = scmp.ne.s32.totalorder %s149, %s150
      %p159 = scmp.eq.s32.totalorder %s34, 0
      %p160 = por %p158, %p159
      %p161 = scmp.ne.s32.totalorder %s149, %s150
      %p162 = scmp.eq.s32.totalorder %s35, 1
      %p163 = por %p161, %p162
      %p165 = scmp.ne.s32.totalorder %s150, %s164
      %p166 = scmp.eq.s32.totalorder %s35, 0
      %p167 = por %p165, %p166
      %s169 = sadd.s32 %s168, 1
      %p172 = scmp.eq.s32.totalorder %s29, 1
      %p173 = scmp.ne.s32.totalorder %s168, %s170
      %p174 = scmp.eq.s32.totalorder %s29, 0
      %p175 = por %p173, %p174
      %p176 = scmp.ne.s32.totalorder %s168, %s170
      %p177 = scmp.eq.s32.totalorder %s34, 1
      %p178 = por %p176, %p177
      %p179 = scmp.ne.s32.totalorder %s170, %s171
      %p180 = scmp.eq.s32.totalorder %s34, 0
      %p181 = por %p179, %p180
      %p182 = scmp.ne.s32.totalorder %s170, %s171
      %p183 = scmp.eq.s32.totalorder %s35, 1
      %p184 = por %p182, %p183
      %p186 = scmp.ne.s32.totalorder %s171, %s185
      %p187 = scmp.eq.s32.totalorder %s35, 0
      %p188 = por %p186, %p187
      %s190 = sadd.s32 %s189, 1
      %p193 = scmp.eq.s32.totalorder %s29, 1
      %p194 = scmp.ne.s32.totalorder %s189, %s191
      %p195 = scmp.eq.s32.totalorder %s29, 0
      %p196 = por %p194, %p195
      %p197 = scmp.ne.s32.totalorder %s189, %s191
      %p198 = scmp.eq.s32.totalorder %s34, 1
      %p199 = por %p197, %p198
      %p200 = scmp.ne.s32.totalorder %s191, %s192
      %p201 = scmp.eq.s32.totalorder %s34, 0
      %p202 = por %p200, %p201
      %p203 = scmp.ne.s32.totalorder %s191, %s192
      %p204 = scmp.eq.s32.totalorder %s35, 1
      %p205 = por %p203, %p204
      %p207 = scmp.ne.s32.totalorder %s192, %s206
      %p208 = scmp.eq.s32.totalorder %s35, 0
      %p209 = por %p207, %p208
      %s211 = sadd.s32 %s210, 1
      %p214 = scmp.eq.s32.totalorder %s29, 1
      %p215 = scmp.ne.s32.totalorder %s210, %s212
      %p216 = scmp.eq.s32.totalorder %s29, 0
      %p217 = por %p215, %p216
      %p218 = scmp.ne.s32.totalorder %s210, %s212
      %p219 = scmp.eq.s32.totalorder %s34, 1
      %p220 = por %p218, %p219
      %p221 = scmp.ne.s32.totalorder %s212, %s213
      %p222 = scmp.eq.s32.totalorder %s34, 0
      %p223 = por %p221, %p222
      %p224 = scmp.ne.s32.totalorder %s212, %s213
      %p225 = scmp.eq.s32.totalorder %s35, 1
      %p226 = por %p224, %p225
      %p228 = scmp.ne.s32.totalorder %s213, %s227
      %p229 = scmp.eq.s32.totalorder %s35, 0
      %p230 = por %p228, %p229
      %s232 = sadd.s32 %s231, 1
      %p235 = scmp.eq.s32.totalorder %s29, 1
      %p236 = scmp.ne.s32.totalorder %s231, %s233
      %p237 = scmp.eq.s32.totalorder %s29, 0
      %p238 = por %p236, %p237
      %p239 = scmp.ne.s32.totalorder %s231, %s233
      %p240 = scmp.eq.s32.totalorder %s34, 1
      %p241 = por %p239, %p240
      %p242 = scmp.ne.s32.totalorder %s233, %s234
      %p243 = scmp.eq.s32.totalorder %s34, 0
      %p244 = por %p242, %p243
      %p245 = scmp.ne.s32.totalorder %s233, %s234
      %p246 = scmp.eq.s32.totalorder %s35, 1
      %p247 = por %p245, %p246
      %p249 = scmp.ne.s32.totalorder %s234, %s248
      %p250 = scmp.eq.s32.totalorder %s35, 0
      %p251 = por %p249, %p250
      %s253 = sadd.s32 %s252, 1
      %p256 = scmp.eq.s32.totalorder %s29, 1
      %p257 = scmp.ne.s32.totalorder %s252, %s254
      %p258 = scmp.eq.s32.totalorder %s29, 0
      %p259 = por %p257, %p258
      %p260 = scmp.ne.s32.totalorder %s252, %s254
      %p261 = scmp.eq.s32.totalorder %s34, 1
      %p262 = por %p260, %p261
      %p263 = scmp.ne.s32.totalorder %s254, %s255
      %p264 = scmp.eq.s32.totalorder %s34, 0
      %p265 = por %p263, %p264
      %p266 = scmp.ne.s32.totalorder %s254, %s255
      %p267 = scmp.eq.s32.totalorder %s35, 1
      %p268 = por %p266, %p267
      %p270 = scmp.ne.s32.totalorder %s255, %s269
      %p271 = scmp.eq.s32.totalorder %s35, 0
      %p272 = por %p270, %p271
      %s274 = sadd.s32 %s273, 1
      %p277 = scmp.eq.s32.totalorder %s29, 1
      %p278 = scmp.ne.s32.totalorder %s273, %s275
      %p279 = scmp.eq.s32.totalorder %s29, 0
      %p280 = por %p278, %p279
      %p281 = scmp.ne.s32.totalorder %s273, %s275
      %p282 = scmp.eq.s32.totalorder %s34, 1
      %p283 = por %p281, %p282
      %p284 = scmp.ne.s32.totalorder %s275, %s276
      %p285 = scmp.eq.s32.totalorder %s34, 0
      %p286 = por %p284, %p285
      %p287 = scmp.ne.s32.totalorder %s275, %s276
      %p288 = scmp.eq.s32.totalorder %s35, 1
      %p289 = por %p287, %p288
      %p291 = scmp.ne.s32.totalorder %s276, %s290
      %p292 = scmp.eq.s32.totalorder %s35, 0
      %p293 = por %p291, %p292
      %s295 = sadd.s32 %s294, 1
      %p298 = scmp.eq.s32.totalorder %s29, 1
      %p299 = scmp.ne.s32.totalorder %s294, %s296
      %p300 = scmp.eq.s32.totalorder %s29, 0
      %p301 = por %p299, %p300
      %p302 = scmp.ne.s32.totalorder %s294, %s296
      %p303 = scmp.eq.s32.totalorder %s34, 1
      %p304 = por %p302, %p303
      %p305 = scmp.ne.s32.totalorder %s296, %s297
      %p306 = scmp.eq.s32.totalorder %s34, 0
      %p307 = por %p305, %p306
      %p308 = scmp.ne.s32.totalorder %s296, %s297
      %p309 = scmp.eq.s32.totalorder %s35, 1
      %p310 = por %p308, %p309
      %p312 = scmp.ne.s32.totalorder %s297, %s311
      %p313 = scmp.eq.s32.totalorder %s35, 0
      %p314 = por %p312, %p313
      %s315 = ssub.s32 %s29, %s36
      %p316 = scmp.eq.s32.totalorder %s315, 0
      %s318 = sadd.s32 %s317, 1
      %s319 = scalar_select %p316, %s317, %s318
      %p322 = pneg %p316
      %p323 = scmp.eq.s32.totalorder %s29, 1
      %p324 = por %p322, %p323
      %p325 = scmp.ne.s32.totalorder %s317, %s320
      %p326 = scmp.eq.s32.totalorder %s29, 0
      %p327 = por %p325, %p326
      %p328 = scmp.ne.s32.totalorder %s317, %s320
      %p329 = scmp.eq.s32.totalorder %s34, 1
      %p330 = por %p328, %p329
      %p331 = scmp.ne.s32.totalorder %s320, %s321
      %p332 = scmp.eq.s32.totalorder %s34, 0
      %p333 = por %p331, %p332
      %p334 = scmp.ne.s32.totalorder %s320, %s321
      %p335 = scmp.eq.s32.totalorder %s35, 1
      %p336 = por %p334, %p335
      %p338 = scmp.ne.s32.totalorder %s321, %s337
      %p339 = scmp.eq.s32.totalorder %s35, 0
      %p340 = por %p338, %p339
      %p341 = scmp.le.s32.totalorder 1, %s29
      %p342 = scmp.lt.s32.totalorder %s29, 3
      %p343 = pnand %p341, %p342
      %p344 = pneg %p343
      // Predicated region
      $region9: #{_lambda_.1} parent=5 // pred_check
        _
      $region10: #{_lambda_.1} parent=5 // pred_check_branch
        %346 = sbr.rel (%p343) target = $region12
      $region11: #{_lambda_.1} parent=5 // pred_region
        %s347 = ssub.s32 %s29, 1
        // Predicated region
        $region13: #{_lambda_.1} parent=11 // pred_check
          %p348 = pneg %p76
        $region14: #{_lambda_.1} parent=11 // pred_check_branch
          %350 = sbr.rel (%p348) target = $region16
        $region15: #{_lambda_.1} parent=11 // pred_region
          %352 = vsyncadd [#allocation6], 0
          %s354 = sshll.u32 %s1, 4
          %s355 = int_to_ptr.hbm [resolvable:$true] %s354
          %s356 = sshll.u32 [#allocation5], 4
          %s357 = int_to_ptr.vmem [resolvable:$true] %s356
          %359 = dma.hbm_to_vmem [thread:$0]  %s355, 16, %s357, [#allocation6]
        $region16: #{_lambda_.1} parent=11 // pred_fallthru
          _
        // Predicated region
        $region17: #{_lambda_.1} parent=11 // pred_check
          %p360 = pneg %p97
        $region18: #{_lambda_.1} parent=11 // pred_check_branch
          %362 = sbr.rel (%p360) target = $region20
        $region19: #{_lambda_.1} parent=11 // pred_region
          %364 = vsyncadd [#allocation6], 0
          %s366 = sshll.u32 %s2, 4
          %s367 = int_to_ptr.hbm [resolvable:$true] %s366
          %s368 = sshll.u32 [#allocation7], 4
          %s369 = int_to_ptr.vmem [resolvable:$true] %s368
          %371 = dma.hbm_to_vmem [thread:$0]  %s367, 16, %s369, [#allocation6]
        $region20: #{_lambda_.1} parent=11 // pred_fallthru
          _
        // Predicated region
        $region21: #{_lambda_.1} parent=11 // pred_check
          %p372 = pneg %p118
        $region22: #{_lambda_.1} parent=11 // pred_check_branch
          %374 = sbr.rel (%p372) target = $region24
        $region23: #{_lambda_.1} parent=11 // pred_region
          %376 = vsyncadd [#allocation9], 0
          %s377 = sshll.u32 %s3, 4
          %s378 = int_to_ptr.hbm [resolvable:$true] %s377
          %s379 = sshll.u32 [#allocation8], 4
          %s380 = int_to_ptr.vmem [resolvable:$true] %s379
          %385 = dma.hbm_to_vmem [thread:$0]  %s378, 512, %s380, [#allocation9], 128, 128, 8
        $region24: #{_lambda_.1} parent=11 // pred_fallthru
          _
        // Predicated region
        $region25: #{_lambda_.1} parent=11 // pred_check
          %p386 = pneg %p139
        $region26: #{_lambda_.1} parent=11 // pred_check_branch
          %388 = sbr.rel (%p386) target = $region28
        $region27: #{_lambda_.1} parent=11 // pred_region
          _
        $region28: #{_lambda_.1} parent=11 // pred_fallthru
          _
        // Predicated region
        $region29: #{_lambda_.1} parent=11 // pred_check
          %p389 = pneg %p160
        $region30: #{_lambda_.1} parent=11 // pred_check_branch
          %391 = sbr.rel (%p389) target = $region32
        $region31: #{_lambda_.1} parent=11 // pred_region
          %393 = vsyncadd [#allocation9], 0
          %s394 = sshll.u32 %s5, 4
          %s395 = int_to_ptr.hbm [resolvable:$true] %s394
          %s396 = sshll.u32 [#allocation10], 4
          %s397 = int_to_ptr.vmem [resolvable:$true] %s396
          %402 = dma.hbm_to_vmem [thread:$0]  %s395, 512, %s397, [#allocation9], 128, 128, 8
        $region32: #{_lambda_.1} parent=11 // pred_fallthru
          _
        // Predicated region
        $region33: #{_lambda_.1} parent=11 // pred_check
          %p403 = pneg %p181
        $region34: #{_lambda_.1} parent=11 // pred_check_branch
          %405 = sbr.rel (%p403) target = $region36
        $region35: #{_lambda_.1} parent=11 // pred_region
          %407 = vsyncadd [#allocation12], 0
          %s409 = sshll.u32 %s6, 4
          %s410 = int_to_ptr.hbm [resolvable:$true] %s409
          %s411 = sshll.u32 [#allocation11], 4
          %s412 = int_to_ptr.vmem [resolvable:$true] %s411
          %414 = dma.hbm_to_vmem [thread:$0]  %s410, 16, %s412, [#allocation12]
        $region36: #{_lambda_.1} parent=11 // pred_fallthru
          _
        // Predicated region
        $region37: #{_lambda_.1} parent=11 // pred_check
          %p415 = pneg %p202
        $region38: #{_lambda_.1} parent=11 // pred_check_branch
          %417 = sbr.rel (%p415) target = $region40
        $region39: #{_lambda_.1} parent=11 // pred_region
          _
        $region40: #{_lambda_.1} parent=11 // pred_fallthru
          _
        // Predicated region
        $region41: #{_lambda_.1} parent=11 // pred_check
          %p418 = pneg %p223
        $region42: #{_lambda_.1} parent=11 // pred_check_branch
          %420 = sbr.rel (%p418) target = $region44
        $region43: #{_lambda_.1} parent=11 // pred_region
          _
        $region44: #{_lambda_.1} parent=11 // pred_fallthru
          _
        // Predicated region
        $region45: #{_lambda_.1} parent=11 // pred_check
          %p421 = pneg %p244
        $region46: #{_lambda_.1} parent=11 // pred_check_branch
          %423 = sbr.rel (%p421) target = $region48
        $region47: #{_lambda_.1} parent=11 // pred_region
          %425 = vsyncadd [#allocation12], 0
          %s426 = sshll.u32 %s9, 4
          %s427 = int_to_ptr.hbm [resolvable:$true] %s426
          %s428 = sshll.u32 [#allocation13], 4
          %s429 = int_to_ptr.vmem [resolvable:$true] %s428
          %434 = dma.hbm_to_vmem [thread:$0]  %s427, 512, %s429, [#allocation12], 128, 128, 8
        $region48: #{_lambda_.1} parent=11 // pred_fallthru
          _
        // Predicated region
        $region49: #{_lambda_.1} parent=11 // pred_check
          %p435 = pneg %p265
        $region50: #{_lambda_.1} parent=11 // pred_check_branch
          %437 = sbr.rel (%p435) target = $region52
        $region51: #{_lambda_.1} parent=11 // pred_region
          _
        $region52: #{_lambda_.1} parent=11 // pred_fallthru
          _
        // Predicated region
        $region53: #{_lambda_.1} parent=11 // pred_check
          %p438 = pneg %p286
        $region54: #{_lambda_.1} parent=11 // pred_check_branch
          %440 = sbr.rel (%p438) target = $region56
        $region55: #{_lambda_.1} parent=11 // pred_region
          %442 = vsyncadd [#allocation15], 0
          %s443 = sshll.u32 %s11, 4
          %s444 = int_to_ptr.hbm [resolvable:$true] %s443
          %s445 = sshll.u32 [#allocation14], 4
          %s446 = int_to_ptr.vmem [resolvable:$true] %s445
          %451 = dma.hbm_to_vmem [thread:$0]  %s444, 512, %s446, [#allocation15], 128, 128, 8
        $region56: #{_lambda_.1} parent=11 // pred_fallthru
          _
        // Predicated region
        $region57: #{_lambda_.1} parent=11 // pred_check
          %p452 = pneg %p307
        $region58: #{_lambda_.1} parent=11 // pred_check_branch
          %454 = sbr.rel (%p452) target = $region60
        $region59: #{_lambda_.1} parent=11 // pred_region
          _
        $region60: #{_lambda_.1} parent=11 // pred_fallthru
          _
      $region12: #{_lambda_.1} parent=5 // pred_fallthru
        _
      %p455 = scmp.lt.s32.totalorder %s29, 2
      // Predicated region
      $region61: #{_lambda_.1} parent=5 // pred_check
        %p456 = pneg %p455
      $region62: #{_lambda_.1} parent=5 // pred_check_branch
        %458 = sbr.rel (%p456) target = $region64
      $region63: #{_lambda_.1} parent=5 // pred_region
        // Predicated region
        $region65: #{_lambda_.1} parent=63 // pred_check
          %p459 = pneg %p49
        $region66: #{_lambda_.1} parent=63 // pred_check_branch
          %461 = sbr.rel (%p459) target = $region68
        $region67: #{_lambda_.1} parent=63 // pred_region
          %s462 = sand.u32 %s39, 1
          %s463 = scalar_lea.sflag [#allocation3], %s462
          %s464 = sand.u32 %s39, 1
          %s465 = smul.addr %s464, 320
          %s466 = scalar_lea.vmem [#allocation2], %s465
          %468 = vsyncadd %s463, 0
          %s469 = smul.addr %s29, 40
          %s470 = smul.addr %s469, 8
          %s471 = scalar_lea.hbm %s0, %s470
          %s472 = sshll.u32 %s471, 4
          %s473 = int_to_ptr.hbm [resolvable:$true] %s472
          %s474 = sshll.u32 %s466, 4
          %s475 = int_to_ptr.vmem [resolvable:$true] %s474
          %480 = dma.hbm_to_vmem [thread:$0]  %s473, 5120, %s475, %s463, 128, 128, 8
        $region68: #{_lambda_.1} parent=63 // pred_fallthru
          _
      $region64: #{_lambda_.1} parent=5 // pred_fallthru
        _
      %p481 = scmp.le.s32.totalorder 1, %s29
      %p482 = scmp.lt.s32.totalorder %s29, 3
      %p483 = pnand %p481, %p482
      %p484 = pneg %p483
      // Predicated region
      $region69: #{_lambda_.1} parent=5 // pred_check
        _
      $region70: #{_lambda_.1} parent=5 // pred_check_branch
        %486 = sbr.rel (%p483) target = $region72
      $region71: #{_lambda_.1} parent=5 // pred_region
        %s487 = ssub.s32 %s29, 1
        %s488 = sand.u32 %s42, 1
        %s489 = scalar_lea.sflag [#allocation3], %s488
        %s490 = sand.u32 %s42, 1
        %s491 = smul.addr %s490, 320
        %s492 = scalar_lea.vmem [#allocation2], %s491
        // Predicated region
        $region73: #{_lambda_.1} parent=71 // pred_check
          %p493 = pneg %p55
        $region74: #{_lambda_.1} parent=71 // pred_check_branch
          %495 = sbr.rel (%p493) target = $region76
        $region75: #{_lambda_.1} parent=71 // pred_region
          %497 = dma.done %s489, 5120
        $region76: #{_lambda_.1} parent=71 // pred_fallthru
          _
        // Predicated region
        $region77: #{_lambda_.1} parent=71 // pred_check
          %p498 = pneg %p76
        $region78: #{_lambda_.1} parent=71 // pred_check_branch
          %500 = sbr.rel (%p498) target = $region80
        $region79: #{_lambda_.1} parent=71 // pred_region
          %502 = dma.done [#allocation6], 16
        $region80: #{_lambda_.1} parent=71 // pred_fallthru
          _
        // Predicated region
        $region81: #{_lambda_.1} parent=71 // pred_check
          %p503 = pneg %p97
        $region82: #{_lambda_.1} parent=71 // pred_check_branch
          %505 = sbr.rel (%p503) target = $region84
        $region83: #{_lambda_.1} parent=71 // pred_region
          %507 = dma.done [#allocation6], 16
        $region84: #{_lambda_.1} parent=71 // pred_fallthru
          _
        // Predicated region
        $region85: #{_lambda_.1} parent=71 // pred_check
          %p508 = pneg %p118
        $region86: #{_lambda_.1} parent=71 // pred_check_branch
          %510 = sbr.rel (%p508) target = $region88
        $region87: #{_lambda_.1} parent=71 // pred_region
          %512 = dma.done [#allocation9], 512
        $region88: #{_lambda_.1} parent=71 // pred_fallthru
          _
        // Predicated region
        $region89: #{_lambda_.1} parent=71 // pred_check
          %p513 = pneg %p160
        $region90: #{_lambda_.1} parent=71 // pred_check_branch
          %515 = sbr.rel (%p513) target = $region92
        $region91: #{_lambda_.1} parent=71 // pred_region
          %517 = dma.done [#allocation9], 512
        $region92: #{_lambda_.1} parent=71 // pred_fallthru
          _
        // Predicated region
        $region93: #{_lambda_.1} parent=71 // pred_check
          %p518 = pneg %p181
        $region94: #{_lambda_.1} parent=71 // pred_check_branch
          %520 = sbr.rel (%p518) target = $region96
        $region95: #{_lambda_.1} parent=71 // pred_region
          %522 = dma.done [#allocation12], 16
        $region96: #{_lambda_.1} parent=71 // pred_fallthru
          _
        // Predicated region
        $region97: #{_lambda_.1} parent=71 // pred_check
          %p523 = pneg %p244
        $region98: #{_lambda_.1} parent=71 // pred_check_branch
          %525 = sbr.rel (%p523) target = $region100
        $region99: #{_lambda_.1} parent=71 // pred_region
          %527 = dma.done [#allocation12], 512
        $region100: #{_lambda_.1} parent=71 // pred_fallthru
          _
        // Predicated region
        $region101: #{_lambda_.1} parent=71 // pred_check
          %p528 = pneg %p286
        $region102: #{_lambda_.1} parent=71 // pred_check_branch
          %530 = sbr.rel (%p528) target = $region104
        $region103: #{_lambda_.1} parent=71 // pred_region
          %532 = dma.done [#allocation15], 512
        $region104: #{_lambda_.1} parent=71 // pred_fallthru
          _
        %s533 = sand.u32 %s42, 1
        %s534 = scalar_lea.sflag [#allocation3], %s533
        %s535 = sand.u32 %s42, 1
        %s536 = smul.addr %s535, 320
        %s537 = scalar_lea.vmem [#allocation2], %s536
        %p538 = pneg %p55
        %p539 = pneg %p52
        %p540 = pneg %p76
        %p541 = pneg %p73
        %p542 = pneg %p97
        %p543 = pneg %p94
        %p544 = pneg %p118
        %p545 = pneg %p115
        %p546 = pneg %p139
        %p547 = pneg %p136
        %p548 = pneg %p160
        %p549 = pneg %p157
        %p550 = pneg %p181
        %p551 = pneg %p178
        %p552 = pneg %p202
        %p553 = pneg %p199
        %p554 = pneg %p223
        %p555 = pneg %p220
        %p556 = pneg %p244
        %p557 = pneg %p241
        %p558 = pneg %p265
        %p559 = pneg %p262
        %p560 = pneg %p286
        %p561 = pneg %p283
        %p562 = pneg %p307
        %p563 = pneg %p304
        %p564 = pneg %p333
        %p565 = pneg %p330
        %s566 = sand.u32 %s320, 1
        %s567 = scalar_lea.sflag [#allocation4], %s566
        %s568 = sand.u32 %s320, 1
        %s569 = smul.addr %s568, 320
        %s570 = scalar_lea.vmem [#allocation16], %s569
        %v571 = vld [vmem:[%s492] sm:$0xff]
        %v572 = vld [vmem:[%s492 + $0x8] sm:$0xff]
        %v573 = vld [vmem:[%s492 + $0x10] sm:$0xff]
        %v574 = vld [vmem:[%s492 + $0x18] sm:$0xff]
        %v575 = vld [vmem:[%s492 + $0x20] sm:$0xff]
        %v576 = vld [vmem:[%s492 + $0x28] sm:$0xff]
        %v577 = vld [vmem:[%s492 + $0x30] sm:$0xff]
        %v578 = vld [vmem:[%s492 + $0x38] sm:$0xff]
        %v579 = vld [vmem:[%s492 + $0x40] sm:$0xff]
        %v580 = vld [vmem:[%s492 + $0x48] sm:$0xff]
        %v581 = vld [vmem:[%s492 + $0x50] sm:$0xff]
        %v582 = vld [vmem:[%s492 + $0x58] sm:$0xff]
        %v583 = vld [vmem:[%s492 + $0x60] sm:$0xff]
        %v584 = vld [vmem:[%s492 + $0x68] sm:$0xff]
        %v585 = vld [vmem:[%s492 + $0x70] sm:$0xff]
        %v586 = vld [vmem:[%s492 + $0x78] sm:$0xff]
        %v587 = vld [vmem:[%s492 + $0x80] sm:$0xff]
        %v588 = vld [vmem:[%s492 + $0x88] sm:$0xff]
        %v589 = vld [vmem:[%s492 + $0x90] sm:$0xff]
        %v590 = vld [vmem:[%s492 + $0x98] sm:$0xff]
        %v591 = vld [vmem:[%s492 + $0xa0] sm:$0xff]
        %v592 = vld [vmem:[%s492 + $0xa8] sm:$0xff]
        %v593 = vld [vmem:[%s492 + $0xb0] sm:$0xff]
        %v594 = vld [vmem:[%s492 + $0xb8] sm:$0xff]
        %v595 = vld [vmem:[%s492 + $0xc0] sm:$0xff]
        %v596 = vld [vmem:[%s492 + $0xc8] sm:$0xff]
        %v597 = vld [vmem:[%s492 + $0xd0] sm:$0xff]
        %v598 = vld [vmem:[%s492 + $0xd8] sm:$0xff]
        %v599 = vld [vmem:[%s492 + $0xe0] sm:$0xff]
        %v600 = vld [vmem:[%s492 + $0xe8] sm:$0xff]
        %v601 = vld [vmem:[%s492 + $0xf0] sm:$0xff]
        %v602 = vld [vmem:[%s492 + $0xf8] sm:$0xff]
        %v603 = vld [vmem:[%s492 + $0x100] sm:$0xff]
        %v604 = vld [vmem:[%s492 + $0x108] sm:$0xff]
        %v605 = vld [vmem:[%s492 + $0x110] sm:$0xff]
        %v606 = vld [vmem:[%s492 + $0x118] sm:$0xff]
        %v607 = vld [vmem:[%s492 + $0x120] sm:$0xff]
        %v608 = vld [vmem:[%s492 + $0x128] sm:$0xff]
        %v609 = vld [vmem:[%s492 + $0x130] sm:$0xff]
        %v610 = vld [vmem:[%s492 + $0x138] sm:$0xff]
        %v611 = vld [vmem:[#allocation5] sm:$0x1]
        %v612 = vld [vmem:[#allocation7] sm:$0x1]
        %vm613 = vcmask 261120
        %v614 = vsel %vm613, %v571, 0.0
        %v615 = vsel %vm613, %v572, 0.0
        %v616 = vadd.f32 %v614, %v615
        %v617 = vsel %vm613, %v573, 0.0
        %v618 = vadd.f32 %v616, %v617
        %v619 = vsel %vm613, %v574, 0.0
        %v620 = vadd.f32 %v618, %v619
        %v621 = vsel %vm613, %v575, 0.0
        %v622 = vadd.f32 %v620, %v621
        %v623 = vsel %vm613, %v576, 0.0
        %v624 = vadd.f32 %v622, %v623
        %v625 = vsel %vm613, %v577, 0.0
        %v626 = vadd.f32 %v624, %v625
        %v627 = vsel %vm613, %v578, 0.0
        %v628 = vadd.f32 %v626, %v627
        %v629 = vrot.slane %v628, 4
        %v630 = vadd.f32 %v628, %v629
        %v631 = vrot.slane %v630, 2
        %v632 = vadd.f32 %v630, %v631
        %v633 = vrot.slane %v632, 1
        %v634 = vadd.f32 %v632, %v633
        %v635 = vsel %vm613, %v579, 0.0
        %v636 = vsel %vm613, %v580, 0.0
        %v637 = vadd.f32 %v635, %v636
        %v638 = vsel %vm613, %v581, 0.0
        %v639 = vadd.f32 %v637, %v638
        %v640 = vsel %vm613, %v582, 0.0
        %v641 = vadd.f32 %v639, %v640
        %v642 = vsel %vm613, %v583, 0.0
        %v643 = vadd.f32 %v641, %v642
        %v644 = vsel %vm613, %v584, 0.0
        %v645 = vadd.f32 %v643, %v644
        %v646 = vsel %vm613, %v585, 0.0
        %v647 = vadd.f32 %v645, %v646
        %v648 = vsel %vm613, %v586, 0.0
        %v649 = vadd.f32 %v647, %v648
        %v650 = vrot.slane %v649, 4
        %v651 = vadd.f32 %v649, %v650
        %v652 = vrot.slane %v651, 2
        %v653 = vadd.f32 %v651, %v652
        %v654 = vrot.slane %v653, 1
        %v655 = vadd.f32 %v653, %v654
        %v656 = vsel %vm613, %v587, 0.0
        %v657 = vsel %vm613, %v588, 0.0
        %v658 = vadd.f32 %v656, %v657
        %v659 = vsel %vm613, %v589, 0.0
        %v660 = vadd.f32 %v658, %v659
        %v661 = vsel %vm613, %v590, 0.0
        %v662 = vadd.f32 %v660, %v661
        %v663 = vsel %vm613, %v591, 0.0
        %v664 = vadd.f32 %v662, %v663
        %v665 = vsel %vm613, %v592, 0.0
        %v666 = vadd.f32 %v664, %v665
        %v667 = vsel %vm613, %v593, 0.0
        %v668 = vadd.f32 %v666, %v667
        %v669 = vsel %vm613, %v594, 0.0
        %v670 = vadd.f32 %v668, %v669
        %v671 = vrot.slane %v670, 4
        %v672 = vadd.f32 %v670, %v671
        %v673 = vrot.slane %v672, 2
        %v674 = vadd.f32 %v672, %v673
        %v675 = vrot.slane %v674, 1
        %v676 = vadd.f32 %v674, %v675
        %v677 = vsel %vm613, %v595, 0.0
        %v678 = vsel %vm613, %v596, 0.0
        %v679 = vadd.f32 %v677, %v678
        %v680 = vsel %vm613, %v597, 0.0
        %v681 = vadd.f32 %v679, %v680
        %v682 = vsel %vm613, %v598, 0.0
        %v683 = vadd.f32 %v681, %v682
        %v684 = vsel %vm613, %v599, 0.0
        %v685 = vadd.f32 %v683, %v684
        %v686 = vsel %vm613, %v600, 0.0
        %v687 = vadd.f32 %v685, %v686
        %v688 = vsel %vm613, %v601, 0.0
        %v689 = vadd.f32 %v687, %v688
        %v690 = vsel %vm613, %v602, 0.0
        %v691 = vadd.f32 %v689, %v690
        %v692 = vrot.slane %v691, 4
        %v693 = vadd.f32 %v691, %v692
        %v694 = vrot.slane %v693, 2
        %v695 = vadd.f32 %v693, %v694
        %v696 = vrot.slane %v695, 1
        %v697 = vadd.f32 %v695, %v696
        %v698 = vsel %vm613, %v603, 0.0
        %v699 = vsel %vm613, %v604, 0.0
        %v700 = vadd.f32 %v698, %v699
        %v701 = vsel %vm613, %v605, 0.0
        %v702 = vadd.f32 %v700, %v701
        %v703 = vsel %vm613, %v606, 0.0
        %v704 = vadd.f32 %v702, %v703
        %v705 = vsel %vm613, %v607, 0.0
        %v706 = vadd.f32 %v704, %v705
        %v707 = vsel %vm613, %v608, 0.0
        %v708 = vadd.f32 %v706, %v707
        %v709 = vsel %vm613, %v609, 0.0
        %v710 = vadd.f32 %v708, %v709
        %v711 = vsel %vm613, %v610, 0.0
        %v712 = vadd.f32 %v710, %v711
        %v713 = vrot.slane %v712, 4
        %v714 = vadd.f32 %v712, %v713
        %v715 = vrot.slane %v714, 2
        %v716 = vadd.f32 %v714, %v715
        %v717 = vrot.slane %v716, 1
        %v718 = vadd.f32 %v716, %v717
        %v719 = vmul.f32 %v571, %v571
        %v720 = vmul.f32 %v572, %v572
        %v721 = vmul.f32 %v573, %v573
        %v722 = vmul.f32 %v574, %v574
        %v723 = vmul.f32 %v575, %v575
        %v724 = vmul.f32 %v576, %v576
        %v725 = vmul.f32 %v577, %v577
        %v726 = vmul.f32 %v578, %v578
        %v727 = vmul.f32 %v579, %v579
        %v728 = vmul.f32 %v580, %v580
        %v729 = vmul.f32 %v581, %v581
        %v730 = vmul.f32 %v582, %v582
        %v731 = vmul.f32 %v583, %v583
        %v732 = vmul.f32 %v584, %v584
        %v733 = vmul.f32 %v585, %v585
        %v734 = vmul.f32 %v586, %v586
        %v735 = vmul.f32 %v587, %v587
        %v736 = vmul.f32 %v588, %v588
        %v737 = vmul.f32 %v589, %v589
        %v738 = vmul.f32 %v590, %v590
        %v739 = vmul.f32 %v591, %v591
        %v740 = vmul.f32 %v592, %v592
        %v741 = vmul.f32 %v593, %v593
        %v742 = vmul.f32 %v594, %v594
        %v743 = vmul.f32 %v595, %v595
        %v744 = vmul.f32 %v596, %v596
        %v745 = vmul.f32 %v597, %v597
        %v746 = vmul.f32 %v598, %v598
        %v747 = vmul.f32 %v599, %v599
        %v748 = vmul.f32 %v600, %v600
        %v749 = vmul.f32 %v601, %v601
        %v750 = vmul.f32 %v602, %v602
        %v751 = vmul.f32 %v603, %v603
        %v752 = vmul.f32 %v604, %v604
        %v753 = vmul.f32 %v605, %v605
        %v754 = vmul.f32 %v606, %v606
        %v755 = vmul.f32 %v607, %v607
        %v756 = vmul.f32 %v608, %v608
        %v757 = vmul.f32 %v609, %v609
        %v758 = vmul.f32 %v610, %v610
        %v759 = vsel %vm613, %v719, 0.0
        %v760 = vsel %vm613, %v720, 0.0
        %v761 = vadd.f32 %v759, %v760
        %v762 = vsel %vm613, %v721, 0.0
        %v763 = vadd.f32 %v761, %v762
        %v764 = vsel %vm613, %v722, 0.0
        %v765 = vadd.f32 %v763, %v764
        %v766 = vsel %vm613, %v723, 0.0
        %v767 = vadd.f32 %v765, %v766
        %v768 = vsel %vm613, %v724, 0.0
        %v769 = vadd.f32 %v767, %v768
        %v770 = vsel %vm613, %v725, 0.0
        %v771 = vadd.f32 %v769, %v770
        %v772 = vsel %vm613, %v726, 0.0
        %v773 = vadd.f32 %v771, %v772
        %v774 = vrot.slane %v773, 4
        %v775 = vadd.f32 %v773, %v774
        %v776 = vrot.slane %v775, 2
        %v777 = vadd.f32 %v775, %v776
        %v778 = vrot.slane %v777, 1
        %v779 = vadd.f32 %v777, %v778
        %v780 = vsel %vm613, %v727, 0.0
        %v781 = vsel %vm613, %v728, 0.0
        %v782 = vadd.f32 %v780, %v781
        %v783 = vsel %vm613, %v729, 0.0
        %v784 = vadd.f32 %v782, %v783
        %v785 = vsel %vm613, %v730, 0.0
        %v786 = vadd.f32 %v784, %v785
        %v787 = vsel %vm613, %v731, 0.0
        %v788 = vadd.f32 %v786, %v787
        %v789 = vsel %vm613, %v732, 0.0
        %v790 = vadd.f32 %v788, %v789
        %v791 = vsel %vm613, %v733, 0.0
        %v792 = vadd.f32 %v790, %v791
        %v793 = vsel %vm613, %v734, 0.0
        %v794 = vadd.f32 %v792, %v793
        %v795 = vrot.slane %v794, 4
        %v796 = vadd.f32 %v794, %v795
        %v797 = vrot.slane %v796, 2
        %v798 = vadd.f32 %v796, %v797
        %v799 = vrot.slane %v798, 1
        %v800 = vadd.f32 %v798, %v799
        %v801 = vsel %vm613, %v735, 0.0
        %v802 = vsel %vm613, %v736, 0.0
        %v803 = vadd.f32 %v801, %v802
        %v804 = vsel %vm613, %v737, 0.0
        %v805 = vadd.f32 %v803, %v804
        %v806 = vsel %vm613, %v738, 0.0
        %v807 = vadd.f32 %v805, %v806
        %v808 = vsel %vm613, %v739, 0.0
        %v809 = vadd.f32 %v807, %v808
        %v810 = vsel %vm613, %v740, 0.0
        %v811 = vadd.f32 %v809, %v810
        %v812 = vsel %vm613, %v741, 0.0
        %v813 = vadd.f32 %v811, %v812
        %v814 = vsel %vm613, %v742, 0.0
        %v815 = vadd.f32 %v813, %v814
        %v816 = vrot.slane %v815, 4
        %v817 = vadd.f32 %v815, %v816
        %v818 = vrot.slane %v817, 2
        %v819 = vadd.f32 %v817, %v818
        %v820 = vrot.slane %v819, 1
        %v821 = vadd.f32 %v819, %v820
        %v822 = vsel %vm613, %v743, 0.0
        %v823 = vsel %vm613, %v744, 0.0
        %v824 = vadd.f32 %v822, %v823
        %v825 = vsel %vm613, %v745, 0.0
        %v826 = vadd.f32 %v824, %v825
        %v827 = vsel %vm613, %v746, 0.0
        %v828 = vadd.f32 %v826, %v827
        %v829 = vsel %vm613, %v747, 0.0
        %v830 = vadd.f32 %v828, %v829
        %v831 = vsel %vm613, %v748, 0.0
        %v832 = vadd.f32 %v830, %v831
        %v833 = vsel %vm613, %v749, 0.0
        %v834 = vadd.f32 %v832, %v833
        %v835 = vsel %vm613, %v750, 0.0
        %v836 = vadd.f32 %v834, %v835
        %v837 = vrot.slane %v836, 4
        %v838 = vadd.f32 %v836, %v837
        %v839 = vrot.slane %v838, 2
        %v840 = vadd.f32 %v838, %v839
        %v841 = vrot.slane %v840, 1
        %v842 = vadd.f32 %v840, %v841
        %v843 = vsel %vm613, %v751, 0.0
        %v844 = vsel %vm613, %v752, 0.0
        %v845 = vadd.f32 %v843, %v844
        %v846 = vsel %vm613, %v753, 0.0
        %v847 = vadd.f32 %v845, %v846
        %v848 = vsel %vm613, %v754, 0.0
        %v849 = vadd.f32 %v847, %v848
        %v850 = vsel %vm613, %v755, 0.0
        %v851 = vadd.f32 %v849, %v850
        %v852 = vsel %vm613, %v756, 0.0
        %v853 = vadd.f32 %v851, %v852
        %v854 = vsel %vm613, %v757, 0.0
        %v855 = vadd.f32 %v853, %v854
        %v856 = vsel %vm613, %v758, 0.0
        %v857 = vadd.f32 %v855, %v856
        %v858 = vrot.slane %v857, 4
        %v859 = vadd.f32 %v857, %v858
        %v860 = vrot.slane %v859, 2
        %v861 = vadd.f32 %v859, %v860
        %v862 = vrot.slane %v861, 1
        %v863 = vadd.f32 %v861, %v862
        %v864 = vmul.f32 %v634, 0.015625
        %v865 = vmul.f32 %v655, 0.015625
        %v866 = vmul.f32 %v676, 0.015625
        %v867 = vmul.f32 %v697, 0.015625
        %v868 = vmul.f32 %v718, 0.015625
        %v869 = vmul.f32 %v779, 0.015625
        %v870 = vmul.f32 %v800, 0.015625
        %v871 = vmul.f32 %v821, 0.015625
        %v872 = vmul.f32 %v842, 0.015625
        %v873 = vmul.f32 %v863, 0.015625
        %v874 = vmul.f32 %v864, %v864
        %v875 = vmul.f32 %v865, %v865
        %v876 = vmul.f32 %v866, %v866
        %v877 = vmul.f32 %v867, %v867
        %v878 = vmul.f32 %v868, %v868
        %v879 = vsub.f32 %v869, %v874
        %v880 = vsub.f32 %v870, %v875
        %v881 = vsub.f32 %v871, %v876
        %v882 = vsub.f32 %v872, %v877
        %v883 = vsub.f32 %v873, %v878
        %v884 = vmax.f32 %v879, 0.0
        %v885 = vmax.f32 %v880, 0.0
        %v886 = vmax.f32 %v881, 0.0
        %v887 = vmax.f32 %v882, 0.0
        %v888 = vmax.f32 %v883, 0.0
        %v889 = vadd.f32 %v884, 1e-06
        %v890 = vadd.f32 %v885, 1e-06
        %v891 = vadd.f32 %v886, 1e-06
        %v892 = vadd.f32 %v887, 1e-06
        %v893 = vadd.f32 %v888, 1e-06
        %v894 = vrsqrt.pop %v889
        %v895 = vmul.f32 %v894, %v889
        %v896 = vmul.f32 %v895, %v894
        %v897 = vmul.f32 0.5, %v896
        %v898 = vsub.f32 1.5, %v897
        %v899 = vmul.f32 %v894, %v898
        %vm900 = vweird.f32 %v889
        %vm901 = vweird.f32 %v894
        %vm902 = vmor %vm900, %vm901
        %v903 = vsel %vm902, %v894, %v899
        %v904 = vrsqrt.pop %v890
        %v905 = vmul.f32 %v904, %v890
        %v906 = vmul.f32 %v905, %v904
        %v907 = vmul.f32 0.5, %v906
        %v908 = vsub.f32 1.5, %v907
        %v909 = vmul.f32 %v904, %v908
        %vm910 = vweird.f32 %v890
        %vm911 = vweird.f32 %v904
        %vm912 = vmor %vm910, %vm911
        %v913 = vsel %vm912, %v904, %v909
        %v914 = vrsqrt.pop %v891
        %v915 = vmul.f32 %v914, %v891
        %v916 = vmul.f32 %v915, %v914
        %v917 = vmul.f32 0.5, %v916
        %v918 = vsub.f32 1.5, %v917
        %v919 = vmul.f32 %v914, %v918
        %vm920 = vweird.f32 %v891
        %vm921 = vweird.f32 %v914
        %vm922 = vmor %vm920, %vm921
        %v923 = vsel %vm922, %v914, %v919
        %v924 = vrsqrt.pop %v892
        %v925 = vmul.f32 %v924, %v892
        %v926 = vmul.f32 %v925, %v924
        %v927 = vmul.f32 0.5, %v926
        %v928 = vsub.f32 1.5, %v927
        %v929 = vmul.f32 %v924, %v928
        %vm930 = vweird.f32 %v892
        %vm931 = vweird.f32 %v924
        %vm932 = vmor %vm930, %vm931
        %v933 = vsel %vm932, %v924, %v929
        %v934 = vrsqrt.pop %v893
        %v935 = vmul.f32 %v934, %v893
        %v936 = vmul.f32 %v935, %v934
        %v937 = vmul.f32 0.5, %v936
        %v938 = vsub.f32 1.5, %v937
        %v939 = vmul.f32 %v934, %v938
        %vm940 = vweird.f32 %v893
        %vm941 = vweird.f32 %v934
        %vm942 = vmor %vm940, %vm941
        %v943 = vsel %vm942, %v934, %v939
        %v944 = vsub.f32 %v571, %v864
        %v945 = vsub.f32 %v572, %v864
        %v946 = vsub.f32 %v573, %v864
        %v947 = vsub.f32 %v574, %v864
        %v948 = vsub.f32 %v575, %v864
        %v949 = vsub.f32 %v576, %v864
        %v950 = vsub.f32 %v577, %v864
        %v951 = vsub.f32 %v578, %v864
        %v952 = vsub.f32 %v579, %v865
        %v953 = vsub.f32 %v580, %v865
        %v954 = vsub.f32 %v581, %v865
        %v955 = vsub.f32 %v582, %v865
        %v956 = vsub.f32 %v583, %v865
        %v957 = vsub.f32 %v584, %v865
        %v958 = vsub.f32 %v585, %v865
        %v959 = vsub.f32 %v586, %v865
        %v960 = vsub.f32 %v587, %v866
        %v961 = vsub.f32 %v588, %v866
        %v962 = vsub.f32 %v589, %v866
        %v963 = vsub.f32 %v590, %v866
        %v964 = vsub.f32 %v591, %v866
        %v965 = vsub.f32 %v592, %v866
        %v966 = vsub.f32 %v593, %v866
        %v967 = vsub.f32 %v594, %v866
        %v968 = vsub.f32 %v595, %v867
        %v969 = vsub.f32 %v596, %v867
        %v970 = vsub.f32 %v597, %v867
        %v971 = vsub.f32 %v598, %v867
        %v972 = vsub.f32 %v599, %v867
        %v973 = vsub.f32 %v600, %v867
        %v974 = vsub.f32 %v601, %v867
        %v975 = vsub.f32 %v602, %v867
        %v976 = vsub.f32 %v603, %v868
        %v977 = vsub.f32 %v604, %v868
        %v978 = vsub.f32 %v605, %v868
        %v979 = vsub.f32 %v606, %v868
        %v980 = vsub.f32 %v607, %v868
        %v981 = vsub.f32 %v608, %v868
        %v982 = vsub.f32 %v609, %v868
        %v983 = vsub.f32 %v610, %v868
        %v984 = vmul.f32 %v944, %v903
        %v985 = vmul.f32 %v945, %v903
        %v986 = vmul.f32 %v946, %v903
        %v987 = vmul.f32 %v947, %v903
        %v988 = vmul.f32 %v948, %v903
        %v989 = vmul.f32 %v949, %v903
        %v990 = vmul.f32 %v950, %v903
        %v991 = vmul.f32 %v951, %v903
        %v992 = vmul.f32 %v952, %v913
        %v993 = vmul.f32 %v953, %v913
        %v994 = vmul.f32 %v954, %v913
        %v995 = vmul.f32 %v955, %v913
        %v996 = vmul.f32 %v956, %v913
        %v997 = vmul.f32 %v957, %v913
        %v998 = vmul.f32 %v958, %v913
        %v999 = vmul.f32 %v959, %v913
        %v1000 = vmul.f32 %v960, %v923
        %v1001 = vmul.f32 %v961, %v923
        %v1002 = vmul.f32 %v962, %v923
        %v1003 = vmul.f32 %v963, %v923
        %v1004 = vmul.f32 %v964, %v923
        %v1005 = vmul.f32 %v965, %v923
        %v1006 = vmul.f32 %v966, %v923
        %v1007 = vmul.f32 %v967, %v923
        %v1008 = vmul.f32 %v968, %v933
        %v1009 = vmul.f32 %v969, %v933
        %v1010 = vmul.f32 %v970, %v933
        %v1011 = vmul.f32 %v971, %v933
        %v1012 = vmul.f32 %v972, %v933
        %v1013 = vmul.f32 %v973, %v933
        %v1014 = vmul.f32 %v974, %v933
        %v1015 = vmul.f32 %v975, %v933
        %v1016 = vmul.f32 %v976, %v943
        %v1017 = vmul.f32 %v977, %v943
        %v1018 = vmul.f32 %v978, %v943
        %v1019 = vmul.f32 %v979, %v943
        %v1020 = vmul.f32 %v980, %v943
        %v1021 = vmul.f32 %v981, %v943
        %v1022 = vmul.f32 %v982, %v943
        %v1023 = vmul.f32 %v983, %v943
        %v1025 = vperm.slane %v611, 0
        %v1027 = vmul.f32 %v984, %v1025
        %v1028 = vmul.f32 %v985, %v1025
        %v1029 = vmul.f32 %v986, %v1025
        %v1030 = vmul.f32 %v987, %v1025
        %v1031 = vmul.f32 %v988, %v1025
        %v1032 = vmul.f32 %v989, %v1025
        %v1033 = vmul.f32 %v990, %v1025
        %v1034 = vmul.f32 %v991, %v1025
        %v1035 = vmul.f32 %v992, %v1025
        %v1036 = vmul.f32 %v993, %v1025
        %v1037 = vmul.f32 %v994, %v1025
        %v1038 = vmul.f32 %v995, %v1025
        %v1039 = vmul.f32 %v996, %v1025
        %v1040 = vmul.f32 %v997, %v1025
        %v1041 = vmul.f32 %v998, %v1025
        %v1042 = vmul.f32 %v999, %v1025
        %v1043 = vmul.f32 %v1000, %v1025
        %v1044 = vmul.f32 %v1001, %v1025
        %v1045 = vmul.f32 %v1002, %v1025
        %v1046 = vmul.f32 %v1003, %v1025
        %v1047 = vmul.f32 %v1004, %v1025
        %v1048 = vmul.f32 %v1005, %v1025
        %v1049 = vmul.f32 %v1006, %v1025
        %v1050 = vmul.f32 %v1007, %v1025
        %v1051 = vmul.f32 %v1008, %v1025
        %v1052 = vmul.f32 %v1009, %v1025
        %v1053 = vmul.f32 %v1010, %v1025
        %v1054 = vmul.f32 %v1011, %v1025
        %v1055 = vmul.f32 %v1012, %v1025
        %v1056 = vmul.f32 %v1013, %v1025
        %v1057 = vmul.f32 %v1014, %v1025
        %v1058 = vmul.f32 %v1015, %v1025
        %v1059 = vmul.f32 %v1016, %v1025
        %v1060 = vmul.f32 %v1017, %v1025
        %v1061 = vmul.f32 %v1018, %v1025
        %v1062 = vmul.f32 %v1019, %v1025
        %v1063 = vmul.f32 %v1020, %v1025
        %v1064 = vmul.f32 %v1021, %v1025
        %v1065 = vmul.f32 %v1022, %v1025
        %v1066 = vmul.f32 %v1023, %v1025
        %v1068 = vperm.slane %v612, 0
        %v1070 = vadd.f32 %v1027, %v1068
        %v1071 = vadd.f32 %v1028, %v1068
        %v1072 = vadd.f32 %v1029, %v1068
        %v1073 = vadd.f32 %v1030, %v1068
        %v1074 = vadd.f32 %v1031, %v1068
        %v1075 = vadd.f32 %v1032, %v1068
        %v1076 = vadd.f32 %v1033, %v1068
        %v1077 = vadd.f32 %v1034, %v1068
        %v1078 = vadd.f32 %v1035, %v1068
        %v1079 = vadd.f32 %v1036, %v1068
        %v1080 = vadd.f32 %v1037, %v1068
        %v1081 = vadd.f32 %v1038, %v1068
        %v1082 = vadd.f32 %v1039, %v1068
        %v1083 = vadd.f32 %v1040, %v1068
        %v1084 = vadd.f32 %v1041, %v1068
        %v1085 = vadd.f32 %v1042, %v1068
        %v1086 = vadd.f32 %v1043, %v1068
        %v1087 = vadd.f32 %v1044, %v1068
        %v1088 = vadd.f32 %v1045, %v1068
        %v1089 = vadd.f32 %v1046, %v1068
        %v1090 = vadd.f32 %v1047, %v1068
        %v1091 = vadd.f32 %v1048, %v1068
        %v1092 = vadd.f32 %v1049, %v1068
        %v1093 = vadd.f32 %v1050, %v1068
        %v1094 = vadd.f32 %v1051, %v1068
        %v1095 = vadd.f32 %v1052, %v1068
        %v1096 = vadd.f32 %v1053, %v1068
        %v1097 = vadd.f32 %v1054, %v1068
        %v1098 = vadd.f32 %v1055, %v1068
        %v1099 = vadd.f32 %v1056, %v1068
        %v1100 = vadd.f32 %v1057, %v1068
        %v1101 = vadd.f32 %v1058, %v1068
        %v1102 = vadd.f32 %v1059, %v1068
        %v1103 = vadd.f32 %v1060, %v1068
        %v1104 = vadd.f32 %v1061, %v1068
        %v1105 = vadd.f32 %v1062, %v1068
        %v1106 = vadd.f32 %v1063, %v1068
        %v1107 = vadd.f32 %v1064, %v1068
        %v1108 = vadd.f32 %v1065, %v1068
        %v1109 = vadd.f32 %v1066, %v1068
        %v1110 = vld [vmem:[#allocation8] sm:$0xff]
        %v1111 = vld [vmem:[#allocation8 + $0x8] sm:$0xff]
        %v1112 = vld [vmem:[#allocation8 + $0x10] sm:$0xff]
        %v1113 = vld [vmem:[#allocation8 + $0x18] sm:$0xff]
        %v1114 = vld [vmem:[%s4] sm:$0x1]
        %v1116 = vperm.slane %v1114, 0
        %v1119 = vsel %vm613, %v1070, 0
        %v1122 = vsel %vm613, %v1071, 0
        %v1125 = vsel %vm613, %v1072, 0
        %v1128 = vsel %vm613, %v1073, 0
        %v1131 = vsel %vm613, %v1074, 0
        %v1134 = vsel %vm613, %v1075, 0
        %v1137 = vsel %vm613, %v1076, 0
        %v1140 = vsel %vm613, %v1077, 0
        %v1143 = vsel %vm613, %v1078, 0
        %v1146 = vsel %vm613, %v1079, 0
        %v1149 = vsel %vm613, %v1080, 0
        %v1152 = vsel %vm613, %v1081, 0
        %v1155 = vsel %vm613, %v1082, 0
        %v1158 = vsel %vm613, %v1083, 0
        %v1161 = vsel %vm613, %v1084, 0
        %v1164 = vsel %vm613, %v1085, 0
        %v1167 = vsel %vm613, %v1086, 0
        %v1170 = vsel %vm613, %v1087, 0
        %v1173 = vsel %vm613, %v1088, 0
        %v1176 = vsel %vm613, %v1089, 0
        %v1179 = vsel %vm613, %v1090, 0
        %v1182 = vsel %vm613, %v1091, 0
        %v1185 = vsel %vm613, %v1092, 0
        %v1188 = vsel %vm613, %v1093, 0
        %v1191 = vsel %vm613, %v1094, 0
        %v1194 = vsel %vm613, %v1095, 0
        %v1197 = vsel %vm613, %v1096, 0
        %v1200 = vsel %vm613, %v1097, 0
        %v1203 = vsel %vm613, %v1098, 0
        %v1206 = vsel %vm613, %v1099, 0
        %v1209 = vsel %vm613, %v1100, 0
        %v1212 = vsel %vm613, %v1101, 0
        %v1215 = vsel %vm613, %v1102, 0
        %v1218 = vsel %vm613, %v1103, 0
        %v1221 = vsel %vm613, %v1104, 0
        %v1224 = vsel %vm613, %v1105, 0
        %v1227 = vsel %vm613, %v1106, 0
        %v1230 = vsel %vm613, %v1107, 0
        %v1233 = vsel %vm613, %v1108, 0
        %v1236 = vsel %vm613, %v1109, 0
        %1238 = vmatpush.msra.mxu0 0.0
        %1239 = vmatpush.msra.mxu0 0.0
        %1240 = vmatpush.msra.mxu0 0.0
        %1241 = vmatpush.msra.mxu0 0.0
        %1242 = vmatpush.msra.mxu0 0.0
        %1243 = vmatpush.msra.mxu0 0.0
        %1244 = vmatpush.msra.mxu0 0.0
        %1245 = vmatpush.msra.mxu0 0.0
        %1246 = vmatpush.msra.mxu0 0.0
        %1247 = vmatpush.msra.mxu0 0.0
        %1248 = vmatpush.msra.mxu0 0.0
        %1249 = vmatpush.msra.mxu0 0.0
        %1250 = vmatpush.msra.mxu0 %v1113
        %1251 = vmatpush.msra.mxu0 %v1112
        %1252 = vmatpush.msra.mxu0 %v1111
        %1253 = vmatpush.msra.mxu0 %v1110
        %1254 = vmatmul.f32.gmra.mxu0 %v1119
        %v1255 = vpop.f32.mrf.mxu0
        %v1256 = vadd.f32 %v1116, %v1255
        %1257 = vmatmul.f32.gmra.mxu0 %v1122
        %v1258 = vpop.f32.mrf.mxu0
        %v1259 = vadd.f32 %v1116, %v1258
        %1260 = vmatmul.f32.gmra.mxu0 %v1125
        %v1261 = vpop.f32.mrf.mxu0
        %v1262 = vadd.f32 %v1116, %v1261
        %1263 = vmatmul.f32.gmra.mxu0 %v1128
        %v1264 = vpop.f32.mrf.mxu0
        %v1265 = vadd.f32 %v1116, %v1264
        %1266 = vmatmul.f32.gmra.mxu0 %v1131
        %v1267 = vpop.f32.mrf.mxu0
        %v1268 = vadd.f32 %v1116, %v1267
        %1269 = vmatmul.f32.gmra.mxu0 %v1134
        %v1270 = vpop.f32.mrf.mxu0
        %v1271 = vadd.f32 %v1116, %v1270
        %1272 = vmatmul.f32.gmra.mxu0 %v1137
        %v1273 = vpop.f32.mrf.mxu0
        %v1274 = vadd.f32 %v1116, %v1273
        %1275 = vmatmul.f32.gmra.mxu0 %v1140
        %v1276 = vpop.f32.mrf.mxu0
        %v1277 = vadd.f32 %v1116, %v1276
        %1278 = vmatmul.f32.gmra.mxu0 %v1143
        %v1279 = vpop.f32.mrf.mxu0
        %v1280 = vadd.f32 %v1116, %v1279
        %1281 = vmatmul.f32.gmra.mxu0 %v1146
        %v1282 = vpop.f32.mrf.mxu0
        %v1283 = vadd.f32 %v1116, %v1282
        %1284 = vmatmul.f32.gmra.mxu0 %v1149
        %v1285 = vpop.f32.mrf.mxu0
        %v1286 = vadd.f32 %v1116, %v1285
        %1287 = vmatmul.f32.gmra.mxu0 %v1152
        %v1288 = vpop.f32.mrf.mxu0
        %v1289 = vadd.f32 %v1116, %v1288
        %1290 = vmatmul.f32.gmra.mxu0 %v1155
        %v1291 = vpop.f32.mrf.mxu0
        %v1292 = vadd.f32 %v1116, %v1291
        %1293 = vmatmul.f32.gmra.mxu0 %v1158
        %v1294 = vpop.f32.mrf.mxu0
        %v1295 = vadd.f32 %v1116, %v1294
        %1296 = vmatmul.f32.gmra.mxu0 %v1161
        %v1297 = vpop.f32.mrf.mxu0
        %v1298 = vadd.f32 %v1116, %v1297
        %1299 = vmatmul.f32.gmra.mxu0 %v1164
        %v1300 = vpop.f32.mrf.mxu0
        %v1301 = vadd.f32 %v1116, %v1300
        %1302 = vmatmul.f32.gmra.mxu0 %v1167
        %v1303 = vpop.f32.mrf.mxu0
        %v1304 = vadd.f32 %v1116, %v1303
        %1305 = vmatmul.f32.gmra.mxu0 %v1170
        %v1306 = vpop.f32.mrf.mxu0
        %v1307 = vadd.f32 %v1116, %v1306
        %1308 = vmatmul.f32.gmra.mxu0 %v1173
        %v1309 = vpop.f32.mrf.mxu0
        %v1310 = vadd.f32 %v1116, %v1309
        %1311 = vmatmul.f32.gmra.mxu0 %v1176
        %v1312 = vpop.f32.mrf.mxu0
        %v1313 = vadd.f32 %v1116, %v1312
        %1314 = vmatmul.f32.gmra.mxu0 %v1179
        %v1315 = vpop.f32.mrf.mxu0
        %v1316 = vadd.f32 %v1116, %v1315
        %1317 = vmatmul.f32.gmra.mxu0 %v1182
        %v1318 = vpop.f32.mrf.mxu0
        %v1319 = vadd.f32 %v1116, %v1318
        %1320 = vmatmul.f32.gmra.mxu0 %v1185
        %v1321 = vpop.f32.mrf.mxu0
        %v1322 = vadd.f32 %v1116, %v1321
        %1323 = vmatmul.f32.gmra.mxu0 %v1188
        %v1324 = vpop.f32.mrf.mxu0
        %v1325 = vadd.f32 %v1116, %v1324
        %1326 = vmatmul.f32.gmra.mxu0 %v1191
        %v1327 = vpop.f32.mrf.mxu0
        %v1328 = vadd.f32 %v1116, %v1327
        %1329 = vmatmul.f32.gmra.mxu0 %v1194
        %v1330 = vpop.f32.mrf.mxu0
        %v1331 = vadd.f32 %v1116, %v1330
        %1332 = vmatmul.f32.gmra.mxu0 %v1197
        %v1333 = vpop.f32.mrf.mxu0
        %v1334 = vadd.f32 %v1116, %v1333
        %1335 = vmatmul.f32.gmra.mxu0 %v1200
        %v1336 = vpop.f32.mrf.mxu0
        %v1337 = vadd.f32 %v1116, %v1336
        %1338 = vmatmul.f32.gmra.mxu0 %v1203
        %v1339 = vpop.f32.mrf.mxu0
        %v1340 = vadd.f32 %v1116, %v1339
        %1341 = vmatmul.f32.gmra.mxu0 %v1206
        %v1342 = vpop.f32.mrf.mxu0
        %v1343 = vadd.f32 %v1116, %v1342
        %1344 = vmatmul.f32.gmra.mxu0 %v1209
        %v1345 = vpop.f32.mrf.mxu0
        %v1346 = vadd.f32 %v1116, %v1345
        %1347 = vmatmul.f32.gmra.mxu0 %v1212
        %v1348 = vpop.f32.mrf.mxu0
        %v1349 = vadd.f32 %v1116, %v1348
        %1350 = vmatmul.f32.gmra.mxu0 %v1215
        %v1351 = vpop.f32.mrf.mxu0
        %v1352 = vadd.f32 %v1116, %v1351
        %1353 = vmatmul.f32.gmra.mxu0 %v1218
        %v1354 = vpop.f32.mrf.mxu0
        %v1355 = vadd.f32 %v1116, %v1354
        %1356 = vmatmul.f32.gmra.mxu0 %v1221
        %v1357 = vpop.f32.mrf.mxu0
        %v1358 = vadd.f32 %v1116, %v1357
        %1359 = vmatmul.f32.gmra.mxu0 %v1224
        %v1360 = vpop.f32.mrf.mxu0
        %v1361 = vadd.f32 %v1116, %v1360
        %1362 = vmatmul.f32.gmra.mxu0 %v1227
        %v1363 = vpop.f32.mrf.mxu0
        %v1364 = vadd.f32 %v1116, %v1363
        %1365 = vmatmul.f32.gmra.mxu0 %v1230
        %v1366 = vpop.f32.mrf.mxu0
        %v1367 = vadd.f32 %v1116, %v1366
        %1368 = vmatmul.f32.gmra.mxu0 %v1233
        %v1369 = vpop.f32.mrf.mxu0
        %v1370 = vadd.f32 %v1116, %v1369
        %1371 = vmatmul.f32.gmra.mxu0 %v1236
        %v1372 = vpop.f32.mrf.mxu0
        %v1373 = vadd.f32 %v1116, %v1372
        %1374 = vdwg.mxu0
        %1383 = vrot.lane.b32.xlu0 %v1256, 96
        %v1384 = vpop.permute.xlu0 %1383
        %1385 = vrot.lane.b32.xlu0 %v1259, 96
        %v1386 = vpop.permute.xlu0 %1385
        %1387 = vrot.lane.b32.xlu0 %v1262, 96
        %v1388 = vpop.permute.xlu0 %1387
        %1389 = vrot.lane.b32.xlu0 %v1265, 96
        %v1390 = vpop.permute.xlu0 %1389
        %1391 = vrot.lane.b32.xlu0 %v1268, 96
        %v1392 = vpop.permute.xlu0 %1391
        %1393 = vrot.lane.b32.xlu0 %v1271, 96
        %v1394 = vpop.permute.xlu0 %1393
        %1395 = vrot.lane.b32.xlu0 %v1274, 96
        %v1396 = vpop.permute.xlu0 %1395
        %1397 = vrot.lane.b32.xlu0 %v1277, 96
        %v1398 = vpop.permute.xlu0 %1397
        %v1399 = vsel %vm613, %v1256, 0
        %v1401 = vsel %vm613, %v1259, 0
        %v1403 = vsel %vm613, %v1262, 0
        %v1405 = vsel %vm613, %v1265, 0
        %v1407 = vsel %vm613, %v1268, 0
        %v1409 = vsel %vm613, %v1271, 0
        %v1411 = vsel %vm613, %v1274, 0
        %v1413 = vsel %vm613, %v1277, 0
        %v1415 = vsel %vm613, %v1384, 0
        %v1417 = vsel %vm613, %v1386, 0
        %v1419 = vsel %vm613, %v1388, 0
        %v1421 = vsel %vm613, %v1390, 0
        %v1423 = vsel %vm613, %v1392, 0
        %v1425 = vsel %vm613, %v1394, 0
        %v1427 = vsel %vm613, %v1396, 0
        %v1429 = vsel %vm613, %v1398, 0
        %1431 = vmatpush.xpose.msra.mxu0 0.0
        %1432 = vmatpush.xpose.msra.mxu0 0.0
        %1433 = vmatpush.xpose.msra.mxu0 0.0
        %1434 = vmatpush.xpose.msra.mxu0 0.0
        %1435 = vmatpush.xpose.msra.mxu0 0.0
        %1436 = vmatpush.xpose.msra.mxu0 0.0
        %1437 = vmatpush.xpose.msra.mxu0 0.0
        %1438 = vmatpush.xpose.msra.mxu0 0.0
        %1439 = vmatpush.xpose.msra.mxu0 %v1429
        %1440 = vmatpush.xpose.msra.mxu0 %v1427
        %1441 = vmatpush.xpose.msra.mxu0 %v1425
        %1442 = vmatpush.xpose.msra.mxu0 %v1423
        %1443 = vmatpush.xpose.msra.mxu0 %v1421
        %1444 = vmatpush.xpose.msra.mxu0 %v1419
        %1445 = vmatpush.xpose.msra.mxu0 %v1417
        %1446 = vmatpush.xpose.msra.mxu0 %v1415
        %1447 = vmatmul.f32.gmra.mxu0 %v1399
        %v1448 = vpop.f32.mrf.mxu0
        %v1449 = vadd.f32 0.0, %v1448
        %1450 = vmatmul.f32.gmra.mxu0 %v1401
        %v1451 = vpop.f32.mrf.mxu0
        %v1452 = vadd.f32 0.0, %v1451
        %1453 = vmatmul.f32.gmra.mxu0 %v1403
        %v1454 = vpop.f32.mrf.mxu0
        %v1455 = vadd.f32 0.0, %v1454
        %1456 = vmatmul.f32.gmra.mxu0 %v1405
        %v1457 = vpop.f32.mrf.mxu0
        %v1458 = vadd.f32 0.0, %v1457
        %1459 = vmatmul.f32.gmra.mxu0 %v1407
        %v1460 = vpop.f32.mrf.mxu0
        %v1461 = vadd.f32 0.0, %v1460
        %1462 = vmatmul.f32.gmra.mxu0 %v1409
        %v1463 = vpop.f32.mrf.mxu0
        %v1464 = vadd.f32 0.0, %v1463
        %1465 = vmatmul.f32.gmra.mxu0 %v1411
        %v1466 = vpop.f32.mrf.mxu0
        %v1467 = vadd.f32 0.0, %v1466
        %1468 = vmatmul.f32.gmra.mxu0 %v1413
        %v1469 = vpop.f32.mrf.mxu0
        %v1470 = vadd.f32 0.0, %v1469
        %1471 = vdwg.mxu0
        %1480 = vrot.lane.b32.xlu0 %v1280, 96
        %v1481 = vpop.permute.xlu0 %1480
        %1482 = vrot.lane.b32.xlu0 %v1283, 96
        %v1483 = vpop.permute.xlu0 %1482
        %1484 = vrot.lane.b32.xlu0 %v1286, 96
        %v1485 = vpop.permute.xlu0 %1484
        %1486 = vrot.lane.b32.xlu0 %v1289, 96
        %v1487 = vpop.permute.xlu0 %1486
        %1488 = vrot.lane.b32.xlu0 %v1292, 96
        %v1489 = vpop.permute.xlu0 %1488
        %1490 = vrot.lane.b32.xlu0 %v1295, 96
        %v1491 = vpop.permute.xlu0 %1490
        %1492 = vrot.lane.b32.xlu0 %v1298, 96
        %v1493 = vpop.permute.xlu0 %1492
        %1494 = vrot.lane.b32.xlu0 %v1301, 96
        %v1495 = vpop.permute.xlu0 %1494
        %v1496 = vsel %vm613, %v1280, 0
        %v1498 = vsel %vm613, %v1283, 0
        %v1500 = vsel %vm613, %v1286, 0
        %v1502 = vsel %vm613, %v1289, 0
        %v1504 = vsel %vm613, %v1292, 0
        %v1506 = vsel %vm613, %v1295, 0
        %v1508 = vsel %vm613, %v1298, 0
        %v1510 = vsel %vm613, %v1301, 0
        %v1512 = vsel %vm613, %v1481, 0
        %v1514 = vsel %vm613, %v1483, 0
        %v1516 = vsel %vm613, %v1485, 0
        %v1518 = vsel %vm613, %v1487, 0
        %v1520 = vsel %vm613, %v1489, 0
        %v1522 = vsel %vm613, %v1491, 0
        %v1524 = vsel %vm613, %v1493, 0
        %v1526 = vsel %vm613, %v1495, 0
        %1528 = vmatpush.xpose.msra.mxu0 0.0
        %1529 = vmatpush.xpose.msra.mxu0 0.0
        %1530 = vmatpush.xpose.msra.mxu0 0.0
        %1531 = vmatpush.xpose.msra.mxu0 0.0
        %1532 = vmatpush.xpose.msra.mxu0 0.0
        %1533 = vmatpush.xpose.msra.mxu0 0.0
        %1534 = vmatpush.xpose.msra.mxu0 0.0
        %1535 = vmatpush.xpose.msra.mxu0 0.0
        %1536 = vmatpush.xpose.msra.mxu0 %v1526
        %1537 = vmatpush.xpose.msra.mxu0 %v1524
        %1538 = vmatpush.xpose.msra.mxu0 %v1522
        %1539 = vmatpush.xpose.msra.mxu0 %v1520
        %1540 = vmatpush.xpose.msra.mxu0 %v1518
        %1541 = vmatpush.xpose.msra.mxu0 %v1516
        %1542 = vmatpush.xpose.msra.mxu0 %v1514
        %1543 = vmatpush.xpose.msra.mxu0 %v1512
        %1544 = vmatmul.f32.gmra.mxu0 %v1496
        %v1545 = vpop.f32.mrf.mxu0
        %v1546 = vadd.f32 0.0, %v1545
        %1547 = vmatmul.f32.gmra.mxu0 %v1498
        %v1548 = vpop.f32.mrf.mxu0
        %v1549 = vadd.f32 0.0, %v1548
        %1550 = vmatmul.f32.gmra.mxu0 %v1500
        %v1551 = vpop.f32.mrf.mxu0
        %v1552 = vadd.f32 0.0, %v1551
        %1553 = vmatmul.f32.gmra.mxu0 %v1502
        %v1554 = vpop.f32.mrf.mxu0
        %v1555 = vadd.f32 0.0, %v1554
        %1556 = vmatmul.f32.gmra.mxu0 %v1504
        %v1557 = vpop.f32.mrf.mxu0
        %v1558 = vadd.f32 0.0, %v1557
        %1559 = vmatmul.f32.gmra.mxu0 %v1506
        %v1560 = vpop.f32.mrf.mxu0
        %v1561 = vadd.f32 0.0, %v1560
        %1562 = vmatmul.f32.gmra.mxu0 %v1508
        %v1563 = vpop.f32.mrf.mxu0
        %v1564 = vadd.f32 0.0, %v1563
        %1565 = vmatmul.f32.gmra.mxu0 %v1510
        %v1566 = vpop.f32.mrf.mxu0
        %v1567 = vadd.f32 0.0, %v1566
        %1568 = vdwg.mxu0
        %1577 = vrot.lane.b32.xlu0 %v1304, 96
        %v1578 = vpop.permute.xlu0 %1577
        %1579 = vrot.lane.b32.xlu0 %v1307, 96
        %v1580 = vpop.permute.xlu0 %1579
        %1581 = vrot.lane.b32.xlu0 %v1310, 96
        %v1582 = vpop.permute.xlu0 %1581
        %1583 = vrot.lane.b32.xlu0 %v1313, 96
        %v1584 = vpop.permute.xlu0 %1583
        %1585 = vrot.lane.b32.xlu0 %v1316, 96
        %v1586 = vpop.permute.xlu0 %1585
        %1587 = vrot.lane.b32.xlu0 %v1319, 96
        %v1588 = vpop.permute.xlu0 %1587
        %1589 = vrot.lane.b32.xlu0 %v1322, 96
        %v1590 = vpop.permute.xlu0 %1589
        %1591 = vrot.lane.b32.xlu0 %v1325, 96
        %v1592 = vpop.permute.xlu0 %1591
        %v1593 = vsel %vm613, %v1304, 0
        %v1595 = vsel %vm613, %v1307, 0
        %v1597 = vsel %vm613, %v1310, 0
        %v1599 = vsel %vm613, %v1313, 0
        %v1601 = vsel %vm613, %v1316, 0
        %v1603 = vsel %vm613, %v1319, 0
        %v1605 = vsel %vm613, %v1322, 0
        %v1607 = vsel %vm613, %v1325, 0
        %v1609 = vsel %vm613, %v1578, 0
        %v1611 = vsel %vm613, %v1580, 0
        %v1613 = vsel %vm613, %v1582, 0
        %v1615 = vsel %vm613, %v1584, 0
        %v1617 = vsel %vm613, %v1586, 0
        %v1619 = vsel %vm613, %v1588, 0
        %v1621 = vsel %vm613, %v1590, 0
        %v1623 = vsel %vm613, %v1592, 0
        %1625 = vmatpush.xpose.msra.mxu0 0.0
        %1626 = vmatpush.xpose.msra.mxu0 0.0
        %1627 = vmatpush.xpose.msra.mxu0 0.0
        %1628 = vmatpush.xpose.msra.mxu0 0.0
        %1629 = vmatpush.xpose.msra.mxu0 0.0
        %1630 = vmatpush.xpose.msra.mxu0 0.0
        %1631 = vmatpush.xpose.msra.mxu0 0.0
        %1632 = vmatpush.xpose.msra.mxu0 0.0
        %1633 = vmatpush.xpose.msra.mxu0 %v1623
        %1634 = vmatpush.xpose.msra.mxu0 %v1621
        %1635 = vmatpush.xpose.msra.mxu0 %v1619
        %1636 = vmatpush.xpose.msra.mxu0 %v1617
        %1637 = vmatpush.xpose.msra.mxu0 %v1615
        %1638 = vmatpush.xpose.msra.mxu0 %v1613
        %1639 = vmatpush.xpose.msra.mxu0 %v1611
        %1640 = vmatpush.xpose.msra.mxu0 %v1609
        %1641 = vmatmul.f32.gmra.mxu0 %v1593
        %v1642 = vpop.f32.mrf.mxu0
        %v1643 = vadd.f32 0.0, %v1642
        %1644 = vmatmul.f32.gmra.mxu0 %v1595
        %v1645 = vpop.f32.mrf.mxu0
        %v1646 = vadd.f32 0.0, %v1645
        %1647 = vmatmul.f32.gmra.mxu0 %v1597
        %v1648 = vpop.f32.mrf.mxu0
        %v1649 = vadd.f32 0.0, %v1648
        %1650 = vmatmul.f32.gmra.mxu0 %v1599
        %v1651 = vpop.f32.mrf.mxu0
        %v1652 = vadd.f32 0.0, %v1651
        %1653 = vmatmul.f32.gmra.mxu0 %v1601
        %v1654 = vpop.f32.mrf.mxu0
        %v1655 = vadd.f32 0.0, %v1654
        %1656 = vmatmul.f32.gmra.mxu0 %v1603
        %v1657 = vpop.f32.mrf.mxu0
        %v1658 = vadd.f32 0.0, %v1657
        %1659 = vmatmul.f32.gmra.mxu0 %v1605
        %v1660 = vpop.f32.mrf.mxu0
        %v1661 = vadd.f32 0.0, %v1660
        %1662 = vmatmul.f32.gmra.mxu0 %v1607
        %v1663 = vpop.f32.mrf.mxu0
        %v1664 = vadd.f32 0.0, %v1663
        %1665 = vdwg.mxu0
        %1674 = vrot.lane.b32.xlu0 %v1328, 96
        %v1675 = vpop.permute.xlu0 %1674
        %1676 = vrot.lane.b32.xlu0 %v1331, 96
        %v1677 = vpop.permute.xlu0 %1676
        %1678 = vrot.lane.b32.xlu0 %v1334, 96
        %v1679 = vpop.permute.xlu0 %1678
        %1680 = vrot.lane.b32.xlu0 %v1337, 96
        %v1681 = vpop.permute.xlu0 %1680
        %1682 = vrot.lane.b32.xlu0 %v1340, 96
        %v1683 = vpop.permute.xlu0 %1682
        %1684 = vrot.lane.b32.xlu0 %v1343, 96
        %v1685 = vpop.permute.xlu0 %1684
        %1686 = vrot.lane.b32.xlu0 %v1346, 96
        %v1687 = vpop.permute.xlu0 %1686
        %1688 = vrot.lane.b32.xlu0 %v1349, 96
        %v1689 = vpop.permute.xlu0 %1688
        %v1690 = vsel %vm613, %v1328, 0
        %v1692 = vsel %vm613, %v1331, 0
        %v1694 = vsel %vm613, %v1334, 0
        %v1696 = vsel %vm613, %v1337, 0
        %v1698 = vsel %vm613, %v1340, 0
        %v1700 = vsel %vm613, %v1343, 0
        %v1702 = vsel %vm613, %v1346, 0
        %v1704 = vsel %vm613, %v1349, 0
        %v1706 = vsel %vm613, %v1675, 0
        %v1708 = vsel %vm613, %v1677, 0
        %v1710 = vsel %vm613, %v1679, 0
        %v1712 = vsel %vm613, %v1681, 0
        %v1714 = vsel %vm613, %v1683, 0
        %v1716 = vsel %vm613, %v1685, 0
        %v1718 = vsel %vm613, %v1687, 0
        %v1720 = vsel %vm613, %v1689, 0
        %1722 = vmatpush.xpose.msra.mxu0 0.0
        %1723 = vmatpush.xpose.msra.mxu0 0.0
        %1724 = vmatpush.xpose.msra.mxu0 0.0
        %1725 = vmatpush.xpose.msra.mxu0 0.0
        %1726 = vmatpush.xpose.msra.mxu0 0.0
        %1727 = vmatpush.xpose.msra.mxu0 0.0
        %1728 = vmatpush.xpose.msra.mxu0 0.0
        %1729 = vmatpush.xpose.msra.mxu0 0.0
        %1730 = vmatpush.xpose.msra.mxu0 %v1720
        %1731 = vmatpush.xpose.msra.mxu0 %v1718
        %1732 = vmatpush.xpose.msra.mxu0 %v1716
        %1733 = vmatpush.xpose.msra.mxu0 %v1714
        %1734 = vmatpush.xpose.msra.mxu0 %v1712
        %1735 = vmatpush.xpose.msra.mxu0 %v1710
        %1736 = vmatpush.xpose.msra.mxu0 %v1708
        %1737 = vmatpush.xpose.msra.mxu0 %v1706
        %1738 = vmatmul.f32.gmra.mxu0 %v1690
        %v1739 = vpop.f32.mrf.mxu0
        %v1740 = vadd.f32 0.0, %v1739
        %1741 = vmatmul.f32.gmra.mxu0 %v1692
        %v1742 = vpop.f32.mrf.mxu0
        %v1743 = vadd.f32 0.0, %v1742
        %1744 = vmatmul.f32.gmra.mxu0 %v1694
        %v1745 = vpop.f32.mrf.mxu0
        %v1746 = vadd.f32 0.0, %v1745
        %1747 = vmatmul.f32.gmra.mxu0 %v1696
        %v1748 = vpop.f32.mrf.mxu0
        %v1749 = vadd.f32 0.0, %v1748
        %1750 = vmatmul.f32.gmra.mxu0 %v1698
        %v1751 = vpop.f32.mrf.mxu0
        %v1752 = vadd.f32 0.0, %v1751
        %1753 = vmatmul.f32.gmra.mxu0 %v1700
        %v1754 = vpop.f32.mrf.mxu0
        %v1755 = vadd.f32 0.0, %v1754
        %1756 = vmatmul.f32.gmra.mxu0 %v1702
        %v1757 = vpop.f32.mrf.mxu0
        %v1758 = vadd.f32 0.0, %v1757
        %1759 = vmatmul.f32.gmra.mxu0 %v1704
        %v1760 = vpop.f32.mrf.mxu0
        %v1761 = vadd.f32 0.0, %v1760
        %1762 = vdwg.mxu0
        %1771 = vrot.lane.b32.xlu0 %v1352, 96
        %v1772 = vpop.permute.xlu0 %1771
        %1773 = vrot.lane.b32.xlu0 %v1355, 96
        %v1774 = vpop.permute.xlu0 %1773
        %1775 = vrot.lane.b32.xlu0 %v1358, 96
        %v1776 = vpop.permute.xlu0 %1775
        %1777 = vrot.lane.b32.xlu0 %v1361, 96
        %v1778 = vpop.permute.xlu0 %1777
        %1779 = vrot.lane.b32.xlu0 %v1364, 96
        %v1780 = vpop.permute.xlu0 %1779
        %1781 = vrot.lane.b32.xlu0 %v1367, 96
        %v1782 = vpop.permute.xlu0 %1781
        %1783 = vrot.lane.b32.xlu0 %v1370, 96
        %v1784 = vpop.permute.xlu0 %1783
        %1785 = vrot.lane.b32.xlu0 %v1373, 96
        %v1786 = vpop.permute.xlu0 %1785
        %v1787 = vsel %vm613, %v1352, 0
        %v1789 = vsel %vm613, %v1355, 0
        %v1791 = vsel %vm613, %v1358, 0
        %v1793 = vsel %vm613, %v1361, 0
        %v1795 = vsel %vm613, %v1364, 0
        %v1797 = vsel %vm613, %v1367, 0
        %v1799 = vsel %vm613, %v1370, 0
        %v1801 = vsel %vm613, %v1373, 0
        %v1803 = vsel %vm613, %v1772, 0
        %v1805 = vsel %vm613, %v1774, 0
        %v1807 = vsel %vm613, %v1776, 0
        %v1809 = vsel %vm613, %v1778, 0
        %v1811 = vsel %vm613, %v1780, 0
        %v1813 = vsel %vm613, %v1782, 0
        %v1815 = vsel %vm613, %v1784, 0
        %v1817 = vsel %vm613, %v1786, 0
        %1819 = vmatpush.xpose.msra.mxu0 0.0
        %1820 = vmatpush.xpose.msra.mxu0 0.0
        %1821 = vmatpush.xpose.msra.mxu0 0.0
        %1822 = vmatpush.xpose.msra.mxu0 0.0
        %1823 = vmatpush.xpose.msra.mxu0 0.0
        %1824 = vmatpush.xpose.msra.mxu0 0.0
        %1825 = vmatpush.xpose.msra.mxu0 0.0
        %1826 = vmatpush.xpose.msra.mxu0 0.0
        %1827 = vmatpush.xpose.msra.mxu0 %v1817
        %1828 = vmatpush.xpose.msra.mxu0 %v1815
        %1829 = vmatpush.xpose.msra.mxu0 %v1813
        %1830 = vmatpush.xpose.msra.mxu0 %v1811
        %1831 = vmatpush.xpose.msra.mxu0 %v1809
        %1832 = vmatpush.xpose.msra.mxu0 %v1807
        %1833 = vmatpush.xpose.msra.mxu0 %v1805
        %1834 = vmatpush.xpose.msra.mxu0 %v1803
        %1835 = vmatmul.f32.gmra.mxu0 %v1787
        %v1836 = vpop.f32.mrf.mxu0
        %v1837 = vadd.f32 0.0, %v1836
        %1838 = vmatmul.f32.gmra.mxu0 %v1789
        %v1839 = vpop.f32.mrf.mxu0
        %v1840 = vadd.f32 0.0, %v1839
        %1841 = vmatmul.f32.gmra.mxu0 %v1791
        %v1842 = vpop.f32.mrf.mxu0
        %v1843 = vadd.f32 0.0, %v1842
        %1844 = vmatmul.f32.gmra.mxu0 %v1793
        %v1845 = vpop.f32.mrf.mxu0
        %v1846 = vadd.f32 0.0, %v1845
        %1847 = vmatmul.f32.gmra.mxu0 %v1795
        %v1848 = vpop.f32.mrf.mxu0
        %v1849 = vadd.f32 0.0, %v1848
        %1850 = vmatmul.f32.gmra.mxu0 %v1797
        %v1851 = vpop.f32.mrf.mxu0
        %v1852 = vadd.f32 0.0, %v1851
        %1853 = vmatmul.f32.gmra.mxu0 %v1799
        %v1854 = vpop.f32.mrf.mxu0
        %v1855 = vadd.f32 0.0, %v1854
        %1856 = vmatmul.f32.gmra.mxu0 %v1801
        %v1857 = vpop.f32.mrf.mxu0
        %v1858 = vadd.f32 0.0, %v1857
        %1859 = vdwg.mxu0
        %vm1860 = vcmask 523264
        %v1861 = vsel %vm1860, %v1449, -inf
        %1862 = vmax.xlane.f32.xlu0 %v1861
        %v1863 = vpop.xlane.xlu0 %1862
        %v1864 = vsel %vm1860, %v1452, -inf
        %1865 = vmax.xlane.f32.xlu0 %v1864
        %v1866 = vpop.xlane.xlu0 %1865
        %v1867 = vsel %vm1860, %v1455, -inf
        %1868 = vmax.xlane.f32.xlu0 %v1867
        %v1869 = vpop.xlane.xlu0 %1868
        %v1870 = vsel %vm1860, %v1458, -inf
        %1871 = vmax.xlane.f32.xlu0 %v1870
        %v1872 = vpop.xlane.xlu0 %1871
        %v1873 = vsel %vm1860, %v1461, -inf
        %1874 = vmax.xlane.f32.xlu0 %v1873
        %v1875 = vpop.xlane.xlu0 %1874
        %v1876 = vsel %vm1860, %v1464, -inf
        %1877 = vmax.xlane.f32.xlu0 %v1876
        %v1878 = vpop.xlane.xlu0 %1877
        %v1879 = vsel %vm1860, %v1467, -inf
        %1880 = vmax.xlane.f32.xlu0 %v1879
        %v1881 = vpop.xlane.xlu0 %1880
        %v1882 = vsel %vm1860, %v1470, -inf
        %1883 = vmax.xlane.f32.xlu0 %v1882
        %v1884 = vpop.xlane.xlu0 %1883
        %v1885 = vsel %vm1860, %v1546, -inf
        %1886 = vmax.xlane.f32.xlu0 %v1885
        %v1887 = vpop.xlane.xlu0 %1886
        %v1888 = vsel %vm1860, %v1549, -inf
        %1889 = vmax.xlane.f32.xlu0 %v1888
        %v1890 = vpop.xlane.xlu0 %1889
        %v1891 = vsel %vm1860, %v1552, -inf
        %1892 = vmax.xlane.f32.xlu0 %v1891
        %v1893 = vpop.xlane.xlu0 %1892
        %v1894 = vsel %vm1860, %v1555, -inf
        %1895 = vmax.xlane.f32.xlu0 %v1894
        %v1896 = vpop.xlane.xlu0 %1895
        %v1897 = vsel %vm1860, %v1558, -inf
        %1898 = vmax.xlane.f32.xlu0 %v1897
        %v1899 = vpop.xlane.xlu0 %1898
        %v1900 = vsel %vm1860, %v1561, -inf
        %1901 = vmax.xlane.f32.xlu0 %v1900
        %v1902 = vpop.xlane.xlu0 %1901
        %v1903 = vsel %vm1860, %v1564, -inf
        %1904 = vmax.xlane.f32.xlu0 %v1903
        %v1905 = vpop.xlane.xlu0 %1904
        %v1906 = vsel %vm1860, %v1567, -inf
        %1907 = vmax.xlane.f32.xlu0 %v1906
        %v1908 = vpop.xlane.xlu0 %1907
        %v1909 = vsel %vm1860, %v1643, -inf
        %1910 = vmax.xlane.f32.xlu0 %v1909
        %v1911 = vpop.xlane.xlu0 %1910
        %v1912 = vsel %vm1860, %v1646, -inf
        %1913 = vmax.xlane.f32.xlu0 %v1912
        %v1914 = vpop.xlane.xlu0 %1913
        %v1915 = vsel %vm1860, %v1649, -inf
        %1916 = vmax.xlane.f32.xlu0 %v1915
        %v1917 = vpop.xlane.xlu0 %1916
        %v1918 = vsel %vm1860, %v1652, -inf
        %1919 = vmax.xlane.f32.xlu0 %v1918
        %v1920 = vpop.xlane.xlu0 %1919
        %v1921 = vsel %vm1860, %v1655, -inf
        %1922 = vmax.xlane.f32.xlu0 %v1921
        %v1923 = vpop.xlane.xlu0 %1922
        %v1924 = vsel %vm1860, %v1658, -inf
        %1925 = vmax.xlane.f32.xlu0 %v1924
        %v1926 = vpop.xlane.xlu0 %1925
        %v1927 = vsel %vm1860, %v1661, -inf
        %1928 = vmax.xlane.f32.xlu0 %v1927
        %v1929 = vpop.xlane.xlu0 %1928
        %v1930 = vsel %vm1860, %v1664, -inf
        %1931 = vmax.xlane.f32.xlu0 %v1930
        %v1932 = vpop.xlane.xlu0 %1931
        %v1933 = vsel %vm1860, %v1740, -inf
        %1934 = vmax.xlane.f32.xlu0 %v1933
        %v1935 = vpop.xlane.xlu0 %1934
        %v1936 = vsel %vm1860, %v1743, -inf
        %1937 = vmax.xlane.f32.xlu0 %v1936
        %v1938 = vpop.xlane.xlu0 %1937
        %v1939 = vsel %vm1860, %v1746, -inf
        %1940 = vmax.xlane.f32.xlu0 %v1939
        %v1941 = vpop.xlane.xlu0 %1940
        %v1942 = vsel %vm1860, %v1749, -inf
        %1943 = vmax.xlane.f32.xlu0 %v1942
        %v1944 = vpop.xlane.xlu0 %1943
        %v1945 = vsel %vm1860, %v1752, -inf
        %1946 = vmax.xlane.f32.xlu0 %v1945
        %v1947 = vpop.xlane.xlu0 %1946
        %v1948 = vsel %vm1860, %v1755, -inf
        %1949 = vmax.xlane.f32.xlu0 %v1948
        %v1950 = vpop.xlane.xlu0 %1949
        %v1951 = vsel %vm1860, %v1758, -inf
        %1952 = vmax.xlane.f32.xlu0 %v1951
        %v1953 = vpop.xlane.xlu0 %1952
        %v1954 = vsel %vm1860, %v1761, -inf
        %1955 = vmax.xlane.f32.xlu0 %v1954
        %v1956 = vpop.xlane.xlu0 %1955
        %v1957 = vsel %vm1860, %v1837, -inf
        %1958 = vmax.xlane.f32.xlu0 %v1957
        %v1959 = vpop.xlane.xlu0 %1958
        %v1960 = vsel %vm1860, %v1840, -inf
        %1961 = vmax.xlane.f32.xlu0 %v1960
        %v1962 = vpop.xlane.xlu0 %1961
        %v1963 = vsel %vm1860, %v1843, -inf
        %1964 = vmax.xlane.f32.xlu0 %v1963
        %v1965 = vpop.xlane.xlu0 %1964
        %v1966 = vsel %vm1860, %v1846, -inf
        %1967 = vmax.xlane.f32.xlu0 %v1966
        %v1968 = vpop.xlane.xlu0 %1967
        %v1969 = vsel %vm1860, %v1849, -inf
        %1970 = vmax.xlane.f32.xlu0 %v1969
        %v1971 = vpop.xlane.xlu0 %1970
        %v1972 = vsel %vm1860, %v1852, -inf
        %1973 = vmax.xlane.f32.xlu0 %v1972
        %v1974 = vpop.xlane.xlu0 %1973
        %v1975 = vsel %vm1860, %v1855, -inf
        %1976 = vmax.xlane.f32.xlu0 %v1975
        %v1977 = vpop.xlane.xlu0 %1976
        %v1978 = vsel %vm1860, %v1858, -inf
        %1979 = vmax.xlane.f32.xlu0 %v1978
        %v1980 = vpop.xlane.xlu0 %1979
        %v1981 = vsub.f32 %v1449, %v1863
        %v1982 = vsub.f32 %v1452, %v1866
        %v1983 = vsub.f32 %v1455, %v1869
        %v1984 = vsub.f32 %v1458, %v1872
        %v1985 = vsub.f32 %v1461, %v1875
        %v1986 = vsub.f32 %v1464, %v1878
        %v1987 = vsub.f32 %v1467, %v1881
        %v1988 = vsub.f32 %v1470, %v1884
        %v1989 = vsub.f32 %v1546, %v1887
        %v1990 = vsub.f32 %v1549, %v1890
        %v1991 = vsub.f32 %v1552, %v1893
        %v1992 = vsub.f32 %v1555, %v1896
        %v1993 = vsub.f32 %v1558, %v1899
        %v1994 = vsub.f32 %v1561, %v1902
        %v1995 = vsub.f32 %v1564, %v1905
        %v1996 = vsub.f32 %v1567, %v1908
        %v1997 = vsub.f32 %v1643, %v1911
        %v1998 = vsub.f32 %v1646, %v1914
        %v1999 = vsub.f32 %v1649, %v1917
        %v2000 = vsub.f32 %v1652, %v1920
        %v2001 = vsub.f32 %v1655, %v1923
        %v2002 = vsub.f32 %v1658, %v1926
        %v2003 = vsub.f32 %v1661, %v1929
        %v2004 = vsub.f32 %v1664, %v1932
        %v2005 = vsub.f32 %v1740, %v1935
        %v2006 = vsub.f32 %v1743, %v1938
        %v2007 = vsub.f32 %v1746, %v1941
        %v2008 = vsub.f32 %v1749, %v1944
        %v2009 = vsub.f32 %v1752, %v1947
        %v2010 = vsub.f32 %v1755, %v1950
        %v2011 = vsub.f32 %v1758, %v1953
        %v2012 = vsub.f32 %v1761, %v1956
        %v2013 = vsub.f32 %v1837, %v1959
        %v2014 = vsub.f32 %v1840, %v1962
        %v2015 = vsub.f32 %v1843, %v1965
        %v2016 = vsub.f32 %v1846, %v1968
        %v2017 = vsub.f32 %v1849, %v1971
        %v2018 = vsub.f32 %v1852, %v1974
        %v2019 = vsub.f32 %v1855, %v1977
        %v2020 = vsub.f32 %v1858, %v1980
        %v2021 = vmul.f32 %v1981, 1.442695
        %v2022 = vpow.pop %v2021
        %v2023 = vmul.f32 %v1982, 1.442695
        %v2024 = vpow.pop %v2023
        %v2025 = vmul.f32 %v1983, 1.442695
        %v2026 = vpow.pop %v2025
        %v2027 = vmul.f32 %v1984, 1.442695
        %v2028 = vpow.pop %v2027
        %v2029 = vmul.f32 %v1985, 1.442695
        %v2030 = vpow.pop %v2029
        %v2031 = vmul.f32 %v1986, 1.442695
        %v2032 = vpow.pop %v2031
        %v2033 = vmul.f32 %v1987, 1.442695
        %v2034 = vpow.pop %v2033
        %v2035 = vmul.f32 %v1988, 1.442695
        %v2036 = vpow.pop %v2035
        %v2037 = vmul.f32 %v1989, 1.442695
        %v2038 = vpow.pop %v2037
        %v2039 = vmul.f32 %v1990, 1.442695
        %v2040 = vpow.pop %v2039
        %v2041 = vmul.f32 %v1991, 1.442695
        %v2042 = vpow.pop %v2041
        %v2043 = vmul.f32 %v1992, 1.442695
        %v2044 = vpow.pop %v2043
        %v2045 = vmul.f32 %v1993, 1.442695
        %v2046 = vpow.pop %v2045
        %v2047 = vmul.f32 %v1994, 1.442695
        %v2048 = vpow.pop %v2047
        %v2049 = vmul.f32 %v1995, 1.442695
        %v2050 = vpow.pop %v2049
        %v2051 = vmul.f32 %v1996, 1.442695
        %v2052 = vpow.pop %v2051
        %v2053 = vmul.f32 %v1997, 1.442695
        %v2054 = vpow.pop %v2053
        %v2055 = vmul.f32 %v1998, 1.442695
        %v2056 = vpow.pop %v2055
        %v2057 = vmul.f32 %v1999, 1.442695
        %v2058 = vpow.pop %v2057
        %v2059 = vmul.f32 %v2000, 1.442695
        %v2060 = vpow.pop %v2059
        %v2061 = vmul.f32 %v2001, 1.442695
        %v2062 = vpow.pop %v2061
        %v2063 = vmul.f32 %v2002, 1.442695
        %v2064 = vpow.pop %v2063
        %v2065 = vmul.f32 %v2003, 1.442695
        %v2066 = vpow.pop %v2065
        %v2067 = vmul.f32 %v2004, 1.442695
        %v2068 = vpow.pop %v2067
        %v2069 = vmul.f32 %v2005, 1.442695
        %v2070 = vpow.pop %v2069
        %v2071 = vmul.f32 %v2006, 1.442695
        %v2072 = vpow.pop %v2071
        %v2073 = vmul.f32 %v2007, 1.442695
        %v2074 = vpow.pop %v2073
        %v2075 = vmul.f32 %v2008, 1.442695
        %v2076 = vpow.pop %v2075
        %v2077 = vmul.f32 %v2009, 1.442695
        %v2078 = vpow.pop %v2077
        %v2079 = vmul.f32 %v2010, 1.442695
        %v2080 = vpow.pop %v2079
        %v2081 = vmul.f32 %v2011, 1.442695
        %v2082 = vpow.pop %v2081
        %v2083 = vmul.f32 %v2012, 1.442695
        %v2084 = vpow.pop %v2083
        %v2085 = vmul.f32 %v2013, 1.442695
        %v2086 = vpow.pop %v2085
        %v2087 = vmul.f32 %v2014, 1.442695
        %v2088 = vpow.pop %v2087
        %v2089 = vmul.f32 %v2015, 1.442695
        %v2090 = vpow.pop %v2089
        %v2091 = vmul.f32 %v2016, 1.442695
        %v2092 = vpow.pop %v2091
        %v2093 = vmul.f32 %v2017, 1.442695
        %v2094 = vpow.pop %v2093
        %v2095 = vmul.f32 %v2018, 1.442695
        %v2096 = vpow.pop %v2095
        %v2097 = vmul.f32 %v2019, 1.442695
        %v2098 = vpow.pop %v2097
        %v2099 = vmul.f32 %v2020, 1.442695
        %v2100 = vpow.pop %v2099
        %v2101 = vsel %vm1860, %v2022, 0.0
        %2102 = vadd.xlane.f32.xlu0 %v2101
        %v2103 = vpop.xlane.xlu0 %2102
        %v2104 = vsel %vm1860, %v2024, 0.0
        %2105 = vadd.xlane.f32.xlu0 %v2104
        %v2106 = vpop.xlane.xlu0 %2105
        %v2107 = vsel %vm1860, %v2026, 0.0
        %2108 = vadd.xlane.f32.xlu0 %v2107
        %v2109 = vpop.xlane.xlu0 %2108
        %v2110 = vsel %vm1860, %v2028, 0.0
        %2111 = vadd.xlane.f32.xlu0 %v2110
        %v2112 = vpop.xlane.xlu0 %2111
        %v2113 = vsel %vm1860, %v2030, 0.0
        %2114 = vadd.xlane.f32.xlu0 %v2113
        %v2115 = vpop.xlane.xlu0 %2114
        %v2116 = vsel %vm1860, %v2032, 0.0
        %2117 = vadd.xlane.f32.xlu0 %v2116
        %v2118 = vpop.xlane.xlu0 %2117
        %v2119 = vsel %vm1860, %v2034, 0.0
        %2120 = vadd.xlane.f32.xlu0 %v2119
        %v2121 = vpop.xlane.xlu0 %2120
        %v2122 = vsel %vm1860, %v2036, 0.0
        %2123 = vadd.xlane.f32.xlu0 %v2122
        %v2124 = vpop.xlane.xlu0 %2123
        %v2125 = vsel %vm1860, %v2038, 0.0
        %2126 = vadd.xlane.f32.xlu0 %v2125
        %v2127 = vpop.xlane.xlu0 %2126
        %v2128 = vsel %vm1860, %v2040, 0.0
        %2129 = vadd.xlane.f32.xlu0 %v2128
        %v2130 = vpop.xlane.xlu0 %2129
        %v2131 = vsel %vm1860, %v2042, 0.0
        %2132 = vadd.xlane.f32.xlu0 %v2131
        %v2133 = vpop.xlane.xlu0 %2132
        %v2134 = vsel %vm1860, %v2044, 0.0
        %2135 = vadd.xlane.f32.xlu0 %v2134
        %v2136 = vpop.xlane.xlu0 %2135
        %v2137 = vsel %vm1860, %v2046, 0.0
        %2138 = vadd.xlane.f32.xlu0 %v2137
        %v2139 = vpop.xlane.xlu0 %2138
        %v2140 = vsel %vm1860, %v2048, 0.0
        %2141 = vadd.xlane.f32.xlu0 %v2140
        %v2142 = vpop.xlane.xlu0 %2141
        %v2143 = vsel %vm1860, %v2050, 0.0
        %2144 = vadd.xlane.f32.xlu0 %v2143
        %v2145 = vpop.xlane.xlu0 %2144
        %v2146 = vsel %vm1860, %v2052, 0.0
        %2147 = vadd.xlane.f32.xlu0 %v2146
        %v2148 = vpop.xlane.xlu0 %2147
        %v2149 = vsel %vm1860, %v2054, 0.0
        %2150 = vadd.xlane.f32.xlu0 %v2149
        %v2151 = vpop.xlane.xlu0 %2150
        %v2152 = vsel %vm1860, %v2056, 0.0
        %2153 = vadd.xlane.f32.xlu0 %v2152
        %v2154 = vpop.xlane.xlu0 %2153
        %v2155 = vsel %vm1860, %v2058, 0.0
        %2156 = vadd.xlane.f32.xlu0 %v2155
        %v2157 = vpop.xlane.xlu0 %2156
        %v2158 = vsel %vm1860, %v2060, 0.0
        %2159 = vadd.xlane.f32.xlu0 %v2158
        %v2160 = vpop.xlane.xlu0 %2159
        %v2161 = vsel %vm1860, %v2062, 0.0
        %2162 = vadd.xlane.f32.xlu0 %v2161
        %v2163 = vpop.xlane.xlu0 %2162
        %v2164 = vsel %vm1860, %v2064, 0.0
        %2165 = vadd.xlane.f32.xlu0 %v2164
        %v2166 = vpop.xlane.xlu0 %2165
        %v2167 = vsel %vm1860, %v2066, 0.0
        %2168 = vadd.xlane.f32.xlu0 %v2167
        %v2169 = vpop.xlane.xlu0 %2168
        %v2170 = vsel %vm1860, %v2068, 0.0
        %2171 = vadd.xlane.f32.xlu0 %v2170
        %v2172 = vpop.xlane.xlu0 %2171
        %v2173 = vsel %vm1860, %v2070, 0.0
        %2174 = vadd.xlane.f32.xlu0 %v2173
        %v2175 = vpop.xlane.xlu0 %2174
        %v2176 = vsel %vm1860, %v2072, 0.0
        %2177 = vadd.xlane.f32.xlu0 %v2176
        %v2178 = vpop.xlane.xlu0 %2177
        %v2179 = vsel %vm1860, %v2074, 0.0
        %2180 = vadd.xlane.f32.xlu0 %v2179
        %v2181 = vpop.xlane.xlu0 %2180
        %v2182 = vsel %vm1860, %v2076, 0.0
        %2183 = vadd.xlane.f32.xlu0 %v2182
        %v2184 = vpop.xlane.xlu0 %2183
        %v2185 = vsel %vm1860, %v2078, 0.0
        %2186 = vadd.xlane.f32.xlu0 %v2185
        %v2187 = vpop.xlane.xlu0 %2186
        %v2188 = vsel %vm1860, %v2080, 0.0
        %2189 = vadd.xlane.f32.xlu0 %v2188
        %v2190 = vpop.xlane.xlu0 %2189
        %v2191 = vsel %vm1860, %v2082, 0.0
        %2192 = vadd.xlane.f32.xlu0 %v2191
        %v2193 = vpop.xlane.xlu0 %2192
        %v2194 = vsel %vm1860, %v2084, 0.0
        %2195 = vadd.xlane.f32.xlu0 %v2194
        %v2196 = vpop.xlane.xlu0 %2195
        %v2197 = vsel %vm1860, %v2086, 0.0
        %2198 = vadd.xlane.f32.xlu0 %v2197
        %v2199 = vpop.xlane.xlu0 %2198
        %v2200 = vsel %vm1860, %v2088, 0.0
        %2201 = vadd.xlane.f32.xlu0 %v2200
        %v2202 = vpop.xlane.xlu0 %2201
        %v2203 = vsel %vm1860, %v2090, 0.0
        %2204 = vadd.xlane.f32.xlu0 %v2203
        %v2205 = vpop.xlane.xlu0 %2204
        %v2206 = vsel %vm1860, %v2092, 0.0
        %2207 = vadd.xlane.f32.xlu0 %v2206
        %v2208 = vpop.xlane.xlu0 %2207
        %v2209 = vsel %vm1860, %v2094, 0.0
        %2210 = vadd.xlane.f32.xlu0 %v2209
        %v2211 = vpop.xlane.xlu0 %2210
        %v2212 = vsel %vm1860, %v2096, 0.0
        %2213 = vadd.xlane.f32.xlu0 %v2212
        %v2214 = vpop.xlane.xlu0 %2213
        %v2215 = vsel %vm1860, %v2098, 0.0
        %2216 = vadd.xlane.f32.xlu0 %v2215
        %v2217 = vpop.xlane.xlu0 %2216
        %v2218 = vsel %vm1860, %v2100, 0.0
        %2219 = vadd.xlane.f32.xlu0 %v2218
        %v2220 = vpop.xlane.xlu0 %2219
        %v2221 = vrcp.pop %v2103
        %v2222 = vrcp.pop %v2106
        %v2223 = vrcp.pop %v2109
        %v2224 = vrcp.pop %v2112
        %v2225 = vrcp.pop %v2115
        %v2226 = vrcp.pop %v2118
        %v2227 = vrcp.pop %v2121
        %v2228 = vrcp.pop %v2124
        %v2229 = vrcp.pop %v2127
        %v2230 = vrcp.pop %v2130
        %v2231 = vrcp.pop %v2133
        %v2232 = vrcp.pop %v2136
        %v2233 = vrcp.pop %v2139
        %v2234 = vrcp.pop %v2142
        %v2235 = vrcp.pop %v2145
        %v2236 = vrcp.pop %v2148
        %v2237 = vrcp.pop %v2151
        %v2238 = vrcp.pop %v2154
        %v2239 = vrcp.pop %v2157
        %v2240 = vrcp.pop %v2160
        %v2241 = vrcp.pop %v2163
        %v2242 = vrcp.pop %v2166
        %v2243 = vrcp.pop %v2169
        %v2244 = vrcp.pop %v2172
        %v2245 = vrcp.pop %v2175
        %v2246 = vrcp.pop %v2178
        %v2247 = vrcp.pop %v2181
        %v2248 = vrcp.pop %v2184
        %v2249 = vrcp.pop %v2187
        %v2250 = vrcp.pop %v2190
        %v2251 = vrcp.pop %v2193
        %v2252 = vrcp.pop %v2196
        %v2253 = vrcp.pop %v2199
        %v2254 = vrcp.pop %v2202
        %v2255 = vrcp.pop %v2205
        %v2256 = vrcp.pop %v2208
        %v2257 = vrcp.pop %v2211
        %v2258 = vrcp.pop %v2214
        %v2259 = vrcp.pop %v2217
        %v2260 = vrcp.pop %v2220
        %v2261 = vmul.f32 %v2022, %v2221
        %v2262 = vmul.f32 %v2024, %v2222
        %v2263 = vmul.f32 %v2026, %v2223
        %v2264 = vmul.f32 %v2028, %v2224
        %v2265 = vmul.f32 %v2030, %v2225
        %v2266 = vmul.f32 %v2032, %v2226
        %v2267 = vmul.f32 %v2034, %v2227
        %v2268 = vmul.f32 %v2036, %v2228
        %v2269 = vmul.f32 %v2038, %v2229
        %v2270 = vmul.f32 %v2040, %v2230
        %v2271 = vmul.f32 %v2042, %v2231
        %v2272 = vmul.f32 %v2044, %v2232
        %v2273 = vmul.f32 %v2046, %v2233
        %v2274 = vmul.f32 %v2048, %v2234
        %v2275 = vmul.f32 %v2050, %v2235
        %v2276 = vmul.f32 %v2052, %v2236
        %v2277 = vmul.f32 %v2054, %v2237
        %v2278 = vmul.f32 %v2056, %v2238
        %v2279 = vmul.f32 %v2058, %v2239
        %v2280 = vmul.f32 %v2060, %v2240
        %v2281 = vmul.f32 %v2062, %v2241
        %v2282 = vmul.f32 %v2064, %v2242
        %v2283 = vmul.f32 %v2066, %v2243
        %v2284 = vmul.f32 %v2068, %v2244
        %v2285 = vmul.f32 %v2070, %v2245
        %v2286 = vmul.f32 %v2072, %v2246
        %v2287 = vmul.f32 %v2074, %v2247
        %v2288 = vmul.f32 %v2076, %v2248
        %v2289 = vmul.f32 %v2078, %v2249
        %v2290 = vmul.f32 %v2080, %v2250
        %v2291 = vmul.f32 %v2082, %v2251
        %v2292 = vmul.f32 %v2084, %v2252
        %v2293 = vmul.f32 %v2086, %v2253
        %v2294 = vmul.f32 %v2088, %v2254
        %v2295 = vmul.f32 %v2090, %v2255
        %v2296 = vmul.f32 %v2092, %v2256
        %v2297 = vmul.f32 %v2094, %v2257
        %v2298 = vmul.f32 %v2096, %v2258
        %v2299 = vmul.f32 %v2098, %v2259
        %v2300 = vmul.f32 %v2100, %v2260
        %2301 = vrot.lane.b32.xlu0 %v1256, 64
        %v2302 = vpop.permute.xlu0 %2301
        %2303 = vrot.lane.b32.xlu0 %v1259, 64
        %v2304 = vpop.permute.xlu0 %2303
        %2305 = vrot.lane.b32.xlu0 %v1262, 64
        %v2306 = vpop.permute.xlu0 %2305
        %2307 = vrot.lane.b32.xlu0 %v1265, 64
        %v2308 = vpop.permute.xlu0 %2307
        %2309 = vrot.lane.b32.xlu0 %v1268, 64
        %v2310 = vpop.permute.xlu0 %2309
        %2311 = vrot.lane.b32.xlu0 %v1271, 64
        %v2312 = vpop.permute.xlu0 %2311
        %2313 = vrot.lane.b32.xlu0 %v1274, 64
        %v2314 = vpop.permute.xlu0 %2313
        %2315 = vrot.lane.b32.xlu0 %v1277, 64
        %v2316 = vpop.permute.xlu0 %2315
        %v2326 = vsel %vm1860, %v2261, 0
        %v2329 = vsel %vm1860, %v2262, 0
        %v2332 = vsel %vm1860, %v2263, 0
        %v2335 = vsel %vm1860, %v2264, 0
        %v2338 = vsel %vm1860, %v2265, 0
        %v2341 = vsel %vm1860, %v2266, 0
        %v2344 = vsel %vm1860, %v2267, 0
        %v2347 = vsel %vm1860, %v2268, 0
        %2349 = vmatpush.msra.mxu0 0.0
        %2350 = vmatpush.msra.mxu0 0.0
        %2351 = vmatpush.msra.mxu0 0.0
        %2352 = vmatpush.msra.mxu0 0.0
        %2353 = vmatpush.msra.mxu0 0.0
        %2354 = vmatpush.msra.mxu0 0.0
        %2355 = vmatpush.msra.mxu0 0.0
        %2356 = vmatpush.msra.mxu0 0.0
        %2357 = vmatpush.msra.mxu0 %v2316
        %2358 = vmatpush.msra.mxu0 %v2314
        %2359 = vmatpush.msra.mxu0 %v2312
        %2360 = vmatpush.msra.mxu0 %v2310
        %2361 = vmatpush.msra.mxu0 %v2308
        %2362 = vmatpush.msra.mxu0 %v2306
        %2363 = vmatpush.msra.mxu0 %v2304
        %2364 = vmatpush.msra.mxu0 %v2302
        %2365 = vmatmul.f32.gmra.mxu0 %v2326
        %v2366 = vpop.f32.mrf.mxu0
        %v2367 = vadd.f32 0.0, %v2366
        %2368 = vmatmul.f32.gmra.mxu0 %v2329
        %v2369 = vpop.f32.mrf.mxu0
        %v2370 = vadd.f32 0.0, %v2369
        %2371 = vmatmul.f32.gmra.mxu0 %v2332
        %v2372 = vpop.f32.mrf.mxu0
        %v2373 = vadd.f32 0.0, %v2372
        %2374 = vmatmul.f32.gmra.mxu0 %v2335
        %v2375 = vpop.f32.mrf.mxu0
        %v2376 = vadd.f32 0.0, %v2375
        %2377 = vmatmul.f32.gmra.mxu0 %v2338
        %v2378 = vpop.f32.mrf.mxu0
        %v2379 = vadd.f32 0.0, %v2378
        %2380 = vmatmul.f32.gmra.mxu0 %v2341
        %v2381 = vpop.f32.mrf.mxu0
        %v2382 = vadd.f32 0.0, %v2381
        %2383 = vmatmul.f32.gmra.mxu0 %v2344
        %v2384 = vpop.f32.mrf.mxu0
        %v2385 = vadd.f32 0.0, %v2384
        %2386 = vmatmul.f32.gmra.mxu0 %v2347
        %v2387 = vpop.f32.mrf.mxu0
        %v2388 = vadd.f32 0.0, %v2387
        %2389 = vdwg.mxu0
        %2390 = vrot.lane.b32.xlu0 %v1280, 64
        %v2391 = vpop.permute.xlu0 %2390
        %2392 = vrot.lane.b32.xlu0 %v1283, 64
        %v2393 = vpop.permute.xlu0 %2392
        %2394 = vrot.lane.b32.xlu0 %v1286, 64
        %v2395 = vpop.permute.xlu0 %2394
        %2396 = vrot.lane.b32.xlu0 %v1289, 64
        %v2397 = vpop.permute.xlu0 %2396
        %2398 = vrot.lane.b32.xlu0 %v1292, 64
        %v2399 = vpop.permute.xlu0 %2398
        %2400 = vrot.lane.b32.xlu0 %v1295, 64
        %v2401 = vpop.permute.xlu0 %2400
        %2402 = vrot.lane.b32.xlu0 %v1298, 64
        %v2403 = vpop.permute.xlu0 %2402
        %2404 = vrot.lane.b32.xlu0 %v1301, 64
        %v2405 = vpop.permute.xlu0 %2404
        %v2415 = vsel %vm1860, %v2269, 0
        %v2418 = vsel %vm1860, %v2270, 0
        %v2421 = vsel %vm1860, %v2271, 0
        %v2424 = vsel %vm1860, %v2272, 0
        %v2427 = vsel %vm1860, %v2273, 0
        %v2430 = vsel %vm1860, %v2274, 0
        %v2433 = vsel %vm1860, %v2275, 0
        %v2436 = vsel %vm1860, %v2276, 0
        %2438 = vmatpush.msra.mxu0 0.0
        %2439 = vmatpush.msra.mxu0 0.0
        %2440 = vmatpush.msra.mxu0 0.0
        %2441 = vmatpush.msra.mxu0 0.0
        %2442 = vmatpush.msra.mxu0 0.0
        %2443 = vmatpush.msra.mxu0 0.0
        %2444 = vmatpush.msra.mxu0 0.0
        %2445 = vmatpush.msra.mxu0 0.0
        %2446 = vmatpush.msra.mxu0 %v2405
        %2447 = vmatpush.msra.mxu0 %v2403
        %2448 = vmatpush.msra.mxu0 %v2401
        %2449 = vmatpush.msra.mxu0 %v2399
        %2450 = vmatpush.msra.mxu0 %v2397
        %2451 = vmatpush.msra.mxu0 %v2395
        %2452 = vmatpush.msra.mxu0 %v2393
        %2453 = vmatpush.msra.mxu0 %v2391
        %2454 = vmatmul.f32.gmra.mxu0 %v2415
        %v2455 = vpop.f32.mrf.mxu0
        %v2456 = vadd.f32 0.0, %v2455
        %2457 = vmatmul.f32.gmra.mxu0 %v2418
        %v2458 = vpop.f32.mrf.mxu0
        %v2459 = vadd.f32 0.0, %v2458
        %2460 = vmatmul.f32.gmra.mxu0 %v2421
        %v2461 = vpop.f32.mrf.mxu0
        %v2462 = vadd.f32 0.0, %v2461
        %2463 = vmatmul.f32.gmra.mxu0 %v2424
        %v2464 = vpop.f32.mrf.mxu0
        %v2465 = vadd.f32 0.0, %v2464
        %2466 = vmatmul.f32.gmra.mxu0 %v2427
        %v2467 = vpop.f32.mrf.mxu0
        %v2468 = vadd.f32 0.0, %v2467
        %2469 = vmatmul.f32.gmra.mxu0 %v2430
        %v2470 = vpop.f32.mrf.mxu0
        %v2471 = vadd.f32 0.0, %v2470
        %2472 = vmatmul.f32.gmra.mxu0 %v2433
        %v2473 = vpop.f32.mrf.mxu0
        %v2474 = vadd.f32 0.0, %v2473
        %2475 = vmatmul.f32.gmra.mxu0 %v2436
        %v2476 = vpop.f32.mrf.mxu0
        %v2477 = vadd.f32 0.0, %v2476
        %2478 = vdwg.mxu0
        %2479 = vrot.lane.b32.xlu0 %v1304, 64
        %v2480 = vpop.permute.xlu0 %2479
        %2481 = vrot.lane.b32.xlu0 %v1307, 64
        %v2482 = vpop.permute.xlu0 %2481
        %2483 = vrot.lane.b32.xlu0 %v1310, 64
        %v2484 = vpop.permute.xlu0 %2483
        %2485 = vrot.lane.b32.xlu0 %v1313, 64
        %v2486 = vpop.permute.xlu0 %2485
        %2487 = vrot.lane.b32.xlu0 %v1316, 64
        %v2488 = vpop.permute.xlu0 %2487
        %2489 = vrot.lane.b32.xlu0 %v1319, 64
        %v2490 = vpop.permute.xlu0 %2489
        %2491 = vrot.lane.b32.xlu0 %v1322, 64
        %v2492 = vpop.permute.xlu0 %2491
        %2493 = vrot.lane.b32.xlu0 %v1325, 64
        %v2494 = vpop.permute.xlu0 %2493
        %v2504 = vsel %vm1860, %v2277, 0
        %v2507 = vsel %vm1860, %v2278, 0
        %v2510 = vsel %vm1860, %v2279, 0
        %v2513 = vsel %vm1860, %v2280, 0
        %v2516 = vsel %vm1860, %v2281, 0
        %v2519 = vsel %vm1860, %v2282, 0
        %v2522 = vsel %vm1860, %v2283, 0
        %v2525 = vsel %vm1860, %v2284, 0
        %2527 = vmatpush.msra.mxu0 0.0
        %2528 = vmatpush.msra.mxu0 0.0
        %2529 = vmatpush.msra.mxu0 0.0
        %2530 = vmatpush.msra.mxu0 0.0
        %2531 = vmatpush.msra.mxu0 0.0
        %2532 = vmatpush.msra.mxu0 0.0
        %2533 = vmatpush.msra.mxu0 0.0
        %2534 = vmatpush.msra.mxu0 0.0
        %2535 = vmatpush.msra.mxu0 %v2494
        %2536 = vmatpush.msra.mxu0 %v2492
        %2537 = vmatpush.msra.mxu0 %v2490
        %2538 = vmatpush.msra.mxu0 %v2488
        %2539 = vmatpush.msra.mxu0 %v2486
        %2540 = vmatpush.msra.mxu0 %v2484
        %2541 = vmatpush.msra.mxu0 %v2482
        %2542 = vmatpush.msra.mxu0 %v2480
        %2543 = vmatmul.f32.gmra.mxu0 %v2504
        %v2544 = vpop.f32.mrf.mxu0
        %v2545 = vadd.f32 0.0, %v2544
        %2546 = vmatmul.f32.gmra.mxu0 %v2507
        %v2547 = vpop.f32.mrf.mxu0
        %v2548 = vadd.f32 0.0, %v2547
        %2549 = vmatmul.f32.gmra.mxu0 %v2510
        %v2550 = vpop.f32.mrf.mxu0
        %v2551 = vadd.f32 0.0, %v2550
        %2552 = vmatmul.f32.gmra.mxu0 %v2513
        %v2553 = vpop.f32.mrf.mxu0
        %v2554 = vadd.f32 0.0, %v2553
        %2555 = vmatmul.f32.gmra.mxu0 %v2516
        %v2556 = vpop.f32.mrf.mxu0
        %v2557 = vadd.f32 0.0, %v2556
        %2558 = vmatmul.f32.gmra.mxu0 %v2519
        %v2559 = vpop.f32.mrf.mxu0
        %v2560 = vadd.f32 0.0, %v2559
        %2561 = vmatmul.f32.gmra.mxu0 %v2522
        %v2562 = vpop.f32.mrf.mxu0
        %v2563 = vadd.f32 0.0, %v2562
        %2564 = vmatmul.f32.gmra.mxu0 %v2525
        %v2565 = vpop.f32.mrf.mxu0
        %v2566 = vadd.f32 0.0, %v2565
        %2567 = vdwg.mxu0
        %2568 = vrot.lane.b32.xlu0 %v1328, 64
        %v2569 = vpop.permute.xlu0 %2568
        %2570 = vrot.lane.b32.xlu0 %v1331, 64
        %v2571 = vpop.permute.xlu0 %2570
        %2572 = vrot.lane.b32.xlu0 %v1334, 64
        %v2573 = vpop.permute.xlu0 %2572
        %2574 = vrot.lane.b32.xlu0 %v1337, 64
        %v2575 = vpop.permute.xlu0 %2574
        %2576 = vrot.lane.b32.xlu0 %v1340, 64
        %v2577 = vpop.permute.xlu0 %2576
        %2578 = vrot.lane.b32.xlu0 %v1343, 64
        %v2579 = vpop.permute.xlu0 %2578
        %2580 = vrot.lane.b32.xlu0 %v1346, 64
        %v2581 = vpop.permute.xlu0 %2580
        %2582 = vrot.lane.b32.xlu0 %v1349, 64
        %v2583 = vpop.permute.xlu0 %2582
        %v2593 = vsel %vm1860, %v2285, 0
        %v2596 = vsel %vm1860, %v2286, 0
        %v2599 = vsel %vm1860, %v2287, 0
        %v2602 = vsel %vm1860, %v2288, 0
        %v2605 = vsel %vm1860, %v2289, 0
        %v2608 = vsel %vm1860, %v2290, 0
        %v2611 = vsel %vm1860, %v2291, 0
        %v2614 = vsel %vm1860, %v2292, 0
        %2616 = vmatpush.msra.mxu0 0.0
        %2617 = vmatpush.msra.mxu0 0.0
        %2618 = vmatpush.msra.mxu0 0.0
        %2619 = vmatpush.msra.mxu0 0.0
        %2620 = vmatpush.msra.mxu0 0.0
        %2621 = vmatpush.msra.mxu0 0.0
        %2622 = vmatpush.msra.mxu0 0.0
        %2623 = vmatpush.msra.mxu0 0.0
        %2624 = vmatpush.msra.mxu0 %v2583
        %2625 = vmatpush.msra.mxu0 %v2581
        %2626 = vmatpush.msra.mxu0 %v2579
        %2627 = vmatpush.msra.mxu0 %v2577
        %2628 = vmatpush.msra.mxu0 %v2575
        %2629 = vmatpush.msra.mxu0 %v2573
        %2630 = vmatpush.msra.mxu0 %v2571
        %2631 = vmatpush.msra.mxu0 %v2569
        %2632 = vmatmul.f32.gmra.mxu0 %v2593
        %v2633 = vpop.f32.mrf.mxu0
        %v2634 = vadd.f32 0.0, %v2633
        %2635 = vmatmul.f32.gmra.mxu0 %v2596
        %v2636 = vpop.f32.mrf.mxu0
        %v2637 = vadd.f32 0.0, %v2636
        %2638 = vmatmul.f32.gmra.mxu0 %v2599
        %v2639 = vpop.f32.mrf.mxu0
        %v2640 = vadd.f32 0.0, %v2639
        %2641 = vmatmul.f32.gmra.mxu0 %v2602
        %v2642 = vpop.f32.mrf.mxu0
        %v2643 = vadd.f32 0.0, %v2642
        %2644 = vmatmul.f32.gmra.mxu0 %v2605
        %v2645 = vpop.f32.mrf.mxu0
        %v2646 = vadd.f32 0.0, %v2645
        %2647 = vmatmul.f32.gmra.mxu0 %v2608
        %v2648 = vpop.f32.mrf.mxu0
        %v2649 = vadd.f32 0.0, %v2648
        %2650 = vmatmul.f32.gmra.mxu0 %v2611
        %v2651 = vpop.f32.mrf.mxu0
        %v2652 = vadd.f32 0.0, %v2651
        %2653 = vmatmul.f32.gmra.mxu0 %v2614
        %v2654 = vpop.f32.mrf.mxu0
        %v2655 = vadd.f32 0.0, %v2654
        %2656 = vdwg.mxu0
        %2657 = vrot.lane.b32.xlu0 %v1352, 64
        %v2658 = vpop.permute.xlu0 %2657
        %2659 = vrot.lane.b32.xlu0 %v1355, 64
        %v2660 = vpop.permute.xlu0 %2659
        %2661 = vrot.lane.b32.xlu0 %v1358, 64
        %v2662 = vpop.permute.xlu0 %2661
        %2663 = vrot.lane.b32.xlu0 %v1361, 64
        %v2664 = vpop.permute.xlu0 %2663
        %2665 = vrot.lane.b32.xlu0 %v1364, 64
        %v2666 = vpop.permute.xlu0 %2665
        %2667 = vrot.lane.b32.xlu0 %v1367, 64
        %v2668 = vpop.permute.xlu0 %2667
        %2669 = vrot.lane.b32.xlu0 %v1370, 64
        %v2670 = vpop.permute.xlu0 %2669
        %2671 = vrot.lane.b32.xlu0 %v1373, 64
        %v2672 = vpop.permute.xlu0 %2671
        %v2682 = vsel %vm1860, %v2293, 0
        %v2685 = vsel %vm1860, %v2294, 0
        %v2688 = vsel %vm1860, %v2295, 0
        %v2691 = vsel %vm1860, %v2296, 0
        %v2694 = vsel %vm1860, %v2297, 0
        %v2697 = vsel %vm1860, %v2298, 0
        %v2700 = vsel %vm1860, %v2299, 0
        %v2703 = vsel %vm1860, %v2300, 0
        %2705 = vmatpush.msra.mxu0 0.0
        %2706 = vmatpush.msra.mxu0 0.0
        %2707 = vmatpush.msra.mxu0 0.0
        %2708 = vmatpush.msra.mxu0 0.0
        %2709 = vmatpush.msra.mxu0 0.0
        %2710 = vmatpush.msra.mxu0 0.0
        %2711 = vmatpush.msra.mxu0 0.0
        %2712 = vmatpush.msra.mxu0 0.0
        %2713 = vmatpush.msra.mxu0 %v2672
        %2714 = vmatpush.msra.mxu0 %v2670
        %2715 = vmatpush.msra.mxu0 %v2668
        %2716 = vmatpush.msra.mxu0 %v2666
        %2717 = vmatpush.msra.mxu0 %v2664
        %2718 = vmatpush.msra.mxu0 %v2662
        %2719 = vmatpush.msra.mxu0 %v2660
        %2720 = vmatpush.msra.mxu0 %v2658
        %2721 = vmatmul.f32.gmra.mxu0 %v2682
        %v2722 = vpop.f32.mrf.mxu0
        %v2723 = vadd.f32 0.0, %v2722
        %2724 = vmatmul.f32.gmra.mxu0 %v2685
        %v2725 = vpop.f32.mrf.mxu0
        %v2726 = vadd.f32 0.0, %v2725
        %2727 = vmatmul.f32.gmra.mxu0 %v2688
        %v2728 = vpop.f32.mrf.mxu0
        %v2729 = vadd.f32 0.0, %v2728
        %2730 = vmatmul.f32.gmra.mxu0 %v2691
        %v2731 = vpop.f32.mrf.mxu0
        %v2732 = vadd.f32 0.0, %v2731
        %2733 = vmatmul.f32.gmra.mxu0 %v2694
        %v2734 = vpop.f32.mrf.mxu0
        %v2735 = vadd.f32 0.0, %v2734
        %2736 = vmatmul.f32.gmra.mxu0 %v2697
        %v2737 = vpop.f32.mrf.mxu0
        %v2738 = vadd.f32 0.0, %v2737
        %2739 = vmatmul.f32.gmra.mxu0 %v2700
        %v2740 = vpop.f32.mrf.mxu0
        %v2741 = vadd.f32 0.0, %v2740
        %2742 = vmatmul.f32.gmra.mxu0 %v2703
        %v2743 = vpop.f32.mrf.mxu0
        %v2744 = vadd.f32 0.0, %v2743
        %2745 = vdwg.mxu0
        %v2746 = vld [vmem:[#allocation10] sm:$0xff]
        %v2747 = vld [vmem:[#allocation10 + $0x8] sm:$0xff]
        %v2748 = vld [vmem:[#allocation10 + $0x10] sm:$0xff]
        %v2749 = vld [vmem:[#allocation10 + $0x18] sm:$0xff]
        %v2751 = vsel %vm613, %v2367, 0
        %v2754 = vsel %vm613, %v2370, 0
        %v2757 = vsel %vm613, %v2373, 0
        %v2760 = vsel %vm613, %v2376, 0
        %v2763 = vsel %vm613, %v2379, 0
        %v2766 = vsel %vm613, %v2382, 0
        %v2769 = vsel %vm613, %v2385, 0
        %v2772 = vsel %vm613, %v2388, 0
        %v2775 = vsel %vm613, %v2456, 0
        %v2778 = vsel %vm613, %v2459, 0
        %v2781 = vsel %vm613, %v2462, 0
        %v2784 = vsel %vm613, %v2465, 0
        %v2787 = vsel %vm613, %v2468, 0
        %v2790 = vsel %vm613, %v2471, 0
        %v2793 = vsel %vm613, %v2474, 0
        %v2796 = vsel %vm613, %v2477, 0
        %v2799 = vsel %vm613, %v2545, 0
        %v2802 = vsel %vm613, %v2548, 0
        %v2805 = vsel %vm613, %v2551, 0
        %v2808 = vsel %vm613, %v2554, 0
        %v2811 = vsel %vm613, %v2557, 0
        %v2814 = vsel %vm613, %v2560, 0
        %v2817 = vsel %vm613, %v2563, 0
        %v2820 = vsel %vm613, %v2566, 0
        %v2823 = vsel %vm613, %v2634, 0
        %v2826 = vsel %vm613, %v2637, 0
        %v2829 = vsel %vm613, %v2640, 0
        %v2832 = vsel %vm613, %v2643, 0
        %v2835 = vsel %vm613, %v2646, 0
        %v2838 = vsel %vm613, %v2649, 0
        %v2841 = vsel %vm613, %v2652, 0
        %v2844 = vsel %vm613, %v2655, 0
        %v2847 = vsel %vm613, %v2723, 0
        %v2850 = vsel %vm613, %v2726, 0
        %v2853 = vsel %vm613, %v2729, 0
        %v2856 = vsel %vm613, %v2732, 0
        %v2859 = vsel %vm613, %v2735, 0
        %v2862 = vsel %vm613, %v2738, 0
        %v2865 = vsel %vm613, %v2741, 0
        %v2868 = vsel %vm613, %v2744, 0
        %2870 = vmatpush.msra.mxu0 0.0
        %2871 = vmatpush.msra.mxu0 0.0
        %2872 = vmatpush.msra.mxu0 0.0
        %2873 = vmatpush.msra.mxu0 0.0
        %2874 = vmatpush.msra.mxu0 0.0
        %2875 = vmatpush.msra.mxu0 0.0
        %2876 = vmatpush.msra.mxu0 0.0
        %2877 = vmatpush.msra.mxu0 0.0
        %2878 = vmatpush.msra.mxu0 0.0
        %2879 = vmatpush.msra.mxu0 0.0
        %2880 = vmatpush.msra.mxu0 0.0
        %2881 = vmatpush.msra.mxu0 0.0
        %2882 = vmatpush.msra.mxu0 %v2749
        %2883 = vmatpush.msra.mxu0 %v2748
        %2884 = vmatpush.msra.mxu0 %v2747
        %2885 = vmatpush.msra.mxu0 %v2746
        %2886 = vmatmul.f32.gmra.mxu0 %v2751
        %v2887 = vpop.f32.mrf.mxu0
        %v2888 = vadd.f32 0.0, %v2887
        %2889 = vmatmul.f32.gmra.mxu0 %v2754
        %v2890 = vpop.f32.mrf.mxu0
        %v2891 = vadd.f32 0.0, %v2890
        %2892 = vmatmul.f32.gmra.mxu0 %v2757
        %v2893 = vpop.f32.mrf.mxu0
        %v2894 = vadd.f32 0.0, %v2893
        %2895 = vmatmul.f32.gmra.mxu0 %v2760
        %v2896 = vpop.f32.mrf.mxu0
        %v2897 = vadd.f32 0.0, %v2896
        %2898 = vmatmul.f32.gmra.mxu0 %v2763
        %v2899 = vpop.f32.mrf.mxu0
        %v2900 = vadd.f32 0.0, %v2899
        %2901 = vmatmul.f32.gmra.mxu0 %v2766
        %v2902 = vpop.f32.mrf.mxu0
        %v2903 = vadd.f32 0.0, %v2902
        %2904 = vmatmul.f32.gmra.mxu0 %v2769
        %v2905 = vpop.f32.mrf.mxu0
        %v2906 = vadd.f32 0.0, %v2905
        %2907 = vmatmul.f32.gmra.mxu0 %v2772
        %v2908 = vpop.f32.mrf.mxu0
        %v2909 = vadd.f32 0.0, %v2908
        %2910 = vmatmul.f32.gmra.mxu0 %v2775
        %v2911 = vpop.f32.mrf.mxu0
        %v2912 = vadd.f32 0.0, %v2911
        %2913 = vmatmul.f32.gmra.mxu0 %v2778
        %v2914 = vpop.f32.mrf.mxu0
        %v2915 = vadd.f32 0.0, %v2914
        %2916 = vmatmul.f32.gmra.mxu0 %v2781
        %v2917 = vpop.f32.mrf.mxu0
        %v2918 = vadd.f32 0.0, %v2917
        %2919 = vmatmul.f32.gmra.mxu0 %v2784
        %v2920 = vpop.f32.mrf.mxu0
        %v2921 = vadd.f32 0.0, %v2920
        %2922 = vmatmul.f32.gmra.mxu0 %v2787
        %v2923 = vpop.f32.mrf.mxu0
        %v2924 = vadd.f32 0.0, %v2923
        %2925 = vmatmul.f32.gmra.mxu0 %v2790
        %v2926 = vpop.f32.mrf.mxu0
        %v2927 = vadd.f32 0.0, %v2926
        %2928 = vmatmul.f32.gmra.mxu0 %v2793
        %v2929 = vpop.f32.mrf.mxu0
        %v2930 = vadd.f32 0.0, %v2929
        %2931 = vmatmul.f32.gmra.mxu0 %v2796
        %v2932 = vpop.f32.mrf.mxu0
        %v2933 = vadd.f32 0.0, %v2932
        %2934 = vmatmul.f32.gmra.mxu0 %v2799
        %v2935 = vpop.f32.mrf.mxu0
        %v2936 = vadd.f32 0.0, %v2935
        %2937 = vmatmul.f32.gmra.mxu0 %v2802
        %v2938 = vpop.f32.mrf.mxu0
        %v2939 = vadd.f32 0.0, %v2938
        %2940 = vmatmul.f32.gmra.mxu0 %v2805
        %v2941 = vpop.f32.mrf.mxu0
        %v2942 = vadd.f32 0.0, %v2941
        %2943 = vmatmul.f32.gmra.mxu0 %v2808
        %v2944 = vpop.f32.mrf.mxu0
        %v2945 = vadd.f32 0.0, %v2944
        %2946 = vmatmul.f32.gmra.mxu0 %v2811
        %v2947 = vpop.f32.mrf.mxu0
        %v2948 = vadd.f32 0.0, %v2947
        %2949 = vmatmul.f32.gmra.mxu0 %v2814
        %v2950 = vpop.f32.mrf.mxu0
        %v2951 = vadd.f32 0.0, %v2950
        %2952 = vmatmul.f32.gmra.mxu0 %v2817
        %v2953 = vpop.f32.mrf.mxu0
        %v2954 = vadd.f32 0.0, %v2953
        %2955 = vmatmul.f32.gmra.mxu0 %v2820
        %v2956 = vpop.f32.mrf.mxu0
        %v2957 = vadd.f32 0.0, %v2956
        %2958 = vmatmul.f32.gmra.mxu0 %v2823
        %v2959 = vpop.f32.mrf.mxu0
        %v2960 = vadd.f32 0.0, %v2959
        %2961 = vmatmul.f32.gmra.mxu0 %v2826
        %v2962 = vpop.f32.mrf.mxu0
        %v2963 = vadd.f32 0.0, %v2962
        %2964 = vmatmul.f32.gmra.mxu0 %v2829
        %v2965 = vpop.f32.mrf.mxu0
        %v2966 = vadd.f32 0.0, %v2965
        %2967 = vmatmul.f32.gmra.mxu0 %v2832
        %v2968 = vpop.f32.mrf.mxu0
        %v2969 = vadd.f32 0.0, %v2968
        %2970 = vmatmul.f32.gmra.mxu0 %v2835
        %v2971 = vpop.f32.mrf.mxu0
        %v2972 = vadd.f32 0.0, %v2971
        %2973 = vmatmul.f32.gmra.mxu0 %v2838
        %v2974 = vpop.f32.mrf.mxu0
        %v2975 = vadd.f32 0.0, %v2974
        %2976 = vmatmul.f32.gmra.mxu0 %v2841
        %v2977 = vpop.f32.mrf.mxu0
        %v2978 = vadd.f32 0.0, %v2977
        %2979 = vmatmul.f32.gmra.mxu0 %v2844
        %v2980 = vpop.f32.mrf.mxu0
        %v2981 = vadd.f32 0.0, %v2980
        %2982 = vmatmul.f32.gmra.mxu0 %v2847
        %v2983 = vpop.f32.mrf.mxu0
        %v2984 = vadd.f32 0.0, %v2983
        %2985 = vmatmul.f32.gmra.mxu0 %v2850
        %v2986 = vpop.f32.mrf.mxu0
        %v2987 = vadd.f32 0.0, %v2986
        %2988 = vmatmul.f32.gmra.mxu0 %v2853
        %v2989 = vpop.f32.mrf.mxu0
        %v2990 = vadd.f32 0.0, %v2989
        %2991 = vmatmul.f32.gmra.mxu0 %v2856
        %v2992 = vpop.f32.mrf.mxu0
        %v2993 = vadd.f32 0.0, %v2992
        %2994 = vmatmul.f32.gmra.mxu0 %v2859
        %v2995 = vpop.f32.mrf.mxu0
        %v2996 = vadd.f32 0.0, %v2995
        %2997 = vmatmul.f32.gmra.mxu0 %v2862
        %v2998 = vpop.f32.mrf.mxu0
        %v2999 = vadd.f32 0.0, %v2998
        %3000 = vmatmul.f32.gmra.mxu0 %v2865
        %v3001 = vpop.f32.mrf.mxu0
        %v3002 = vadd.f32 0.0, %v3001
        %3003 = vmatmul.f32.gmra.mxu0 %v2868
        %v3004 = vpop.f32.mrf.mxu0
        %v3005 = vadd.f32 0.0, %v3004
        %3006 = vdwg.mxu0
        %v3007 = vadd.f32 %v571, %v2888
        %v3008 = vadd.f32 %v572, %v2891
        %v3009 = vadd.f32 %v573, %v2894
        %v3010 = vadd.f32 %v574, %v2897
        %v3011 = vadd.f32 %v575, %v2900
        %v3012 = vadd.f32 %v576, %v2903
        %v3013 = vadd.f32 %v577, %v2906
        %v3014 = vadd.f32 %v578, %v2909
        %v3015 = vadd.f32 %v579, %v2912
        %v3016 = vadd.f32 %v580, %v2915
        %v3017 = vadd.f32 %v581, %v2918
        %v3018 = vadd.f32 %v582, %v2921
        %v3019 = vadd.f32 %v583, %v2924
        %v3020 = vadd.f32 %v584, %v2927
        %v3021 = vadd.f32 %v585, %v2930
        %v3022 = vadd.f32 %v586, %v2933
        %v3023 = vadd.f32 %v587, %v2936
        %v3024 = vadd.f32 %v588, %v2939
        %v3025 = vadd.f32 %v589, %v2942
        %v3026 = vadd.f32 %v590, %v2945
        %v3027 = vadd.f32 %v591, %v2948
        %v3028 = vadd.f32 %v592, %v2951
        %v3029 = vadd.f32 %v593, %v2954
        %v3030 = vadd.f32 %v594, %v2957
        %v3031 = vadd.f32 %v595, %v2960
        %v3032 = vadd.f32 %v596, %v2963
        %v3033 = vadd.f32 %v597, %v2966
        %v3034 = vadd.f32 %v598, %v2969
        %v3035 = vadd.f32 %v599, %v2972
        %v3036 = vadd.f32 %v600, %v2975
        %v3037 = vadd.f32 %v601, %v2978
        %v3038 = vadd.f32 %v602, %v2981
        %v3039 = vadd.f32 %v603, %v2984
        %v3040 = vadd.f32 %v604, %v2987
        %v3041 = vadd.f32 %v605, %v2990
        %v3042 = vadd.f32 %v606, %v2993
        %v3043 = vadd.f32 %v607, %v2996
        %v3044 = vadd.f32 %v608, %v2999
        %v3045 = vadd.f32 %v609, %v3002
        %v3046 = vadd.f32 %v610, %v3005
        %v3047 = vld [vmem:[#allocation11] sm:$0x1]
        %v3049 = vperm.slane %v3047, 0
        %v3051 = vadd.f32 %v3007, %v3049
        %v3052 = vadd.f32 %v3008, %v3049
        %v3053 = vadd.f32 %v3009, %v3049
        %v3054 = vadd.f32 %v3010, %v3049
        %v3055 = vadd.f32 %v3011, %v3049
        %v3056 = vadd.f32 %v3012, %v3049
        %v3057 = vadd.f32 %v3013, %v3049
        %v3058 = vadd.f32 %v3014, %v3049
        %v3059 = vadd.f32 %v3015, %v3049
        %v3060 = vadd.f32 %v3016, %v3049
        %v3061 = vadd.f32 %v3017, %v3049
        %v3062 = vadd.f32 %v3018, %v3049
        %v3063 = vadd.f32 %v3019, %v3049
        %v3064 = vadd.f32 %v3020, %v3049
        %v3065 = vadd.f32 %v3021, %v3049
        %v3066 = vadd.f32 %v3022, %v3049
        %v3067 = vadd.f32 %v3023, %v3049
        %v3068 = vadd.f32 %v3024, %v3049
        %v3069 = vadd.f32 %v3025, %v3049
        %v3070 = vadd.f32 %v3026, %v3049
        %v3071 = vadd.f32 %v3027, %v3049
        %v3072 = vadd.f32 %v3028, %v3049
        %v3073 = vadd.f32 %v3029, %v3049
        %v3074 = vadd.f32 %v3030, %v3049
        %v3075 = vadd.f32 %v3031, %v3049
        %v3076 = vadd.f32 %v3032, %v3049
        %v3077 = vadd.f32 %v3033, %v3049
        %v3078 = vadd.f32 %v3034, %v3049
        %v3079 = vadd.f32 %v3035, %v3049
        %v3080 = vadd.f32 %v3036, %v3049
        %v3081 = vadd.f32 %v3037, %v3049
        %v3082 = vadd.f32 %v3038, %v3049
        %v3083 = vadd.f32 %v3039, %v3049
        %v3084 = vadd.f32 %v3040, %v3049
        %v3085 = vadd.f32 %v3041, %v3049
        %v3086 = vadd.f32 %v3042, %v3049
        %v3087 = vadd.f32 %v3043, %v3049
        %v3088 = vadd.f32 %v3044, %v3049
        %v3089 = vadd.f32 %v3045, %v3049
        %v3090 = vadd.f32 %v3046, %v3049
        %v3091 = vld [vmem:[%s7] sm:$0x1]
        %v3092 = vld [vmem:[%s8] sm:$0x1]
        %v3093 = vsel %vm613, %v3051, 0.0
        %v3094 = vsel %vm613, %v3052, 0.0
        %v3095 = vadd.f32 %v3093, %v3094
        %v3096 = vsel %vm613, %v3053, 0.0
        %v3097 = vadd.f32 %v3095, %v3096
        %v3098 = vsel %vm613, %v3054, 0.0
        %v3099 = vadd.f32 %v3097, %v3098
        %v3100 = vsel %vm613, %v3055, 0.0
        %v3101 = vadd.f32 %v3099, %v3100
        %v3102 = vsel %vm613, %v3056, 0.0
        %v3103 = vadd.f32 %v3101, %v3102
        %v3104 = vsel %vm613, %v3057, 0.0
        %v3105 = vadd.f32 %v3103, %v3104
        %v3106 = vsel %vm613, %v3058, 0.0
        %v3107 = vadd.f32 %v3105, %v3106
        %v3108 = vrot.slane %v3107, 4
        %v3109 = vadd.f32 %v3107, %v3108
        %v3110 = vrot.slane %v3109, 2
        %v3111 = vadd.f32 %v3109, %v3110
        %v3112 = vrot.slane %v3111, 1
        %v3113 = vadd.f32 %v3111, %v3112
        %v3114 = vsel %vm613, %v3059, 0.0
        %v3115 = vsel %vm613, %v3060, 0.0
        %v3116 = vadd.f32 %v3114, %v3115
        %v3117 = vsel %vm613, %v3061, 0.0
        %v3118 = vadd.f32 %v3116, %v3117
        %v3119 = vsel %vm613, %v3062, 0.0
        %v3120 = vadd.f32 %v3118, %v3119
        %v3121 = vsel %vm613, %v3063, 0.0
        %v3122 = vadd.f32 %v3120, %v3121
        %v3123 = vsel %vm613, %v3064, 0.0
        %v3124 = vadd.f32 %v3122, %v3123
        %v3125 = vsel %vm613, %v3065, 0.0
        %v3126 = vadd.f32 %v3124, %v3125
        %v3127 = vsel %vm613, %v3066, 0.0
        %v3128 = vadd.f32 %v3126, %v3127
        %v3129 = vrot.slane %v3128, 4
        %v3130 = vadd.f32 %v3128, %v3129
        %v3131 = vrot.slane %v3130, 2
        %v3132 = vadd.f32 %v3130, %v3131
        %v3133 = vrot.slane %v3132, 1
        %v3134 = vadd.f32 %v3132, %v3133
        %v3135 = vsel %vm613, %v3067, 0.0
        %v3136 = vsel %vm613, %v3068, 0.0
        %v3137 = vadd.f32 %v3135, %v3136
        %v3138 = vsel %vm613, %v3069, 0.0
        %v3139 = vadd.f32 %v3137, %v3138
        %v3140 = vsel %vm613, %v3070, 0.0
        %v3141 = vadd.f32 %v3139, %v3140
        %v3142 = vsel %vm613, %v3071, 0.0
        %v3143 = vadd.f32 %v3141, %v3142
        %v3144 = vsel %vm613, %v3072, 0.0
        %v3145 = vadd.f32 %v3143, %v3144
        %v3146 = vsel %vm613, %v3073, 0.0
        %v3147 = vadd.f32 %v3145, %v3146
        %v3148 = vsel %vm613, %v3074, 0.0
        %v3149 = vadd.f32 %v3147, %v3148
        %v3150 = vrot.slane %v3149, 4
        %v3151 = vadd.f32 %v3149, %v3150
        %v3152 = vrot.slane %v3151, 2
        %v3153 = vadd.f32 %v3151, %v3152
        %v3154 = vrot.slane %v3153, 1
        %v3155 = vadd.f32 %v3153, %v3154
        %v3156 = vsel %vm613, %v3075, 0.0
        %v3157 = vsel %vm613, %v3076, 0.0
        %v3158 = vadd.f32 %v3156, %v3157
        %v3159 = vsel %vm613, %v3077, 0.0
        %v3160 = vadd.f32 %v3158, %v3159
        %v3161 = vsel %vm613, %v3078, 0.0
        %v3162 = vadd.f32 %v3160, %v3161
        %v3163 = vsel %vm613, %v3079, 0.0
        %v3164 = vadd.f32 %v3162, %v3163
        %v3165 = vsel %vm613, %v3080, 0.0
        %v3166 = vadd.f32 %v3164, %v3165
        %v3167 = vsel %vm613, %v3081, 0.0
        %v3168 = vadd.f32 %v3166, %v3167
        %v3169 = vsel %vm613, %v3082, 0.0
        %v3170 = vadd.f32 %v3168, %v3169
        %v3171 = vrot.slane %v3170, 4
        %v3172 = vadd.f32 %v3170, %v3171
        %v3173 = vrot.slane %v3172, 2
        %v3174 = vadd.f32 %v3172, %v3173
        %v3175 = vrot.slane %v3174, 1
        %v3176 = vadd.f32 %v3174, %v3175
        %v3177 = vsel %vm613, %v3083, 0.0
        %v3178 = vsel %vm613, %v3084, 0.0
        %v3179 = vadd.f32 %v3177, %v3178
        %v3180 = vsel %vm613, %v3085, 0.0
        %v3181 = vadd.f32 %v3179, %v3180
        %v3182 = vsel %vm613, %v3086, 0.0
        %v3183 = vadd.f32 %v3181, %v3182
        %v3184 = vsel %vm613, %v3087, 0.0
        %v3185 = vadd.f32 %v3183, %v3184
        %v3186 = vsel %vm613, %v3088, 0.0
        %v3187 = vadd.f32 %v3185, %v3186
        %v3188 = vsel %vm613, %v3089, 0.0
        %v3189 = vadd.f32 %v3187, %v3188
        %v3190 = vsel %vm613, %v3090, 0.0
        %v3191 = vadd.f32 %v3189, %v3190
        %v3192 = vrot.slane %v3191, 4
        %v3193 = vadd.f32 %v3191, %v3192
        %v3194 = vrot.slane %v3193, 2
        %v3195 = vadd.f32 %v3193, %v3194
        %v3196 = vrot.slane %v3195, 1
        %v3197 = vadd.f32 %v3195, %v3196
        %v3198 = vmul.f32 %v3051, %v3051
        %v3199 = vmul.f32 %v3052, %v3052
        %v3200 = vmul.f32 %v3053, %v3053
        %v3201 = vmul.f32 %v3054, %v3054
        %v3202 = vmul.f32 %v3055, %v3055
        %v3203 = vmul.f32 %v3056, %v3056
        %v3204 = vmul.f32 %v3057, %v3057
        %v3205 = vmul.f32 %v3058, %v3058
        %v3206 = vmul.f32 %v3059, %v3059
        %v3207 = vmul.f32 %v3060, %v3060
        %v3208 = vmul.f32 %v3061, %v3061
        %v3209 = vmul.f32 %v3062, %v3062
        %v3210 = vmul.f32 %v3063, %v3063
        %v3211 = vmul.f32 %v3064, %v3064
        %v3212 = vmul.f32 %v3065, %v3065
        %v3213 = vmul.f32 %v3066, %v3066
        %v3214 = vmul.f32 %v3067, %v3067
        %v3215 = vmul.f32 %v3068, %v3068
        %v3216 = vmul.f32 %v3069, %v3069
        %v3217 = vmul.f32 %v3070, %v3070
        %v3218 = vmul.f32 %v3071, %v3071
        %v3219 = vmul.f32 %v3072, %v3072
        %v3220 = vmul.f32 %v3073, %v3073
        %v3221 = vmul.f32 %v3074, %v3074
        %v3222 = vmul.f32 %v3075, %v3075
        %v3223 = vmul.f32 %v3076, %v3076
        %v3224 = vmul.f32 %v3077, %v3077
        %v3225 = vmul.f32 %v3078, %v3078
        %v3226 = vmul.f32 %v3079, %v3079
        %v3227 = vmul.f32 %v3080, %v3080
        %v3228 = vmul.f32 %v3081, %v3081
        %v3229 = vmul.f32 %v3082, %v3082
        %v3230 = vmul.f32 %v3083, %v3083
        %v3231 = vmul.f32 %v3084, %v3084
        %v3232 = vmul.f32 %v3085, %v3085
        %v3233 = vmul.f32 %v3086, %v3086
        %v3234 = vmul.f32 %v3087, %v3087
        %v3235 = vmul.f32 %v3088, %v3088
        %v3236 = vmul.f32 %v3089, %v3089
        %v3237 = vmul.f32 %v3090, %v3090
        %v3238 = vsel %vm613, %v3198, 0.0
        %v3239 = vsel %vm613, %v3199, 0.0
        %v3240 = vadd.f32 %v3238, %v3239
        %v3241 = vsel %vm613, %v3200, 0.0
        %v3242 = vadd.f32 %v3240, %v3241
        %v3243 = vsel %vm613, %v3201, 0.0
        %v3244 = vadd.f32 %v3242, %v3243
        %v3245 = vsel %vm613, %v3202, 0.0
        %v3246 = vadd.f32 %v3244, %v3245
        %v3247 = vsel %vm613, %v3203, 0.0
        %v3248 = vadd.f32 %v3246, %v3247
        %v3249 = vsel %vm613, %v3204, 0.0
        %v3250 = vadd.f32 %v3248, %v3249
        %v3251 = vsel %vm613, %v3205, 0.0
        %v3252 = vadd.f32 %v3250, %v3251
        %v3253 = vrot.slane %v3252, 4
        %v3254 = vadd.f32 %v3252, %v3253
        %v3255 = vrot.slane %v3254, 2
        %v3256 = vadd.f32 %v3254, %v3255
        %v3257 = vrot.slane %v3256, 1
        %v3258 = vadd.f32 %v3256, %v3257
        %v3259 = vsel %vm613, %v3206, 0.0
        %v3260 = vsel %vm613, %v3207, 0.0
        %v3261 = vadd.f32 %v3259, %v3260
        %v3262 = vsel %vm613, %v3208, 0.0
        %v3263 = vadd.f32 %v3261, %v3262
        %v3264 = vsel %vm613, %v3209, 0.0
        %v3265 = vadd.f32 %v3263, %v3264
        %v3266 = vsel %vm613, %v3210, 0.0
        %v3267 = vadd.f32 %v3265, %v3266
        %v3268 = vsel %vm613, %v3211, 0.0
        %v3269 = vadd.f32 %v3267, %v3268
        %v3270 = vsel %vm613, %v3212, 0.0
        %v3271 = vadd.f32 %v3269, %v3270
        %v3272 = vsel %vm613, %v3213, 0.0
        %v3273 = vadd.f32 %v3271, %v3272
        %v3274 = vrot.slane %v3273, 4
        %v3275 = vadd.f32 %v3273, %v3274
        %v3276 = vrot.slane %v3275, 2
        %v3277 = vadd.f32 %v3275, %v3276
        %v3278 = vrot.slane %v3277, 1
        %v3279 = vadd.f32 %v3277, %v3278
        %v3280 = vsel %vm613, %v3214, 0.0
        %v3281 = vsel %vm613, %v3215, 0.0
        %v3282 = vadd.f32 %v3280, %v3281
        %v3283 = vsel %vm613, %v3216, 0.0
        %v3284 = vadd.f32 %v3282, %v3283
        %v3285 = vsel %vm613, %v3217, 0.0
        %v3286 = vadd.f32 %v3284, %v3285
        %v3287 = vsel %vm613, %v3218, 0.0
        %v3288 = vadd.f32 %v3286, %v3287
        %v3289 = vsel %vm613, %v3219, 0.0
        %v3290 = vadd.f32 %v3288, %v3289
        %v3291 = vsel %vm613, %v3220, 0.0
        %v3292 = vadd.f32 %v3290, %v3291
        %v3293 = vsel %vm613, %v3221, 0.0
        %v3294 = vadd.f32 %v3292, %v3293
        %v3295 = vrot.slane %v3294, 4
        %v3296 = vadd.f32 %v3294, %v3295
        %v3297 = vrot.slane %v3296, 2
        %v3298 = vadd.f32 %v3296, %v3297
        %v3299 = vrot.slane %v3298, 1
        %v3300 = vadd.f32 %v3298, %v3299
        %v3301 = vsel %vm613, %v3222, 0.0
        %v3302 = vsel %vm613, %v3223, 0.0
        %v3303 = vadd.f32 %v3301, %v3302
        %v3304 = vsel %vm613, %v3224, 0.0
        %v3305 = vadd.f32 %v3303, %v3304
        %v3306 = vsel %vm613, %v3225, 0.0
        %v3307 = vadd.f32 %v3305, %v3306
        %v3308 = vsel %vm613, %v3226, 0.0
        %v3309 = vadd.f32 %v3307, %v3308
        %v3310 = vsel %vm613, %v3227, 0.0
        %v3311 = vadd.f32 %v3309, %v3310
        %v3312 = vsel %vm613, %v3228, 0.0
        %v3313 = vadd.f32 %v3311, %v3312
        %v3314 = vsel %vm613, %v3229, 0.0
        %v3315 = vadd.f32 %v3313, %v3314
        %v3316 = vrot.slane %v3315, 4
        %v3317 = vadd.f32 %v3315, %v3316
        %v3318 = vrot.slane %v3317, 2
        %v3319 = vadd.f32 %v3317, %v3318
        %v3320 = vrot.slane %v3319, 1
        %v3321 = vadd.f32 %v3319, %v3320
        %v3322 = vsel %vm613, %v3230, 0.0
        %v3323 = vsel %vm613, %v3231, 0.0
        %v3324 = vadd.f32 %v3322, %v3323
        %v3325 = vsel %vm613, %v3232, 0.0
        %v3326 = vadd.f32 %v3324, %v3325
        %v3327 = vsel %vm613, %v3233, 0.0
        %v3328 = vadd.f32 %v3326, %v3327
        %v3329 = vsel %vm613, %v3234, 0.0
        %v3330 = vadd.f32 %v3328, %v3329
        %v3331 = vsel %vm613, %v3235, 0.0
        %v3332 = vadd.f32 %v3330, %v3331
        %v3333 = vsel %vm613, %v3236, 0.0
        %v3334 = vadd.f32 %v3332, %v3333
        %v3335 = vsel %vm613, %v3237, 0.0
        %v3336 = vadd.f32 %v3334, %v3335
        %v3337 = vrot.slane %v3336, 4
        %v3338 = vadd.f32 %v3336, %v3337
        %v3339 = vrot.slane %v3338, 2
        %v3340 = vadd.f32 %v3338, %v3339
        %v3341 = vrot.slane %v3340, 1
        %v3342 = vadd.f32 %v3340, %v3341
        %v3343 = vmul.f32 %v3113, 0.015625
        %v3344 = vmul.f32 %v3134, 0.015625
        %v3345 = vmul.f32 %v3155, 0.015625
        %v3346 = vmul.f32 %v3176, 0.015625
        %v3347 = vmul.f32 %v3197, 0.015625
        %v3348 = vmul.f32 %v3258, 0.015625
        %v3349 = vmul.f32 %v3279, 0.015625
        %v3350 = vmul.f32 %v3300, 0.015625
        %v3351 = vmul.f32 %v3321, 0.015625
        %v3352 = vmul.f32 %v3342, 0.015625
        %v3353 = vmul.f32 %v3343, %v3343
        %v3354 = vmul.f32 %v3344, %v3344
        %v3355 = vmul.f32 %v3345, %v3345
        %v3356 = vmul.f32 %v3346, %v3346
        %v3357 = vmul.f32 %v3347, %v3347
        %v3358 = vsub.f32 %v3348, %v3353
        %v3359 = vsub.f32 %v3349, %v3354
        %v3360 = vsub.f32 %v3350, %v3355
        %v3361 = vsub.f32 %v3351, %v3356
        %v3362 = vsub.f32 %v3352, %v3357
        %v3363 = vmax.f32 %v3358, 0.0
        %v3364 = vmax.f32 %v3359, 0.0
        %v3365 = vmax.f32 %v3360, 0.0
        %v3366 = vmax.f32 %v3361, 0.0
        %v3367 = vmax.f32 %v3362, 0.0
        %v3368 = vadd.f32 %v3363, 1e-06
        %v3369 = vadd.f32 %v3364, 1e-06
        %v3370 = vadd.f32 %v3365, 1e-06
        %v3371 = vadd.f32 %v3366, 1e-06
        %v3372 = vadd.f32 %v3367, 1e-06
        %v3373 = vrsqrt.pop %v3368
        %v3374 = vmul.f32 %v3373, %v3368
        %v3375 = vmul.f32 %v3374, %v3373
        %v3376 = vmul.f32 0.5, %v3375
        %v3377 = vsub.f32 1.5, %v3376
        %v3378 = vmul.f32 %v3373, %v3377
        %vm3379 = vweird.f32 %v3368
        %vm3380 = vweird.f32 %v3373
        %vm3381 = vmor %vm3379, %vm3380
        %v3382 = vsel %vm3381, %v3373, %v3378
        %v3383 = vrsqrt.pop %v3369
        %v3384 = vmul.f32 %v3383, %v3369
        %v3385 = vmul.f32 %v3384, %v3383
        %v3386 = vmul.f32 0.5, %v3385
        %v3387 = vsub.f32 1.5, %v3386
        %v3388 = vmul.f32 %v3383, %v3387
        %vm3389 = vweird.f32 %v3369
        %vm3390 = vweird.f32 %v3383
        %vm3391 = vmor %vm3389, %vm3390
        %v3392 = vsel %vm3391, %v3383, %v3388
        %v3393 = vrsqrt.pop %v3370
        %v3394 = vmul.f32 %v3393, %v3370
        %v3395 = vmul.f32 %v3394, %v3393
        %v3396 = vmul.f32 0.5, %v3395
        %v3397 = vsub.f32 1.5, %v3396
        %v3398 = vmul.f32 %v3393, %v3397
        %vm3399 = vweird.f32 %v3370
        %vm3400 = vweird.f32 %v3393
        %vm3401 = vmor %vm3399, %vm3400
        %v3402 = vsel %vm3401, %v3393, %v3398
        %v3403 = vrsqrt.pop %v3371
        %v3404 = vmul.f32 %v3403, %v3371
        %v3405 = vmul.f32 %v3404, %v3403
        %v3406 = vmul.f32 0.5, %v3405
        %v3407 = vsub.f32 1.5, %v3406
        %v3408 = vmul.f32 %v3403, %v3407
        %vm3409 = vweird.f32 %v3371
        %vm3410 = vweird.f32 %v3403
        %vm3411 = vmor %vm3409, %vm3410
        %v3412 = vsel %vm3411, %v3403, %v3408
        %v3413 = vrsqrt.pop %v3372
        %v3414 = vmul.f32 %v3413, %v3372
        %v3415 = vmul.f32 %v3414, %v3413
        %v3416 = vmul.f32 0.5, %v3415
        %v3417 = vsub.f32 1.5, %v3416
        %v3418 = vmul.f32 %v3413, %v3417
        %vm3419 = vweird.f32 %v3372
        %vm3420 = vweird.f32 %v3413
        %vm3421 = vmor %vm3419, %vm3420
        %v3422 = vsel %vm3421, %v3413, %v3418
        %v3423 = vsub.f32 %v3051, %v3343
        %v3424 = vsub.f32 %v3052, %v3343
        %v3425 = vsub.f32 %v3053, %v3343
        %v3426 = vsub.f32 %v3054, %v3343
        %v3427 = vsub.f32 %v3055, %v3343
        %v3428 = vsub.f32 %v3056, %v3343
        %v3429 = vsub.f32 %v3057, %v3343
        %v3430 = vsub.f32 %v3058, %v3343
        %v3431 = vsub.f32 %v3059, %v3344
        %v3432 = vsub.f32 %v3060, %v3344
        %v3433 = vsub.f32 %v3061, %v3344
        %v3434 = vsub.f32 %v3062, %v3344
        %v3435 = vsub.f32 %v3063, %v3344
        %v3436 = vsub.f32 %v3064, %v3344
        %v3437 = vsub.f32 %v3065, %v3344
        %v3438 = vsub.f32 %v3066, %v3344
        %v3439 = vsub.f32 %v3067, %v3345
        %v3440 = vsub.f32 %v3068, %v3345
        %v3441 = vsub.f32 %v3069, %v3345
        %v3442 = vsub.f32 %v3070, %v3345
        %v3443 = vsub.f32 %v3071, %v3345
        %v3444 = vsub.f32 %v3072, %v3345
        %v3445 = vsub.f32 %v3073, %v3345
        %v3446 = vsub.f32 %v3074, %v3345
        %v3447 = vsub.f32 %v3075, %v3346
        %v3448 = vsub.f32 %v3076, %v3346
        %v3449 = vsub.f32 %v3077, %v3346
        %v3450 = vsub.f32 %v3078, %v3346
        %v3451 = vsub.f32 %v3079, %v3346
        %v3452 = vsub.f32 %v3080, %v3346
        %v3453 = vsub.f32 %v3081, %v3346
        %v3454 = vsub.f32 %v3082, %v3346
        %v3455 = vsub.f32 %v3083, %v3347
        %v3456 = vsub.f32 %v3084, %v3347
        %v3457 = vsub.f32 %v3085, %v3347
        %v3458 = vsub.f32 %v3086, %v3347
        %v3459 = vsub.f32 %v3087, %v3347
        %v3460 = vsub.f32 %v3088, %v3347
        %v3461 = vsub.f32 %v3089, %v3347
        %v3462 = vsub.f32 %v3090, %v3347
        %v3463 = vmul.f32 %v3423, %v3382
        %v3464 = vmul.f32 %v3424, %v3382
        %v3465 = vmul.f32 %v3425, %v3382
        %v3466 = vmul.f32 %v3426, %v3382
        %v3467 = vmul.f32 %v3427, %v3382
        %v3468 = vmul.f32 %v3428, %v3382
        %v3469 = vmul.f32 %v3429, %v3382
        %v3470 = vmul.f32 %v3430, %v3382
        %v3471 = vmul.f32 %v3431, %v3392
        %v3472 = vmul.f32 %v3432, %v3392
        %v3473 = vmul.f32 %v3433, %v3392
        %v3474 = vmul.f32 %v3434, %v3392
        %v3475 = vmul.f32 %v3435, %v3392
        %v3476 = vmul.f32 %v3436, %v3392
        %v3477 = vmul.f32 %v3437, %v3392
        %v3478 = vmul.f32 %v3438, %v3392
        %v3479 = vmul.f32 %v3439, %v3402
        %v3480 = vmul.f32 %v3440, %v3402
        %v3481 = vmul.f32 %v3441, %v3402
        %v3482 = vmul.f32 %v3442, %v3402
        %v3483 = vmul.f32 %v3443, %v3402
        %v3484 = vmul.f32 %v3444, %v3402
        %v3485 = vmul.f32 %v3445, %v3402
        %v3486 = vmul.f32 %v3446, %v3402
        %v3487 = vmul.f32 %v3447, %v3412
        %v3488 = vmul.f32 %v3448, %v3412
        %v3489 = vmul.f32 %v3449, %v3412
        %v3490 = vmul.f32 %v3450, %v3412
        %v3491 = vmul.f32 %v3451, %v3412
        %v3492 = vmul.f32 %v3452, %v3412
        %v3493 = vmul.f32 %v3453, %v3412
        %v3494 = vmul.f32 %v3454, %v3412
        %v3495 = vmul.f32 %v3455, %v3422
        %v3496 = vmul.f32 %v3456, %v3422
        %v3497 = vmul.f32 %v3457, %v3422
        %v3498 = vmul.f32 %v3458, %v3422
        %v3499 = vmul.f32 %v3459, %v3422
        %v3500 = vmul.f32 %v3460, %v3422
        %v3501 = vmul.f32 %v3461, %v3422
        %v3502 = vmul.f32 %v3462, %v3422
        %v3504 = vperm.slane %v3091, 0
        %v3506 = vmul.f32 %v3463, %v3504
        %v3507 = vmul.f32 %v3464, %v3504
        %v3508 = vmul.f32 %v3465, %v3504
        %v3509 = vmul.f32 %v3466, %v3504
        %v3510 = vmul.f32 %v3467, %v3504
        %v3511 = vmul.f32 %v3468, %v3504
        %v3512 = vmul.f32 %v3469, %v3504
        %v3513 = vmul.f32 %v3470, %v3504
        %v3514 = vmul.f32 %v3471, %v3504
        %v3515 = vmul.f32 %v3472, %v3504
        %v3516 = vmul.f32 %v3473, %v3504
        %v3517 = vmul.f32 %v3474, %v3504
        %v3518 = vmul.f32 %v3475, %v3504
        %v3519 = vmul.f32 %v3476, %v3504
        %v3520 = vmul.f32 %v3477, %v3504
        %v3521 = vmul.f32 %v3478, %v3504
        %v3522 = vmul.f32 %v3479, %v3504
        %v3523 = vmul.f32 %v3480, %v3504
        %v3524 = vmul.f32 %v3481, %v3504
        %v3525 = vmul.f32 %v3482, %v3504
        %v3526 = vmul.f32 %v3483, %v3504
        %v3527 = vmul.f32 %v3484, %v3504
        %v3528 = vmul.f32 %v3485, %v3504
        %v3529 = vmul.f32 %v3486, %v3504
        %v3530 = vmul.f32 %v3487, %v3504
        %v3531 = vmul.f32 %v3488, %v3504
        %v3532 = vmul.f32 %v3489, %v3504
        %v3533 = vmul.f32 %v3490, %v3504
        %v3534 = vmul.f32 %v3491, %v3504
        %v3535 = vmul.f32 %v3492, %v3504
        %v3536 = vmul.f32 %v3493, %v3504
        %v3537 = vmul.f32 %v3494, %v3504
        %v3538 = vmul.f32 %v3495, %v3504
        %v3539 = vmul.f32 %v3496, %v3504
        %v3540 = vmul.f32 %v3497, %v3504
        %v3541 = vmul.f32 %v3498, %v3504
        %v3542 = vmul.f32 %v3499, %v3504
        %v3543 = vmul.f32 %v3500, %v3504
        %v3544 = vmul.f32 %v3501, %v3504
        %v3545 = vmul.f32 %v3502, %v3504
        %v3547 = vperm.slane %v3092, 0
        %v3549 = vadd.f32 %v3506, %v3547
        %v3550 = vadd.f32 %v3507, %v3547
        %v3551 = vadd.f32 %v3508, %v3547
        %v3552 = vadd.f32 %v3509, %v3547
        %v3553 = vadd.f32 %v3510, %v3547
        %v3554 = vadd.f32 %v3511, %v3547
        %v3555 = vadd.f32 %v3512, %v3547
        %v3556 = vadd.f32 %v3513, %v3547
        %v3557 = vadd.f32 %v3514, %v3547
        %v3558 = vadd.f32 %v3515, %v3547
        %v3559 = vadd.f32 %v3516, %v3547
        %v3560 = vadd.f32 %v3517, %v3547
        %v3561 = vadd.f32 %v3518, %v3547
        %v3562 = vadd.f32 %v3519, %v3547
        %v3563 = vadd.f32 %v3520, %v3547
        %v3564 = vadd.f32 %v3521, %v3547
        %v3565 = vadd.f32 %v3522, %v3547
        %v3566 = vadd.f32 %v3523, %v3547
        %v3567 = vadd.f32 %v3524, %v3547
        %v3568 = vadd.f32 %v3525, %v3547
        %v3569 = vadd.f32 %v3526, %v3547
        %v3570 = vadd.f32 %v3527, %v3547
        %v3571 = vadd.f32 %v3528, %v3547
        %v3572 = vadd.f32 %v3529, %v3547
        %v3573 = vadd.f32 %v3530, %v3547
        %v3574 = vadd.f32 %v3531, %v3547
        %v3575 = vadd.f32 %v3532, %v3547
        %v3576 = vadd.f32 %v3533, %v3547
        %v3577 = vadd.f32 %v3534, %v3547
        %v3578 = vadd.f32 %v3535, %v3547
        %v3579 = vadd.f32 %v3536, %v3547
        %v3580 = vadd.f32 %v3537, %v3547
        %v3581 = vadd.f32 %v3538, %v3547
        %v3582 = vadd.f32 %v3539, %v3547
        %v3583 = vadd.f32 %v3540, %v3547
        %v3584 = vadd.f32 %v3541, %v3547
        %v3585 = vadd.f32 %v3542, %v3547
        %v3586 = vadd.f32 %v3543, %v3547
        %v3587 = vadd.f32 %v3544, %v3547
        %v3588 = vadd.f32 %v3545, %v3547
        %v3589 = vld [vmem:[#allocation13] sm:$0xff]
        %v3590 = vld [vmem:[#allocation13 + $0x8] sm:$0xff]
        %v3591 = vld [vmem:[#allocation13 + $0x10] sm:$0xff]
        %v3592 = vld [vmem:[#allocation13 + $0x18] sm:$0xff]
        %v3593 = vld [vmem:[%s10] sm:$0x1]
        %v3595 = vperm.slane %v3593, 0
        %v3598 = vsel %vm613, %v3549, 0
        %v3601 = vsel %vm613, %v3550, 0
        %v3604 = vsel %vm613, %v3551, 0
        %v3607 = vsel %vm613, %v3552, 0
        %v3610 = vsel %vm613, %v3553, 0
        %v3613 = vsel %vm613, %v3554, 0
        %v3616 = vsel %vm613, %v3555, 0
        %v3619 = vsel %vm613, %v3556, 0
        %v3622 = vsel %vm613, %v3557, 0
        %v3625 = vsel %vm613, %v3558, 0
        %v3628 = vsel %vm613, %v3559, 0
        %v3631 = vsel %vm613, %v3560, 0
        %v3634 = vsel %vm613, %v3561, 0
        %v3637 = vsel %vm613, %v3562, 0
        %v3640 = vsel %vm613, %v3563, 0
        %v3643 = vsel %vm613, %v3564, 0
        %v3646 = vsel %vm613, %v3565, 0
        %v3649 = vsel %vm613, %v3566, 0
        %v3652 = vsel %vm613, %v3567, 0
        %v3655 = vsel %vm613, %v3568, 0
        %v3658 = vsel %vm613, %v3569, 0
        %v3661 = vsel %vm613, %v3570, 0
        %v3664 = vsel %vm613, %v3571, 0
        %v3667 = vsel %vm613, %v3572, 0
        %v3670 = vsel %vm613, %v3573, 0
        %v3673 = vsel %vm613, %v3574, 0
        %v3676 = vsel %vm613, %v3575, 0
        %v3679 = vsel %vm613, %v3576, 0
        %v3682 = vsel %vm613, %v3577, 0
        %v3685 = vsel %vm613, %v3578, 0
        %v3688 = vsel %vm613, %v3579, 0
        %v3691 = vsel %vm613, %v3580, 0
        %v3694 = vsel %vm613, %v3581, 0
        %v3697 = vsel %vm613, %v3582, 0
        %v3700 = vsel %vm613, %v3583, 0
        %v3703 = vsel %vm613, %v3584, 0
        %v3706 = vsel %vm613, %v3585, 0
        %v3709 = vsel %vm613, %v3586, 0
        %v3712 = vsel %vm613, %v3587, 0
        %v3715 = vsel %vm613, %v3588, 0
        %3717 = vmatpush.msra.mxu0 0.0
        %3718 = vmatpush.msra.mxu0 0.0
        %3719 = vmatpush.msra.mxu0 0.0
        %3720 = vmatpush.msra.mxu0 0.0
        %3721 = vmatpush.msra.mxu0 0.0
        %3722 = vmatpush.msra.mxu0 0.0
        %3723 = vmatpush.msra.mxu0 0.0
        %3724 = vmatpush.msra.mxu0 0.0
        %3725 = vmatpush.msra.mxu0 0.0
        %3726 = vmatpush.msra.mxu0 0.0
        %3727 = vmatpush.msra.mxu0 0.0
        %3728 = vmatpush.msra.mxu0 0.0
        %3729 = vmatpush.msra.mxu0 %v3592
        %3730 = vmatpush.msra.mxu0 %v3591
        %3731 = vmatpush.msra.mxu0 %v3590
        %3732 = vmatpush.msra.mxu0 %v3589
        %3733 = vmatmul.f32.gmra.mxu0 %v3598
        %v3734 = vpop.f32.mrf.mxu0
        %v3735 = vadd.f32 %v3595, %v3734
        %3736 = vmatmul.f32.gmra.mxu0 %v3601
        %v3737 = vpop.f32.mrf.mxu0
        %v3738 = vadd.f32 %v3595, %v3737
        %3739 = vmatmul.f32.gmra.mxu0 %v3604
        %v3740 = vpop.f32.mrf.mxu0
        %v3741 = vadd.f32 %v3595, %v3740
        %3742 = vmatmul.f32.gmra.mxu0 %v3607
        %v3743 = vpop.f32.mrf.mxu0
        %v3744 = vadd.f32 %v3595, %v3743
        %3745 = vmatmul.f32.gmra.mxu0 %v3610
        %v3746 = vpop.f32.mrf.mxu0
        %v3747 = vadd.f32 %v3595, %v3746
        %3748 = vmatmul.f32.gmra.mxu0 %v3613
        %v3749 = vpop.f32.mrf.mxu0
        %v3750 = vadd.f32 %v3595, %v3749
        %3751 = vmatmul.f32.gmra.mxu0 %v3616
        %v3752 = vpop.f32.mrf.mxu0
        %v3753 = vadd.f32 %v3595, %v3752
        %3754 = vmatmul.f32.gmra.mxu0 %v3619
        %v3755 = vpop.f32.mrf.mxu0
        %v3756 = vadd.f32 %v3595, %v3755
        %3757 = vmatmul.f32.gmra.mxu0 %v3622
        %v3758 = vpop.f32.mrf.mxu0
        %v3759 = vadd.f32 %v3595, %v3758
        %3760 = vmatmul.f32.gmra.mxu0 %v3625
        %v3761 = vpop.f32.mrf.mxu0
        %v3762 = vadd.f32 %v3595, %v3761
        %3763 = vmatmul.f32.gmra.mxu0 %v3628
        %v3764 = vpop.f32.mrf.mxu0
        %v3765 = vadd.f32 %v3595, %v3764
        %3766 = vmatmul.f32.gmra.mxu0 %v3631
        %v3767 = vpop.f32.mrf.mxu0
        %v3768 = vadd.f32 %v3595, %v3767
        %3769 = vmatmul.f32.gmra.mxu0 %v3634
        %v3770 = vpop.f32.mrf.mxu0
        %v3771 = vadd.f32 %v3595, %v3770
        %3772 = vmatmul.f32.gmra.mxu0 %v3637
        %v3773 = vpop.f32.mrf.mxu0
        %v3774 = vadd.f32 %v3595, %v3773
        %3775 = vmatmul.f32.gmra.mxu0 %v3640
        %v3776 = vpop.f32.mrf.mxu0
        %v3777 = vadd.f32 %v3595, %v3776
        %3778 = vmatmul.f32.gmra.mxu0 %v3643
        %v3779 = vpop.f32.mrf.mxu0
        %v3780 = vadd.f32 %v3595, %v3779
        %3781 = vmatmul.f32.gmra.mxu0 %v3646
        %v3782 = vpop.f32.mrf.mxu0
        %v3783 = vadd.f32 %v3595, %v3782
        %3784 = vmatmul.f32.gmra.mxu0 %v3649
        %v3785 = vpop.f32.mrf.mxu0
        %v3786 = vadd.f32 %v3595, %v3785
        %3787 = vmatmul.f32.gmra.mxu0 %v3652
        %v3788 = vpop.f32.mrf.mxu0
        %v3789 = vadd.f32 %v3595, %v3788
        %3790 = vmatmul.f32.gmra.mxu0 %v3655
        %v3791 = vpop.f32.mrf.mxu0
        %v3792 = vadd.f32 %v3595, %v3791
        %3793 = vmatmul.f32.gmra.mxu0 %v3658
        %v3794 = vpop.f32.mrf.mxu0
        %v3795 = vadd.f32 %v3595, %v3794
        %3796 = vmatmul.f32.gmra.mxu0 %v3661
        %v3797 = vpop.f32.mrf.mxu0
        %v3798 = vadd.f32 %v3595, %v3797
        %3799 = vmatmul.f32.gmra.mxu0 %v3664
        %v3800 = vpop.f32.mrf.mxu0
        %v3801 = vadd.f32 %v3595, %v3800
        %3802 = vmatmul.f32.gmra.mxu0 %v3667
        %v3803 = vpop.f32.mrf.mxu0
        %v3804 = vadd.f32 %v3595, %v3803
        %3805 = vmatmul.f32.gmra.mxu0 %v3670
        %v3806 = vpop.f32.mrf.mxu0
        %v3807 = vadd.f32 %v3595, %v3806
        %3808 = vmatmul.f32.gmra.mxu0 %v3673
        %v3809 = vpop.f32.mrf.mxu0
        %v3810 = vadd.f32 %v3595, %v3809
        %3811 = vmatmul.f32.gmra.mxu0 %v3676
        %v3812 = vpop.f32.mrf.mxu0
        %v3813 = vadd.f32 %v3595, %v3812
        %3814 = vmatmul.f32.gmra.mxu0 %v3679
        %v3815 = vpop.f32.mrf.mxu0
        %v3816 = vadd.f32 %v3595, %v3815
        %3817 = vmatmul.f32.gmra.mxu0 %v3682
        %v3818 = vpop.f32.mrf.mxu0
        %v3819 = vadd.f32 %v3595, %v3818
        %3820 = vmatmul.f32.gmra.mxu0 %v3685
        %v3821 = vpop.f32.mrf.mxu0
        %v3822 = vadd.f32 %v3595, %v3821
        %3823 = vmatmul.f32.gmra.mxu0 %v3688
        %v3824 = vpop.f32.mrf.mxu0
        %v3825 = vadd.f32 %v3595, %v3824
        %3826 = vmatmul.f32.gmra.mxu0 %v3691
        %v3827 = vpop.f32.mrf.mxu0
        %v3828 = vadd.f32 %v3595, %v3827
        %3829 = vmatmul.f32.gmra.mxu0 %v3694
        %v3830 = vpop.f32.mrf.mxu0
        %v3831 = vadd.f32 %v3595, %v3830
        %3832 = vmatmul.f32.gmra.mxu0 %v3697
        %v3833 = vpop.f32.mrf.mxu0
        %v3834 = vadd.f32 %v3595, %v3833
        %3835 = vmatmul.f32.gmra.mxu0 %v3700
        %v3836 = vpop.f32.mrf.mxu0
        %v3837 = vadd.f32 %v3595, %v3836
        %3838 = vmatmul.f32.gmra.mxu0 %v3703
        %v3839 = vpop.f32.mrf.mxu0
        %v3840 = vadd.f32 %v3595, %v3839
        %3841 = vmatmul.f32.gmra.mxu0 %v3706
        %v3842 = vpop.f32.mrf.mxu0
        %v3843 = vadd.f32 %v3595, %v3842
        %3844 = vmatmul.f32.gmra.mxu0 %v3709
        %v3845 = vpop.f32.mrf.mxu0
        %v3846 = vadd.f32 %v3595, %v3845
        %3847 = vmatmul.f32.gmra.mxu0 %v3712
        %v3848 = vpop.f32.mrf.mxu0
        %v3849 = vadd.f32 %v3595, %v3848
        %3850 = vmatmul.f32.gmra.mxu0 %v3715
        %v3851 = vpop.f32.mrf.mxu0
        %v3852 = vadd.f32 %v3595, %v3851
        %3853 = vdwg.mxu0
        %3862 = vrot.lane.b32.xlu0 %v3735, 96
        %v3863 = vpop.permute.xlu0 %3862
        %3864 = vrot.lane.b32.xlu0 %v3738, 96
        %v3865 = vpop.permute.xlu0 %3864
        %3866 = vrot.lane.b32.xlu0 %v3741, 96
        %v3867 = vpop.permute.xlu0 %3866
        %3868 = vrot.lane.b32.xlu0 %v3744, 96
        %v3869 = vpop.permute.xlu0 %3868
        %3870 = vrot.lane.b32.xlu0 %v3747, 96
        %v3871 = vpop.permute.xlu0 %3870
        %3872 = vrot.lane.b32.xlu0 %v3750, 96
        %v3873 = vpop.permute.xlu0 %3872
        %3874 = vrot.lane.b32.xlu0 %v3753, 96
        %v3875 = vpop.permute.xlu0 %3874
        %3876 = vrot.lane.b32.xlu0 %v3756, 96
        %v3877 = vpop.permute.xlu0 %3876
        %v3886 = vmul.f32 %v3735, %v3863
        %v3887 = vmul.f32 %v3738, %v3865
        %v3888 = vmul.f32 %v3741, %v3867
        %v3889 = vmul.f32 %v3744, %v3869
        %v3890 = vmul.f32 %v3747, %v3871
        %v3891 = vmul.f32 %v3750, %v3873
        %v3892 = vmul.f32 %v3753, %v3875
        %v3893 = vmul.f32 %v3756, %v3877
        %v3894 = vsel %vm613, %v3886, 0.0
        %3895 = vadd.xlane.f32.xlu0 %v3894
        %v3896 = vpop.xlane.xlu0 %3895
        %v3897 = vsel %vm613, %v3887, 0.0
        %3898 = vadd.xlane.f32.xlu0 %v3897
        %v3899 = vpop.xlane.xlu0 %3898
        %v3900 = vsel %vm613, %v3888, 0.0
        %3901 = vadd.xlane.f32.xlu0 %v3900
        %v3902 = vpop.xlane.xlu0 %3901
        %v3903 = vsel %vm613, %v3889, 0.0
        %3904 = vadd.xlane.f32.xlu0 %v3903
        %v3905 = vpop.xlane.xlu0 %3904
        %v3906 = vsel %vm613, %v3890, 0.0
        %3907 = vadd.xlane.f32.xlu0 %v3906
        %v3908 = vpop.xlane.xlu0 %3907
        %v3909 = vsel %vm613, %v3891, 0.0
        %3910 = vadd.xlane.f32.xlu0 %v3909
        %v3911 = vpop.xlane.xlu0 %3910
        %v3912 = vsel %vm613, %v3892, 0.0
        %3913 = vadd.xlane.f32.xlu0 %v3912
        %v3914 = vpop.xlane.xlu0 %3913
        %v3915 = vsel %vm613, %v3893, 0.0
        %3916 = vadd.xlane.f32.xlu0 %v3915
        %v3917 = vpop.xlane.xlu0 %3916
        %3926 = vrot.lane.b32.xlu0 %v3759, 96
        %v3927 = vpop.permute.xlu0 %3926
        %3928 = vrot.lane.b32.xlu0 %v3762, 96
        %v3929 = vpop.permute.xlu0 %3928
        %3930 = vrot.lane.b32.xlu0 %v3765, 96
        %v3931 = vpop.permute.xlu0 %3930
        %3932 = vrot.lane.b32.xlu0 %v3768, 96
        %v3933 = vpop.permute.xlu0 %3932
        %3934 = vrot.lane.b32.xlu0 %v3771, 96
        %v3935 = vpop.permute.xlu0 %3934
        %3936 = vrot.lane.b32.xlu0 %v3774, 96
        %v3937 = vpop.permute.xlu0 %3936
        %3938 = vrot.lane.b32.xlu0 %v3777, 96
        %v3939 = vpop.permute.xlu0 %3938
        %3940 = vrot.lane.b32.xlu0 %v3780, 96
        %v3941 = vpop.permute.xlu0 %3940
        %v3950 = vmul.f32 %v3735, %v3927
        %v3951 = vmul.f32 %v3738, %v3929
        %v3952 = vmul.f32 %v3741, %v3931
        %v3953 = vmul.f32 %v3744, %v3933
        %v3954 = vmul.f32 %v3747, %v3935
        %v3955 = vmul.f32 %v3750, %v3937
        %v3956 = vmul.f32 %v3753, %v3939
        %v3957 = vmul.f32 %v3756, %v3941
        %v3958 = vsel %vm613, %v3950, 0.0
        %3959 = vadd.xlane.f32.xlu0 %v3958
        %v3960 = vpop.xlane.xlu0 %3959
        %v3961 = vsel %vm613, %v3951, 0.0
        %3962 = vadd.xlane.f32.xlu0 %v3961
        %v3963 = vpop.xlane.xlu0 %3962
        %v3964 = vsel %vm613, %v3952, 0.0
        %3965 = vadd.xlane.f32.xlu0 %v3964
        %v3966 = vpop.xlane.xlu0 %3965
        %v3967 = vsel %vm613, %v3953, 0.0
        %3968 = vadd.xlane.f32.xlu0 %v3967
        %v3969 = vpop.xlane.xlu0 %3968
        %v3970 = vsel %vm613, %v3954, 0.0
        %3971 = vadd.xlane.f32.xlu0 %v3970
        %v3972 = vpop.xlane.xlu0 %3971
        %v3973 = vsel %vm613, %v3955, 0.0
        %3974 = vadd.xlane.f32.xlu0 %v3973
        %v3975 = vpop.xlane.xlu0 %3974
        %v3976 = vsel %vm613, %v3956, 0.0
        %3977 = vadd.xlane.f32.xlu0 %v3976
        %v3978 = vpop.xlane.xlu0 %3977
        %v3979 = vsel %vm613, %v3957, 0.0
        %3980 = vadd.xlane.f32.xlu0 %v3979
        %v3981 = vpop.xlane.xlu0 %3980
        %3990 = vrot.lane.b32.xlu0 %v3783, 96
        %v3991 = vpop.permute.xlu0 %3990
        %3992 = vrot.lane.b32.xlu0 %v3786, 96
        %v3993 = vpop.permute.xlu0 %3992
        %3994 = vrot.lane.b32.xlu0 %v3789, 96
        %v3995 = vpop.permute.xlu0 %3994
        %3996 = vrot.lane.b32.xlu0 %v3792, 96
        %v3997 = vpop.permute.xlu0 %3996
        %3998 = vrot.lane.b32.xlu0 %v3795, 96
        %v3999 = vpop.permute.xlu0 %3998
        %4000 = vrot.lane.b32.xlu0 %v3798, 96
        %v4001 = vpop.permute.xlu0 %4000
        %4002 = vrot.lane.b32.xlu0 %v3801, 96
        %v4003 = vpop.permute.xlu0 %4002
        %4004 = vrot.lane.b32.xlu0 %v3804, 96
        %v4005 = vpop.permute.xlu0 %4004
        %v4014 = vmul.f32 %v3735, %v3991
        %v4015 = vmul.f32 %v3738, %v3993
        %v4016 = vmul.f32 %v3741, %v3995
        %v4017 = vmul.f32 %v3744, %v3997
        %v4018 = vmul.f32 %v3747, %v3999
        %v4019 = vmul.f32 %v3750, %v4001
        %v4020 = vmul.f32 %v3753, %v4003
        %v4021 = vmul.f32 %v3756, %v4005
        %v4022 = vsel %vm613, %v4014, 0.0
        %4023 = vadd.xlane.f32.xlu0 %v4022
        %v4024 = vpop.xlane.xlu0 %4023
        %v4025 = vsel %vm613, %v4015, 0.0
        %4026 = vadd.xlane.f32.xlu0 %v4025
        %v4027 = vpop.xlane.xlu0 %4026
        %v4028 = vsel %vm613, %v4016, 0.0
        %4029 = vadd.xlane.f32.xlu0 %v4028
        %v4030 = vpop.xlane.xlu0 %4029
        %v4031 = vsel %vm613, %v4017, 0.0
        %4032 = vadd.xlane.f32.xlu0 %v4031
        %v4033 = vpop.xlane.xlu0 %4032
        %v4034 = vsel %vm613, %v4018, 0.0
        %4035 = vadd.xlane.f32.xlu0 %v4034
        %v4036 = vpop.xlane.xlu0 %4035
        %v4037 = vsel %vm613, %v4019, 0.0
        %4038 = vadd.xlane.f32.xlu0 %v4037
        %v4039 = vpop.xlane.xlu0 %4038
        %v4040 = vsel %vm613, %v4020, 0.0
        %4041 = vadd.xlane.f32.xlu0 %v4040
        %v4042 = vpop.xlane.xlu0 %4041
        %v4043 = vsel %vm613, %v4021, 0.0
        %4044 = vadd.xlane.f32.xlu0 %v4043
        %v4045 = vpop.xlane.xlu0 %4044
        %4054 = vrot.lane.b32.xlu0 %v3807, 96
        %v4055 = vpop.permute.xlu0 %4054
        %4056 = vrot.lane.b32.xlu0 %v3810, 96
        %v4057 = vpop.permute.xlu0 %4056
        %4058 = vrot.lane.b32.xlu0 %v3813, 96
        %v4059 = vpop.permute.xlu0 %4058
        %4060 = vrot.lane.b32.xlu0 %v3816, 96
        %v4061 = vpop.permute.xlu0 %4060
        %4062 = vrot.lane.b32.xlu0 %v3819, 96
        %v4063 = vpop.permute.xlu0 %4062
        %4064 = vrot.lane.b32.xlu0 %v3822, 96
        %v4065 = vpop.permute.xlu0 %4064
        %4066 = vrot.lane.b32.xlu0 %v3825, 96
        %v4067 = vpop.permute.xlu0 %4066
        %4068 = vrot.lane.b32.xlu0 %v3828, 96
        %v4069 = vpop.permute.xlu0 %4068
        %v4078 = vmul.f32 %v3735, %v4055
        %v4079 = vmul.f32 %v3738, %v4057
        %v4080 = vmul.f32 %v3741, %v4059
        %v4081 = vmul.f32 %v3744, %v4061
        %v4082 = vmul.f32 %v3747, %v4063
        %v4083 = vmul.f32 %v3750, %v4065
        %v4084 = vmul.f32 %v3753, %v4067
        %v4085 = vmul.f32 %v3756, %v4069
        %v4086 = vsel %vm613, %v4078, 0.0
        %4087 = vadd.xlane.f32.xlu0 %v4086
        %v4088 = vpop.xlane.xlu0 %4087
        %v4089 = vsel %vm613, %v4079, 0.0
        %4090 = vadd.xlane.f32.xlu0 %v4089
        %v4091 = vpop.xlane.xlu0 %4090
        %v4092 = vsel %vm613, %v4080, 0.0
        %4093 = vadd.xlane.f32.xlu0 %v4092
        %v4094 = vpop.xlane.xlu0 %4093
        %v4095 = vsel %vm613, %v4081, 0.0
        %4096 = vadd.xlane.f32.xlu0 %v4095
        %v4097 = vpop.xlane.xlu0 %4096
        %v4098 = vsel %vm613, %v4082, 0.0
        %4099 = vadd.xlane.f32.xlu0 %v4098
        %v4100 = vpop.xlane.xlu0 %4099
        %v4101 = vsel %vm613, %v4083, 0.0
        %4102 = vadd.xlane.f32.xlu0 %v4101
        %v4103 = vpop.xlane.xlu0 %4102
        %v4104 = vsel %vm613, %v4084, 0.0
        %4105 = vadd.xlane.f32.xlu0 %v4104
        %v4106 = vpop.xlane.xlu0 %4105
        %v4107 = vsel %vm613, %v4085, 0.0
        %4108 = vadd.xlane.f32.xlu0 %v4107
        %v4109 = vpop.xlane.xlu0 %4108
        %4118 = vrot.lane.b32.xlu0 %v3831, 96
        %v4119 = vpop.permute.xlu0 %4118
        %4120 = vrot.lane.b32.xlu0 %v3834, 96
        %v4121 = vpop.permute.xlu0 %4120
        %4122 = vrot.lane.b32.xlu0 %v3837, 96
        %v4123 = vpop.permute.xlu0 %4122
        %4124 = vrot.lane.b32.xlu0 %v3840, 96
        %v4125 = vpop.permute.xlu0 %4124
        %4126 = vrot.lane.b32.xlu0 %v3843, 96
        %v4127 = vpop.permute.xlu0 %4126
        %4128 = vrot.lane.b32.xlu0 %v3846, 96
        %v4129 = vpop.permute.xlu0 %4128
        %4130 = vrot.lane.b32.xlu0 %v3849, 96
        %v4131 = vpop.permute.xlu0 %4130
        %4132 = vrot.lane.b32.xlu0 %v3852, 96
        %v4133 = vpop.permute.xlu0 %4132
        %v4142 = vmul.f32 %v3735, %v4119
        %v4143 = vmul.f32 %v3738, %v4121
        %v4144 = vmul.f32 %v3741, %v4123
        %v4145 = vmul.f32 %v3744, %v4125
        %v4146 = vmul.f32 %v3747, %v4127
        %v4147 = vmul.f32 %v3750, %v4129
        %v4148 = vmul.f32 %v3753, %v4131
        %v4149 = vmul.f32 %v3756, %v4133
        %v4150 = vsel %vm613, %v4142, 0.0
        %4151 = vadd.xlane.f32.xlu0 %v4150
        %v4152 = vpop.xlane.xlu0 %4151
        %v4153 = vsel %vm613, %v4143, 0.0
        %4154 = vadd.xlane.f32.xlu0 %v4153
        %v4155 = vpop.xlane.xlu0 %4154
        %v4156 = vsel %vm613, %v4144, 0.0
        %4157 = vadd.xlane.f32.xlu0 %v4156
        %v4158 = vpop.xlane.xlu0 %4157
        %v4159 = vsel %vm613, %v4145, 0.0
        %4160 = vadd.xlane.f32.xlu0 %v4159
        %v4161 = vpop.xlane.xlu0 %4160
        %v4162 = vsel %vm613, %v4146, 0.0
        %4163 = vadd.xlane.f32.xlu0 %v4162
        %v4164 = vpop.xlane.xlu0 %4163
        %v4165 = vsel %vm613, %v4147, 0.0
        %4166 = vadd.xlane.f32.xlu0 %v4165
        %v4167 = vpop.xlane.xlu0 %4166
        %v4168 = vsel %vm613, %v4148, 0.0
        %4169 = vadd.xlane.f32.xlu0 %v4168
        %v4170 = vpop.xlane.xlu0 %4169
        %v4171 = vsel %vm613, %v4149, 0.0
        %4172 = vadd.xlane.f32.xlu0 %v4171
        %v4173 = vpop.xlane.xlu0 %4172
        %vm4174 = vcmask 7168
        %v4175 = vsel %vm4174, %v3896, %v3960
        %v4176 = vsel %vm4174, %v3899, %v3963
        %v4177 = vsel %vm4174, %v3902, %v3966
        %v4178 = vsel %vm4174, %v3905, %v3969
        %v4179 = vsel %vm4174, %v3908, %v3972
        %v4180 = vsel %vm4174, %v3911, %v3975
        %v4181 = vsel %vm4174, %v3914, %v3978
        %v4182 = vsel %vm4174, %v3917, %v3981
        %vm4183 = vcmask 15360
        %v4184 = vsel %vm4183, %v4175, %v4024
        %v4185 = vsel %vm4183, %v4176, %v4027
        %v4186 = vsel %vm4183, %v4177, %v4030
        %v4187 = vsel %vm4183, %v4178, %v4033
        %v4188 = vsel %vm4183, %v4179, %v4036
        %v4189 = vsel %vm4183, %v4180, %v4039
        %v4190 = vsel %vm4183, %v4181, %v4042
        %v4191 = vsel %vm4183, %v4182, %v4045
        %vm4192 = vcmask 23552
        %v4193 = vsel %vm4192, %v4184, %v4088
        %v4194 = vsel %vm4192, %v4185, %v4091
        %v4195 = vsel %vm4192, %v4186, %v4094
        %v4196 = vsel %vm4192, %v4187, %v4097
        %v4197 = vsel %vm4192, %v4188, %v4100
        %v4198 = vsel %vm4192, %v4189, %v4103
        %v4199 = vsel %vm4192, %v4190, %v4106
        %v4200 = vsel %vm4192, %v4191, %v4109
        %vm4201 = vcmask 31744
        %v4202 = vsel %vm4201, %v4193, %v4152
        %v4203 = vsel %vm4201, %v4194, %v4155
        %v4204 = vsel %vm4201, %v4195, %v4158
        %v4205 = vsel %vm4201, %v4196, %v4161
        %v4206 = vsel %vm4201, %v4197, %v4164
        %v4207 = vsel %vm4201, %v4198, %v4167
        %v4208 = vsel %vm4201, %v4199, %v4170
        %v4209 = vsel %vm4201, %v4200, %v4173
        %vm4210 = vcmask 39936
        %v4211 = vsel %vm4210, %v4202, -inf
        %4212 = vmax.xlane.f32.xlu0 %v4211
        %v4213 = vpop.xlane.xlu0 %4212
        %v4214 = vsel %vm4210, %v4203, -inf
        %4215 = vmax.xlane.f32.xlu0 %v4214
        %v4216 = vpop.xlane.xlu0 %4215
        %v4217 = vsel %vm4210, %v4204, -inf
        %4218 = vmax.xlane.f32.xlu0 %v4217
        %v4219 = vpop.xlane.xlu0 %4218
        %v4220 = vsel %vm4210, %v4205, -inf
        %4221 = vmax.xlane.f32.xlu0 %v4220
        %v4222 = vpop.xlane.xlu0 %4221
        %v4223 = vsel %vm4210, %v4206, -inf
        %4224 = vmax.xlane.f32.xlu0 %v4223
        %v4225 = vpop.xlane.xlu0 %4224
        %v4226 = vsel %vm4210, %v4207, -inf
        %4227 = vmax.xlane.f32.xlu0 %v4226
        %v4228 = vpop.xlane.xlu0 %4227
        %v4229 = vsel %vm4210, %v4208, -inf
        %4230 = vmax.xlane.f32.xlu0 %v4229
        %v4231 = vpop.xlane.xlu0 %4230
        %v4232 = vsel %vm4210, %v4209, -inf
        %4233 = vmax.xlane.f32.xlu0 %v4232
        %v4234 = vpop.xlane.xlu0 %4233
        %v4235 = vsub.f32 %v4202, %v4213
        %v4236 = vsub.f32 %v4203, %v4216
        %v4237 = vsub.f32 %v4204, %v4219
        %v4238 = vsub.f32 %v4205, %v4222
        %v4239 = vsub.f32 %v4206, %v4225
        %v4240 = vsub.f32 %v4207, %v4228
        %v4241 = vsub.f32 %v4208, %v4231
        %v4242 = vsub.f32 %v4209, %v4234
        %v4243 = vmul.f32 %v4235, 1.442695
        %v4244 = vpow.pop %v4243
        %v4245 = vmul.f32 %v4236, 1.442695
        %v4246 = vpow.pop %v4245
        %v4247 = vmul.f32 %v4237, 1.442695
        %v4248 = vpow.pop %v4247
        %v4249 = vmul.f32 %v4238, 1.442695
        %v4250 = vpow.pop %v4249
        %v4251 = vmul.f32 %v4239, 1.442695
        %v4252 = vpow.pop %v4251
        %v4253 = vmul.f32 %v4240, 1.442695
        %v4254 = vpow.pop %v4253
        %v4255 = vmul.f32 %v4241, 1.442695
        %v4256 = vpow.pop %v4255
        %v4257 = vmul.f32 %v4242, 1.442695
        %v4258 = vpow.pop %v4257
        %v4259 = vsel %vm4210, %v4244, 0.0
        %4260 = vadd.xlane.f32.xlu0 %v4259
        %v4261 = vpop.xlane.xlu0 %4260
        %v4262 = vsel %vm4210, %v4246, 0.0
        %4263 = vadd.xlane.f32.xlu0 %v4262
        %v4264 = vpop.xlane.xlu0 %4263
        %v4265 = vsel %vm4210, %v4248, 0.0
        %4266 = vadd.xlane.f32.xlu0 %v4265
        %v4267 = vpop.xlane.xlu0 %4266
        %v4268 = vsel %vm4210, %v4250, 0.0
        %4269 = vadd.xlane.f32.xlu0 %v4268
        %v4270 = vpop.xlane.xlu0 %4269
        %v4271 = vsel %vm4210, %v4252, 0.0
        %4272 = vadd.xlane.f32.xlu0 %v4271
        %v4273 = vpop.xlane.xlu0 %4272
        %v4274 = vsel %vm4210, %v4254, 0.0
        %4275 = vadd.xlane.f32.xlu0 %v4274
        %v4276 = vpop.xlane.xlu0 %4275
        %v4277 = vsel %vm4210, %v4256, 0.0
        %4278 = vadd.xlane.f32.xlu0 %v4277
        %v4279 = vpop.xlane.xlu0 %4278
        %v4280 = vsel %vm4210, %v4258, 0.0
        %4281 = vadd.xlane.f32.xlu0 %v4280
        %v4282 = vpop.xlane.xlu0 %4281
        %v4283 = vrcp.pop %v4261
        %v4284 = vrcp.pop %v4264
        %v4285 = vrcp.pop %v4267
        %v4286 = vrcp.pop %v4270
        %v4287 = vrcp.pop %v4273
        %v4288 = vrcp.pop %v4276
        %v4289 = vrcp.pop %v4279
        %v4290 = vrcp.pop %v4282
        %v4291 = vmul.f32 %v4244, %v4283
        %v4292 = vmul.f32 %v4246, %v4284
        %v4293 = vmul.f32 %v4248, %v4285
        %v4294 = vmul.f32 %v4250, %v4286
        %v4295 = vmul.f32 %v4252, %v4287
        %v4296 = vmul.f32 %v4254, %v4288
        %v4297 = vmul.f32 %v4256, %v4289
        %v4298 = vmul.f32 %v4258, %v4290
        %4300 = vset.pattern.permute.xlu0 0
        %4301 = vperm.xlu0 %4300, %v4291
        %v4302 = vpop.permute.xlu0 %4301
        %4305 = vset.pattern.permute.xlu0 0
        %4306 = vperm.xlu0 %4305, %v4292
        %v4307 = vpop.permute.xlu0 %4306
        %4310 = vset.pattern.permute.xlu0 0
        %4311 = vperm.xlu0 %4310, %v4293
        %v4312 = vpop.permute.xlu0 %4311
        %4315 = vset.pattern.permute.xlu0 0
        %4316 = vperm.xlu0 %4315, %v4294
        %v4317 = vpop.permute.xlu0 %4316
        %4320 = vset.pattern.permute.xlu0 0
        %4321 = vperm.xlu0 %4320, %v4295
        %v4322 = vpop.permute.xlu0 %4321
        %4325 = vset.pattern.permute.xlu0 0
        %4326 = vperm.xlu0 %4325, %v4296
        %v4327 = vpop.permute.xlu0 %4326
        %4330 = vset.pattern.permute.xlu0 0
        %4331 = vperm.xlu0 %4330, %v4297
        %v4332 = vpop.permute.xlu0 %4331
        %4335 = vset.pattern.permute.xlu0 0
        %4336 = vperm.xlu0 %4335, %v4298
        %v4337 = vpop.permute.xlu0 %4336
        %v4339 = vmul.f32 %v4302, %v3735
        %v4340 = vmul.f32 %v4307, %v3738
        %v4341 = vmul.f32 %v4312, %v3741
        %v4342 = vmul.f32 %v4317, %v3744
        %v4343 = vmul.f32 %v4322, %v3747
        %v4344 = vmul.f32 %v4327, %v3750
        %v4345 = vmul.f32 %v4332, %v3753
        %v4346 = vmul.f32 %v4337, %v3756
        %4347 = vset.pattern.permute.xlu0 1
        %4348 = vperm.xlu0 %4347, %v4291
        %v4349 = vpop.permute.xlu0 %4348
        %4351 = vset.pattern.permute.xlu0 1
        %4352 = vperm.xlu0 %4351, %v4292
        %v4353 = vpop.permute.xlu0 %4352
        %4355 = vset.pattern.permute.xlu0 1
        %4356 = vperm.xlu0 %4355, %v4293
        %v4357 = vpop.permute.xlu0 %4356
        %4359 = vset.pattern.permute.xlu0 1
        %4360 = vperm.xlu0 %4359, %v4294
        %v4361 = vpop.permute.xlu0 %4360
        %4363 = vset.pattern.permute.xlu0 1
        %4364 = vperm.xlu0 %4363, %v4295
        %v4365 = vpop.permute.xlu0 %4364
        %4367 = vset.pattern.permute.xlu0 1
        %4368 = vperm.xlu0 %4367, %v4296
        %v4369 = vpop.permute.xlu0 %4368
        %4371 = vset.pattern.permute.xlu0 1
        %4372 = vperm.xlu0 %4371, %v4297
        %v4373 = vpop.permute.xlu0 %4372
        %4375 = vset.pattern.permute.xlu0 1
        %4376 = vperm.xlu0 %4375, %v4298
        %v4377 = vpop.permute.xlu0 %4376
        %v4379 = vmul.f32 %v4349, %v3759
        %v4380 = vmul.f32 %v4353, %v3762
        %v4381 = vmul.f32 %v4357, %v3765
        %v4382 = vmul.f32 %v4361, %v3768
        %v4383 = vmul.f32 %v4365, %v3771
        %v4384 = vmul.f32 %v4369, %v3774
        %v4385 = vmul.f32 %v4373, %v3777
        %v4386 = vmul.f32 %v4377, %v3780
        %v4387 = vadd.f32 %v4339, %v4379
        %v4388 = vadd.f32 %v4340, %v4380
        %v4389 = vadd.f32 %v4341, %v4381
        %v4390 = vadd.f32 %v4342, %v4382
        %v4391 = vadd.f32 %v4343, %v4383
        %v4392 = vadd.f32 %v4344, %v4384
        %v4393 = vadd.f32 %v4345, %v4385
        %v4394 = vadd.f32 %v4346, %v4386
        %4395 = vset.pattern.permute.xlu0 2
        %4396 = vperm.xlu0 %4395, %v4291
        %v4397 = vpop.permute.xlu0 %4396
        %4399 = vset.pattern.permute.xlu0 2
        %4400 = vperm.xlu0 %4399, %v4292
        %v4401 = vpop.permute.xlu0 %4400
        %4403 = vset.pattern.permute.xlu0 2
        %4404 = vperm.xlu0 %4403, %v4293
        %v4405 = vpop.permute.xlu0 %4404
        %4407 = vset.pattern.permute.xlu0 2
        %4408 = vperm.xlu0 %4407, %v4294
        %v4409 = vpop.permute.xlu0 %4408
        %4411 = vset.pattern.permute.xlu0 2
        %4412 = vperm.xlu0 %4411, %v4295
        %v4413 = vpop.permute.xlu0 %4412
        %4415 = vset.pattern.permute.xlu0 2
        %4416 = vperm.xlu0 %4415, %v4296
        %v4417 = vpop.permute.xlu0 %4416
        %4419 = vset.pattern.permute.xlu0 2
        %4420 = vperm.xlu0 %4419, %v4297
        %v4421 = vpop.permute.xlu0 %4420
        %4423 = vset.pattern.permute.xlu0 2
        %4424 = vperm.xlu0 %4423, %v4298
        %v4425 = vpop.permute.xlu0 %4424
        %v4427 = vmul.f32 %v4397, %v3783
        %v4428 = vmul.f32 %v4401, %v3786
        %v4429 = vmul.f32 %v4405, %v3789
        %v4430 = vmul.f32 %v4409, %v3792
        %v4431 = vmul.f32 %v4413, %v3795
        %v4432 = vmul.f32 %v4417, %v3798
        %v4433 = vmul.f32 %v4421, %v3801
        %v4434 = vmul.f32 %v4425, %v3804
        %v4435 = vadd.f32 %v4387, %v4427
        %v4436 = vadd.f32 %v4388, %v4428
        %v4437 = vadd.f32 %v4389, %v4429
        %v4438 = vadd.f32 %v4390, %v4430
        %v4439 = vadd.f32 %v4391, %v4431
        %v4440 = vadd.f32 %v4392, %v4432
        %v4441 = vadd.f32 %v4393, %v4433
        %v4442 = vadd.f32 %v4394, %v4434
        %4443 = vset.pattern.permute.xlu0 3
        %4444 = vperm.xlu0 %4443, %v4291
        %v4445 = vpop.permute.xlu0 %4444
        %4447 = vset.pattern.permute.xlu0 3
        %4448 = vperm.xlu0 %4447, %v4292
        %v4449 = vpop.permute.xlu0 %4448
        %4451 = vset.pattern.permute.xlu0 3
        %4452 = vperm.xlu0 %4451, %v4293
        %v4453 = vpop.permute.xlu0 %4452
        %4455 = vset.pattern.permute.xlu0 3
        %4456 = vperm.xlu0 %4455, %v4294
        %v4457 = vpop.permute.xlu0 %4456
        %4459 = vset.pattern.permute.xlu0 3
        %4460 = vperm.xlu0 %4459, %v4295
        %v4461 = vpop.permute.xlu0 %4460
        %4463 = vset.pattern.permute.xlu0 3
        %4464 = vperm.xlu0 %4463, %v4296
        %v4465 = vpop.permute.xlu0 %4464
        %4467 = vset.pattern.permute.xlu0 3
        %4468 = vperm.xlu0 %4467, %v4297
        %v4469 = vpop.permute.xlu0 %4468
        %4471 = vset.pattern.permute.xlu0 3
        %4472 = vperm.xlu0 %4471, %v4298
        %v4473 = vpop.permute.xlu0 %4472
        %v4475 = vmul.f32 %v4445, %v3807
        %v4476 = vmul.f32 %v4449, %v3810
        %v4477 = vmul.f32 %v4453, %v3813
        %v4478 = vmul.f32 %v4457, %v3816
        %v4479 = vmul.f32 %v4461, %v3819
        %v4480 = vmul.f32 %v4465, %v3822
        %v4481 = vmul.f32 %v4469, %v3825
        %v4482 = vmul.f32 %v4473, %v3828
        %v4483 = vadd.f32 %v4435, %v4475
        %v4484 = vadd.f32 %v4436, %v4476
        %v4485 = vadd.f32 %v4437, %v4477
        %v4486 = vadd.f32 %v4438, %v4478
        %v4487 = vadd.f32 %v4439, %v4479
        %v4488 = vadd.f32 %v4440, %v4480
        %v4489 = vadd.f32 %v4441, %v4481
        %v4490 = vadd.f32 %v4442, %v4482
        %4491 = vset.pattern.permute.xlu0 4
        %4492 = vperm.xlu0 %4491, %v4291
        %v4493 = vpop.permute.xlu0 %4492
        %4495 = vset.pattern.permute.xlu0 4
        %4496 = vperm.xlu0 %4495, %v4292
        %v4497 = vpop.permute.xlu0 %4496
        %4499 = vset.pattern.permute.xlu0 4
        %4500 = vperm.xlu0 %4499, %v4293
        %v4501 = vpop.permute.xlu0 %4500
        %4503 = vset.pattern.permute.xlu0 4
        %4504 = vperm.xlu0 %4503, %v4294
        %v4505 = vpop.permute.xlu0 %4504
        %4507 = vset.pattern.permute.xlu0 4
        %4508 = vperm.xlu0 %4507, %v4295
        %v4509 = vpop.permute.xlu0 %4508
        %4511 = vset.pattern.permute.xlu0 4
        %4512 = vperm.xlu0 %4511, %v4296
        %v4513 = vpop.permute.xlu0 %4512
        %4515 = vset.pattern.permute.xlu0 4
        %4516 = vperm.xlu0 %4515, %v4297
        %v4517 = vpop.permute.xlu0 %4516
        %4519 = vset.pattern.permute.xlu0 4
        %4520 = vperm.xlu0 %4519, %v4298
        %v4521 = vpop.permute.xlu0 %4520
        %v4523 = vmul.f32 %v4493, %v3831
        %v4524 = vmul.f32 %v4497, %v3834
        %v4525 = vmul.f32 %v4501, %v3837
        %v4526 = vmul.f32 %v4505, %v3840
        %v4527 = vmul.f32 %v4509, %v3843
        %v4528 = vmul.f32 %v4513, %v3846
        %v4529 = vmul.f32 %v4517, %v3849
        %v4530 = vmul.f32 %v4521, %v3852
        %v4531 = vadd.f32 %v4483, %v4523
        %v4532 = vadd.f32 %v4484, %v4524
        %v4533 = vadd.f32 %v4485, %v4525
        %v4534 = vadd.f32 %v4486, %v4526
        %v4535 = vadd.f32 %v4487, %v4527
        %v4536 = vadd.f32 %v4488, %v4528
        %v4537 = vadd.f32 %v4489, %v4529
        %v4538 = vadd.f32 %v4490, %v4530
        %v4539 = vmul.f32 %v3759, %v3863
        %v4540 = vmul.f32 %v3762, %v3865
        %v4541 = vmul.f32 %v3765, %v3867
        %v4542 = vmul.f32 %v3768, %v3869
        %v4543 = vmul.f32 %v3771, %v3871
        %v4544 = vmul.f32 %v3774, %v3873
        %v4545 = vmul.f32 %v3777, %v3875
        %v4546 = vmul.f32 %v3780, %v3877
        %v4547 = vsel %vm613, %v4539, 0.0
        %4548 = vadd.xlane.f32.xlu0 %v4547
        %v4549 = vpop.xlane.xlu0 %4548
        %v4550 = vsel %vm613, %v4540, 0.0
        %4551 = vadd.xlane.f32.xlu0 %v4550
        %v4552 = vpop.xlane.xlu0 %4551
        %v4553 = vsel %vm613, %v4541, 0.0
        %4554 = vadd.xlane.f32.xlu0 %v4553
        %v4555 = vpop.xlane.xlu0 %4554
        %v4556 = vsel %vm613, %v4542, 0.0
        %4557 = vadd.xlane.f32.xlu0 %v4556
        %v4558 = vpop.xlane.xlu0 %4557
        %v4559 = vsel %vm613, %v4543, 0.0
        %4560 = vadd.xlane.f32.xlu0 %v4559
        %v4561 = vpop.xlane.xlu0 %4560
        %v4562 = vsel %vm613, %v4544, 0.0
        %4563 = vadd.xlane.f32.xlu0 %v4562
        %v4564 = vpop.xlane.xlu0 %4563
        %v4565 = vsel %vm613, %v4545, 0.0
        %4566 = vadd.xlane.f32.xlu0 %v4565
        %v4567 = vpop.xlane.xlu0 %4566
        %v4568 = vsel %vm613, %v4546, 0.0
        %4569 = vadd.xlane.f32.xlu0 %v4568
        %v4570 = vpop.xlane.xlu0 %4569
        %v4571 = vmul.f32 %v3759, %v3927
        %v4572 = vmul.f32 %v3762, %v3929
        %v4573 = vmul.f32 %v3765, %v3931
        %v4574 = vmul.f32 %v3768, %v3933
        %v4575 = vmul.f32 %v3771, %v3935
        %v4576 = vmul.f32 %v3774, %v3937
        %v4577 = vmul.f32 %v3777, %v3939
        %v4578 = vmul.f32 %v3780, %v3941
        %v4579 = vsel %vm613, %v4571, 0.0
        %4580 = vadd.xlane.f32.xlu0 %v4579
        %v4581 = vpop.xlane.xlu0 %4580
        %v4582 = vsel %vm613, %v4572, 0.0
        %4583 = vadd.xlane.f32.xlu0 %v4582
        %v4584 = vpop.xlane.xlu0 %4583
        %v4585 = vsel %vm613, %v4573, 0.0
        %4586 = vadd.xlane.f32.xlu0 %v4585
        %v4587 = vpop.xlane.xlu0 %4586
        %v4588 = vsel %vm613, %v4574, 0.0
        %4589 = vadd.xlane.f32.xlu0 %v4588
        %v4590 = vpop.xlane.xlu0 %4589
        %v4591 = vsel %vm613, %v4575, 0.0
        %4592 = vadd.xlane.f32.xlu0 %v4591
        %v4593 = vpop.xlane.xlu0 %4592
        %v4594 = vsel %vm613, %v4576, 0.0
        %4595 = vadd.xlane.f32.xlu0 %v4594
        %v4596 = vpop.xlane.xlu0 %4595
        %v4597 = vsel %vm613, %v4577, 0.0
        %4598 = vadd.xlane.f32.xlu0 %v4597
        %v4599 = vpop.xlane.xlu0 %4598
        %v4600 = vsel %vm613, %v4578, 0.0
        %4601 = vadd.xlane.f32.xlu0 %v4600
        %v4602 = vpop.xlane.xlu0 %4601
        %v4603 = vmul.f32 %v3759, %v3991
        %v4604 = vmul.f32 %v3762, %v3993
        %v4605 = vmul.f32 %v3765, %v3995
        %v4606 = vmul.f32 %v3768, %v3997
        %v4607 = vmul.f32 %v3771, %v3999
        %v4608 = vmul.f32 %v3774, %v4001
        %v4609 = vmul.f32 %v3777, %v4003
        %v4610 = vmul.f32 %v3780, %v4005
        %v4611 = vsel %vm613, %v4603, 0.0
        %4612 = vadd.xlane.f32.xlu0 %v4611
        %v4613 = vpop.xlane.xlu0 %4612
        %v4614 = vsel %vm613, %v4604, 0.0
        %4615 = vadd.xlane.f32.xlu0 %v4614
        %v4616 = vpop.xlane.xlu0 %4615
        %v4617 = vsel %vm613, %v4605, 0.0
        %4618 = vadd.xlane.f32.xlu0 %v4617
        %v4619 = vpop.xlane.xlu0 %4618
        %v4620 = vsel %vm613, %v4606, 0.0
        %4621 = vadd.xlane.f32.xlu0 %v4620
        %v4622 = vpop.xlane.xlu0 %4621
        %v4623 = vsel %vm613, %v4607, 0.0
        %4624 = vadd.xlane.f32.xlu0 %v4623
        %v4625 = vpop.xlane.xlu0 %4624
        %v4626 = vsel %vm613, %v4608, 0.0
        %4627 = vadd.xlane.f32.xlu0 %v4626
        %v4628 = vpop.xlane.xlu0 %4627
        %v4629 = vsel %vm613, %v4609, 0.0
        %4630 = vadd.xlane.f32.xlu0 %v4629
        %v4631 = vpop.xlane.xlu0 %4630
        %v4632 = vsel %vm613, %v4610, 0.0
        %4633 = vadd.xlane.f32.xlu0 %v4632
        %v4634 = vpop.xlane.xlu0 %4633
        %v4635 = vmul.f32 %v3759, %v4055
        %v4636 = vmul.f32 %v3762, %v4057
        %v4637 = vmul.f32 %v3765, %v4059
        %v4638 = vmul.f32 %v3768, %v4061
        %v4639 = vmul.f32 %v3771, %v4063
        %v4640 = vmul.f32 %v3774, %v4065
        %v4641 = vmul.f32 %v3777, %v4067
        %v4642 = vmul.f32 %v3780, %v4069
        %v4643 = vsel %vm613, %v4635, 0.0
        %4644 = vadd.xlane.f32.xlu0 %v4643
        %v4645 = vpop.xlane.xlu0 %4644
        %v4646 = vsel %vm613, %v4636, 0.0
        %4647 = vadd.xlane.f32.xlu0 %v4646
        %v4648 = vpop.xlane.xlu0 %4647
        %v4649 = vsel %vm613, %v4637, 0.0
        %4650 = vadd.xlane.f32.xlu0 %v4649
        %v4651 = vpop.xlane.xlu0 %4650
        %v4652 = vsel %vm613, %v4638, 0.0
        %4653 = vadd.xlane.f32.xlu0 %v4652
        %v4654 = vpop.xlane.xlu0 %4653
        %v4655 = vsel %vm613, %v4639, 0.0
        %4656 = vadd.xlane.f32.xlu0 %v4655
        %v4657 = vpop.xlane.xlu0 %4656
        %v4658 = vsel %vm613, %v4640, 0.0
        %4659 = vadd.xlane.f32.xlu0 %v4658
        %v4660 = vpop.xlane.xlu0 %4659
        %v4661 = vsel %vm613, %v4641, 0.0
        %4662 = vadd.xlane.f32.xlu0 %v4661
        %v4663 = vpop.xlane.xlu0 %4662
        %v4664 = vsel %vm613, %v4642, 0.0
        %4665 = vadd.xlane.f32.xlu0 %v4664
        %v4666 = vpop.xlane.xlu0 %4665
        %v4667 = vmul.f32 %v3759, %v4119
        %v4668 = vmul.f32 %v3762, %v4121
        %v4669 = vmul.f32 %v3765, %v4123
        %v4670 = vmul.f32 %v3768, %v4125
        %v4671 = vmul.f32 %v3771, %v4127
        %v4672 = vmul.f32 %v3774, %v4129
        %v4673 = vmul.f32 %v3777, %v4131
        %v4674 = vmul.f32 %v3780, %v4133
        %v4675 = vsel %vm613, %v4667, 0.0
        %4676 = vadd.xlane.f32.xlu0 %v4675
        %v4677 = vpop.xlane.xlu0 %4676
        %v4678 = vsel %vm613, %v4668, 0.0
        %4679 = vadd.xlane.f32.xlu0 %v4678
        %v4680 = vpop.xlane.xlu0 %4679
        %v4681 = vsel %vm613, %v4669, 0.0
        %4682 = vadd.xlane.f32.xlu0 %v4681
        %v4683 = vpop.xlane.xlu0 %4682
        %v4684 = vsel %vm613, %v4670, 0.0
        %4685 = vadd.xlane.f32.xlu0 %v4684
        %v4686 = vpop.xlane.xlu0 %4685
        %v4687 = vsel %vm613, %v4671, 0.0
        %4688 = vadd.xlane.f32.xlu0 %v4687
        %v4689 = vpop.xlane.xlu0 %4688
        %v4690 = vsel %vm613, %v4672, 0.0
        %4691 = vadd.xlane.f32.xlu0 %v4690
        %v4692 = vpop.xlane.xlu0 %4691
        %v4693 = vsel %vm613, %v4673, 0.0
        %4694 = vadd.xlane.f32.xlu0 %v4693
        %v4695 = vpop.xlane.xlu0 %4694
        %v4696 = vsel %vm613, %v4674, 0.0
        %4697 = vadd.xlane.f32.xlu0 %v4696
        %v4698 = vpop.xlane.xlu0 %4697
        %v4699 = vsel %vm4174, %v4549, %v4581
        %v4700 = vsel %vm4174, %v4552, %v4584
        %v4701 = vsel %vm4174, %v4555, %v4587
        %v4702 = vsel %vm4174, %v4558, %v4590
        %v4703 = vsel %vm4174, %v4561, %v4593
        %v4704 = vsel %vm4174, %v4564, %v4596
        %v4705 = vsel %vm4174, %v4567, %v4599
        %v4706 = vsel %vm4174, %v4570, %v4602
        %v4707 = vsel %vm4183, %v4699, %v4613
        %v4708 = vsel %vm4183, %v4700, %v4616
        %v4709 = vsel %vm4183, %v4701, %v4619
        %v4710 = vsel %vm4183, %v4702, %v4622
        %v4711 = vsel %vm4183, %v4703, %v4625
        %v4712 = vsel %vm4183, %v4704, %v4628
        %v4713 = vsel %vm4183, %v4705, %v4631
        %v4714 = vsel %vm4183, %v4706, %v4634
        %v4715 = vsel %vm4192, %v4707, %v4645
        %v4716 = vsel %vm4192, %v4708, %v4648
        %v4717 = vsel %vm4192, %v4709, %v4651
        %v4718 = vsel %vm4192, %v4710, %v4654
        %v4719 = vsel %vm4192, %v4711, %v4657
        %v4720 = vsel %vm4192, %v4712, %v4660
        %v4721 = vsel %vm4192, %v4713, %v4663
        %v4722 = vsel %vm4192, %v4714, %v4666
        %v4723 = vsel %vm4201, %v4715, %v4677
        %v4724 = vsel %vm4201, %v4716, %v4680
        %v4725 = vsel %vm4201, %v4717, %v4683
        %v4726 = vsel %vm4201, %v4718, %v4686
        %v4727 = vsel %vm4201, %v4719, %v4689
        %v4728 = vsel %vm4201, %v4720, %v4692
        %v4729 = vsel %vm4201, %v4721, %v4695
        %v4730 = vsel %vm4201, %v4722, %v4698
        %v4731 = vsel %vm4210, %v4723, -inf
        %4732 = vmax.xlane.f32.xlu0 %v4731
        %v4733 = vpop.xlane.xlu0 %4732
        %v4734 = vsel %vm4210, %v4724, -inf
        %4735 = vmax.xlane.f32.xlu0 %v4734
        %v4736 = vpop.xlane.xlu0 %4735
        %v4737 = vsel %vm4210, %v4725, -inf
        %4738 = vmax.xlane.f32.xlu0 %v4737
        %v4739 = vpop.xlane.xlu0 %4738
        %v4740 = vsel %vm4210, %v4726, -inf
        %4741 = vmax.xlane.f32.xlu0 %v4740
        %v4742 = vpop.xlane.xlu0 %4741
        %v4743 = vsel %vm4210, %v4727, -inf
        %4744 = vmax.xlane.f32.xlu0 %v4743
        %v4745 = vpop.xlane.xlu0 %4744
        %v4746 = vsel %vm4210, %v4728, -inf
        %4747 = vmax.xlane.f32.xlu0 %v4746
        %v4748 = vpop.xlane.xlu0 %4747
        %v4749 = vsel %vm4210, %v4729, -inf
        %4750 = vmax.xlane.f32.xlu0 %v4749
        %v4751 = vpop.xlane.xlu0 %4750
        %v4752 = vsel %vm4210, %v4730, -inf
        %4753 = vmax.xlane.f32.xlu0 %v4752
        %v4754 = vpop.xlane.xlu0 %4753
        %v4755 = vsub.f32 %v4723, %v4733
        %v4756 = vsub.f32 %v4724, %v4736
        %v4757 = vsub.f32 %v4725, %v4739
        %v4758 = vsub.f32 %v4726, %v4742
        %v4759 = vsub.f32 %v4727, %v4745
        %v4760 = vsub.f32 %v4728, %v4748
        %v4761 = vsub.f32 %v4729, %v4751
        %v4762 = vsub.f32 %v4730, %v4754
        %v4763 = vmul.f32 %v4755, 1.442695
        %v4764 = vpow.pop %v4763
        %v4765 = vmul.f32 %v4756, 1.442695
        %v4766 = vpow.pop %v4765
        %v4767 = vmul.f32 %v4757, 1.442695
        %v4768 = vpow.pop %v4767
        %v4769 = vmul.f32 %v4758, 1.442695
        %v4770 = vpow.pop %v4769
        %v4771 = vmul.f32 %v4759, 1.442695
        %v4772 = vpow.pop %v4771
        %v4773 = vmul.f32 %v4760, 1.442695
        %v4774 = vpow.pop %v4773
        %v4775 = vmul.f32 %v4761, 1.442695
        %v4776 = vpow.pop %v4775
        %v4777 = vmul.f32 %v4762, 1.442695
        %v4778 = vpow.pop %v4777
        %v4779 = vsel %vm4210, %v4764, 0.0
        %4780 = vadd.xlane.f32.xlu0 %v4779
        %v4781 = vpop.xlane.xlu0 %4780
        %v4782 = vsel %vm4210, %v4766, 0.0
        %4783 = vadd.xlane.f32.xlu0 %v4782
        %v4784 = vpop.xlane.xlu0 %4783
        %v4785 = vsel %vm4210, %v4768, 0.0
        %4786 = vadd.xlane.f32.xlu0 %v4785
        %v4787 = vpop.xlane.xlu0 %4786
        %v4788 = vsel %vm4210, %v4770, 0.0
        %4789 = vadd.xlane.f32.xlu0 %v4788
        %v4790 = vpop.xlane.xlu0 %4789
        %v4791 = vsel %vm4210, %v4772, 0.0
        %4792 = vadd.xlane.f32.xlu0 %v4791
        %v4793 = vpop.xlane.xlu0 %4792
        %v4794 = vsel %vm4210, %v4774, 0.0
        %4795 = vadd.xlane.f32.xlu0 %v4794
        %v4796 = vpop.xlane.xlu0 %4795
        %v4797 = vsel %vm4210, %v4776, 0.0
        %4798 = vadd.xlane.f32.xlu0 %v4797
        %v4799 = vpop.xlane.xlu0 %4798
        %v4800 = vsel %vm4210, %v4778, 0.0
        %4801 = vadd.xlane.f32.xlu0 %v4800
        %v4802 = vpop.xlane.xlu0 %4801
        %v4803 = vrcp.pop %v4781
        %v4804 = vrcp.pop %v4784
        %v4805 = vrcp.pop %v4787
        %v4806 = vrcp.pop %v4790
        %v4807 = vrcp.pop %v4793
        %v4808 = vrcp.pop %v4796
        %v4809 = vrcp.pop %v4799
        %v4810 = vrcp.pop %v4802
        %v4811 = vmul.f32 %v4764, %v4803
        %v4812 = vmul.f32 %v4766, %v4804
        %v4813 = vmul.f32 %v4768, %v4805
        %v4814 = vmul.f32 %v4770, %v4806
        %v4815 = vmul.f32 %v4772, %v4807
        %v4816 = vmul.f32 %v4774, %v4808
        %v4817 = vmul.f32 %v4776, %v4809
        %v4818 = vmul.f32 %v4778, %v4810
        %4820 = vset.pattern.permute.xlu0 0
        %4821 = vperm.xlu0 %4820, %v4811
        %v4822 = vpop.permute.xlu0 %4821
        %4825 = vset.pattern.permute.xlu0 0
        %4826 = vperm.xlu0 %4825, %v4812
        %v4827 = vpop.permute.xlu0 %4826
        %4830 = vset.pattern.permute.xlu0 0
        %4831 = vperm.xlu0 %4830, %v4813
        %v4832 = vpop.permute.xlu0 %4831
        %4835 = vset.pattern.permute.xlu0 0
        %4836 = vperm.xlu0 %4835, %v4814
        %v4837 = vpop.permute.xlu0 %4836
        %4840 = vset.pattern.permute.xlu0 0
        %4841 = vperm.xlu0 %4840, %v4815
        %v4842 = vpop.permute.xlu0 %4841
        %4845 = vset.pattern.permute.xlu0 0
        %4846 = vperm.xlu0 %4845, %v4816
        %v4847 = vpop.permute.xlu0 %4846
        %4850 = vset.pattern.permute.xlu0 0
        %4851 = vperm.xlu0 %4850, %v4817
        %v4852 = vpop.permute.xlu0 %4851
        %4855 = vset.pattern.permute.xlu0 0
        %4856 = vperm.xlu0 %4855, %v4818
        %v4857 = vpop.permute.xlu0 %4856
        %v4859 = vmul.f32 %v4822, %v3735
        %v4860 = vmul.f32 %v4827, %v3738
        %v4861 = vmul.f32 %v4832, %v3741
        %v4862 = vmul.f32 %v4837, %v3744
        %v4863 = vmul.f32 %v4842, %v3747
        %v4864 = vmul.f32 %v4847, %v3750
        %v4865 = vmul.f32 %v4852, %v3753
        %v4866 = vmul.f32 %v4857, %v3756
        %4867 = vset.pattern.permute.xlu0 1
        %4868 = vperm.xlu0 %4867, %v4811
        %v4869 = vpop.permute.xlu0 %4868
        %4871 = vset.pattern.permute.xlu0 1
        %4872 = vperm.xlu0 %4871, %v4812
        %v4873 = vpop.permute.xlu0 %4872
        %4875 = vset.pattern.permute.xlu0 1
        %4876 = vperm.xlu0 %4875, %v4813
        %v4877 = vpop.permute.xlu0 %4876
        %4879 = vset.pattern.permute.xlu0 1
        %4880 = vperm.xlu0 %4879, %v4814
        %v4881 = vpop.permute.xlu0 %4880
        %4883 = vset.pattern.permute.xlu0 1
        %4884 = vperm.xlu0 %4883, %v4815
        %v4885 = vpop.permute.xlu0 %4884
        %4887 = vset.pattern.permute.xlu0 1
        %4888 = vperm.xlu0 %4887, %v4816
        %v4889 = vpop.permute.xlu0 %4888
        %4891 = vset.pattern.permute.xlu0 1
        %4892 = vperm.xlu0 %4891, %v4817
        %v4893 = vpop.permute.xlu0 %4892
        %4895 = vset.pattern.permute.xlu0 1
        %4896 = vperm.xlu0 %4895, %v4818
        %v4897 = vpop.permute.xlu0 %4896
        %v4899 = vmul.f32 %v4869, %v3759
        %v4900 = vmul.f32 %v4873, %v3762
        %v4901 = vmul.f32 %v4877, %v3765
        %v4902 = vmul.f32 %v4881, %v3768
        %v4903 = vmul.f32 %v4885, %v3771
        %v4904 = vmul.f32 %v4889, %v3774
        %v4905 = vmul.f32 %v4893, %v3777
        %v4906 = vmul.f32 %v4897, %v3780
        %v4907 = vadd.f32 %v4859, %v4899
        %v4908 = vadd.f32 %v4860, %v4900
        %v4909 = vadd.f32 %v4861, %v4901
        %v4910 = vadd.f32 %v4862, %v4902
        %v4911 = vadd.f32 %v4863, %v4903
        %v4912 = vadd.f32 %v4864, %v4904
        %v4913 = vadd.f32 %v4865, %v4905
        %v4914 = vadd.f32 %v4866, %v4906
        %4915 = vset.pattern.permute.xlu0 2
        %4916 = vperm.xlu0 %4915, %v4811
        %v4917 = vpop.permute.xlu0 %4916
        %4919 = vset.pattern.permute.xlu0 2
        %4920 = vperm.xlu0 %4919, %v4812
        %v4921 = vpop.permute.xlu0 %4920
        %4923 = vset.pattern.permute.xlu0 2
        %4924 = vperm.xlu0 %4923, %v4813
        %v4925 = vpop.permute.xlu0 %4924
        %4927 = vset.pattern.permute.xlu0 2
        %4928 = vperm.xlu0 %4927, %v4814
        %v4929 = vpop.permute.xlu0 %4928
        %4931 = vset.pattern.permute.xlu0 2
        %4932 = vperm.xlu0 %4931, %v4815
        %v4933 = vpop.permute.xlu0 %4932
        %4935 = vset.pattern.permute.xlu0 2
        %4936 = vperm.xlu0 %4935, %v4816
        %v4937 = vpop.permute.xlu0 %4936
        %4939 = vset.pattern.permute.xlu0 2
        %4940 = vperm.xlu0 %4939, %v4817
        %v4941 = vpop.permute.xlu0 %4940
        %4943 = vset.pattern.permute.xlu0 2
        %4944 = vperm.xlu0 %4943, %v4818
        %v4945 = vpop.permute.xlu0 %4944
        %v4947 = vmul.f32 %v4917, %v3783
        %v4948 = vmul.f32 %v4921, %v3786
        %v4949 = vmul.f32 %v4925, %v3789
        %v4950 = vmul.f32 %v4929, %v3792
        %v4951 = vmul.f32 %v4933, %v3795
        %v4952 = vmul.f32 %v4937, %v3798
        %v4953 = vmul.f32 %v4941, %v3801
        %v4954 = vmul.f32 %v4945, %v3804
        %v4955 = vadd.f32 %v4907, %v4947
        %v4956 = vadd.f32 %v4908, %v4948
        %v4957 = vadd.f32 %v4909, %v4949
        %v4958 = vadd.f32 %v4910, %v4950
        %v4959 = vadd.f32 %v4911, %v4951
        %v4960 = vadd.f32 %v4912, %v4952
        %v4961 = vadd.f32 %v4913, %v4953
        %v4962 = vadd.f32 %v4914, %v4954
        %4963 = vset.pattern.permute.xlu0 3
        %4964 = vperm.xlu0 %4963, %v4811
        %v4965 = vpop.permute.xlu0 %4964
        %4967 = vset.pattern.permute.xlu0 3
        %4968 = vperm.xlu0 %4967, %v4812
        %v4969 = vpop.permute.xlu0 %4968
        %4971 = vset.pattern.permute.xlu0 3
        %4972 = vperm.xlu0 %4971, %v4813
        %v4973 = vpop.permute.xlu0 %4972
        %4975 = vset.pattern.permute.xlu0 3
        %4976 = vperm.xlu0 %4975, %v4814
        %v4977 = vpop.permute.xlu0 %4976
        %4979 = vset.pattern.permute.xlu0 3
        %4980 = vperm.xlu0 %4979, %v4815
        %v4981 = vpop.permute.xlu0 %4980
        %4983 = vset.pattern.permute.xlu0 3
        %4984 = vperm.xlu0 %4983, %v4816
        %v4985 = vpop.permute.xlu0 %4984
        %4987 = vset.pattern.permute.xlu0 3
        %4988 = vperm.xlu0 %4987, %v4817
        %v4989 = vpop.permute.xlu0 %4988
        %4991 = vset.pattern.permute.xlu0 3
        %4992 = vperm.xlu0 %4991, %v4818
        %v4993 = vpop.permute.xlu0 %4992
        %v4995 = vmul.f32 %v4965, %v3807
        %v4996 = vmul.f32 %v4969, %v3810
        %v4997 = vmul.f32 %v4973, %v3813
        %v4998 = vmul.f32 %v4977, %v3816
        %v4999 = vmul.f32 %v4981, %v3819
        %v5000 = vmul.f32 %v4985, %v3822
        %v5001 = vmul.f32 %v4989, %v3825
        %v5002 = vmul.f32 %v4993, %v3828
        %v5003 = vadd.f32 %v4955, %v4995
        %v5004 = vadd.f32 %v4956, %v4996
        %v5005 = vadd.f32 %v4957, %v4997
        %v5006 = vadd.f32 %v4958, %v4998
        %v5007 = vadd.f32 %v4959, %v4999
        %v5008 = vadd.f32 %v4960, %v5000
        %v5009 = vadd.f32 %v4961, %v5001
        %v5010 = vadd.f32 %v4962, %v5002
        %5011 = vset.pattern.permute.xlu0 4
        %5012 = vperm.xlu0 %5011, %v4811
        %v5013 = vpop.permute.xlu0 %5012
        %5015 = vset.pattern.permute.xlu0 4
        %5016 = vperm.xlu0 %5015, %v4812
        %v5017 = vpop.permute.xlu0 %5016
        %5019 = vset.pattern.permute.xlu0 4
        %5020 = vperm.xlu0 %5019, %v4813
        %v5021 = vpop.permute.xlu0 %5020
        %5023 = vset.pattern.permute.xlu0 4
        %5024 = vperm.xlu0 %5023, %v4814
        %v5025 = vpop.permute.xlu0 %5024
        %5027 = vset.pattern.permute.xlu0 4
        %5028 = vperm.xlu0 %5027, %v4815
        %v5029 = vpop.permute.xlu0 %5028
        %5031 = vset.pattern.permute.xlu0 4
        %5032 = vperm.xlu0 %5031, %v4816
        %v5033 = vpop.permute.xlu0 %5032
        %5035 = vset.pattern.permute.xlu0 4
        %5036 = vperm.xlu0 %5035, %v4817
        %v5037 = vpop.permute.xlu0 %5036
        %5039 = vset.pattern.permute.xlu0 4
        %5040 = vperm.xlu0 %5039, %v4818
        %v5041 = vpop.permute.xlu0 %5040
        %v5043 = vmul.f32 %v5013, %v3831
        %v5044 = vmul.f32 %v5017, %v3834
        %v5045 = vmul.f32 %v5021, %v3837
        %v5046 = vmul.f32 %v5025, %v3840
        %v5047 = vmul.f32 %v5029, %v3843
        %v5048 = vmul.f32 %v5033, %v3846
        %v5049 = vmul.f32 %v5037, %v3849
        %v5050 = vmul.f32 %v5041, %v3852
        %v5051 = vadd.f32 %v5003, %v5043
        %v5052 = vadd.f32 %v5004, %v5044
        %v5053 = vadd.f32 %v5005, %v5045
        %v5054 = vadd.f32 %v5006, %v5046
        %v5055 = vadd.f32 %v5007, %v5047
        %v5056 = vadd.f32 %v5008, %v5048
        %v5057 = vadd.f32 %v5009, %v5049
        %v5058 = vadd.f32 %v5010, %v5050
        %v5059 = vmul.f32 %v3783, %v3863
        %v5060 = vmul.f32 %v3786, %v3865
        %v5061 = vmul.f32 %v3789, %v3867
        %v5062 = vmul.f32 %v3792, %v3869
        %v5063 = vmul.f32 %v3795, %v3871
        %v5064 = vmul.f32 %v3798, %v3873
        %v5065 = vmul.f32 %v3801, %v3875
        %v5066 = vmul.f32 %v3804, %v3877
        %v5067 = vsel %vm613, %v5059, 0.0
        %5068 = vadd.xlane.f32.xlu0 %v5067
        %v5069 = vpop.xlane.xlu0 %5068
        %v5070 = vsel %vm613, %v5060, 0.0
        %5071 = vadd.xlane.f32.xlu0 %v5070
        %v5072 = vpop.xlane.xlu0 %5071
        %v5073 = vsel %vm613, %v5061, 0.0
        %5074 = vadd.xlane.f32.xlu0 %v5073
        %v5075 = vpop.xlane.xlu0 %5074
        %v5076 = vsel %vm613, %v5062, 0.0
        %5077 = vadd.xlane.f32.xlu0 %v5076
        %v5078 = vpop.xlane.xlu0 %5077
        %v5079 = vsel %vm613, %v5063, 0.0
        %5080 = vadd.xlane.f32.xlu0 %v5079
        %v5081 = vpop.xlane.xlu0 %5080
        %v5082 = vsel %vm613, %v5064, 0.0
        %5083 = vadd.xlane.f32.xlu0 %v5082
        %v5084 = vpop.xlane.xlu0 %5083
        %v5085 = vsel %vm613, %v5065, 0.0
        %5086 = vadd.xlane.f32.xlu0 %v5085
        %v5087 = vpop.xlane.xlu0 %5086
        %v5088 = vsel %vm613, %v5066, 0.0
        %5089 = vadd.xlane.f32.xlu0 %v5088
        %v5090 = vpop.xlane.xlu0 %5089
        %v5091 = vmul.f32 %v3783, %v3927
        %v5092 = vmul.f32 %v3786, %v3929
        %v5093 = vmul.f32 %v3789, %v3931
        %v5094 = vmul.f32 %v3792, %v3933
        %v5095 = vmul.f32 %v3795, %v3935
        %v5096 = vmul.f32 %v3798, %v3937
        %v5097 = vmul.f32 %v3801, %v3939
        %v5098 = vmul.f32 %v3804, %v3941
        %v5099 = vsel %vm613, %v5091, 0.0
        %5100 = vadd.xlane.f32.xlu0 %v5099
        %v5101 = vpop.xlane.xlu0 %5100
        %v5102 = vsel %vm613, %v5092, 0.0
        %5103 = vadd.xlane.f32.xlu0 %v5102
        %v5104 = vpop.xlane.xlu0 %5103
        %v5105 = vsel %vm613, %v5093, 0.0
        %5106 = vadd.xlane.f32.xlu0 %v5105
        %v5107 = vpop.xlane.xlu0 %5106
        %v5108 = vsel %vm613, %v5094, 0.0
        %5109 = vadd.xlane.f32.xlu0 %v5108
        %v5110 = vpop.xlane.xlu0 %5109
        %v5111 = vsel %vm613, %v5095, 0.0
        %5112 = vadd.xlane.f32.xlu0 %v5111
        %v5113 = vpop.xlane.xlu0 %5112
        %v5114 = vsel %vm613, %v5096, 0.0
        %5115 = vadd.xlane.f32.xlu0 %v5114
        %v5116 = vpop.xlane.xlu0 %5115
        %v5117 = vsel %vm613, %v5097, 0.0
        %5118 = vadd.xlane.f32.xlu0 %v5117
        %v5119 = vpop.xlane.xlu0 %5118
        %v5120 = vsel %vm613, %v5098, 0.0
        %5121 = vadd.xlane.f32.xlu0 %v5120
        %v5122 = vpop.xlane.xlu0 %5121
        %v5123 = vmul.f32 %v3783, %v3991
        %v5124 = vmul.f32 %v3786, %v3993
        %v5125 = vmul.f32 %v3789, %v3995
        %v5126 = vmul.f32 %v3792, %v3997
        %v5127 = vmul.f32 %v3795, %v3999
        %v5128 = vmul.f32 %v3798, %v4001
        %v5129 = vmul.f32 %v3801, %v4003
        %v5130 = vmul.f32 %v3804, %v4005
        %v5131 = vsel %vm613, %v5123, 0.0
        %5132 = vadd.xlane.f32.xlu0 %v5131
        %v5133 = vpop.xlane.xlu0 %5132
        %v5134 = vsel %vm613, %v5124, 0.0
        %5135 = vadd.xlane.f32.xlu0 %v5134
        %v5136 = vpop.xlane.xlu0 %5135
        %v5137 = vsel %vm613, %v5125, 0.0
        %5138 = vadd.xlane.f32.xlu0 %v5137
        %v5139 = vpop.xlane.xlu0 %5138
        %v5140 = vsel %vm613, %v5126, 0.0
        %5141 = vadd.xlane.f32.xlu0 %v5140
        %v5142 = vpop.xlane.xlu0 %5141
        %v5143 = vsel %vm613, %v5127, 0.0
        %5144 = vadd.xlane.f32.xlu0 %v5143
        %v5145 = vpop.xlane.xlu0 %5144
        %v5146 = vsel %vm613, %v5128, 0.0
        %5147 = vadd.xlane.f32.xlu0 %v5146
        %v5148 = vpop.xlane.xlu0 %5147
        %v5149 = vsel %vm613, %v5129, 0.0
        %5150 = vadd.xlane.f32.xlu0 %v5149
        %v5151 = vpop.xlane.xlu0 %5150
        %v5152 = vsel %vm613, %v5130, 0.0
        %5153 = vadd.xlane.f32.xlu0 %v5152
        %v5154 = vpop.xlane.xlu0 %5153
        %v5155 = vmul.f32 %v3783, %v4055
        %v5156 = vmul.f32 %v3786, %v4057
        %v5157 = vmul.f32 %v3789, %v4059
        %v5158 = vmul.f32 %v3792, %v4061
        %v5159 = vmul.f32 %v3795, %v4063
        %v5160 = vmul.f32 %v3798, %v4065
        %v5161 = vmul.f32 %v3801, %v4067
        %v5162 = vmul.f32 %v3804, %v4069
        %v5163 = vsel %vm613, %v5155, 0.0
        %5164 = vadd.xlane.f32.xlu0 %v5163
        %v5165 = vpop.xlane.xlu0 %5164
        %v5166 = vsel %vm613, %v5156, 0.0
        %5167 = vadd.xlane.f32.xlu0 %v5166
        %v5168 = vpop.xlane.xlu0 %5167
        %v5169 = vsel %vm613, %v5157, 0.0
        %5170 = vadd.xlane.f32.xlu0 %v5169
        %v5171 = vpop.xlane.xlu0 %5170
        %v5172 = vsel %vm613, %v5158, 0.0
        %5173 = vadd.xlane.f32.xlu0 %v5172
        %v5174 = vpop.xlane.xlu0 %5173
        %v5175 = vsel %vm613, %v5159, 0.0
        %5176 = vadd.xlane.f32.xlu0 %v5175
        %v5177 = vpop.xlane.xlu0 %5176
        %v5178 = vsel %vm613, %v5160, 0.0
        %5179 = vadd.xlane.f32.xlu0 %v5178
        %v5180 = vpop.xlane.xlu0 %5179
        %v5181 = vsel %vm613, %v5161, 0.0
        %5182 = vadd.xlane.f32.xlu0 %v5181
        %v5183 = vpop.xlane.xlu0 %5182
        %v5184 = vsel %vm613, %v5162, 0.0
        %5185 = vadd.xlane.f32.xlu0 %v5184
        %v5186 = vpop.xlane.xlu0 %5185
        %v5187 = vmul.f32 %v3783, %v4119
        %v5188 = vmul.f32 %v3786, %v4121
        %v5189 = vmul.f32 %v3789, %v4123
        %v5190 = vmul.f32 %v3792, %v4125
        %v5191 = vmul.f32 %v3795, %v4127
        %v5192 = vmul.f32 %v3798, %v4129
        %v5193 = vmul.f32 %v3801, %v4131
        %v5194 = vmul.f32 %v3804, %v4133
        %v5195 = vsel %vm613, %v5187, 0.0
        %5196 = vadd.xlane.f32.xlu0 %v5195
        %v5197 = vpop.xlane.xlu0 %5196
        %v5198 = vsel %vm613, %v5188, 0.0
        %5199 = vadd.xlane.f32.xlu0 %v5198
        %v5200 = vpop.xlane.xlu0 %5199
        %v5201 = vsel %vm613, %v5189, 0.0
        %5202 = vadd.xlane.f32.xlu0 %v5201
        %v5203 = vpop.xlane.xlu0 %5202
        %v5204 = vsel %vm613, %v5190, 0.0
        %5205 = vadd.xlane.f32.xlu0 %v5204
        %v5206 = vpop.xlane.xlu0 %5205
        %v5207 = vsel %vm613, %v5191, 0.0
        %5208 = vadd.xlane.f32.xlu0 %v5207
        %v5209 = vpop.xlane.xlu0 %5208
        %v5210 = vsel %vm613, %v5192, 0.0
        %5211 = vadd.xlane.f32.xlu0 %v5210
        %v5212 = vpop.xlane.xlu0 %5211
        %v5213 = vsel %vm613, %v5193, 0.0
        %5214 = vadd.xlane.f32.xlu0 %v5213
        %v5215 = vpop.xlane.xlu0 %5214
        %v5216 = vsel %vm613, %v5194, 0.0
        %5217 = vadd.xlane.f32.xlu0 %v5216
        %v5218 = vpop.xlane.xlu0 %5217
        %v5219 = vsel %vm4174, %v5069, %v5101
        %v5220 = vsel %vm4174, %v5072, %v5104
        %v5221 = vsel %vm4174, %v5075, %v5107
        %v5222 = vsel %vm4174, %v5078, %v5110
        %v5223 = vsel %vm4174, %v5081, %v5113
        %v5224 = vsel %vm4174, %v5084, %v5116
        %v5225 = vsel %vm4174, %v5087, %v5119
        %v5226 = vsel %vm4174, %v5090, %v5122
        %v5227 = vsel %vm4183, %v5219, %v5133
        %v5228 = vsel %vm4183, %v5220, %v5136
        %v5229 = vsel %vm4183, %v5221, %v5139
        %v5230 = vsel %vm4183, %v5222, %v5142
        %v5231 = vsel %vm4183, %v5223, %v5145
        %v5232 = vsel %vm4183, %v5224, %v5148
        %v5233 = vsel %vm4183, %v5225, %v5151
        %v5234 = vsel %vm4183, %v5226, %v5154
        %v5235 = vsel %vm4192, %v5227, %v5165
        %v5236 = vsel %vm4192, %v5228, %v5168
        %v5237 = vsel %vm4192, %v5229, %v5171
        %v5238 = vsel %vm4192, %v5230, %v5174
        %v5239 = vsel %vm4192, %v5231, %v5177
        %v5240 = vsel %vm4192, %v5232, %v5180
        %v5241 = vsel %vm4192, %v5233, %v5183
        %v5242 = vsel %vm4192, %v5234, %v5186
        %v5243 = vsel %vm4201, %v5235, %v5197
        %v5244 = vsel %vm4201, %v5236, %v5200
        %v5245 = vsel %vm4201, %v5237, %v5203
        %v5246 = vsel %vm4201, %v5238, %v5206
        %v5247 = vsel %vm4201, %v5239, %v5209
        %v5248 = vsel %vm4201, %v5240, %v5212
        %v5249 = vsel %vm4201, %v5241, %v5215
        %v5250 = vsel %vm4201, %v5242, %v5218
        %v5251 = vsel %vm4210, %v5243, -inf
        %5252 = vmax.xlane.f32.xlu0 %v5251
        %v5253 = vpop.xlane.xlu0 %5252
        %v5254 = vsel %vm4210, %v5244, -inf
        %5255 = vmax.xlane.f32.xlu0 %v5254
        %v5256 = vpop.xlane.xlu0 %5255
        %v5257 = vsel %vm4210, %v5245, -inf
        %5258 = vmax.xlane.f32.xlu0 %v5257
        %v5259 = vpop.xlane.xlu0 %5258
        %v5260 = vsel %vm4210, %v5246, -inf
        %5261 = vmax.xlane.f32.xlu0 %v5260
        %v5262 = vpop.xlane.xlu0 %5261
        %v5263 = vsel %vm4210, %v5247, -inf
        %5264 = vmax.xlane.f32.xlu0 %v5263
        %v5265 = vpop.xlane.xlu0 %5264
        %v5266 = vsel %vm4210, %v5248, -inf
        %5267 = vmax.xlane.f32.xlu0 %v5266
        %v5268 = vpop.xlane.xlu0 %5267
        %v5269 = vsel %vm4210, %v5249, -inf
        %5270 = vmax.xlane.f32.xlu0 %v5269
        %v5271 = vpop.xlane.xlu0 %5270
        %v5272 = vsel %vm4210, %v5250, -inf
        %5273 = vmax.xlane.f32.xlu0 %v5272
        %v5274 = vpop.xlane.xlu0 %5273
        %v5275 = vsub.f32 %v5243, %v5253
        %v5276 = vsub.f32 %v5244, %v5256
        %v5277 = vsub.f32 %v5245, %v5259
        %v5278 = vsub.f32 %v5246, %v5262
        %v5279 = vsub.f32 %v5247, %v5265
        %v5280 = vsub.f32 %v5248, %v5268
        %v5281 = vsub.f32 %v5249, %v5271
        %v5282 = vsub.f32 %v5250, %v5274
        %v5283 = vmul.f32 %v5275, 1.442695
        %v5284 = vpow.pop %v5283
        %v5285 = vmul.f32 %v5276, 1.442695
        %v5286 = vpow.pop %v5285
        %v5287 = vmul.f32 %v5277, 1.442695
        %v5288 = vpow.pop %v5287
        %v5289 = vmul.f32 %v5278, 1.442695
        %v5290 = vpow.pop %v5289
        %v5291 = vmul.f32 %v5279, 1.442695
        %v5292 = vpow.pop %v5291
        %v5293 = vmul.f32 %v5280, 1.442695
        %v5294 = vpow.pop %v5293
        %v5295 = vmul.f32 %v5281, 1.442695
        %v5296 = vpow.pop %v5295
        %v5297 = vmul.f32 %v5282, 1.442695
        %v5298 = vpow.pop %v5297
        %v5299 = vsel %vm4210, %v5284, 0.0
        %5300 = vadd.xlane.f32.xlu0 %v5299
        %v5301 = vpop.xlane.xlu0 %5300
        %v5302 = vsel %vm4210, %v5286, 0.0
        %5303 = vadd.xlane.f32.xlu0 %v5302
        %v5304 = vpop.xlane.xlu0 %5303
        %v5305 = vsel %vm4210, %v5288, 0.0
        %5306 = vadd.xlane.f32.xlu0 %v5305
        %v5307 = vpop.xlane.xlu0 %5306
        %v5308 = vsel %vm4210, %v5290, 0.0
        %5309 = vadd.xlane.f32.xlu0 %v5308
        %v5310 = vpop.xlane.xlu0 %5309
        %v5311 = vsel %vm4210, %v5292, 0.0
        %5312 = vadd.xlane.f32.xlu0 %v5311
        %v5313 = vpop.xlane.xlu0 %5312
        %v5314 = vsel %vm4210, %v5294, 0.0
        %5315 = vadd.xlane.f32.xlu0 %v5314
        %v5316 = vpop.xlane.xlu0 %5315
        %v5317 = vsel %vm4210, %v5296, 0.0
        %5318 = vadd.xlane.f32.xlu0 %v5317
        %v5319 = vpop.xlane.xlu0 %5318
        %v5320 = vsel %vm4210, %v5298, 0.0
        %5321 = vadd.xlane.f32.xlu0 %v5320
        %v5322 = vpop.xlane.xlu0 %5321
        %v5323 = vrcp.pop %v5301
        %v5324 = vrcp.pop %v5304
        %v5325 = vrcp.pop %v5307
        %v5326 = vrcp.pop %v5310
        %v5327 = vrcp.pop %v5313
        %v5328 = vrcp.pop %v5316
        %v5329 = vrcp.pop %v5319
        %v5330 = vrcp.pop %v5322
        %v5331 = vmul.f32 %v5284, %v5323
        %v5332 = vmul.f32 %v5286, %v5324
        %v5333 = vmul.f32 %v5288, %v5325
        %v5334 = vmul.f32 %v5290, %v5326
        %v5335 = vmul.f32 %v5292, %v5327
        %v5336 = vmul.f32 %v5294, %v5328
        %v5337 = vmul.f32 %v5296, %v5329
        %v5338 = vmul.f32 %v5298, %v5330
        %5340 = vset.pattern.permute.xlu0 0
        %5341 = vperm.xlu0 %5340, %v5331
        %v5342 = vpop.permute.xlu0 %5341
        %5345 = vset.pattern.permute.xlu0 0
        %5346 = vperm.xlu0 %5345, %v5332
        %v5347 = vpop.permute.xlu0 %5346
        %5350 = vset.pattern.permute.xlu0 0
        %5351 = vperm.xlu0 %5350, %v5333
        %v5352 = vpop.permute.xlu0 %5351
        %5355 = vset.pattern.permute.xlu0 0
        %5356 = vperm.xlu0 %5355, %v5334
        %v5357 = vpop.permute.xlu0 %5356
        %5360 = vset.pattern.permute.xlu0 0
        %5361 = vperm.xlu0 %5360, %v5335
        %v5362 = vpop.permute.xlu0 %5361
        %5365 = vset.pattern.permute.xlu0 0
        %5366 = vperm.xlu0 %5365, %v5336
        %v5367 = vpop.permute.xlu0 %5366
        %5370 = vset.pattern.permute.xlu0 0
        %5371 = vperm.xlu0 %5370, %v5337
        %v5372 = vpop.permute.xlu0 %5371
        %5375 = vset.pattern.permute.xlu0 0
        %5376 = vperm.xlu0 %5375, %v5338
        %v5377 = vpop.permute.xlu0 %5376
        %v5379 = vmul.f32 %v5342, %v3735
        %v5380 = vmul.f32 %v5347, %v3738
        %v5381 = vmul.f32 %v5352, %v3741
        %v5382 = vmul.f32 %v5357, %v3744
        %v5383 = vmul.f32 %v5362, %v3747
        %v5384 = vmul.f32 %v5367, %v3750
        %v5385 = vmul.f32 %v5372, %v3753
        %v5386 = vmul.f32 %v5377, %v3756
        %5387 = vset.pattern.permute.xlu0 1
        %5388 = vperm.xlu0 %5387, %v5331
        %v5389 = vpop.permute.xlu0 %5388
        %5391 = vset.pattern.permute.xlu0 1
        %5392 = vperm.xlu0 %5391, %v5332
        %v5393 = vpop.permute.xlu0 %5392
        %5395 = vset.pattern.permute.xlu0 1
        %5396 = vperm.xlu0 %5395, %v5333
        %v5397 = vpop.permute.xlu0 %5396
        %5399 = vset.pattern.permute.xlu0 1
        %5400 = vperm.xlu0 %5399, %v5334
        %v5401 = vpop.permute.xlu0 %5400
        %5403 = vset.pattern.permute.xlu0 1
        %5404 = vperm.xlu0 %5403, %v5335
        %v5405 = vpop.permute.xlu0 %5404
        %5407 = vset.pattern.permute.xlu0 1
        %5408 = vperm.xlu0 %5407, %v5336
        %v5409 = vpop.permute.xlu0 %5408
        %5411 = vset.pattern.permute.xlu0 1
        %5412 = vperm.xlu0 %5411, %v5337
        %v5413 = vpop.permute.xlu0 %5412
        %5415 = vset.pattern.permute.xlu0 1
        %5416 = vperm.xlu0 %5415, %v5338
        %v5417 = vpop.permute.xlu0 %5416
        %v5419 = vmul.f32 %v5389, %v3759
        %v5420 = vmul.f32 %v5393, %v3762
        %v5421 = vmul.f32 %v5397, %v3765
        %v5422 = vmul.f32 %v5401, %v3768
        %v5423 = vmul.f32 %v5405, %v3771
        %v5424 = vmul.f32 %v5409, %v3774
        %v5425 = vmul.f32 %v5413, %v3777
        %v5426 = vmul.f32 %v5417, %v3780
        %v5427 = vadd.f32 %v5379, %v5419
        %v5428 = vadd.f32 %v5380, %v5420
        %v5429 = vadd.f32 %v5381, %v5421
        %v5430 = vadd.f32 %v5382, %v5422
        %v5431 = vadd.f32 %v5383, %v5423
        %v5432 = vadd.f32 %v5384, %v5424
        %v5433 = vadd.f32 %v5385, %v5425
        %v5434 = vadd.f32 %v5386, %v5426
        %5435 = vset.pattern.permute.xlu0 2
        %5436 = vperm.xlu0 %5435, %v5331
        %v5437 = vpop.permute.xlu0 %5436
        %5439 = vset.pattern.permute.xlu0 2
        %5440 = vperm.xlu0 %5439, %v5332
        %v5441 = vpop.permute.xlu0 %5440
        %5443 = vset.pattern.permute.xlu0 2
        %5444 = vperm.xlu0 %5443, %v5333
        %v5445 = vpop.permute.xlu0 %5444
        %5447 = vset.pattern.permute.xlu0 2
        %5448 = vperm.xlu0 %5447, %v5334
        %v5449 = vpop.permute.xlu0 %5448
        %5451 = vset.pattern.permute.xlu0 2
        %5452 = vperm.xlu0 %5451, %v5335
        %v5453 = vpop.permute.xlu0 %5452
        %5455 = vset.pattern.permute.xlu0 2
        %5456 = vperm.xlu0 %5455, %v5336
        %v5457 = vpop.permute.xlu0 %5456
        %5459 = vset.pattern.permute.xlu0 2
        %5460 = vperm.xlu0 %5459, %v5337
        %v5461 = vpop.permute.xlu0 %5460
        %5463 = vset.pattern.permute.xlu0 2
        %5464 = vperm.xlu0 %5463, %v5338
        %v5465 = vpop.permute.xlu0 %5464
        %v5467 = vmul.f32 %v5437, %v3783
        %v5468 = vmul.f32 %v5441, %v3786
        %v5469 = vmul.f32 %v5445, %v3789
        %v5470 = vmul.f32 %v5449, %v3792
        %v5471 = vmul.f32 %v5453, %v3795
        %v5472 = vmul.f32 %v5457, %v3798
        %v5473 = vmul.f32 %v5461, %v3801
        %v5474 = vmul.f32 %v5465, %v3804
        %v5475 = vadd.f32 %v5427, %v5467
        %v5476 = vadd.f32 %v5428, %v5468
        %v5477 = vadd.f32 %v5429, %v5469
        %v5478 = vadd.f32 %v5430, %v5470
        %v5479 = vadd.f32 %v5431, %v5471
        %v5480 = vadd.f32 %v5432, %v5472
        %v5481 = vadd.f32 %v5433, %v5473
        %v5482 = vadd.f32 %v5434, %v5474
        %5483 = vset.pattern.permute.xlu0 3
        %5484 = vperm.xlu0 %5483, %v5331
        %v5485 = vpop.permute.xlu0 %5484
        %5487 = vset.pattern.permute.xlu0 3
        %5488 = vperm.xlu0 %5487, %v5332
        %v5489 = vpop.permute.xlu0 %5488
        %5491 = vset.pattern.permute.xlu0 3
        %5492 = vperm.xlu0 %5491, %v5333
        %v5493 = vpop.permute.xlu0 %5492
        %5495 = vset.pattern.permute.xlu0 3
        %5496 = vperm.xlu0 %5495, %v5334
        %v5497 = vpop.permute.xlu0 %5496
        %5499 = vset.pattern.permute.xlu0 3
        %5500 = vperm.xlu0 %5499, %v5335
        %v5501 = vpop.permute.xlu0 %5500
        %5503 = vset.pattern.permute.xlu0 3
        %5504 = vperm.xlu0 %5503, %v5336
        %v5505 = vpop.permute.xlu0 %5504
        %5507 = vset.pattern.permute.xlu0 3
        %5508 = vperm.xlu0 %5507, %v5337
        %v5509 = vpop.permute.xlu0 %5508
        %5511 = vset.pattern.permute.xlu0 3
        %5512 = vperm.xlu0 %5511, %v5338
        %v5513 = vpop.permute.xlu0 %5512
        %v5515 = vmul.f32 %v5485, %v3807
        %v5516 = vmul.f32 %v5489, %v3810
        %v5517 = vmul.f32 %v5493, %v3813
        %v5518 = vmul.f32 %v5497, %v3816
        %v5519 = vmul.f32 %v5501, %v3819
        %v5520 = vmul.f32 %v5505, %v3822
        %v5521 = vmul.f32 %v5509, %v3825
        %v5522 = vmul.f32 %v5513, %v3828
        %v5523 = vadd.f32 %v5475, %v5515
        %v5524 = vadd.f32 %v5476, %v5516
        %v5525 = vadd.f32 %v5477, %v5517
        %v5526 = vadd.f32 %v5478, %v5518
        %v5527 = vadd.f32 %v5479, %v5519
        %v5528 = vadd.f32 %v5480, %v5520
        %v5529 = vadd.f32 %v5481, %v5521
        %v5530 = vadd.f32 %v5482, %v5522
        %5531 = vset.pattern.permute.xlu0 4
        %5532 = vperm.xlu0 %5531, %v5331
        %v5533 = vpop.permute.xlu0 %5532
        %5535 = vset.pattern.permute.xlu0 4
        %5536 = vperm.xlu0 %5535, %v5332
        %v5537 = vpop.permute.xlu0 %5536
        %5539 = vset.pattern.permute.xlu0 4
        %5540 = vperm.xlu0 %5539, %v5333
        %v5541 = vpop.permute.xlu0 %5540
        %5543 = vset.pattern.permute.xlu0 4
        %5544 = vperm.xlu0 %5543, %v5334
        %v5545 = vpop.permute.xlu0 %5544
        %5547 = vset.pattern.permute.xlu0 4
        %5548 = vperm.xlu0 %5547, %v5335
        %v5549 = vpop.permute.xlu0 %5548
        %5551 = vset.pattern.permute.xlu0 4
        %5552 = vperm.xlu0 %5551, %v5336
        %v5553 = vpop.permute.xlu0 %5552
        %5555 = vset.pattern.permute.xlu0 4
        %5556 = vperm.xlu0 %5555, %v5337
        %v5557 = vpop.permute.xlu0 %5556
        %5559 = vset.pattern.permute.xlu0 4
        %5560 = vperm.xlu0 %5559, %v5338
        %v5561 = vpop.permute.xlu0 %5560
        %v5563 = vmul.f32 %v5533, %v3831
        %v5564 = vmul.f32 %v5537, %v3834
        %v5565 = vmul.f32 %v5541, %v3837
        %v5566 = vmul.f32 %v5545, %v3840
        %v5567 = vmul.f32 %v5549, %v3843
        %v5568 = vmul.f32 %v5553, %v3846
        %v5569 = vmul.f32 %v5557, %v3849
        %v5570 = vmul.f32 %v5561, %v3852
        %v5571 = vadd.f32 %v5523, %v5563
        %v5572 = vadd.f32 %v5524, %v5564
        %v5573 = vadd.f32 %v5525, %v5565
        %v5574 = vadd.f32 %v5526, %v5566
        %v5575 = vadd.f32 %v5527, %v5567
        %v5576 = vadd.f32 %v5528, %v5568
        %v5577 = vadd.f32 %v5529, %v5569
        %v5578 = vadd.f32 %v5530, %v5570
        %v5579 = vmul.f32 %v3807, %v3863
        %v5580 = vmul.f32 %v3810, %v3865
        %v5581 = vmul.f32 %v3813, %v3867
        %v5582 = vmul.f32 %v3816, %v3869
        %v5583 = vmul.f32 %v3819, %v3871
        %v5584 = vmul.f32 %v3822, %v3873
        %v5585 = vmul.f32 %v3825, %v3875
        %v5586 = vmul.f32 %v3828, %v3877
        %v5587 = vsel %vm613, %v5579, 0.0
        %5588 = vadd.xlane.f32.xlu0 %v5587
        %v5589 = vpop.xlane.xlu0 %5588
        %v5590 = vsel %vm613, %v5580, 0.0
        %5591 = vadd.xlane.f32.xlu0 %v5590
        %v5592 = vpop.xlane.xlu0 %5591
        %v5593 = vsel %vm613, %v5581, 0.0
        %5594 = vadd.xlane.f32.xlu0 %v5593
        %v5595 = vpop.xlane.xlu0 %5594
        %v5596 = vsel %vm613, %v5582, 0.0
        %5597 = vadd.xlane.f32.xlu0 %v5596
        %v5598 = vpop.xlane.xlu0 %5597
        %v5599 = vsel %vm613, %v5583, 0.0
        %5600 = vadd.xlane.f32.xlu0 %v5599
        %v5601 = vpop.xlane.xlu0 %5600
        %v5602 = vsel %vm613, %v5584, 0.0
        %5603 = vadd.xlane.f32.xlu0 %v5602
        %v5604 = vpop.xlane.xlu0 %5603
        %v5605 = vsel %vm613, %v5585, 0.0
        %5606 = vadd.xlane.f32.xlu0 %v5605
        %v5607 = vpop.xlane.xlu0 %5606
        %v5608 = vsel %vm613, %v5586, 0.0
        %5609 = vadd.xlane.f32.xlu0 %v5608
        %v5610 = vpop.xlane.xlu0 %5609
        %v5611 = vmul.f32 %v3807, %v3927
        %v5612 = vmul.f32 %v3810, %v3929
        %v5613 = vmul.f32 %v3813, %v3931
        %v5614 = vmul.f32 %v3816, %v3933
        %v5615 = vmul.f32 %v3819, %v3935
        %v5616 = vmul.f32 %v3822, %v3937
        %v5617 = vmul.f32 %v3825, %v3939
        %v5618 = vmul.f32 %v3828, %v3941
        %v5619 = vsel %vm613, %v5611, 0.0
        %5620 = vadd.xlane.f32.xlu0 %v5619
        %v5621 = vpop.xlane.xlu0 %5620
        %v5622 = vsel %vm613, %v5612, 0.0
        %5623 = vadd.xlane.f32.xlu0 %v5622
        %v5624 = vpop.xlane.xlu0 %5623
        %v5625 = vsel %vm613, %v5613, 0.0
        %5626 = vadd.xlane.f32.xlu0 %v5625
        %v5627 = vpop.xlane.xlu0 %5626
        %v5628 = vsel %vm613, %v5614, 0.0
        %5629 = vadd.xlane.f32.xlu0 %v5628
        %v5630 = vpop.xlane.xlu0 %5629
        %v5631 = vsel %vm613, %v5615, 0.0
        %5632 = vadd.xlane.f32.xlu0 %v5631
        %v5633 = vpop.xlane.xlu0 %5632
        %v5634 = vsel %vm613, %v5616, 0.0
        %5635 = vadd.xlane.f32.xlu0 %v5634
        %v5636 = vpop.xlane.xlu0 %5635
        %v5637 = vsel %vm613, %v5617, 0.0
        %5638 = vadd.xlane.f32.xlu0 %v5637
        %v5639 = vpop.xlane.xlu0 %5638
        %v5640 = vsel %vm613, %v5618, 0.0
        %5641 = vadd.xlane.f32.xlu0 %v5640
        %v5642 = vpop.xlane.xlu0 %5641
        %v5643 = vmul.f32 %v3807, %v3991
        %v5644 = vmul.f32 %v3810, %v3993
        %v5645 = vmul.f32 %v3813, %v3995
        %v5646 = vmul.f32 %v3816, %v3997
        %v5647 = vmul.f32 %v3819, %v3999
        %v5648 = vmul.f32 %v3822, %v4001
        %v5649 = vmul.f32 %v3825, %v4003
        %v5650 = vmul.f32 %v3828, %v4005
        %v5651 = vsel %vm613, %v5643, 0.0
        %5652 = vadd.xlane.f32.xlu0 %v5651
        %v5653 = vpop.xlane.xlu0 %5652
        %v5654 = vsel %vm613, %v5644, 0.0
        %5655 = vadd.xlane.f32.xlu0 %v5654
        %v5656 = vpop.xlane.xlu0 %5655
        %v5657 = vsel %vm613, %v5645, 0.0
        %5658 = vadd.xlane.f32.xlu0 %v5657
        %v5659 = vpop.xlane.xlu0 %5658
        %v5660 = vsel %vm613, %v5646, 0.0
        %5661 = vadd.xlane.f32.xlu0 %v5660
        %v5662 = vpop.xlane.xlu0 %5661
        %v5663 = vsel %vm613, %v5647, 0.0
        %5664 = vadd.xlane.f32.xlu0 %v5663
        %v5665 = vpop.xlane.xlu0 %5664
        %v5666 = vsel %vm613, %v5648, 0.0
        %5667 = vadd.xlane.f32.xlu0 %v5666
        %v5668 = vpop.xlane.xlu0 %5667
        %v5669 = vsel %vm613, %v5649, 0.0
        %5670 = vadd.xlane.f32.xlu0 %v5669
        %v5671 = vpop.xlane.xlu0 %5670
        %v5672 = vsel %vm613, %v5650, 0.0
        %5673 = vadd.xlane.f32.xlu0 %v5672
        %v5674 = vpop.xlane.xlu0 %5673
        %v5675 = vmul.f32 %v3807, %v4055
        %v5676 = vmul.f32 %v3810, %v4057
        %v5677 = vmul.f32 %v3813, %v4059
        %v5678 = vmul.f32 %v3816, %v4061
        %v5679 = vmul.f32 %v3819, %v4063
        %v5680 = vmul.f32 %v3822, %v4065
        %v5681 = vmul.f32 %v3825, %v4067
        %v5682 = vmul.f32 %v3828, %v4069
        %v5683 = vsel %vm613, %v5675, 0.0
        %5684 = vadd.xlane.f32.xlu0 %v5683
        %v5685 = vpop.xlane.xlu0 %5684
        %v5686 = vsel %vm613, %v5676, 0.0
        %5687 = vadd.xlane.f32.xlu0 %v5686
        %v5688 = vpop.xlane.xlu0 %5687
        %v5689 = vsel %vm613, %v5677, 0.0
        %5690 = vadd.xlane.f32.xlu0 %v5689
        %v5691 = vpop.xlane.xlu0 %5690
        %v5692 = vsel %vm613, %v5678, 0.0
        %5693 = vadd.xlane.f32.xlu0 %v5692
        %v5694 = vpop.xlane.xlu0 %5693
        %v5695 = vsel %vm613, %v5679, 0.0
        %5696 = vadd.xlane.f32.xlu0 %v5695
        %v5697 = vpop.xlane.xlu0 %5696
        %v5698 = vsel %vm613, %v5680, 0.0
        %5699 = vadd.xlane.f32.xlu0 %v5698
        %v5700 = vpop.xlane.xlu0 %5699
        %v5701 = vsel %vm613, %v5681, 0.0
        %5702 = vadd.xlane.f32.xlu0 %v5701
        %v5703 = vpop.xlane.xlu0 %5702
        %v5704 = vsel %vm613, %v5682, 0.0
        %5705 = vadd.xlane.f32.xlu0 %v5704
        %v5706 = vpop.xlane.xlu0 %5705
        %v5707 = vmul.f32 %v3807, %v4119
        %v5708 = vmul.f32 %v3810, %v4121
        %v5709 = vmul.f32 %v3813, %v4123
        %v5710 = vmul.f32 %v3816, %v4125
        %v5711 = vmul.f32 %v3819, %v4127
        %v5712 = vmul.f32 %v3822, %v4129
        %v5713 = vmul.f32 %v3825, %v4131
        %v5714 = vmul.f32 %v3828, %v4133
        %v5715 = vsel %vm613, %v5707, 0.0
        %5716 = vadd.xlane.f32.xlu0 %v5715
        %v5717 = vpop.xlane.xlu0 %5716
        %v5718 = vsel %vm613, %v5708, 0.0
        %5719 = vadd.xlane.f32.xlu0 %v5718
        %v5720 = vpop.xlane.xlu0 %5719
        %v5721 = vsel %vm613, %v5709, 0.0
        %5722 = vadd.xlane.f32.xlu0 %v5721
        %v5723 = vpop.xlane.xlu0 %5722
        %v5724 = vsel %vm613, %v5710, 0.0
        %5725 = vadd.xlane.f32.xlu0 %v5724
        %v5726 = vpop.xlane.xlu0 %5725
        %v5727 = vsel %vm613, %v5711, 0.0
        %5728 = vadd.xlane.f32.xlu0 %v5727
        %v5729 = vpop.xlane.xlu0 %5728
        %v5730 = vsel %vm613, %v5712, 0.0
        %5731 = vadd.xlane.f32.xlu0 %v5730
        %v5732 = vpop.xlane.xlu0 %5731
        %v5733 = vsel %vm613, %v5713, 0.0
        %5734 = vadd.xlane.f32.xlu0 %v5733
        %v5735 = vpop.xlane.xlu0 %5734
        %v5736 = vsel %vm613, %v5714, 0.0
        %5737 = vadd.xlane.f32.xlu0 %v5736
        %v5738 = vpop.xlane.xlu0 %5737
        %v5739 = vsel %vm4174, %v5589, %v5621
        %v5740 = vsel %vm4174, %v5592, %v5624
        %v5741 = vsel %vm4174, %v5595, %v5627
        %v5742 = vsel %vm4174, %v5598, %v5630
        %v5743 = vsel %vm4174, %v5601, %v5633
        %v5744 = vsel %vm4174, %v5604, %v5636
        %v5745 = vsel %vm4174, %v5607, %v5639
        %v5746 = vsel %vm4174, %v5610, %v5642
        %v5747 = vsel %vm4183, %v5739, %v5653
        %v5748 = vsel %vm4183, %v5740, %v5656
        %v5749 = vsel %vm4183, %v5741, %v5659
        %v5750 = vsel %vm4183, %v5742, %v5662
        %v5751 = vsel %vm4183, %v5743, %v5665
        %v5752 = vsel %vm4183, %v5744, %v5668
        %v5753 = vsel %vm4183, %v5745, %v5671
        %v5754 = vsel %vm4183, %v5746, %v5674
        %v5755 = vsel %vm4192, %v5747, %v5685
        %v5756 = vsel %vm4192, %v5748, %v5688
        %v5757 = vsel %vm4192, %v5749, %v5691
        %v5758 = vsel %vm4192, %v5750, %v5694
        %v5759 = vsel %vm4192, %v5751, %v5697
        %v5760 = vsel %vm4192, %v5752, %v5700
        %v5761 = vsel %vm4192, %v5753, %v5703
        %v5762 = vsel %vm4192, %v5754, %v5706
        %v5763 = vsel %vm4201, %v5755, %v5717
        %v5764 = vsel %vm4201, %v5756, %v5720
        %v5765 = vsel %vm4201, %v5757, %v5723
        %v5766 = vsel %vm4201, %v5758, %v5726
        %v5767 = vsel %vm4201, %v5759, %v5729
        %v5768 = vsel %vm4201, %v5760, %v5732
        %v5769 = vsel %vm4201, %v5761, %v5735
        %v5770 = vsel %vm4201, %v5762, %v5738
        %v5771 = vsel %vm4210, %v5763, -inf
        %5772 = vmax.xlane.f32.xlu0 %v5771
        %v5773 = vpop.xlane.xlu0 %5772
        %v5774 = vsel %vm4210, %v5764, -inf
        %5775 = vmax.xlane.f32.xlu0 %v5774
        %v5776 = vpop.xlane.xlu0 %5775
        %v5777 = vsel %vm4210, %v5765, -inf
        %5778 = vmax.xlane.f32.xlu0 %v5777
        %v5779 = vpop.xlane.xlu0 %5778
        %v5780 = vsel %vm4210, %v5766, -inf
        %5781 = vmax.xlane.f32.xlu0 %v5780
        %v5782 = vpop.xlane.xlu0 %5781
        %v5783 = vsel %vm4210, %v5767, -inf
        %5784 = vmax.xlane.f32.xlu0 %v5783
        %v5785 = vpop.xlane.xlu0 %5784
        %v5786 = vsel %vm4210, %v5768, -inf
        %5787 = vmax.xlane.f32.xlu0 %v5786
        %v5788 = vpop.xlane.xlu0 %5787
        %v5789 = vsel %vm4210, %v5769, -inf
        %5790 = vmax.xlane.f32.xlu0 %v5789
        %v5791 = vpop.xlane.xlu0 %5790
        %v5792 = vsel %vm4210, %v5770, -inf
        %5793 = vmax.xlane.f32.xlu0 %v5792
        %v5794 = vpop.xlane.xlu0 %5793
        %v5795 = vsub.f32 %v5763, %v5773
        %v5796 = vsub.f32 %v5764, %v5776
        %v5797 = vsub.f32 %v5765, %v5779
        %v5798 = vsub.f32 %v5766, %v5782
        %v5799 = vsub.f32 %v5767, %v5785
        %v5800 = vsub.f32 %v5768, %v5788
        %v5801 = vsub.f32 %v5769, %v5791
        %v5802 = vsub.f32 %v5770, %v5794
        %v5803 = vmul.f32 %v5795, 1.442695
        %v5804 = vpow.pop %v5803
        %v5805 = vmul.f32 %v5796, 1.442695
        %v5806 = vpow.pop %v5805
        %v5807 = vmul.f32 %v5797, 1.442695
        %v5808 = vpow.pop %v5807
        %v5809 = vmul.f32 %v5798, 1.442695
        %v5810 = vpow.pop %v5809
        %v5811 = vmul.f32 %v5799, 1.442695
        %v5812 = vpow.pop %v5811
        %v5813 = vmul.f32 %v5800, 1.442695
        %v5814 = vpow.pop %v5813
        %v5815 = vmul.f32 %v5801, 1.442695
        %v5816 = vpow.pop %v5815
        %v5817 = vmul.f32 %v5802, 1.442695
        %v5818 = vpow.pop %v5817
        %v5819 = vsel %vm4210, %v5804, 0.0
        %5820 = vadd.xlane.f32.xlu0 %v5819
        %v5821 = vpop.xlane.xlu0 %5820
        %v5822 = vsel %vm4210, %v5806, 0.0
        %5823 = vadd.xlane.f32.xlu0 %v5822
        %v5824 = vpop.xlane.xlu0 %5823
        %v5825 = vsel %vm4210, %v5808, 0.0
        %5826 = vadd.xlane.f32.xlu0 %v5825
        %v5827 = vpop.xlane.xlu0 %5826
        %v5828 = vsel %vm4210, %v5810, 0.0
        %5829 = vadd.xlane.f32.xlu0 %v5828
        %v5830 = vpop.xlane.xlu0 %5829
        %v5831 = vsel %vm4210, %v5812, 0.0
        %5832 = vadd.xlane.f32.xlu0 %v5831
        %v5833 = vpop.xlane.xlu0 %5832
        %v5834 = vsel %vm4210, %v5814, 0.0
        %5835 = vadd.xlane.f32.xlu0 %v5834
        %v5836 = vpop.xlane.xlu0 %5835
        %v5837 = vsel %vm4210, %v5816, 0.0
        %5838 = vadd.xlane.f32.xlu0 %v5837
        %v5839 = vpop.xlane.xlu0 %5838
        %v5840 = vsel %vm4210, %v5818, 0.0
        %5841 = vadd.xlane.f32.xlu0 %v5840
        %v5842 = vpop.xlane.xlu0 %5841
        %v5843 = vrcp.pop %v5821
        %v5844 = vrcp.pop %v5824
        %v5845 = vrcp.pop %v5827
        %v5846 = vrcp.pop %v5830
        %v5847 = vrcp.pop %v5833
        %v5848 = vrcp.pop %v5836
        %v5849 = vrcp.pop %v5839
        %v5850 = vrcp.pop %v5842
        %v5851 = vmul.f32 %v5804, %v5843
        %v5852 = vmul.f32 %v5806, %v5844
        %v5853 = vmul.f32 %v5808, %v5845
        %v5854 = vmul.f32 %v5810, %v5846
        %v5855 = vmul.f32 %v5812, %v5847
        %v5856 = vmul.f32 %v5814, %v5848
        %v5857 = vmul.f32 %v5816, %v5849
        %v5858 = vmul.f32 %v5818, %v5850
        %5860 = vset.pattern.permute.xlu0 0
        %5861 = vperm.xlu0 %5860, %v5851
        %v5862 = vpop.permute.xlu0 %5861
        %5865 = vset.pattern.permute.xlu0 0
        %5866 = vperm.xlu0 %5865, %v5852
        %v5867 = vpop.permute.xlu0 %5866
        %5870 = vset.pattern.permute.xlu0 0
        %5871 = vperm.xlu0 %5870, %v5853
        %v5872 = vpop.permute.xlu0 %5871
        %5875 = vset.pattern.permute.xlu0 0
        %5876 = vperm.xlu0 %5875, %v5854
        %v5877 = vpop.permute.xlu0 %5876
        %5880 = vset.pattern.permute.xlu0 0
        %5881 = vperm.xlu0 %5880, %v5855
        %v5882 = vpop.permute.xlu0 %5881
        %5885 = vset.pattern.permute.xlu0 0
        %5886 = vperm.xlu0 %5885, %v5856
        %v5887 = vpop.permute.xlu0 %5886
        %5890 = vset.pattern.permute.xlu0 0
        %5891 = vperm.xlu0 %5890, %v5857
        %v5892 = vpop.permute.xlu0 %5891
        %5895 = vset.pattern.permute.xlu0 0
        %5896 = vperm.xlu0 %5895, %v5858
        %v5897 = vpop.permute.xlu0 %5896
        %v5899 = vmul.f32 %v5862, %v3735
        %v5900 = vmul.f32 %v5867, %v3738
        %v5901 = vmul.f32 %v5872, %v3741
        %v5902 = vmul.f32 %v5877, %v3744
        %v5903 = vmul.f32 %v5882, %v3747
        %v5904 = vmul.f32 %v5887, %v3750
        %v5905 = vmul.f32 %v5892, %v3753
        %v5906 = vmul.f32 %v5897, %v3756
        %5907 = vset.pattern.permute.xlu0 1
        %5908 = vperm.xlu0 %5907, %v5851
        %v5909 = vpop.permute.xlu0 %5908
        %5911 = vset.pattern.permute.xlu0 1
        %5912 = vperm.xlu0 %5911, %v5852
        %v5913 = vpop.permute.xlu0 %5912
        %5915 = vset.pattern.permute.xlu0 1
        %5916 = vperm.xlu0 %5915, %v5853
        %v5917 = vpop.permute.xlu0 %5916
        %5919 = vset.pattern.permute.xlu0 1
        %5920 = vperm.xlu0 %5919, %v5854
        %v5921 = vpop.permute.xlu0 %5920
        %5923 = vset.pattern.permute.xlu0 1
        %5924 = vperm.xlu0 %5923, %v5855
        %v5925 = vpop.permute.xlu0 %5924
        %5927 = vset.pattern.permute.xlu0 1
        %5928 = vperm.xlu0 %5927, %v5856
        %v5929 = vpop.permute.xlu0 %5928
        %5931 = vset.pattern.permute.xlu0 1
        %5932 = vperm.xlu0 %5931, %v5857
        %v5933 = vpop.permute.xlu0 %5932
        %5935 = vset.pattern.permute.xlu0 1
        %5936 = vperm.xlu0 %5935, %v5858
        %v5937 = vpop.permute.xlu0 %5936
        %v5939 = vmul.f32 %v5909, %v3759
        %v5940 = vmul.f32 %v5913, %v3762
        %v5941 = vmul.f32 %v5917, %v3765
        %v5942 = vmul.f32 %v5921, %v3768
        %v5943 = vmul.f32 %v5925, %v3771
        %v5944 = vmul.f32 %v5929, %v3774
        %v5945 = vmul.f32 %v5933, %v3777
        %v5946 = vmul.f32 %v5937, %v3780
        %v5947 = vadd.f32 %v5899, %v5939
        %v5948 = vadd.f32 %v5900, %v5940
        %v5949 = vadd.f32 %v5901, %v5941
        %v5950 = vadd.f32 %v5902, %v5942
        %v5951 = vadd.f32 %v5903, %v5943
        %v5952 = vadd.f32 %v5904, %v5944
        %v5953 = vadd.f32 %v5905, %v5945
        %v5954 = vadd.f32 %v5906, %v5946
        %5955 = vset.pattern.permute.xlu0 2
        %5956 = vperm.xlu0 %5955, %v5851
        %v5957 = vpop.permute.xlu0 %5956
        %5959 = vset.pattern.permute.xlu0 2
        %5960 = vperm.xlu0 %5959, %v5852
        %v5961 = vpop.permute.xlu0 %5960
        %5963 = vset.pattern.permute.xlu0 2
        %5964 = vperm.xlu0 %5963, %v5853
        %v5965 = vpop.permute.xlu0 %5964
        %5967 = vset.pattern.permute.xlu0 2
        %5968 = vperm.xlu0 %5967, %v5854
        %v5969 = vpop.permute.xlu0 %5968
        %5971 = vset.pattern.permute.xlu0 2
        %5972 = vperm.xlu0 %5971, %v5855
        %v5973 = vpop.permute.xlu0 %5972
        %5975 = vset.pattern.permute.xlu0 2
        %5976 = vperm.xlu0 %5975, %v5856
        %v5977 = vpop.permute.xlu0 %5976
        %5979 = vset.pattern.permute.xlu0 2
        %5980 = vperm.xlu0 %5979, %v5857
        %v5981 = vpop.permute.xlu0 %5980
        %5983 = vset.pattern.permute.xlu0 2
        %5984 = vperm.xlu0 %5983, %v5858
        %v5985 = vpop.permute.xlu0 %5984
        %v5987 = vmul.f32 %v5957, %v3783
        %v5988 = vmul.f32 %v5961, %v3786
        %v5989 = vmul.f32 %v5965, %v3789
        %v5990 = vmul.f32 %v5969, %v3792
        %v5991 = vmul.f32 %v5973, %v3795
        %v5992 = vmul.f32 %v5977, %v3798
        %v5993 = vmul.f32 %v5981, %v3801
        %v5994 = vmul.f32 %v5985, %v3804
        %v5995 = vadd.f32 %v5947, %v5987
        %v5996 = vadd.f32 %v5948, %v5988
        %v5997 = vadd.f32 %v5949, %v5989
        %v5998 = vadd.f32 %v5950, %v5990
        %v5999 = vadd.f32 %v5951, %v5991
        %v6000 = vadd.f32 %v5952, %v5992
        %v6001 = vadd.f32 %v5953, %v5993
        %v6002 = vadd.f32 %v5954, %v5994
        %6003 = vset.pattern.permute.xlu0 3
        %6004 = vperm.xlu0 %6003, %v5851
        %v6005 = vpop.permute.xlu0 %6004
        %6007 = vset.pattern.permute.xlu0 3
        %6008 = vperm.xlu0 %6007, %v5852
        %v6009 = vpop.permute.xlu0 %6008
        %6011 = vset.pattern.permute.xlu0 3
        %6012 = vperm.xlu0 %6011, %v5853
        %v6013 = vpop.permute.xlu0 %6012
        %6015 = vset.pattern.permute.xlu0 3
        %6016 = vperm.xlu0 %6015, %v5854
        %v6017 = vpop.permute.xlu0 %6016
        %6019 = vset.pattern.permute.xlu0 3
        %6020 = vperm.xlu0 %6019, %v5855
        %v6021 = vpop.permute.xlu0 %6020
        %6023 = vset.pattern.permute.xlu0 3
        %6024 = vperm.xlu0 %6023, %v5856
        %v6025 = vpop.permute.xlu0 %6024
        %6027 = vset.pattern.permute.xlu0 3
        %6028 = vperm.xlu0 %6027, %v5857
        %v6029 = vpop.permute.xlu0 %6028
        %6031 = vset.pattern.permute.xlu0 3
        %6032 = vperm.xlu0 %6031, %v5858
        %v6033 = vpop.permute.xlu0 %6032
        %v6035 = vmul.f32 %v6005, %v3807
        %v6036 = vmul.f32 %v6009, %v3810
        %v6037 = vmul.f32 %v6013, %v3813
        %v6038 = vmul.f32 %v6017, %v3816
        %v6039 = vmul.f32 %v6021, %v3819
        %v6040 = vmul.f32 %v6025, %v3822
        %v6041 = vmul.f32 %v6029, %v3825
        %v6042 = vmul.f32 %v6033, %v3828
        %v6043 = vadd.f32 %v5995, %v6035
        %v6044 = vadd.f32 %v5996, %v6036
        %v6045 = vadd.f32 %v5997, %v6037
        %v6046 = vadd.f32 %v5998, %v6038
        %v6047 = vadd.f32 %v5999, %v6039
        %v6048 = vadd.f32 %v6000, %v6040
        %v6049 = vadd.f32 %v6001, %v6041
        %v6050 = vadd.f32 %v6002, %v6042
        %6051 = vset.pattern.permute.xlu0 4
        %6052 = vperm.xlu0 %6051, %v5851
        %v6053 = vpop.permute.xlu0 %6052
        %6055 = vset.pattern.permute.xlu0 4
        %6056 = vperm.xlu0 %6055, %v5852
        %v6057 = vpop.permute.xlu0 %6056
        %6059 = vset.pattern.permute.xlu0 4
        %6060 = vperm.xlu0 %6059, %v5853
        %v6061 = vpop.permute.xlu0 %6060
        %6063 = vset.pattern.permute.xlu0 4
        %6064 = vperm.xlu0 %6063, %v5854
        %v6065 = vpop.permute.xlu0 %6064
        %6067 = vset.pattern.permute.xlu0 4
        %6068 = vperm.xlu0 %6067, %v5855
        %v6069 = vpop.permute.xlu0 %6068
        %6071 = vset.pattern.permute.xlu0 4
        %6072 = vperm.xlu0 %6071, %v5856
        %v6073 = vpop.permute.xlu0 %6072
        %6075 = vset.pattern.permute.xlu0 4
        %6076 = vperm.xlu0 %6075, %v5857
        %v6077 = vpop.permute.xlu0 %6076
        %6079 = vset.pattern.permute.xlu0 4
        %6080 = vperm.xlu0 %6079, %v5858
        %v6081 = vpop.permute.xlu0 %6080
        %v6083 = vmul.f32 %v6053, %v3831
        %v6084 = vmul.f32 %v6057, %v3834
        %v6085 = vmul.f32 %v6061, %v3837
        %v6086 = vmul.f32 %v6065, %v3840
        %v6087 = vmul.f32 %v6069, %v3843
        %v6088 = vmul.f32 %v6073, %v3846
        %v6089 = vmul.f32 %v6077, %v3849
        %v6090 = vmul.f32 %v6081, %v3852
        %v6091 = vadd.f32 %v6043, %v6083
        %v6092 = vadd.f32 %v6044, %v6084
        %v6093 = vadd.f32 %v6045, %v6085
        %v6094 = vadd.f32 %v6046, %v6086
        %v6095 = vadd.f32 %v6047, %v6087
        %v6096 = vadd.f32 %v6048, %v6088
        %v6097 = vadd.f32 %v6049, %v6089
        %v6098 = vadd.f32 %v6050, %v6090
        %v6099 = vmul.f32 %v3831, %v3863
        %v6100 = vmul.f32 %v3834, %v3865
        %v6101 = vmul.f32 %v3837, %v3867
        %v6102 = vmul.f32 %v3840, %v3869
        %v6103 = vmul.f32 %v3843, %v3871
        %v6104 = vmul.f32 %v3846, %v3873
        %v6105 = vmul.f32 %v3849, %v3875
        %v6106 = vmul.f32 %v3852, %v3877
        %v6107 = vsel %vm613, %v6099, 0.0
        %6108 = vadd.xlane.f32.xlu0 %v6107
        %v6109 = vpop.xlane.xlu0 %6108
        %v6110 = vsel %vm613, %v6100, 0.0
        %6111 = vadd.xlane.f32.xlu0 %v6110
        %v6112 = vpop.xlane.xlu0 %6111
        %v6113 = vsel %vm613, %v6101, 0.0
        %6114 = vadd.xlane.f32.xlu0 %v6113
        %v6115 = vpop.xlane.xlu0 %6114
        %v6116 = vsel %vm613, %v6102, 0.0
        %6117 = vadd.xlane.f32.xlu0 %v6116
        %v6118 = vpop.xlane.xlu0 %6117
        %v6119 = vsel %vm613, %v6103, 0.0
        %6120 = vadd.xlane.f32.xlu0 %v6119
        %v6121 = vpop.xlane.xlu0 %6120
        %v6122 = vsel %vm613, %v6104, 0.0
        %6123 = vadd.xlane.f32.xlu0 %v6122
        %v6124 = vpop.xlane.xlu0 %6123
        %v6125 = vsel %vm613, %v6105, 0.0
        %6126 = vadd.xlane.f32.xlu0 %v6125
        %v6127 = vpop.xlane.xlu0 %6126
        %v6128 = vsel %vm613, %v6106, 0.0
        %6129 = vadd.xlane.f32.xlu0 %v6128
        %v6130 = vpop.xlane.xlu0 %6129
        %v6131 = vmul.f32 %v3831, %v3927
        %v6132 = vmul.f32 %v3834, %v3929
        %v6133 = vmul.f32 %v3837, %v3931
        %v6134 = vmul.f32 %v3840, %v3933
        %v6135 = vmul.f32 %v3843, %v3935
        %v6136 = vmul.f32 %v3846, %v3937
        %v6137 = vmul.f32 %v3849, %v3939
        %v6138 = vmul.f32 %v3852, %v3941
        %v6139 = vsel %vm613, %v6131, 0.0
        %6140 = vadd.xlane.f32.xlu0 %v6139
        %v6141 = vpop.xlane.xlu0 %6140
        %v6142 = vsel %vm613, %v6132, 0.0
        %6143 = vadd.xlane.f32.xlu0 %v6142
        %v6144 = vpop.xlane.xlu0 %6143
        %v6145 = vsel %vm613, %v6133, 0.0
        %6146 = vadd.xlane.f32.xlu0 %v6145
        %v6147 = vpop.xlane.xlu0 %6146
        %v6148 = vsel %vm613, %v6134, 0.0
        %6149 = vadd.xlane.f32.xlu0 %v6148
        %v6150 = vpop.xlane.xlu0 %6149
        %v6151 = vsel %vm613, %v6135, 0.0
        %6152 = vadd.xlane.f32.xlu0 %v6151
        %v6153 = vpop.xlane.xlu0 %6152
        %v6154 = vsel %vm613, %v6136, 0.0
        %6155 = vadd.xlane.f32.xlu0 %v6154
        %v6156 = vpop.xlane.xlu0 %6155
        %v6157 = vsel %vm613, %v6137, 0.0
        %6158 = vadd.xlane.f32.xlu0 %v6157
        %v6159 = vpop.xlane.xlu0 %6158
        %v6160 = vsel %vm613, %v6138, 0.0
        %6161 = vadd.xlane.f32.xlu0 %v6160
        %v6162 = vpop.xlane.xlu0 %6161
        %v6163 = vmul.f32 %v3831, %v3991
        %v6164 = vmul.f32 %v3834, %v3993
        %v6165 = vmul.f32 %v3837, %v3995
        %v6166 = vmul.f32 %v3840, %v3997
        %v6167 = vmul.f32 %v3843, %v3999
        %v6168 = vmul.f32 %v3846, %v4001
        %v6169 = vmul.f32 %v3849, %v4003
        %v6170 = vmul.f32 %v3852, %v4005
        %v6171 = vsel %vm613, %v6163, 0.0
        %6172 = vadd.xlane.f32.xlu0 %v6171
        %v6173 = vpop.xlane.xlu0 %6172
        %v6174 = vsel %vm613, %v6164, 0.0
        %6175 = vadd.xlane.f32.xlu0 %v6174
        %v6176 = vpop.xlane.xlu0 %6175
        %v6177 = vsel %vm613, %v6165, 0.0
        %6178 = vadd.xlane.f32.xlu0 %v6177
        %v6179 = vpop.xlane.xlu0 %6178
        %v6180 = vsel %vm613, %v6166, 0.0
        %6181 = vadd.xlane.f32.xlu0 %v6180
        %v6182 = vpop.xlane.xlu0 %6181
        %v6183 = vsel %vm613, %v6167, 0.0
        %6184 = vadd.xlane.f32.xlu0 %v6183
        %v6185 = vpop.xlane.xlu0 %6184
        %v6186 = vsel %vm613, %v6168, 0.0
        %6187 = vadd.xlane.f32.xlu0 %v6186
        %v6188 = vpop.xlane.xlu0 %6187
        %v6189 = vsel %vm613, %v6169, 0.0
        %6190 = vadd.xlane.f32.xlu0 %v6189
        %v6191 = vpop.xlane.xlu0 %6190
        %v6192 = vsel %vm613, %v6170, 0.0
        %6193 = vadd.xlane.f32.xlu0 %v6192
        %v6194 = vpop.xlane.xlu0 %6193
        %v6195 = vmul.f32 %v3831, %v4055
        %v6196 = vmul.f32 %v3834, %v4057
        %v6197 = vmul.f32 %v3837, %v4059
        %v6198 = vmul.f32 %v3840, %v4061
        %v6199 = vmul.f32 %v3843, %v4063
        %v6200 = vmul.f32 %v3846, %v4065
        %v6201 = vmul.f32 %v3849, %v4067
        %v6202 = vmul.f32 %v3852, %v4069
        %v6203 = vsel %vm613, %v6195, 0.0
        %6204 = vadd.xlane.f32.xlu0 %v6203
        %v6205 = vpop.xlane.xlu0 %6204
        %v6206 = vsel %vm613, %v6196, 0.0
        %6207 = vadd.xlane.f32.xlu0 %v6206
        %v6208 = vpop.xlane.xlu0 %6207
        %v6209 = vsel %vm613, %v6197, 0.0
        %6210 = vadd.xlane.f32.xlu0 %v6209
        %v6211 = vpop.xlane.xlu0 %6210
        %v6212 = vsel %vm613, %v6198, 0.0
        %6213 = vadd.xlane.f32.xlu0 %v6212
        %v6214 = vpop.xlane.xlu0 %6213
        %v6215 = vsel %vm613, %v6199, 0.0
        %6216 = vadd.xlane.f32.xlu0 %v6215
        %v6217 = vpop.xlane.xlu0 %6216
        %v6218 = vsel %vm613, %v6200, 0.0
        %6219 = vadd.xlane.f32.xlu0 %v6218
        %v6220 = vpop.xlane.xlu0 %6219
        %v6221 = vsel %vm613, %v6201, 0.0
        %6222 = vadd.xlane.f32.xlu0 %v6221
        %v6223 = vpop.xlane.xlu0 %6222
        %v6224 = vsel %vm613, %v6202, 0.0
        %6225 = vadd.xlane.f32.xlu0 %v6224
        %v6226 = vpop.xlane.xlu0 %6225
        %v6227 = vmul.f32 %v3831, %v4119
        %v6228 = vmul.f32 %v3834, %v4121
        %v6229 = vmul.f32 %v3837, %v4123
        %v6230 = vmul.f32 %v3840, %v4125
        %v6231 = vmul.f32 %v3843, %v4127
        %v6232 = vmul.f32 %v3846, %v4129
        %v6233 = vmul.f32 %v3849, %v4131
        %v6234 = vmul.f32 %v3852, %v4133
        %v6235 = vsel %vm613, %v6227, 0.0
        %6236 = vadd.xlane.f32.xlu0 %v6235
        %v6237 = vpop.xlane.xlu0 %6236
        %v6238 = vsel %vm613, %v6228, 0.0
        %6239 = vadd.xlane.f32.xlu0 %v6238
        %v6240 = vpop.xlane.xlu0 %6239
        %v6241 = vsel %vm613, %v6229, 0.0
        %6242 = vadd.xlane.f32.xlu0 %v6241
        %v6243 = vpop.xlane.xlu0 %6242
        %v6244 = vsel %vm613, %v6230, 0.0
        %6245 = vadd.xlane.f32.xlu0 %v6244
        %v6246 = vpop.xlane.xlu0 %6245
        %v6247 = vsel %vm613, %v6231, 0.0
        %6248 = vadd.xlane.f32.xlu0 %v6247
        %v6249 = vpop.xlane.xlu0 %6248
        %v6250 = vsel %vm613, %v6232, 0.0
        %6251 = vadd.xlane.f32.xlu0 %v6250
        %v6252 = vpop.xlane.xlu0 %6251
        %v6253 = vsel %vm613, %v6233, 0.0
        %6254 = vadd.xlane.f32.xlu0 %v6253
        %v6255 = vpop.xlane.xlu0 %6254
        %v6256 = vsel %vm613, %v6234, 0.0
        %6257 = vadd.xlane.f32.xlu0 %v6256
        %v6258 = vpop.xlane.xlu0 %6257
        %v6259 = vsel %vm4174, %v6109, %v6141
        %v6260 = vsel %vm4174, %v6112, %v6144
        %v6261 = vsel %vm4174, %v6115, %v6147
        %v6262 = vsel %vm4174, %v6118, %v6150
        %v6263 = vsel %vm4174, %v6121, %v6153
        %v6264 = vsel %vm4174, %v6124, %v6156
        %v6265 = vsel %vm4174, %v6127, %v6159
        %v6266 = vsel %vm4174, %v6130, %v6162
        %v6267 = vsel %vm4183, %v6259, %v6173
        %v6268 = vsel %vm4183, %v6260, %v6176
        %v6269 = vsel %vm4183, %v6261, %v6179
        %v6270 = vsel %vm4183, %v6262, %v6182
        %v6271 = vsel %vm4183, %v6263, %v6185
        %v6272 = vsel %vm4183, %v6264, %v6188
        %v6273 = vsel %vm4183, %v6265, %v6191
        %v6274 = vsel %vm4183, %v6266, %v6194
        %v6275 = vsel %vm4192, %v6267, %v6205
        %v6276 = vsel %vm4192, %v6268, %v6208
        %v6277 = vsel %vm4192, %v6269, %v6211
        %v6278 = vsel %vm4192, %v6270, %v6214
        %v6279 = vsel %vm4192, %v6271, %v6217
        %v6280 = vsel %vm4192, %v6272, %v6220
        %v6281 = vsel %vm4192, %v6273, %v6223
        %v6282 = vsel %vm4192, %v6274, %v6226
        %v6283 = vsel %vm4201, %v6275, %v6237
        %v6284 = vsel %vm4201, %v6276, %v6240
        %v6285 = vsel %vm4201, %v6277, %v6243
        %v6286 = vsel %vm4201, %v6278, %v6246
        %v6287 = vsel %vm4201, %v6279, %v6249
        %v6288 = vsel %vm4201, %v6280, %v6252
        %v6289 = vsel %vm4201, %v6281, %v6255
        %v6290 = vsel %vm4201, %v6282, %v6258
        %v6291 = vsel %vm4210, %v6283, -inf
        %6292 = vmax.xlane.f32.xlu0 %v6291
        %v6293 = vpop.xlane.xlu0 %6292
        %v6294 = vsel %vm4210, %v6284, -inf
        %6295 = vmax.xlane.f32.xlu0 %v6294
        %v6296 = vpop.xlane.xlu0 %6295
        %v6297 = vsel %vm4210, %v6285, -inf
        %6298 = vmax.xlane.f32.xlu0 %v6297
        %v6299 = vpop.xlane.xlu0 %6298
        %v6300 = vsel %vm4210, %v6286, -inf
        %6301 = vmax.xlane.f32.xlu0 %v6300
        %v6302 = vpop.xlane.xlu0 %6301
        %v6303 = vsel %vm4210, %v6287, -inf
        %6304 = vmax.xlane.f32.xlu0 %v6303
        %v6305 = vpop.xlane.xlu0 %6304
        %v6306 = vsel %vm4210, %v6288, -inf
        %6307 = vmax.xlane.f32.xlu0 %v6306
        %v6308 = vpop.xlane.xlu0 %6307
        %v6309 = vsel %vm4210, %v6289, -inf
        %6310 = vmax.xlane.f32.xlu0 %v6309
        %v6311 = vpop.xlane.xlu0 %6310
        %v6312 = vsel %vm4210, %v6290, -inf
        %6313 = vmax.xlane.f32.xlu0 %v6312
        %v6314 = vpop.xlane.xlu0 %6313
        %v6315 = vsub.f32 %v6283, %v6293
        %v6316 = vsub.f32 %v6284, %v6296
        %v6317 = vsub.f32 %v6285, %v6299
        %v6318 = vsub.f32 %v6286, %v6302
        %v6319 = vsub.f32 %v6287, %v6305
        %v6320 = vsub.f32 %v6288, %v6308
        %v6321 = vsub.f32 %v6289, %v6311
        %v6322 = vsub.f32 %v6290, %v6314
        %v6323 = vmul.f32 %v6315, 1.442695
        %v6324 = vpow.pop %v6323
        %v6325 = vmul.f32 %v6316, 1.442695
        %v6326 = vpow.pop %v6325
        %v6327 = vmul.f32 %v6317, 1.442695
        %v6328 = vpow.pop %v6327
        %v6329 = vmul.f32 %v6318, 1.442695
        %v6330 = vpow.pop %v6329
        %v6331 = vmul.f32 %v6319, 1.442695
        %v6332 = vpow.pop %v6331
        %v6333 = vmul.f32 %v6320, 1.442695
        %v6334 = vpow.pop %v6333
        %v6335 = vmul.f32 %v6321, 1.442695
        %v6336 = vpow.pop %v6335
        %v6337 = vmul.f32 %v6322, 1.442695
        %v6338 = vpow.pop %v6337
        %v6339 = vsel %vm4210, %v6324, 0.0
        %6340 = vadd.xlane.f32.xlu0 %v6339
        %v6341 = vpop.xlane.xlu0 %6340
        %v6342 = vsel %vm4210, %v6326, 0.0
        %6343 = vadd.xlane.f32.xlu0 %v6342
        %v6344 = vpop.xlane.xlu0 %6343
        %v6345 = vsel %vm4210, %v6328, 0.0
        %6346 = vadd.xlane.f32.xlu0 %v6345
        %v6347 = vpop.xlane.xlu0 %6346
        %v6348 = vsel %vm4210, %v6330, 0.0
        %6349 = vadd.xlane.f32.xlu0 %v6348
        %v6350 = vpop.xlane.xlu0 %6349
        %v6351 = vsel %vm4210, %v6332, 0.0
        %6352 = vadd.xlane.f32.xlu0 %v6351
        %v6353 = vpop.xlane.xlu0 %6352
        %v6354 = vsel %vm4210, %v6334, 0.0
        %6355 = vadd.xlane.f32.xlu0 %v6354
        %v6356 = vpop.xlane.xlu0 %6355
        %v6357 = vsel %vm4210, %v6336, 0.0
        %6358 = vadd.xlane.f32.xlu0 %v6357
        %v6359 = vpop.xlane.xlu0 %6358
        %v6360 = vsel %vm4210, %v6338, 0.0
        %6361 = vadd.xlane.f32.xlu0 %v6360
        %v6362 = vpop.xlane.xlu0 %6361
        %v6363 = vrcp.pop %v6341
        %v6364 = vrcp.pop %v6344
        %v6365 = vrcp.pop %v6347
        %v6366 = vrcp.pop %v6350
        %v6367 = vrcp.pop %v6353
        %v6368 = vrcp.pop %v6356
        %v6369 = vrcp.pop %v6359
        %v6370 = vrcp.pop %v6362
        %v6371 = vmul.f32 %v6324, %v6363
        %v6372 = vmul.f32 %v6326, %v6364
        %v6373 = vmul.f32 %v6328, %v6365
        %v6374 = vmul.f32 %v6330, %v6366
        %v6375 = vmul.f32 %v6332, %v6367
        %v6376 = vmul.f32 %v6334, %v6368
        %v6377 = vmul.f32 %v6336, %v6369
        %v6378 = vmul.f32 %v6338, %v6370
        %6380 = vset.pattern.permute.xlu0 0
        %6381 = vperm.xlu0 %6380, %v6371
        %v6382 = vpop.permute.xlu0 %6381
        %6385 = vset.pattern.permute.xlu0 0
        %6386 = vperm.xlu0 %6385, %v6372
        %v6387 = vpop.permute.xlu0 %6386
        %6390 = vset.pattern.permute.xlu0 0
        %6391 = vperm.xlu0 %6390, %v6373
        %v6392 = vpop.permute.xlu0 %6391
        %6395 = vset.pattern.permute.xlu0 0
        %6396 = vperm.xlu0 %6395, %v6374
        %v6397 = vpop.permute.xlu0 %6396
        %6400 = vset.pattern.permute.xlu0 0
        %6401 = vperm.xlu0 %6400, %v6375
        %v6402 = vpop.permute.xlu0 %6401
        %6405 = vset.pattern.permute.xlu0 0
        %6406 = vperm.xlu0 %6405, %v6376
        %v6407 = vpop.permute.xlu0 %6406
        %6410 = vset.pattern.permute.xlu0 0
        %6411 = vperm.xlu0 %6410, %v6377
        %v6412 = vpop.permute.xlu0 %6411
        %6415 = vset.pattern.permute.xlu0 0
        %6416 = vperm.xlu0 %6415, %v6378
        %v6417 = vpop.permute.xlu0 %6416
        %v6419 = vmul.f32 %v6382, %v3735
        %v6420 = vmul.f32 %v6387, %v3738
        %v6421 = vmul.f32 %v6392, %v3741
        %v6422 = vmul.f32 %v6397, %v3744
        %v6423 = vmul.f32 %v6402, %v3747
        %v6424 = vmul.f32 %v6407, %v3750
        %v6425 = vmul.f32 %v6412, %v3753
        %v6426 = vmul.f32 %v6417, %v3756
        %6427 = vset.pattern.permute.xlu0 1
        %6428 = vperm.xlu0 %6427, %v6371
        %v6429 = vpop.permute.xlu0 %6428
        %6431 = vset.pattern.permute.xlu0 1
        %6432 = vperm.xlu0 %6431, %v6372
        %v6433 = vpop.permute.xlu0 %6432
        %6435 = vset.pattern.permute.xlu0 1
        %6436 = vperm.xlu0 %6435, %v6373
        %v6437 = vpop.permute.xlu0 %6436
        %6439 = vset.pattern.permute.xlu0 1
        %6440 = vperm.xlu0 %6439, %v6374
        %v6441 = vpop.permute.xlu0 %6440
        %6443 = vset.pattern.permute.xlu0 1
        %6444 = vperm.xlu0 %6443, %v6375
        %v6445 = vpop.permute.xlu0 %6444
        %6447 = vset.pattern.permute.xlu0 1
        %6448 = vperm.xlu0 %6447, %v6376
        %v6449 = vpop.permute.xlu0 %6448
        %6451 = vset.pattern.permute.xlu0 1
        %6452 = vperm.xlu0 %6451, %v6377
        %v6453 = vpop.permute.xlu0 %6452
        %6455 = vset.pattern.permute.xlu0 1
        %6456 = vperm.xlu0 %6455, %v6378
        %v6457 = vpop.permute.xlu0 %6456
        %v6459 = vmul.f32 %v6429, %v3759
        %v6460 = vmul.f32 %v6433, %v3762
        %v6461 = vmul.f32 %v6437, %v3765
        %v6462 = vmul.f32 %v6441, %v3768
        %v6463 = vmul.f32 %v6445, %v3771
        %v6464 = vmul.f32 %v6449, %v3774
        %v6465 = vmul.f32 %v6453, %v3777
        %v6466 = vmul.f32 %v6457, %v3780
        %v6467 = vadd.f32 %v6419, %v6459
        %v6468 = vadd.f32 %v6420, %v6460
        %v6469 = vadd.f32 %v6421, %v6461
        %v6470 = vadd.f32 %v6422, %v6462
        %v6471 = vadd.f32 %v6423, %v6463
        %v6472 = vadd.f32 %v6424, %v6464
        %v6473 = vadd.f32 %v6425, %v6465
        %v6474 = vadd.f32 %v6426, %v6466
        %6475 = vset.pattern.permute.xlu0 2
        %6476 = vperm.xlu0 %6475, %v6371
        %v6477 = vpop.permute.xlu0 %6476
        %6479 = vset.pattern.permute.xlu0 2
        %6480 = vperm.xlu0 %6479, %v6372
        %v6481 = vpop.permute.xlu0 %6480
        %6483 = vset.pattern.permute.xlu0 2
        %6484 = vperm.xlu0 %6483, %v6373
        %v6485 = vpop.permute.xlu0 %6484
        %6487 = vset.pattern.permute.xlu0 2
        %6488 = vperm.xlu0 %6487, %v6374
        %v6489 = vpop.permute.xlu0 %6488
        %6491 = vset.pattern.permute.xlu0 2
        %6492 = vperm.xlu0 %6491, %v6375
        %v6493 = vpop.permute.xlu0 %6492
        %6495 = vset.pattern.permute.xlu0 2
        %6496 = vperm.xlu0 %6495, %v6376
        %v6497 = vpop.permute.xlu0 %6496
        %6499 = vset.pattern.permute.xlu0 2
        %6500 = vperm.xlu0 %6499, %v6377
        %v6501 = vpop.permute.xlu0 %6500
        %6503 = vset.pattern.permute.xlu0 2
        %6504 = vperm.xlu0 %6503, %v6378
        %v6505 = vpop.permute.xlu0 %6504
        %v6507 = vmul.f32 %v6477, %v3783
        %v6508 = vmul.f32 %v6481, %v3786
        %v6509 = vmul.f32 %v6485, %v3789
        %v6510 = vmul.f32 %v6489, %v3792
        %v6511 = vmul.f32 %v6493, %v3795
        %v6512 = vmul.f32 %v6497, %v3798
        %v6513 = vmul.f32 %v6501, %v3801
        %v6514 = vmul.f32 %v6505, %v3804
        %v6515 = vadd.f32 %v6467, %v6507
        %v6516 = vadd.f32 %v6468, %v6508
        %v6517 = vadd.f32 %v6469, %v6509
        %v6518 = vadd.f32 %v6470, %v6510
        %v6519 = vadd.f32 %v6471, %v6511
        %v6520 = vadd.f32 %v6472, %v6512
        %v6521 = vadd.f32 %v6473, %v6513
        %v6522 = vadd.f32 %v6474, %v6514
        %6523 = vset.pattern.permute.xlu0 3
        %6524 = vperm.xlu0 %6523, %v6371
        %v6525 = vpop.permute.xlu0 %6524
        %6527 = vset.pattern.permute.xlu0 3
        %6528 = vperm.xlu0 %6527, %v6372
        %v6529 = vpop.permute.xlu0 %6528
        %6531 = vset.pattern.permute.xlu0 3
        %6532 = vperm.xlu0 %6531, %v6373
        %v6533 = vpop.permute.xlu0 %6532
        %6535 = vset.pattern.permute.xlu0 3
        %6536 = vperm.xlu0 %6535, %v6374
        %v6537 = vpop.permute.xlu0 %6536
        %6539 = vset.pattern.permute.xlu0 3
        %6540 = vperm.xlu0 %6539, %v6375
        %v6541 = vpop.permute.xlu0 %6540
        %6543 = vset.pattern.permute.xlu0 3
        %6544 = vperm.xlu0 %6543, %v6376
        %v6545 = vpop.permute.xlu0 %6544
        %6547 = vset.pattern.permute.xlu0 3
        %6548 = vperm.xlu0 %6547, %v6377
        %v6549 = vpop.permute.xlu0 %6548
        %6551 = vset.pattern.permute.xlu0 3
        %6552 = vperm.xlu0 %6551, %v6378
        %v6553 = vpop.permute.xlu0 %6552
        %v6555 = vmul.f32 %v6525, %v3807
        %v6556 = vmul.f32 %v6529, %v3810
        %v6557 = vmul.f32 %v6533, %v3813
        %v6558 = vmul.f32 %v6537, %v3816
        %v6559 = vmul.f32 %v6541, %v3819
        %v6560 = vmul.f32 %v6545, %v3822
        %v6561 = vmul.f32 %v6549, %v3825
        %v6562 = vmul.f32 %v6553, %v3828
        %v6563 = vadd.f32 %v6515, %v6555
        %v6564 = vadd.f32 %v6516, %v6556
        %v6565 = vadd.f32 %v6517, %v6557
        %v6566 = vadd.f32 %v6518, %v6558
        %v6567 = vadd.f32 %v6519, %v6559
        %v6568 = vadd.f32 %v6520, %v6560
        %v6569 = vadd.f32 %v6521, %v6561
        %v6570 = vadd.f32 %v6522, %v6562
        %6571 = vset.pattern.permute.xlu0 4
        %6572 = vperm.xlu0 %6571, %v6371
        %v6573 = vpop.permute.xlu0 %6572
        %6575 = vset.pattern.permute.xlu0 4
        %6576 = vperm.xlu0 %6575, %v6372
        %v6577 = vpop.permute.xlu0 %6576
        %6579 = vset.pattern.permute.xlu0 4
        %6580 = vperm.xlu0 %6579, %v6373
        %v6581 = vpop.permute.xlu0 %6580
        %6583 = vset.pattern.permute.xlu0 4
        %6584 = vperm.xlu0 %6583, %v6374
        %v6585 = vpop.permute.xlu0 %6584
        %6587 = vset.pattern.permute.xlu0 4
        %6588 = vperm.xlu0 %6587, %v6375
        %v6589 = vpop.permute.xlu0 %6588
        %6591 = vset.pattern.permute.xlu0 4
        %6592 = vperm.xlu0 %6591, %v6376
        %v6593 = vpop.permute.xlu0 %6592
        %6595 = vset.pattern.permute.xlu0 4
        %6596 = vperm.xlu0 %6595, %v6377
        %v6597 = vpop.permute.xlu0 %6596
        %6599 = vset.pattern.permute.xlu0 4
        %6600 = vperm.xlu0 %6599, %v6378
        %v6601 = vpop.permute.xlu0 %6600
        %v6603 = vmul.f32 %v6573, %v3831
        %v6604 = vmul.f32 %v6577, %v3834
        %v6605 = vmul.f32 %v6581, %v3837
        %v6606 = vmul.f32 %v6585, %v3840
        %v6607 = vmul.f32 %v6589, %v3843
        %v6608 = vmul.f32 %v6593, %v3846
        %v6609 = vmul.f32 %v6597, %v3849
        %v6610 = vmul.f32 %v6601, %v3852
        %v6611 = vadd.f32 %v6563, %v6603
        %v6612 = vadd.f32 %v6564, %v6604
        %v6613 = vadd.f32 %v6565, %v6605
        %v6614 = vadd.f32 %v6566, %v6606
        %v6615 = vadd.f32 %v6567, %v6607
        %v6616 = vadd.f32 %v6568, %v6608
        %v6617 = vadd.f32 %v6569, %v6609
        %v6618 = vadd.f32 %v6570, %v6610
        %v6619 = vld [vmem:[#allocation14] sm:$0xff]
        %v6620 = vld [vmem:[#allocation14 + $0x8] sm:$0xff]
        %v6621 = vld [vmem:[#allocation14 + $0x10] sm:$0xff]
        %v6622 = vld [vmem:[#allocation14 + $0x18] sm:$0xff]
        %6663 = vrot.lane.b32.xlu0 %v4531, 64
        %v6664 = vpop.permute.xlu0 %6663
        %6665 = vrot.lane.b32.xlu0 %v4532, 64
        %v6666 = vpop.permute.xlu0 %6665
        %6667 = vrot.lane.b32.xlu0 %v4533, 64
        %v6668 = vpop.permute.xlu0 %6667
        %6669 = vrot.lane.b32.xlu0 %v4534, 64
        %v6670 = vpop.permute.xlu0 %6669
        %6671 = vrot.lane.b32.xlu0 %v4535, 64
        %v6672 = vpop.permute.xlu0 %6671
        %6673 = vrot.lane.b32.xlu0 %v4536, 64
        %v6674 = vpop.permute.xlu0 %6673
        %6675 = vrot.lane.b32.xlu0 %v4537, 64
        %v6676 = vpop.permute.xlu0 %6675
        %6677 = vrot.lane.b32.xlu0 %v4538, 64
        %v6678 = vpop.permute.xlu0 %6677
        %6679 = vrot.lane.b32.xlu0 %v5051, 64
        %v6680 = vpop.permute.xlu0 %6679
        %6681 = vrot.lane.b32.xlu0 %v5052, 64
        %v6682 = vpop.permute.xlu0 %6681
        %6683 = vrot.lane.b32.xlu0 %v5053, 64
        %v6684 = vpop.permute.xlu0 %6683
        %6685 = vrot.lane.b32.xlu0 %v5054, 64
        %v6686 = vpop.permute.xlu0 %6685
        %6687 = vrot.lane.b32.xlu0 %v5055, 64
        %v6688 = vpop.permute.xlu0 %6687
        %6689 = vrot.lane.b32.xlu0 %v5056, 64
        %v6690 = vpop.permute.xlu0 %6689
        %6691 = vrot.lane.b32.xlu0 %v5057, 64
        %v6692 = vpop.permute.xlu0 %6691
        %6693 = vrot.lane.b32.xlu0 %v5058, 64
        %v6694 = vpop.permute.xlu0 %6693
        %6695 = vrot.lane.b32.xlu0 %v5571, 64
        %v6696 = vpop.permute.xlu0 %6695
        %6697 = vrot.lane.b32.xlu0 %v5572, 64
        %v6698 = vpop.permute.xlu0 %6697
        %6699 = vrot.lane.b32.xlu0 %v5573, 64
        %v6700 = vpop.permute.xlu0 %6699
        %6701 = vrot.lane.b32.xlu0 %v5574, 64
        %v6702 = vpop.permute.xlu0 %6701
        %6703 = vrot.lane.b32.xlu0 %v5575, 64
        %v6704 = vpop.permute.xlu0 %6703
        %6705 = vrot.lane.b32.xlu0 %v5576, 64
        %v6706 = vpop.permute.xlu0 %6705
        %6707 = vrot.lane.b32.xlu0 %v5577, 64
        %v6708 = vpop.permute.xlu0 %6707
        %6709 = vrot.lane.b32.xlu0 %v5578, 64
        %v6710 = vpop.permute.xlu0 %6709
        %6711 = vrot.lane.b32.xlu0 %v6091, 64
        %v6712 = vpop.permute.xlu0 %6711
        %6713 = vrot.lane.b32.xlu0 %v6092, 64
        %v6714 = vpop.permute.xlu0 %6713
        %6715 = vrot.lane.b32.xlu0 %v6093, 64
        %v6716 = vpop.permute.xlu0 %6715
        %6717 = vrot.lane.b32.xlu0 %v6094, 64
        %v6718 = vpop.permute.xlu0 %6717
        %6719 = vrot.lane.b32.xlu0 %v6095, 64
        %v6720 = vpop.permute.xlu0 %6719
        %6721 = vrot.lane.b32.xlu0 %v6096, 64
        %v6722 = vpop.permute.xlu0 %6721
        %6723 = vrot.lane.b32.xlu0 %v6097, 64
        %v6724 = vpop.permute.xlu0 %6723
        %6725 = vrot.lane.b32.xlu0 %v6098, 64
        %v6726 = vpop.permute.xlu0 %6725
        %6727 = vrot.lane.b32.xlu0 %v6611, 64
        %v6728 = vpop.permute.xlu0 %6727
        %6729 = vrot.lane.b32.xlu0 %v6612, 64
        %v6730 = vpop.permute.xlu0 %6729
        %6731 = vrot.lane.b32.xlu0 %v6613, 64
        %v6732 = vpop.permute.xlu0 %6731
        %6733 = vrot.lane.b32.xlu0 %v6614, 64
        %v6734 = vpop.permute.xlu0 %6733
        %6735 = vrot.lane.b32.xlu0 %v6615, 64
        %v6736 = vpop.permute.xlu0 %6735
        %6737 = vrot.lane.b32.xlu0 %v6616, 64
        %v6738 = vpop.permute.xlu0 %6737
        %6739 = vrot.lane.b32.xlu0 %v6617, 64
        %v6740 = vpop.permute.xlu0 %6739
        %6741 = vrot.lane.b32.xlu0 %v6618, 64
        %v6742 = vpop.permute.xlu0 %6741
        %v6743 = vsel %vm613, %v6664, 0
        %v6745 = vsel %vm613, %v6666, 0
        %v6747 = vsel %vm613, %v6668, 0
        %v6749 = vsel %vm613, %v6670, 0
        %v6751 = vsel %vm613, %v6672, 0
        %v6753 = vsel %vm613, %v6674, 0
        %v6755 = vsel %vm613, %v6676, 0
        %v6757 = vsel %vm613, %v6678, 0
        %v6759 = vsel %vm613, %v6680, 0
        %v6761 = vsel %vm613, %v6682, 0
        %v6763 = vsel %vm613, %v6684, 0
        %v6765 = vsel %vm613, %v6686, 0
        %v6767 = vsel %vm613, %v6688, 0
        %v6769 = vsel %vm613, %v6690, 0
        %v6771 = vsel %vm613, %v6692, 0
        %v6773 = vsel %vm613, %v6694, 0
        %v6775 = vsel %vm613, %v6696, 0
        %v6777 = vsel %vm613, %v6698, 0
        %v6779 = vsel %vm613, %v6700, 0
        %v6781 = vsel %vm613, %v6702, 0
        %v6783 = vsel %vm613, %v6704, 0
        %v6785 = vsel %vm613, %v6706, 0
        %v6787 = vsel %vm613, %v6708, 0
        %v6789 = vsel %vm613, %v6710, 0
        %v6791 = vsel %vm613, %v6712, 0
        %v6793 = vsel %vm613, %v6714, 0
        %v6795 = vsel %vm613, %v6716, 0
        %v6797 = vsel %vm613, %v6718, 0
        %v6799 = vsel %vm613, %v6720, 0
        %v6801 = vsel %vm613, %v6722, 0
        %v6803 = vsel %vm613, %v6724, 0
        %v6805 = vsel %vm613, %v6726, 0
        %v6807 = vsel %vm613, %v6728, 0
        %v6809 = vsel %vm613, %v6730, 0
        %v6811 = vsel %vm613, %v6732, 0
        %v6813 = vsel %vm613, %v6734, 0
        %v6815 = vsel %vm613, %v6736, 0
        %v6817 = vsel %vm613, %v6738, 0
        %v6819 = vsel %vm613, %v6740, 0
        %v6821 = vsel %vm613, %v6742, 0
        %6823 = vmatpush.msra.mxu0 0.0
        %6824 = vmatpush.msra.mxu0 0.0
        %6825 = vmatpush.msra.mxu0 0.0
        %6826 = vmatpush.msra.mxu0 0.0
        %6827 = vmatpush.msra.mxu0 0.0
        %6828 = vmatpush.msra.mxu0 0.0
        %6829 = vmatpush.msra.mxu0 0.0
        %6830 = vmatpush.msra.mxu0 0.0
        %6831 = vmatpush.msra.mxu0 0.0
        %6832 = vmatpush.msra.mxu0 0.0
        %6833 = vmatpush.msra.mxu0 0.0
        %6834 = vmatpush.msra.mxu0 0.0
        %6835 = vmatpush.msra.mxu0 %v6622
        %6836 = vmatpush.msra.mxu0 %v6621
        %6837 = vmatpush.msra.mxu0 %v6620
        %6838 = vmatpush.msra.mxu0 %v6619
        %6839 = vmatmul.f32.gmra.mxu0 %v6743
        %v6840 = vpop.f32.mrf.mxu0
        %v6841 = vadd.f32 0.0, %v6840
        %6842 = vmatmul.f32.gmra.mxu0 %v6745
        %v6843 = vpop.f32.mrf.mxu0
        %v6844 = vadd.f32 0.0, %v6843
        %6845 = vmatmul.f32.gmra.mxu0 %v6747
        %v6846 = vpop.f32.mrf.mxu0
        %v6847 = vadd.f32 0.0, %v6846
        %6848 = vmatmul.f32.gmra.mxu0 %v6749
        %v6849 = vpop.f32.mrf.mxu0
        %v6850 = vadd.f32 0.0, %v6849
        %6851 = vmatmul.f32.gmra.mxu0 %v6751
        %v6852 = vpop.f32.mrf.mxu0
        %v6853 = vadd.f32 0.0, %v6852
        %6854 = vmatmul.f32.gmra.mxu0 %v6753
        %v6855 = vpop.f32.mrf.mxu0
        %v6856 = vadd.f32 0.0, %v6855
        %6857 = vmatmul.f32.gmra.mxu0 %v6755
        %v6858 = vpop.f32.mrf.mxu0
        %v6859 = vadd.f32 0.0, %v6858
        %6860 = vmatmul.f32.gmra.mxu0 %v6757
        %v6861 = vpop.f32.mrf.mxu0
        %v6862 = vadd.f32 0.0, %v6861
        %6863 = vmatmul.f32.gmra.mxu0 %v6759
        %v6864 = vpop.f32.mrf.mxu0
        %v6865 = vadd.f32 0.0, %v6864
        %6866 = vmatmul.f32.gmra.mxu0 %v6761
        %v6867 = vpop.f32.mrf.mxu0
        %v6868 = vadd.f32 0.0, %v6867
        %6869 = vmatmul.f32.gmra.mxu0 %v6763
        %v6870 = vpop.f32.mrf.mxu0
        %v6871 = vadd.f32 0.0, %v6870
        %6872 = vmatmul.f32.gmra.mxu0 %v6765
        %v6873 = vpop.f32.mrf.mxu0
        %v6874 = vadd.f32 0.0, %v6873
        %6875 = vmatmul.f32.gmra.mxu0 %v6767
        %v6876 = vpop.f32.mrf.mxu0
        %v6877 = vadd.f32 0.0, %v6876
        %6878 = vmatmul.f32.gmra.mxu0 %v6769
        %v6879 = vpop.f32.mrf.mxu0
        %v6880 = vadd.f32 0.0, %v6879
        %6881 = vmatmul.f32.gmra.mxu0 %v6771
        %v6882 = vpop.f32.mrf.mxu0
        %v6883 = vadd.f32 0.0, %v6882
        %6884 = vmatmul.f32.gmra.mxu0 %v6773
        %v6885 = vpop.f32.mrf.mxu0
        %v6886 = vadd.f32 0.0, %v6885
        %6887 = vmatmul.f32.gmra.mxu0 %v6775
        %v6888 = vpop.f32.mrf.mxu0
        %v6889 = vadd.f32 0.0, %v6888
        %6890 = vmatmul.f32.gmra.mxu0 %v6777
        %v6891 = vpop.f32.mrf.mxu0
        %v6892 = vadd.f32 0.0, %v6891
        %6893 = vmatmul.f32.gmra.mxu0 %v6779
        %v6894 = vpop.f32.mrf.mxu0
        %v6895 = vadd.f32 0.0, %v6894
        %6896 = vmatmul.f32.gmra.mxu0 %v6781
        %v6897 = vpop.f32.mrf.mxu0
        %v6898 = vadd.f32 0.0, %v6897
        %6899 = vmatmul.f32.gmra.mxu0 %v6783
        %v6900 = vpop.f32.mrf.mxu0
        %v6901 = vadd.f32 0.0, %v6900
        %6902 = vmatmul.f32.gmra.mxu0 %v6785
        %v6903 = vpop.f32.mrf.mxu0
        %v6904 = vadd.f32 0.0, %v6903
        %6905 = vmatmul.f32.gmra.mxu0 %v6787
        %v6906 = vpop.f32.mrf.mxu0
        %v6907 = vadd.f32 0.0, %v6906
        %6908 = vmatmul.f32.gmra.mxu0 %v6789
        %v6909 = vpop.f32.mrf.mxu0
        %v6910 = vadd.f32 0.0, %v6909
        %6911 = vmatmul.f32.gmra.mxu0 %v6791
        %v6912 = vpop.f32.mrf.mxu0
        %v6913 = vadd.f32 0.0, %v6912
        %6914 = vmatmul.f32.gmra.mxu0 %v6793
        %v6915 = vpop.f32.mrf.mxu0
        %v6916 = vadd.f32 0.0, %v6915
        %6917 = vmatmul.f32.gmra.mxu0 %v6795
        %v6918 = vpop.f32.mrf.mxu0
        %v6919 = vadd.f32 0.0, %v6918
        %6920 = vmatmul.f32.gmra.mxu0 %v6797
        %v6921 = vpop.f32.mrf.mxu0
        %v6922 = vadd.f32 0.0, %v6921
        %6923 = vmatmul.f32.gmra.mxu0 %v6799
        %v6924 = vpop.f32.mrf.mxu0
        %v6925 = vadd.f32 0.0, %v6924
        %6926 = vmatmul.f32.gmra.mxu0 %v6801
        %v6927 = vpop.f32.mrf.mxu0
        %v6928 = vadd.f32 0.0, %v6927
        %6929 = vmatmul.f32.gmra.mxu0 %v6803
        %v6930 = vpop.f32.mrf.mxu0
        %v6931 = vadd.f32 0.0, %v6930
        %6932 = vmatmul.f32.gmra.mxu0 %v6805
        %v6933 = vpop.f32.mrf.mxu0
        %v6934 = vadd.f32 0.0, %v6933
        %6935 = vmatmul.f32.gmra.mxu0 %v6807
        %v6936 = vpop.f32.mrf.mxu0
        %v6937 = vadd.f32 0.0, %v6936
        %6938 = vmatmul.f32.gmra.mxu0 %v6809
        %v6939 = vpop.f32.mrf.mxu0
        %v6940 = vadd.f32 0.0, %v6939
        %6941 = vmatmul.f32.gmra.mxu0 %v6811
        %v6942 = vpop.f32.mrf.mxu0
        %v6943 = vadd.f32 0.0, %v6942
        %6944 = vmatmul.f32.gmra.mxu0 %v6813
        %v6945 = vpop.f32.mrf.mxu0
        %v6946 = vadd.f32 0.0, %v6945
        %6947 = vmatmul.f32.gmra.mxu0 %v6815
        %v6948 = vpop.f32.mrf.mxu0
        %v6949 = vadd.f32 0.0, %v6948
        %6950 = vmatmul.f32.gmra.mxu0 %v6817
        %v6951 = vpop.f32.mrf.mxu0
        %v6952 = vadd.f32 0.0, %v6951
        %6953 = vmatmul.f32.gmra.mxu0 %v6819
        %v6954 = vpop.f32.mrf.mxu0
        %v6955 = vadd.f32 0.0, %v6954
        %6956 = vmatmul.f32.gmra.mxu0 %v6821
        %v6957 = vpop.f32.mrf.mxu0
        %v6958 = vadd.f32 0.0, %v6957
        %6959 = vdwg.mxu0
        %v6960 = vadd.f32 %v571, %v6841
        %v6961 = vadd.f32 %v572, %v6844
        %v6962 = vadd.f32 %v573, %v6847
        %v6963 = vadd.f32 %v574, %v6850
        %v6964 = vadd.f32 %v575, %v6853
        %v6965 = vadd.f32 %v576, %v6856
        %v6966 = vadd.f32 %v577, %v6859
        %v6967 = vadd.f32 %v578, %v6862
        %v6968 = vadd.f32 %v579, %v6865
        %v6969 = vadd.f32 %v580, %v6868
        %v6970 = vadd.f32 %v581, %v6871
        %v6971 = vadd.f32 %v582, %v6874
        %v6972 = vadd.f32 %v583, %v6877
        %v6973 = vadd.f32 %v584, %v6880
        %v6974 = vadd.f32 %v585, %v6883
        %v6975 = vadd.f32 %v586, %v6886
        %v6976 = vadd.f32 %v587, %v6889
        %v6977 = vadd.f32 %v588, %v6892
        %v6978 = vadd.f32 %v589, %v6895
        %v6979 = vadd.f32 %v590, %v6898
        %v6980 = vadd.f32 %v591, %v6901
        %v6981 = vadd.f32 %v592, %v6904
        %v6982 = vadd.f32 %v593, %v6907
        %v6983 = vadd.f32 %v594, %v6910
        %v6984 = vadd.f32 %v595, %v6913
        %v6985 = vadd.f32 %v596, %v6916
        %v6986 = vadd.f32 %v597, %v6919
        %v6987 = vadd.f32 %v598, %v6922
        %v6988 = vadd.f32 %v599, %v6925
        %v6989 = vadd.f32 %v600, %v6928
        %v6990 = vadd.f32 %v601, %v6931
        %v6991 = vadd.f32 %v602, %v6934
        %v6992 = vadd.f32 %v603, %v6937
        %v6993 = vadd.f32 %v604, %v6940
        %v6994 = vadd.f32 %v605, %v6943
        %v6995 = vadd.f32 %v606, %v6946
        %v6996 = vadd.f32 %v607, %v6949
        %v6997 = vadd.f32 %v608, %v6952
        %v6998 = vadd.f32 %v609, %v6955
        %v6999 = vadd.f32 %v610, %v6958
        %v7000 = vld [vmem:[%s12] sm:$0x1]
        %v7002 = vperm.slane %v7000, 0
        %v7004 = vadd.f32 %v6960, %v7002
        %v7005 = vadd.f32 %v6961, %v7002
        %v7006 = vadd.f32 %v6962, %v7002
        %v7007 = vadd.f32 %v6963, %v7002
        %v7008 = vadd.f32 %v6964, %v7002
        %v7009 = vadd.f32 %v6965, %v7002
        %v7010 = vadd.f32 %v6966, %v7002
        %v7011 = vadd.f32 %v6967, %v7002
        %v7012 = vadd.f32 %v6968, %v7002
        %v7013 = vadd.f32 %v6969, %v7002
        %v7014 = vadd.f32 %v6970, %v7002
        %v7015 = vadd.f32 %v6971, %v7002
        %v7016 = vadd.f32 %v6972, %v7002
        %v7017 = vadd.f32 %v6973, %v7002
        %v7018 = vadd.f32 %v6974, %v7002
        %v7019 = vadd.f32 %v6975, %v7002
        %v7020 = vadd.f32 %v6976, %v7002
        %v7021 = vadd.f32 %v6977, %v7002
        %v7022 = vadd.f32 %v6978, %v7002
        %v7023 = vadd.f32 %v6979, %v7002
        %v7024 = vadd.f32 %v6980, %v7002
        %v7025 = vadd.f32 %v6981, %v7002
        %v7026 = vadd.f32 %v6982, %v7002
        %v7027 = vadd.f32 %v6983, %v7002
        %v7028 = vadd.f32 %v6984, %v7002
        %v7029 = vadd.f32 %v6985, %v7002
        %v7030 = vadd.f32 %v6986, %v7002
        %v7031 = vadd.f32 %v6987, %v7002
        %v7032 = vadd.f32 %v6988, %v7002
        %v7033 = vadd.f32 %v6989, %v7002
        %v7034 = vadd.f32 %v6990, %v7002
        %v7035 = vadd.f32 %v6991, %v7002
        %v7036 = vadd.f32 %v6992, %v7002
        %v7037 = vadd.f32 %v6993, %v7002
        %v7038 = vadd.f32 %v6994, %v7002
        %v7039 = vadd.f32 %v6995, %v7002
        %v7040 = vadd.f32 %v6996, %v7002
        %v7041 = vadd.f32 %v6997, %v7002
        %v7042 = vadd.f32 %v6998, %v7002
        %v7043 = vadd.f32 %v6999, %v7002
        %7044 = vst.msk [vmem:[%s570] sm:$0xff] %vm613, %v7004
        %7045 = vst.msk [vmem:[%s570 + $0x8] sm:$0xff] %vm613, %v7005
        %7046 = vst.msk [vmem:[%s570 + $0x10] sm:$0xff] %vm613, %v7006
        %7047 = vst.msk [vmem:[%s570 + $0x18] sm:$0xff] %vm613, %v7007
        %7048 = vst.msk [vmem:[%s570 + $0x20] sm:$0xff] %vm613, %v7008
        %7049 = vst.msk [vmem:[%s570 + $0x28] sm:$0xff] %vm613, %v7009
        %7050 = vst.msk [vmem:[%s570 + $0x30] sm:$0xff] %vm613, %v7010
        %7051 = vst.msk [vmem:[%s570 + $0x38] sm:$0xff] %vm613, %v7011
        %7052 = vst.msk [vmem:[%s570 + $0x40] sm:$0xff] %vm613, %v7012
        %7053 = vst.msk [vmem:[%s570 + $0x48] sm:$0xff] %vm613, %v7013
        %7054 = vst.msk [vmem:[%s570 + $0x50] sm:$0xff] %vm613, %v7014
        %7055 = vst.msk [vmem:[%s570 + $0x58] sm:$0xff] %vm613, %v7015
        %7056 = vst.msk [vmem:[%s570 + $0x60] sm:$0xff] %vm613, %v7016
        %7057 = vst.msk [vmem:[%s570 + $0x68] sm:$0xff] %vm613, %v7017
        %7058 = vst.msk [vmem:[%s570 + $0x70] sm:$0xff] %vm613, %v7018
        %7059 = vst.msk [vmem:[%s570 + $0x78] sm:$0xff] %vm613, %v7019
        %7060 = vst.msk [vmem:[%s570 + $0x80] sm:$0xff] %vm613, %v7020
        %7061 = vst.msk [vmem:[%s570 + $0x88] sm:$0xff] %vm613, %v7021
        %7062 = vst.msk [vmem:[%s570 + $0x90] sm:$0xff] %vm613, %v7022
        %7063 = vst.msk [vmem:[%s570 + $0x98] sm:$0xff] %vm613, %v7023
        %7064 = vst.msk [vmem:[%s570 + $0xa0] sm:$0xff] %vm613, %v7024
        %7065 = vst.msk [vmem:[%s570 + $0xa8] sm:$0xff] %vm613, %v7025
        %7066 = vst.msk [vmem:[%s570 + $0xb0] sm:$0xff] %vm613, %v7026
        %7067 = vst.msk [vmem:[%s570 + $0xb8] sm:$0xff] %vm613, %v7027
        %7068 = vst.msk [vmem:[%s570 + $0xc0] sm:$0xff] %vm613, %v7028
        %7069 = vst.msk [vmem:[%s570 + $0xc8] sm:$0xff] %vm613, %v7029
        %7070 = vst.msk [vmem:[%s570 + $0xd0] sm:$0xff] %vm613, %v7030
        %7071 = vst.msk [vmem:[%s570 + $0xd8] sm:$0xff] %vm613, %v7031
        %7072 = vst.msk [vmem:[%s570 + $0xe0] sm:$0xff] %vm613, %v7032
        %7073 = vst.msk [vmem:[%s570 + $0xe8] sm:$0xff] %vm613, %v7033
        %7074 = vst.msk [vmem:[%s570 + $0xf0] sm:$0xff] %vm613, %v7034
        %7075 = vst.msk [vmem:[%s570 + $0xf8] sm:$0xff] %vm613, %v7035
        %7076 = vst.msk [vmem:[%s570 + $0x100] sm:$0xff] %vm613, %v7036
        %7077 = vst.msk [vmem:[%s570 + $0x108] sm:$0xff] %vm613, %v7037
        %7078 = vst.msk [vmem:[%s570 + $0x110] sm:$0xff] %vm613, %v7038
        %7079 = vst.msk [vmem:[%s570 + $0x118] sm:$0xff] %vm613, %v7039
        %7080 = vst.msk [vmem:[%s570 + $0x120] sm:$0xff] %vm613, %v7040
        %7081 = vst.msk [vmem:[%s570 + $0x128] sm:$0xff] %vm613, %v7041
        %7082 = vst.msk [vmem:[%s570 + $0x130] sm:$0xff] %vm613, %v7042
        %7083 = vst.msk [vmem:[%s570 + $0x138] sm:$0xff] %vm613, %v7043
        %s7084 = sand.u32 %s320, 1
        %s7085 = scalar_lea.sflag [#allocation4], %s7084
        %s7086 = sand.u32 %s320, 1
        %s7087 = smul.addr %s7086, 320
        %s7088 = scalar_lea.vmem [#allocation16], %s7087
        // Predicated region
        $region105: #{_lambda_.1} parent=71 // pred_check
          %p7089 = pneg %p330
        $region106: #{_lambda_.1} parent=71 // pred_check_branch
          %7091 = sbr.rel (%p7089) target = $region108
        $region107: #{_lambda_.1} parent=71 // pred_region
          %7093 = vsyncadd %s7085, 0
          %s7094 = smul.addr %s34, 40
          %s7095 = smul.addr %s7094, 8
          %s7096 = scalar_lea.hbm %s13, %s7095
          %s7097 = sshll.u32 %s7088, 4
          %s7098 = int_to_ptr.vmem [resolvable:$true] %s7097
          %s7099 = sshll.u32 %s7096, 4
          %s7100 = int_to_ptr.hbm [resolvable:$true] %s7099
          %7105 = dma.vmem_to_hbm [thread:$0]  %s7098, 5120, %s7100, %s7085, 128, 128, 8
        $region108: #{_lambda_.1} parent=71 // pred_fallthru
          _
      $region72: #{_lambda_.1} parent=5 // pred_fallthru
        _
      %p7106 = scmp.le.s32.totalorder 2, %s29
      // Predicated region
      $region109: #{_lambda_.1} parent=5 // pred_check
        %p7107 = pneg %p7106
      $region110: #{_lambda_.1} parent=5 // pred_check_branch
        %7109 = sbr.rel (%p7107) target = $region112
      $region111: #{_lambda_.1} parent=5 // pred_region
        %s7110 = ssub.s32 %s29, 2
        // Predicated region
        $region113: #{_lambda_.1} parent=111 // pred_check
          %p7111 = pneg %p336
        $region114: #{_lambda_.1} parent=111 // pred_check_branch
          %7113 = sbr.rel (%p7111) target = $region116
        $region115: #{_lambda_.1} parent=111 // pred_region
          %s7114 = sand.u32 %s321, 1
          %s7115 = scalar_lea.sflag [#allocation4], %s7114
          %s7116 = sand.u32 %s321, 1
          %s7117 = smul.addr %s7116, 320
          %s7118 = scalar_lea.vmem [#allocation16], %s7117
          %7120 = dma.done %s7115, 5120
        $region116: #{_lambda_.1} parent=111 // pred_fallthru
          _
      $region112: #{_lambda_.1} parent=5 // pred_fallthru
        _
    $region6: #{_lambda_.1} parent=1 // loop_footer
      %s33 = sadd.s32 1, %s29
    $region7: #{_lambda_.1} parent=1 // loop_footer_branch
      %28 = sbr.rel target = $region3
    $region8: #{_lambda_.1} parent=1 // loop_exit
      _
    %7121 = vsyncpa [#allocation3], 1
    %s7122 = scalar_lea.sflag [#allocation3], 1
    %7123 = vsyncpa %s7122, 1
    %7124 = vsyncpa [#allocation6], 1
    %7125 = vsyncpa [#allocation9], 1
    %7126 = vsyncpa [#allocation12], 1
    %7127 = vsyncpa [#allocation15], 1
    %7128 = vsyncpa [#allocation4], 1
    %s7129 = scalar_lea.sflag [#allocation4], 1
    %7130 = vsyncpa %s7129, 1

</llo_original>
